<compile_context>
chip_gen: v7x
topology: tpu7x:2x2x1
jax: 0.10.0
libtpu: 0.0.40
codegen_flags: <defaults>
</compile_context>

<pallas_src>
import functools

import jax
import jax.numpy as jnp
from jax.experimental import pallas as pl
from jax.experimental.pallas import tpu as pltpu

B_TILE = 8     # batch rows per grid step (sublane-aligned)
LANE = 128


def _round_up(x, m):
    return ((x + m - 1) // m) * m


# ----------------------------------------------------------------------------
# Fused Pallas kernel: all LSTM layers (both directions) + FC head.
# ----------------------------------------------------------------------------
def _fused_encoder_kernel(*refs, num_layers, T, HP, n_hs):
    refs = list(refs)
    x0_ref = refs.pop(0)        # (T, BT, DP)   padded layer-0 char embeddings
    lens_ref = refs.pop(0)      # (BT, 1) int32 valid sequence lengths
    word_ref = refs.pop(0)      # (BT, DWP)     padded word embeddings
    lstm = []
    for _ in range(num_layers):
        dirs = []
        for _ in range(2):                       # forward, backward
            wih_t = refs.pop(0)                  # (D_in_pad, 4*HP)
            whh_t = refs.pop(0)                  # (HP, 4*HP)
            bias = refs.pop(0)                   # (1, 4*HP)  (= b_ih + b_hh)
            dirs.append((wih_t, whh_t, bias))
        lstm.append(dirs)
    fcw_word_ref = refs.pop(0)  # (DWP, NLP)
    fcw_f_ref = refs.pop(0)     # (HP, NLP)
    fcw_b_ref = refs.pop(0)     # (HP, NLP)
    fcb_ref = refs.pop(0)       # (1, NLP)
    out_ref = refs.pop(0)       # (BT, NLP)
    hs_refs = [refs.pop(0) for _ in range(n_hs)]   # (T, BT, 2*HP) scratch
    gxf_ref = refs.pop(0)       # (T, BT, 4*HP) scratch: fwd input projections
    gxb_ref = refs.pop(0)       # (T, BT, 4*HP) scratch: bwd input projections

    BT = out_ref.shape[0]
    G = 4 * HP
    lens = lens_ref[...]        # (BT, 1)

    def cell(gx, h, c, whh):
        gates = gx + jnp.dot(h, whh, preferred_element_type=jnp.float32)
        # Each gate lives in its own 128-lane block -> vreg-aligned slices.
        i_g = jax.nn.sigmoid(gates[:, 0 * HP:1 * HP])
        f_g = jax.nn.sigmoid(gates[:, 1 * HP:2 * HP])
        g_g = jnp.tanh(gates[:, 2 * HP:3 * HP])
        o_g = jax.nn.sigmoid(gates[:, 3 * HP:4 * HP])
        c_new = f_g * c + i_g * g_g
        h_new = o_g * jnp.tanh(c_new)
        return h_new, c_new

    def run_layer(x_flat, fwd, bwd, hs_out):
        wih_f, whh_f, b_f = fwd
        wih_b, whh_b, b_b = bwd
        # Hoisted input projection: one big matmul per direction instead of T
        # tiny per-step matmuls; bias folded in here (not per step).
        gxf_ref[...] = (jnp.dot(x_flat, wih_f[...],
                                preferred_element_type=jnp.float32)
                        + b_f[...]).reshape(T, BT, G)
        gxb_ref[...] = (jnp.dot(x_flat, wih_b[...],
                                preferred_element_type=jnp.float32)
                        + b_b[...]).reshape(T, BT, G)
        whh_f_m = whh_f[...]
        whh_b_m = whh_b[...]

        zeros = jnp.zeros((BT, HP), jnp.float32)
        h_f = c_f = h_b = c_b = zeros
        # Fully unrolled time loop (T is small & static) -> max LLO overlap.
        for i in range(T):
            t_f, t_b = i, T - 1 - i
            # forward direction
            hn, cn = cell(gxf_ref[t_f], h_f, c_f, whh_f_m)
            valid = t_f < lens                   # pack_padded_sequence mask
            h_f = jnp.where(valid, hn, h_f)
            c_f = jnp.where(valid, cn, c_f)
            # backward direction
            hn, cn = cell(gxb_ref[t_b], h_b, c_b, whh_b_m)
            valid = t_b < lens
            h_b = jnp.where(valid, hn, h_b)
            c_b = jnp.where(valid, cn, c_b)
            if hs_out is not None:               # skipped for the last layer
                hs_out[t_f, :, 0:HP] = h_f
                hs_out[t_b, :, HP:2 * HP] = h_b
        return h_f, h_b

    x_flat = x0_ref[...].reshape(T * BT, x0_ref.shape[-1])
    h_f = h_b = None
    for layer in range(num_layers):
        last = layer == num_layers - 1
        hs_out = None if last else hs_refs[layer % n_hs]
        h_f, h_b = run_layer(x_flat, lstm[layer][0], lstm[layer][1], hs_out)
        if not last:
            x_flat = hs_out[...].reshape(T * BT, 2 * HP)

    # Fused FC head: out = [word | h_fwd | h_bwd] @ W^T + b as a split matmul
    # (padded rows/lanes hit zero weights, so no in-kernel concat/slicing).
    out_ref[...] = (
        jnp.dot(word_ref[...], fcw_word_ref[...],
                preferred_element_type=jnp.float32)
        + jnp.dot(h_f, fcw_f_ref[...], preferred_element_type=jnp.float32)
        + jnp.dot(h_b, fcw_b_ref[...], preferred_element_type=jnp.float32)
        + fcb_ref[...])


# ----------------------------------------------------------------------------
# Wrapper
# ----------------------------------------------------------------------------
def future_encoder_forward(kp, words, padded_chars, char_lengths):
    """words: (B,) int32; padded_chars: (T, B) int32 (time-major, like
    pack_padded_sequence(batch_first=False)); char_lengths: (B,) int32."""
    d = kp["dims"]
    HP, DP, DWP, NLP = d["HP"], d["DP"], d["DWP"], d["NLP"]
    NL, Dw, Dc, num_layers = d["NL"], d["Dw"], d["Dc"], d["num_layers"]
    T, B = padded_chars.shape
    BP = _round_up(B, B_TILE)

    # Embedding gathers stay in plain JAX (glue).
    word = jnp.take(kp["word_emb"], words, axis=0).astype(jnp.float32)
    x = jnp.take(kp["char_emb"], padded_chars, axis=0).astype(jnp.float32)

    # (8,128)-aligned, zero-padded kernel operands.
    word_p = jnp.zeros((BP, DWP), jnp.float32).at[:B, :Dw].set(word)
    x_p = jnp.zeros((T, BP, DP), jnp.float32).at[:, :B, :Dc].set(x)
    lens_p = jnp.zeros((BP, 1), jnp.int32).at[:B, 0].set(
        char_lengths.astype(jnp.int32))

    weight_inputs, weight_specs = [], []

    def add_weight(w):
        weight_inputs.append(w)
        weight_specs.append(pl.BlockSpec(w.shape, lambda i: (0, 0)))

    for layer in kp["lstm"]:
        for (wih_t, whh_t, bias) in layer:
            add_weight(wih_t)
            add_weight(whh_t)
            add_weight(bias)
    for w in (kp["fcw_word"], kp["fcw_f"], kp["fcw_b"], kp["fcb"]):
        add_weight(w)

    n_hs = 2 if num_layers >= 3 else 1
    scratch = [pltpu.VMEM((T, B_TILE, 2 * HP), jnp.float32)
               for _ in range(n_hs)]
    scratch += [pltpu.VMEM((T, B_TILE, 4 * HP), jnp.float32),
                pltpu.VMEM((T, B_TILE, 4 * HP), jnp.float32)]

    kernel = functools.partial(_fused_encoder_kernel, num_layers=num_layers,
                               T=T, HP=HP, n_hs=n_hs)

    out = pl.pallas_call(
        kernel,
        out_shape=jax.ShapeDtypeStruct((BP, NLP), jnp.float32),
        grid_spec=pltpu.PrefetchScalarGridSpec(
            num_scalar_prefetch=0,
            grid=(BP // B_TILE,),
            in_specs=[pl.BlockSpec((T, B_TILE, DP), lambda i: (0, i, 0)),
                      pl.BlockSpec((B_TILE, 1), lambda i: (i, 0)),
                      pl.BlockSpec((B_TILE, DWP), lambda i: (i, 0))]
                     + weight_specs,
            out_specs=pl.BlockSpec((B_TILE, NLP), lambda i: (i, 0)),
            scratch_shapes=scratch),
        compiler_params=pltpu.CompilerParams(
            dimension_semantics=("parallel",)),
    )(x_p, lens_p, word_p, *weight_inputs)

    return out[:B, :NL]


# ----------------------------------------------------------------------------
# Parameters (raw PyTorch layout) + padded kernel layout
# ----------------------------------------------------------------------------
def make_params(key, *, word_vocab, char_vocab, word_dim, char_dim,
                num_layers, num_labels):
    """Raw params in PyTorch nn.LSTM / nn.Linear layout (gate order i,f,g,o)."""
    H = char_dim
    keys = iter(jax.random.split(key, 8 + 8 * num_layers))

    def init(shape, scale=0.1):
        return (scale * jax.random.normal(next(keys), shape)).astype(jnp.float32)

    raw = {"word_emb": init((word_vocab, word_dim), 1.0),
           "char_emb": init((char_vocab, char_dim), 1.0),
           "lstm": [],
           "hidden": H, "word_dim": word_dim, "char_dim": char_dim}
    for layer in range(num_layers):
        d_in = char_dim if layer == 0 else 2 * H
        dirs = []
        for _ in range(2):                       # forward, backward
            dirs.append((init((4 * H, d_in)),    # w_ih
                         init((4 * H, H)),       # w_hh
                         init((4 * H,)),         # b_ih
                         init((4 * H,))))        # b_hh
        raw["lstm"].append(tuple(dirs))
    raw["fc_w"] = init((num_labels, word_dim + 2 * H))
    raw["fc_b"] = init((num_labels,))
    return raw


def prepare_kernel_params(raw):
    """Pad / transpose raw weights into the (8,128)-aligned kernel layout.

    Each gate gets its own 128-lane block (cols [g*HP, g*HP+H)); hidden states
    live in lanes [0,H) of an HP-wide vector. Zero padding keeps padded lanes
    exactly zero through the recurrence, so no in-kernel masking is needed.
    """
    H, Dw, Dc = raw["hidden"], raw["word_dim"], raw["char_dim"]
    NL = raw["fc_b"].shape[0]
    num_layers = len(raw["lstm"])
    HP = _round_up(H, LANE)
    DP = _round_up(Dc, LANE)
    DWP = _round_up(Dw, LANE)
    NLP = _round_up(NL, LANE)

    lstm_p = []
    for layer, layer_dirs in enumerate(raw["lstm"]):
        d_in_pad = DP if layer == 0 else 2 * HP
        dirs = []
        for (w_ih, w_hh, b_ih, b_hh) in layer_dirs:
            wih_t = jnp.zeros((d_in_pad, 4 * HP), jnp.float32)
            whh_t = jnp.zeros((HP, 4 * HP), jnp.float32)
            bias = jnp.zeros((1, 4 * HP), jnp.float32)
            for g in range(4):
                wg = w_ih[g * H:(g + 1) * H, :]          # (H, d_in)
                col = slice(g * HP, g * HP + H)
                if layer == 0:
                    wih_t = wih_t.at[0:Dc, col].set(wg.T)
                else:
                    # layer>0 input = [fwd hidden | bwd hidden]; fwd features
                    # sit in lanes [0,H), bwd features in lanes [HP, HP+H).
                    wih_t = wih_t.at[0:H, col].set(wg[:, 0:H].T)
                    wih_t = wih_t.at[HP:HP + H, col].set(wg[:, H:2 * H].T)
                whh_t = whh_t.at[0:H, col].set(w_hh[g * H:(g + 1) * H, :].T)
                bias = bias.at[0, col].set(b_ih[g * H:(g + 1) * H]
                                           + b_hh[g * H:(g + 1) * H])
            dirs.append((wih_t, whh_t, bias))
        lstm_p.append(tuple(dirs))

    fc_w, fc_b = raw["fc_w"], raw["fc_b"]
    fcw_word = jnp.zeros((DWP, NLP), jnp.float32).at[0:Dw, 0:NL].set(
        fc_w[:, 0:Dw].T)
    fcw_f = jnp.zeros((HP, NLP), jnp.float32).at[0:H, 0:NL].set(
        fc_w[:, Dw:Dw + H].T)
    fcw_b = jnp.zeros((HP, NLP), jnp.float32).at[0:H, 0:NL].set(
        fc_w[:, Dw + H:Dw + 2 * H].T)
    fcb = jnp.zeros((1, NLP), jnp.float32).at[0, 0:NL].set(fc_b)

    return {"word_emb": raw["word_emb"], "char_emb": raw["char_emb"],
            "lstm": lstm_p,
            "fcw_word": fcw_word, "fcw_f": fcw_f, "fcw_b": fcw_b, "fcb": fcb,
            "dims": dict(H=H, HP=HP, DP=DP, DWP=DWP, NLP=NLP,
                         NL=NL, Dw=Dw, Dc=Dc, num_layers=num_layers)}


# ----------------------------------------------------------------------------
# Pure-JAX reference (mirrors the PyTorch FutureEncoder forward)
# ----------------------------------------------------------------------------
def _reference_forward(raw, words, padded_chars, char_lengths):
    H = raw["hidden"]
    hi = jax.lax.Precision.HIGHEST
    word = jnp.take(raw["word_emb"], words, axis=0).astype(jnp.float32)
    x = jnp.take(raw["char_emb"], padded_chars, axis=0).astype(jnp.float32)
    T, B, _ = x.shape
    lens = char_lengths.astype(jnp.int32)[:, None]        # (B, 1)

    def run_dir(xs, w_ih, w_hh, b_ih, b_hh, reverse):
        h = jnp.zeros((B, H), jnp.float32)
        c = jnp.zeros((B, H), jnp.float32)
        hs = [None] * T
        order = range(T - 1, -1, -1) if reverse else range(T)
        for t in order:
            gates = (jnp.dot(xs[t], w_ih.T, precision=hi)
                     + jnp.dot(h, w_hh.T, precision=hi) + b_ih + b_hh)
            i_g = jax.nn.sigmoid(gates[:, 0:H])
            f_g = jax.nn.sigmoid(gates[:, H:2 * H])
            g_g = jnp.tanh(gates[:, 2 * H:3 * H])
            o_g = jax.nn.sigmoid(gates[:, 3 * H:4 * H])
            c_new = f_g * c + i_g * g_g
            h_new = o_g * jnp.tanh(c_new)
            valid = t < lens
            h = jnp.where(valid, h_new, h)
            c = jnp.where(valid, c_new, c)
            hs[t] = h
        return jnp.stack(hs, axis=0), h

    layer_in = x
    h_f = h_b = None
    for (fwd, bwd) in raw["lstm"]:
        hs_f, h_f = run_dir(layer_in, *fwd, reverse=False)
        hs_b, h_b = run_dir(layer_in, *bwd, reverse=True)
        layer_in = jnp.concatenate([hs_f, hs_b], axis=-1)

    feat = jnp.concatenate([word, h_f, h_b], axis=1)
    return jnp.dot(feat, raw["fc_w"].T, precision=hi) + raw["fc_b"]


# ----------------------------------------------------------------------------
if __name__ == "__main__":
    B, T = 4, 8
    WORD_DIM, CHAR_DIM = 32, 16      # hidden size == char_dim (as in the module)
    NUM_LAYERS, NUM_LABELS = 2, 8
    WORD_VOCAB, CHAR_VOCAB = 20, 30

    root = jax.random.PRNGKey(0)
    k_params, k_words, k_chars = jax.random.split(root, 3)

    raw = make_params(k_params, word_vocab=WORD_VOCAB, char_vocab=CHAR_VOCAB,
                      word_dim=WORD_DIM, char_dim=CHAR_DIM,
                      num_layers=NUM_LAYERS, num_labels=NUM_LABELS)
    kp = prepare_kernel_params(raw)

    words = jax.random.randint(k_words, (B,), 0, WORD_VOCAB, dtype=jnp.int32)
    padded_chars = jax.random.randint(k_chars, (T, B), 0, CHAR_VOCAB,
                                      dtype=jnp.int32)
    # pack_padded_sequence(enforce_sorted=True) expects descending lengths.
    char_lengths = jnp.array([8, 6, 5, 3], dtype=jnp.int32)

    fwd_fn = jax.jit(lambda w, c, l: future_encoder_forward(kp, w, c, l))
    out = jax.block_until_ready(fwd_fn(words, padded_chars, char_lengths))
    assert out.shape == (B, NUM_LABELS), out.shape

    ref = _reference_forward(raw, words, padded_chars, char_lengths)
    err = float(jnp.max(jnp.abs(out - ref)))
    assert err < 1e-3, f"kernel vs reference mismatch: max abs err = {err}"

    print("KERNEL_OK")
</pallas_src>

<mosaic_0001>
module attributes {stable_mosaic.version = 11 : i64} {
  func.func @_fused_encoder_kernel(%arg0: i32, %arg1: memref<8x8x128xf32, #tpu.memory_space<vmem>>, %arg2: memref<8x1xi32, #tpu.memory_space<vmem>>, %arg3: memref<8x128xf32, #tpu.memory_space<vmem>>, %arg4: memref<128x512xf32, #tpu.memory_space<vmem>>, %arg5: memref<128x512xf32, #tpu.memory_space<vmem>>, %arg6: memref<1x512xf32, #tpu.memory_space<vmem>>, %arg7: memref<128x512xf32, #tpu.memory_space<vmem>>, %arg8: memref<128x512xf32, #tpu.memory_space<vmem>>, %arg9: memref<1x512xf32, #tpu.memory_space<vmem>>, %arg10: memref<256x512xf32, #tpu.memory_space<vmem>>, %arg11: memref<128x512xf32, #tpu.memory_space<vmem>>, %arg12: memref<1x512xf32, #tpu.memory_space<vmem>>, %arg13: memref<256x512xf32, #tpu.memory_space<vmem>>, %arg14: memref<128x512xf32, #tpu.memory_space<vmem>>, %arg15: memref<1x512xf32, #tpu.memory_space<vmem>>, %arg16: memref<128x128xf32, #tpu.memory_space<vmem>>, %arg17: memref<128x128xf32, #tpu.memory_space<vmem>>, %arg18: memref<128x128xf32, #tpu.memory_space<vmem>>, %arg19: memref<1x128xf32, #tpu.memory_space<vmem>>, %arg20: memref<8x128xf32, #tpu.memory_space<vmem>>, %arg21: memref<8x8x256xf32, #tpu.memory_space<vmem>>, %arg22: memref<8x8x512xf32, #tpu.memory_space<vmem>>, %arg23: memref<8x8x512xf32, #tpu.memory_space<vmem>>) attributes {dimension_semantics = [#tpu.dimension_semantics<parallel>], iteration_bounds = array<i64: 1>, scalar_prefetch = 0 : i64, scratch_operands = 3 : i64, tpu.core_type = #tpu.core_type<tc>, window_params = [{transform_indices = @transform_0, window_bounds = array<i64: 8, 8, 128>}, {transform_indices = @transform_1, window_bounds = array<i64: 8, 1>}, {transform_indices = @transform_2, window_bounds = array<i64: 8, 128>}, {pipeline_mode = #tpu.pipeline_mode<synchronous>, transform_indices = @transform_3, window_bounds = array<i64: 128, 512>}, {pipeline_mode = #tpu.pipeline_mode<synchronous>, transform_indices = @transform_4, window_bounds = array<i64: 128, 512>}, {pipeline_mode = #tpu.pipeline_mode<synchronous>, transform_indices = @transform_5, window_bounds = array<i64: 1, 512>}, {pipeline_mode = #tpu.pipeline_mode<synchronous>, transform_indices = @transform_6, window_bounds = array<i64: 128, 512>}, {pipeline_mode = #tpu.pipeline_mode<synchronous>, transform_indices = @transform_7, window_bounds = array<i64: 128, 512>}, {pipeline_mode = #tpu.pipeline_mode<synchronous>, transform_indices = @transform_8, window_bounds = array<i64: 1, 512>}, {pipeline_mode = #tpu.pipeline_mode<synchronous>, transform_indices = @transform_9, window_bounds = array<i64: 256, 512>}, {pipeline_mode = #tpu.pipeline_mode<synchronous>, transform_indices = @transform_10, window_bounds = array<i64: 128, 512>}, {pipeline_mode = #tpu.pipeline_mode<synchronous>, transform_indices = @transform_11, window_bounds = array<i64: 1, 512>}, {pipeline_mode = #tpu.pipeline_mode<synchronous>, transform_indices = @transform_12, window_bounds = array<i64: 256, 512>}, {pipeline_mode = #tpu.pipeline_mode<synchronous>, transform_indices = @transform_13, window_bounds = array<i64: 128, 512>}, {pipeline_mode = #tpu.pipeline_mode<synchronous>, transform_indices = @transform_14, window_bounds = array<i64: 1, 512>}, {pipeline_mode = #tpu.pipeline_mode<synchronous>, transform_indices = @transform_15, window_bounds = array<i64: 128, 128>}, {pipeline_mode = #tpu.pipeline_mode<synchronous>, transform_indices = @transform_16, window_bounds = array<i64: 128, 128>}, {pipeline_mode = #tpu.pipeline_mode<synchronous>, transform_indices = @transform_17, window_bounds = array<i64: 128, 128>}, {pipeline_mode = #tpu.pipeline_mode<synchronous>, transform_indices = @transform_18, window_bounds = array<i64: 1, 128>}, {transform_indices = @transform_19, window_bounds = array<i64: 8, 128>}]} {
    %c0 = arith.constant 0 : index
    %c0_0 = arith.constant 0 : index
    %0 = vector.load %arg2[%c0, %c0_0] : memref<8x1xi32, #tpu.memory_space<vmem>>, vector<8x1xi32>
    %c0_1 = arith.constant 0 : index
    %c0_2 = arith.constant 0 : index
    %c0_3 = arith.constant 0 : index
    %1 = vector.load %arg1[%c0_1, %c0_2, %c0_3] : memref<8x8x128xf32, #tpu.memory_space<vmem>>, vector<8x8x128xf32>
    %2 = vector.shape_cast %1 : vector<8x8x128xf32> to vector<64x128xf32>
    %c0_4 = arith.constant 0 : index
    %c0_5 = arith.constant 0 : index
    %3 = vector.load %arg4[%c0_4, %c0_5] : memref<128x512xf32, #tpu.memory_space<vmem>>, vector<128x512xf32>
    %cst = arith.constant dense<0.000000e+00> : vector<64x512xf32>
    %4 = tpu.matmul %2, %3, %cst {dimension_numbers = #tpu.dot_dimension_numbers<[1], [0], [0], [1], [0, 0, 1, 1], [], []>} : vector<64x128xf32>, vector<128x512xf32>, vector<64x512xf32> -> vector<64x512xf32>
    %c0_6 = arith.constant 0 : index
    %c0_7 = arith.constant 0 : index
    %5 = vector.load %arg6[%c0_6, %c0_7] : memref<1x512xf32, #tpu.memory_space<vmem>>, vector<1x512xf32>
    %6 = vector.broadcast %5 : vector<1x512xf32> to vector<64x512xf32>
    %7 = arith.addf %4, %6 : vector<64x512xf32>
    %8 = vector.shape_cast %7 : vector<64x512xf32> to vector<8x8x512xf32>
    %c0_8 = arith.constant 0 : index
    %c0_9 = arith.constant 0 : index
    %c0_10 = arith.constant 0 : index
    %9 = vector.load %arg22[%c0_8, %c0_9, %c0_10] : memref<8x8x512xf32, #tpu.memory_space<vmem>>, vector<8x8x512xf32>
    tpu.vector_store %arg22[%c0_8, %c0_9, %c0_10], %8 {strides = array<i32>} : memref<8x8x512xf32, #tpu.memory_space<vmem>>, vector<8x8x512xf32>,
    %c0_11 = arith.constant 0 : index
    %c0_12 = arith.constant 0 : index
    %10 = vector.load %arg7[%c0_11, %c0_12] : memref<128x512xf32, #tpu.memory_space<vmem>>, vector<128x512xf32>
    %cst_13 = arith.constant dense<0.000000e+00> : vector<64x512xf32>
    %11 = tpu.matmul %2, %10, %cst_13 {dimension_numbers = #tpu.dot_dimension_numbers<[1], [0], [0], [1], [0, 0, 1, 1], [], []>} : vector<64x128xf32>, vector<128x512xf32>, vector<64x512xf32> -> vector<64x512xf32>
    %c0_14 = arith.constant 0 : index
    %c0_15 = arith.constant 0 : index
    %12 = vector.load %arg9[%c0_14, %c0_15] : memref<1x512xf32, #tpu.memory_space<vmem>>, vector<1x512xf32>
    %13 = vector.broadcast %12 : vector<1x512xf32> to vector<64x512xf32>
    %14 = arith.addf %11, %13 : vector<64x512xf32>
    %15 = vector.shape_cast %14 : vector<64x512xf32> to vector<8x8x512xf32>
    %c0_16 = arith.constant 0 : index
    %c0_17 = arith.constant 0 : index
    %c0_18 = arith.constant 0 : index
    %16 = vector.load %arg23[%c0_16, %c0_17, %c0_18] : memref<8x8x512xf32, #tpu.memory_space<vmem>>, vector<8x8x512xf32>
    tpu.vector_store %arg23[%c0_16, %c0_17, %c0_18], %15 {strides = array<i32>} : memref<8x8x512xf32, #tpu.memory_space<vmem>>, vector<8x8x512xf32>,
    %c0_19 = arith.constant 0 : index
    %c0_20 = arith.constant 0 : index
    %17 = vector.load %arg5[%c0_19, %c0_20] : memref<128x512xf32, #tpu.memory_space<vmem>>, vector<128x512xf32>
    %c0_21 = arith.constant 0 : index
    %c0_22 = arith.constant 0 : index
    %18 = vector.load %arg8[%c0_21, %c0_22] : memref<128x512xf32, #tpu.memory_space<vmem>>, vector<128x512xf32>
    %cst_23 = arith.constant 0.000000e+00 : f32
    %19 = vector.broadcast %cst_23 : f32 to vector<8x128xf32>
    %c0_24 = arith.constant 0 : index
    %c0_25 = arith.constant 0 : index
    %c0_26 = arith.constant 0 : index
    %20 = vector.load %arg22[%c0_24, %c0_25, %c0_26] : memref<8x8x512xf32, #tpu.memory_space<vmem>>, vector<1x8x512xf32>
    %21 = vector.shape_cast %20 : vector<1x8x512xf32> to vector<8x512xf32>
    %cst_27 = arith.constant dense<0.000000e+00> : vector<8x512xf32>
    %22 = tpu.matmul %19, %17, %cst_27 {dimension_numbers = #tpu.dot_dimension_numbers<[1], [0], [0], [1], [0, 0, 1, 1], [], []>} : vector<8x128xf32>, vector<128x512xf32>, vector<8x512xf32> -> vector<8x512xf32>
    %23 = arith.addf %21, %22 : vector<8x512xf32>
    %24 = vector.extract_strided_slice %23 {offsets = [0, 0], sizes = [8, 128], strides = [1, 1]} : vector<8x512xf32> to vector<8x128xf32>
    %25 = arith.negf %24 : vector<8x128xf32>
    %26 = math.exp %25 : vector<8x128xf32>
    %cst_28 = arith.constant 1.000000e+00 : f32
    %27 = vector.broadcast %cst_28 : f32 to vector<8x128xf32>
    %28 = arith.addf %27, %26 : vector<8x128xf32>
    %29 = arith.divf %27, %28 : vector<8x128xf32>
    %30 = vector.extract_strided_slice %23 {offsets = [0, 128], sizes = [8, 128], strides = [1, 1]} : vector<8x512xf32> to vector<8x128xf32>
    %31 = arith.negf %30 : vector<8x128xf32>
    %32 = math.exp %31 : vector<8x128xf32>
    %cst_29 = arith.constant 1.000000e+00 : f32
    %33 = vector.broadcast %cst_29 : f32 to vector<8x128xf32>
    %34 = arith.addf %33, %32 : vector<8x128xf32>
    %35 = arith.divf %33, %34 : vector<8x128xf32>
    %36 = vector.extract_strided_slice %23 {offsets = [0, 256], sizes = [8, 128], strides = [1, 1]} : vector<8x512xf32> to vector<8x128xf32>
    %37 = math.tanh %36 : vector<8x128xf32>
    %38 = vector.extract_strided_slice %23 {offsets = [0, 384], sizes = [8, 128], strides = [1, 1]} : vector<8x512xf32> to vector<8x128xf32>
    %39 = arith.negf %38 : vector<8x128xf32>
    %40 = math.exp %39 : vector<8x128xf32>
    %cst_30 = arith.constant 1.000000e+00 : f32
    %41 = vector.broadcast %cst_30 : f32 to vector<8x128xf32>
    %42 = arith.addf %41, %40 : vector<8x128xf32>
    %43 = arith.divf %41, %42 : vector<8x128xf32>
    %44 = arith.mulf %35, %19 : vector<8x128xf32>
    %45 = arith.mulf %29, %37 : vector<8x128xf32>
    %46 = arith.addf %44, %45 : vector<8x128xf32>
    %47 = math.tanh %46 : vector<8x128xf32>
    %48 = arith.mulf %43, %47 : vector<8x128xf32>
    %c0_i32 = arith.constant 0 : i32
    %49 = vector.broadcast %c0_i32 : i32 to vector<8x1xi32>
    %50 = arith.cmpi sgt, %0, %49 : vector<8x1xi32>
    %51 = vector.shape_cast %50 : vector<8x1xi1> to vector<8x1xi1>
    %52 = vector.broadcast %51 : vector<8x1xi1> to vector<8x128xi1>
    %53 = arith.select %52, %48, %19 : vector<8x128xi1>, vector<8x128xf32>
    %54 = vector.shape_cast %50 : vector<8x1xi1> to vector<8x1xi1>
    %55 = vector.broadcast %54 : vector<8x1xi1> to vector<8x128xi1>
    %56 = arith.select %55, %46, %19 : vector<8x128xi1>, vector<8x128xf32>
    %c7 = arith.constant 7 : index
    %c0_31 = arith.constant 0 : index
    %c0_32 = arith.constant 0 : index
    %57 = vector.load %arg23[%c7, %c0_31, %c0_32] : memref<8x8x512xf32, #tpu.memory_space<vmem>>, vector<1x8x512xf32>
    %58 = vector.shape_cast %57 : vector<1x8x512xf32> to vector<8x512xf32>
    %cst_33 = arith.constant dense<0.000000e+00> : vector<8x512xf32>
    %59 = tpu.matmul %19, %18, %cst_33 {dimension_numbers = #tpu.dot_dimension_numbers<[1], [0], [0], [1], [0, 0, 1, 1], [], []>} : vector<8x128xf32>, vector<128x512xf32>, vector<8x512xf32> -> vector<8x512xf32>
    %60 = arith.addf %58, %59 : vector<8x512xf32>
    %61 = vector.extract_strided_slice %60 {offsets = [0, 0], sizes = [8, 128], strides = [1, 1]} : vector<8x512xf32> to vector<8x128xf32>
    %62 = arith.negf %61 : vector<8x128xf32>
    %63 = math.exp %62 : vector<8x128xf32>
    %cst_34 = arith.constant 1.000000e+00 : f32
    %64 = vector.broadcast %cst_34 : f32 to vector<8x128xf32>
    %65 = arith.addf %64, %63 : vector<8x128xf32>
    %66 = arith.divf %64, %65 : vector<8x128xf32>
    %67 = vector.extract_strided_slice %60 {offsets = [0, 128], sizes = [8, 128], strides = [1, 1]} : vector<8x512xf32> to vector<8x128xf32>
    %68 = arith.negf %67 : vector<8x128xf32>
    %69 = math.exp %68 : vector<8x128xf32>
    %cst_35 = arith.constant 1.000000e+00 : f32
    %70 = vector.broadcast %cst_35 : f32 to vector<8x128xf32>
    %71 = arith.addf %70, %69 : vector<8x128xf32>
    %72 = arith.divf %70, %71 : vector<8x128xf32>
    %73 = vector.extract_strided_slice %60 {offsets = [0, 256], sizes = [8, 128], strides = [1, 1]} : vector<8x512xf32> to vector<8x128xf32>
    %74 = math.tanh %73 : vector<8x128xf32>
    %75 = vector.extract_strided_slice %60 {offsets = [0, 384], sizes = [8, 128], strides = [1, 1]} : vector<8x512xf32> to vector<8x128xf32>
    %76 = arith.negf %75 : vector<8x128xf32>
    %77 = math.exp %76 : vector<8x128xf32>
    %cst_36 = arith.constant 1.000000e+00 : f32
    %78 = vector.broadcast %cst_36 : f32 to vector<8x128xf32>
    %79 = arith.addf %78, %77 : vector<8x128xf32>
    %80 = arith.divf %78, %79 : vector<8x128xf32>
    %81 = arith.mulf %72, %19 : vector<8x128xf32>
    %82 = arith.mulf %66, %74 : vector<8x128xf32>
    %83 = arith.addf %81, %82 : vector<8x128xf32>
    %84 = math.tanh %83 : vector<8x128xf32>
    %85 = arith.mulf %80, %84 : vector<8x128xf32>
    %c7_i32 = arith.constant 7 : i32
    %86 = vector.broadcast %c7_i32 : i32 to vector<8x1xi32>
    %87 = arith.cmpi sgt, %0, %86 : vector<8x1xi32>
    %88 = vector.shape_cast %87 : vector<8x1xi1> to vector<8x1xi1>
    %89 = vector.broadcast %88 : vector<8x1xi1> to vector<8x128xi1>
    %90 = arith.select %89, %85, %19 : vector<8x128xi1>, vector<8x128xf32>
    %91 = vector.shape_cast %87 : vector<8x1xi1> to vector<8x1xi1>
    %92 = vector.broadcast %91 : vector<8x1xi1> to vector<8x128xi1>
    %93 = arith.select %92, %83, %19 : vector<8x128xi1>, vector<8x128xf32>
    %c0_37 = arith.constant 0 : index
    %c0_38 = arith.constant 0 : index
    %c0_39 = arith.constant 0 : index
    %94 = vector.load %arg21[%c0_37, %c0_38, %c0_39] : memref<8x8x256xf32, #tpu.memory_space<vmem>>, vector<1x8x128xf32>
    %95 = vector.shape_cast %94 : vector<1x8x128xf32> to vector<8x128xf32>
    %96 = vector.shape_cast %53 : vector<8x128xf32> to vector<1x8x128xf32>
    tpu.vector_store %arg21[%c0_37, %c0_38, %c0_39], %96 {strides = array<i32>} : memref<8x8x256xf32, #tpu.memory_space<vmem>>, vector<1x8x128xf32>,
    %c7_40 = arith.constant 7 : index
    %c0_41 = arith.constant 0 : index
    %c128 = arith.constant 128 : index
    %97 = vector.load %arg21[%c7_40, %c0_41, %c128] : memref<8x8x256xf32, #tpu.memory_space<vmem>>, vector<1x8x128xf32>
    %98 = vector.shape_cast %97 : vector<1x8x128xf32> to vector<8x128xf32>
    %99 = vector.shape_cast %90 : vector<8x128xf32> to vector<1x8x128xf32>
    tpu.vector_store %arg21[%c7_40, %c0_41, %c128], %99 {strides = array<i32>} : memref<8x8x256xf32, #tpu.memory_space<vmem>>, vector<1x8x128xf32>,
    %c1 = arith.constant 1 : index
    %c0_42 = arith.constant 0 : index
    %c0_43 = arith.constant 0 : index
    %100 = vector.load %arg22[%c1, %c0_42, %c0_43] : memref<8x8x512xf32, #tpu.memory_space<vmem>>, vector<1x8x512xf32>
    %101 = vector.shape_cast %100 : vector<1x8x512xf32> to vector<8x512xf32>
    %cst_44 = arith.constant dense<0.000000e+00> : vector<8x512xf32>
    %102 = tpu.matmul %53, %17, %cst_44 {dimension_numbers = #tpu.dot_dimension_numbers<[1], [0], [0], [1], [0, 0, 1, 1], [], []>} : vector<8x128xf32>, vector<128x512xf32>, vector<8x512xf32> -> vector<8x512xf32>
    %103 = arith.addf %101, %102 : vector<8x512xf32>
    %104 = vector.extract_strided_slice %103 {offsets = [0, 0], sizes = [8, 128], strides = [1, 1]} : vector<8x512xf32> to vector<8x128xf32>
    %105 = arith.negf %104 : vector<8x128xf32>
    %106 = math.exp %105 : vector<8x128xf32>
    %cst_45 = arith.constant 1.000000e+00 : f32
    %107 = vector.broadcast %cst_45 : f32 to vector<8x128xf32>
    %108 = arith.addf %107, %106 : vector<8x128xf32>
    %109 = arith.divf %107, %108 : vector<8x128xf32>
    %110 = vector.extract_strided_slice %103 {offsets = [0, 128], sizes = [8, 128], strides = [1, 1]} : vector<8x512xf32> to vector<8x128xf32>
    %111 = arith.negf %110 : vector<8x128xf32>
    %112 = math.exp %111 : vector<8x128xf32>
    %cst_46 = arith.constant 1.000000e+00 : f32
    %113 = vector.broadcast %cst_46 : f32 to vector<8x128xf32>
    %114 = arith.addf %113, %112 : vector<8x128xf32>
    %115 = arith.divf %113, %114 : vector<8x128xf32>
    %116 = vector.extract_strided_slice %103 {offsets = [0, 256], sizes = [8, 128], strides = [1, 1]} : vector<8x512xf32> to vector<8x128xf32>
    %117 = math.tanh %116 : vector<8x128xf32>
    %118 = vector.extract_strided_slice %103 {offsets = [0, 384], sizes = [8, 128], strides = [1, 1]} : vector<8x512xf32> to vector<8x128xf32>
    %119 = arith.negf %118 : vector<8x128xf32>
    %120 = math.exp %119 : vector<8x128xf32>
    %cst_47 = arith.constant 1.000000e+00 : f32
    %121 = vector.broadcast %cst_47 : f32 to vector<8x128xf32>
    %122 = arith.addf %121, %120 : vector<8x128xf32>
    %123 = arith.divf %121, %122 : vector<8x128xf32>
    %124 = arith.mulf %115, %56 : vector<8x128xf32>
    %125 = arith.mulf %109, %117 : vector<8x128xf32>
    %126 = arith.addf %124, %125 : vector<8x128xf32>
    %127 = math.tanh %126 : vector<8x128xf32>
    %128 = arith.mulf %123, %127 : vector<8x128xf32>
    %c1_i32 = arith.constant 1 : i32
    %129 = vector.broadcast %c1_i32 : i32 to vector<8x1xi32>
    %130 = arith.cmpi sgt, %0, %129 : vector<8x1xi32>
    %131 = vector.shape_cast %130 : vector<8x1xi1> to vector<8x1xi1>
    %132 = vector.broadcast %131 : vector<8x1xi1> to vector<8x128xi1>
    %133 = arith.select %132, %128, %53 : vector<8x128xi1>, vector<8x128xf32>
    %134 = vector.shape_cast %130 : vector<8x1xi1> to vector<8x1xi1>
    %135 = vector.broadcast %134 : vector<8x1xi1> to vector<8x128xi1>
    %136 = arith.select %135, %126, %56 : vector<8x128xi1>, vector<8x128xf32>
    %c6 = arith.constant 6 : index
    %c0_48 = arith.constant 0 : index
    %c0_49 = arith.constant 0 : index
    %137 = vector.load %arg23[%c6, %c0_48, %c0_49] : memref<8x8x512xf32, #tpu.memory_space<vmem>>, vector<1x8x512xf32>
    %138 = vector.shape_cast %137 : vector<1x8x512xf32> to vector<8x512xf32>
    %cst_50 = arith.constant dense<0.000000e+00> : vector<8x512xf32>
    %139 = tpu.matmul %90, %18, %cst_50 {dimension_numbers = #tpu.dot_dimension_numbers<[1], [0], [0], [1], [0, 0, 1, 1], [], []>} : vector<8x128xf32>, vector<128x512xf32>, vector<8x512xf32> -> vector<8x512xf32>
    %140 = arith.addf %138, %139 : vector<8x512xf32>
    %141 = vector.extract_strided_slice %140 {offsets = [0, 0], sizes = [8, 128], strides = [1, 1]} : vector<8x512xf32> to vector<8x128xf32>
    %142 = arith.negf %141 : vector<8x128xf32>
    %143 = math.exp %142 : vector<8x128xf32>
    %cst_51 = arith.constant 1.000000e+00 : f32
    %144 = vector.broadcast %cst_51 : f32 to vector<8x128xf32>
    %145 = arith.addf %144, %143 : vector<8x128xf32>
    %146 = arith.divf %144, %145 : vector<8x128xf32>
    %147 = vector.extract_strided_slice %140 {offsets = [0, 128], sizes = [8, 128], strides = [1, 1]} : vector<8x512xf32> to vector<8x128xf32>
    %148 = arith.negf %147 : vector<8x128xf32>
    %149 = math.exp %148 : vector<8x128xf32>
    %cst_52 = arith.constant 1.000000e+00 : f32
    %150 = vector.broadcast %cst_52 : f32 to vector<8x128xf32>
    %151 = arith.addf %150, %149 : vector<8x128xf32>
    %152 = arith.divf %150, %151 : vector<8x128xf32>
    %153 = vector.extract_strided_slice %140 {offsets = [0, 256], sizes = [8, 128], strides = [1, 1]} : vector<8x512xf32> to vector<8x128xf32>
    %154 = math.tanh %153 : vector<8x128xf32>
    %155 = vector.extract_strided_slice %140 {offsets = [0, 384], sizes = [8, 128], strides = [1, 1]} : vector<8x512xf32> to vector<8x128xf32>
    %156 = arith.negf %155 : vector<8x128xf32>
    %157 = math.exp %156 : vector<8x128xf32>
    %cst_53 = arith.constant 1.000000e+00 : f32
    %158 = vector.broadcast %cst_53 : f32 to vector<8x128xf32>
    %159 = arith.addf %158, %157 : vector<8x128xf32>
    %160 = arith.divf %158, %159 : vector<8x128xf32>
    %161 = arith.mulf %152, %93 : vector<8x128xf32>
    %162 = arith.mulf %146, %154 : vector<8x128xf32>
    %163 = arith.addf %161, %162 : vector<8x128xf32>
    %164 = math.tanh %163 : vector<8x128xf32>
    %165 = arith.mulf %160, %164 : vector<8x128xf32>
    %c6_i32 = arith.constant 6 : i32
    %166 = vector.broadcast %c6_i32 : i32 to vector<8x1xi32>
    %167 = arith.cmpi sgt, %0, %166 : vector<8x1xi32>
    %168 = vector.shape_cast %167 : vector<8x1xi1> to vector<8x1xi1>
    %169 = vector.broadcast %168 : vector<8x1xi1> to vector<8x128xi1>
    %170 = arith.select %169, %165, %90 : vector<8x128xi1>, vector<8x128xf32>
    %171 = vector.shape_cast %167 : vector<8x1xi1> to vector<8x1xi1>
    %172 = vector.broadcast %171 : vector<8x1xi1> to vector<8x128xi1>
    %173 = arith.select %172, %163, %93 : vector<8x128xi1>, vector<8x128xf32>
    %c1_54 = arith.constant 1 : index
    %c0_55 = arith.constant 0 : index
    %c0_56 = arith.constant 0 : index
    %174 = vector.load %arg21[%c1_54, %c0_55, %c0_56] : memref<8x8x256xf32, #tpu.memory_space<vmem>>, vector<1x8x128xf32>
    %175 = vector.shape_cast %174 : vector<1x8x128xf32> to vector<8x128xf32>
    %176 = vector.shape_cast %133 : vector<8x128xf32> to vector<1x8x128xf32>
    tpu.vector_store %arg21[%c1_54, %c0_55, %c0_56], %176 {strides = array<i32>} : memref<8x8x256xf32, #tpu.memory_space<vmem>>, vector<1x8x128xf32>,
    %c6_57 = arith.constant 6 : index
    %c0_58 = arith.constant 0 : index
    %c128_59 = arith.constant 128 : index
    %177 = vector.load %arg21[%c6_57, %c0_58, %c128_59] : memref<8x8x256xf32, #tpu.memory_space<vmem>>, vector<1x8x128xf32>
    %178 = vector.shape_cast %177 : vector<1x8x128xf32> to vector<8x128xf32>
    %179 = vector.shape_cast %170 : vector<8x128xf32> to vector<1x8x128xf32>
    tpu.vector_store %arg21[%c6_57, %c0_58, %c128_59], %179 {strides = array<i32>} : memref<8x8x256xf32, #tpu.memory_space<vmem>>, vector<1x8x128xf32>,
    %c2 = arith.constant 2 : index
    %c0_60 = arith.constant 0 : index
    %c0_61 = arith.constant 0 : index
    %180 = vector.load %arg22[%c2, %c0_60, %c0_61] : memref<8x8x512xf32, #tpu.memory_space<vmem>>, vector<1x8x512xf32>
    %181 = vector.shape_cast %180 : vector<1x8x512xf32> to vector<8x512xf32>
    %cst_62 = arith.constant dense<0.000000e+00> : vector<8x512xf32>
    %182 = tpu.matmul %133, %17, %cst_62 {dimension_numbers = #tpu.dot_dimension_numbers<[1], [0], [0], [1], [0, 0, 1, 1], [], []>} : vector<8x128xf32>, vector<128x512xf32>, vector<8x512xf32> -> vector<8x512xf32>
    %183 = arith.addf %181, %182 : vector<8x512xf32>
    %184 = vector.extract_strided_slice %183 {offsets = [0, 0], sizes = [8, 128], strides = [1, 1]} : vector<8x512xf32> to vector<8x128xf32>
    %185 = arith.negf %184 : vector<8x128xf32>
    %186 = math.exp %185 : vector<8x128xf32>
    %cst_63 = arith.constant 1.000000e+00 : f32
    %187 = vector.broadcast %cst_63 : f32 to vector<8x128xf32>
    %188 = arith.addf %187, %186 : vector<8x128xf32>
    %189 = arith.divf %187, %188 : vector<8x128xf32>
    %190 = vector.extract_strided_slice %183 {offsets = [0, 128], sizes = [8, 128], strides = [1, 1]} : vector<8x512xf32> to vector<8x128xf32>
    %191 = arith.negf %190 : vector<8x128xf32>
    %192 = math.exp %191 : vector<8x128xf32>
    %cst_64 = arith.constant 1.000000e+00 : f32
    %193 = vector.broadcast %cst_64 : f32 to vector<8x128xf32>
    %194 = arith.addf %193, %192 : vector<8x128xf32>
    %195 = arith.divf %193, %194 : vector<8x128xf32>
    %196 = vector.extract_strided_slice %183 {offsets = [0, 256], sizes = [8, 128], strides = [1, 1]} : vector<8x512xf32> to vector<8x128xf32>
    %197 = math.tanh %196 : vector<8x128xf32>
    %198 = vector.extract_strided_slice %183 {offsets = [0, 384], sizes = [8, 128], strides = [1, 1]} : vector<8x512xf32> to vector<8x128xf32>
    %199 = arith.negf %198 : vector<8x128xf32>
    %200 = math.exp %199 : vector<8x128xf32>
    %cst_65 = arith.constant 1.000000e+00 : f32
    %201 = vector.broadcast %cst_65 : f32 to vector<8x128xf32>
    %202 = arith.addf %201, %200 : vector<8x128xf32>
    %203 = arith.divf %201, %202 : vector<8x128xf32>
    %204 = arith.mulf %195, %136 : vector<8x128xf32>
    %205 = arith.mulf %189, %197 : vector<8x128xf32>
    %206 = arith.addf %204, %205 : vector<8x128xf32>
    %207 = math.tanh %206 : vector<8x128xf32>
    %208 = arith.mulf %203, %207 : vector<8x128xf32>
    %c2_i32 = arith.constant 2 : i32
    %209 = vector.broadcast %c2_i32 : i32 to vector<8x1xi32>
    %210 = arith.cmpi sgt, %0, %209 : vector<8x1xi32>
    %211 = vector.shape_cast %210 : vector<8x1xi1> to vector<8x1xi1>
    %212 = vector.broadcast %211 : vector<8x1xi1> to vector<8x128xi1>
    %213 = arith.select %212, %208, %133 : vector<8x128xi1>, vector<8x128xf32>
    %214 = vector.shape_cast %210 : vector<8x1xi1> to vector<8x1xi1>
    %215 = vector.broadcast %214 : vector<8x1xi1> to vector<8x128xi1>
    %216 = arith.select %215, %206, %136 : vector<8x128xi1>, vector<8x128xf32>
    %c5 = arith.constant 5 : index
    %c0_66 = arith.constant 0 : index
    %c0_67 = arith.constant 0 : index
    %217 = vector.load %arg23[%c5, %c0_66, %c0_67] : memref<8x8x512xf32, #tpu.memory_space<vmem>>, vector<1x8x512xf32>
    %218 = vector.shape_cast %217 : vector<1x8x512xf32> to vector<8x512xf32>
    %cst_68 = arith.constant dense<0.000000e+00> : vector<8x512xf32>
    %219 = tpu.matmul %170, %18, %cst_68 {dimension_numbers = #tpu.dot_dimension_numbers<[1], [0], [0], [1], [0, 0, 1, 1], [], []>} : vector<8x128xf32>, vector<128x512xf32>, vector<8x512xf32> -> vector<8x512xf32>
    %220 = arith.addf %218, %219 : vector<8x512xf32>
    %221 = vector.extract_strided_slice %220 {offsets = [0, 0], sizes = [8, 128], strides = [1, 1]} : vector<8x512xf32> to vector<8x128xf32>
    %222 = arith.negf %221 : vector<8x128xf32>
    %223 = math.exp %222 : vector<8x128xf32>
    %cst_69 = arith.constant 1.000000e+00 : f32
    %224 = vector.broadcast %cst_69 : f32 to vector<8x128xf32>
    %225 = arith.addf %224, %223 : vector<8x128xf32>
    %226 = arith.divf %224, %225 : vector<8x128xf32>
    %227 = vector.extract_strided_slice %220 {offsets = [0, 128], sizes = [8, 128], strides = [1, 1]} : vector<8x512xf32> to vector<8x128xf32>
    %228 = arith.negf %227 : vector<8x128xf32>
    %229 = math.exp %228 : vector<8x128xf32>
    %cst_70 = arith.constant 1.000000e+00 : f32
    %230 = vector.broadcast %cst_70 : f32 to vector<8x128xf32>
    %231 = arith.addf %230, %229 : vector<8x128xf32>
    %232 = arith.divf %230, %231 : vector<8x128xf32>
    %233 = vector.extract_strided_slice %220 {offsets = [0, 256], sizes = [8, 128], strides = [1, 1]} : vector<8x512xf32> to vector<8x128xf32>
    %234 = math.tanh %233 : vector<8x128xf32>
    %235 = vector.extract_strided_slice %220 {offsets = [0, 384], sizes = [8, 128], strides = [1, 1]} : vector<8x512xf32> to vector<8x128xf32>
    %236 = arith.negf %235 : vector<8x128xf32>
    %237 = math.exp %236 : vector<8x128xf32>
    %cst_71 = arith.constant 1.000000e+00 : f32
    %238 = vector.broadcast %cst_71 : f32 to vector<8x128xf32>
    %239 = arith.addf %238, %237 : vector<8x128xf32>
    %240 = arith.divf %238, %239 : vector<8x128xf32>
    %241 = arith.mulf %232, %173 : vector<8x128xf32>
    %242 = arith.mulf %226, %234 : vector<8x128xf32>
    %243 = arith.addf %241, %242 : vector<8x128xf32>
    %244 = math.tanh %243 : vector<8x128xf32>
    %245 = arith.mulf %240, %244 : vector<8x128xf32>
    %c5_i32 = arith.constant 5 : i32
    %246 = vector.broadcast %c5_i32 : i32 to vector<8x1xi32>
    %247 = arith.cmpi sgt, %0, %246 : vector<8x1xi32>
    %248 = vector.shape_cast %247 : vector<8x1xi1> to vector<8x1xi1>
    %249 = vector.broadcast %248 : vector<8x1xi1> to vector<8x128xi1>
    %250 = arith.select %249, %245, %170 : vector<8x128xi1>, vector<8x128xf32>
    %251 = vector.shape_cast %247 : vector<8x1xi1> to vector<8x1xi1>
    %252 = vector.broadcast %251 : vector<8x1xi1> to vector<8x128xi1>
    %253 = arith.select %252, %243, %173 : vector<8x128xi1>, vector<8x128xf32>
    %c2_72 = arith.constant 2 : index
    %c0_73 = arith.constant 0 : index
    %c0_74 = arith.constant 0 : index
    %254 = vector.load %arg21[%c2_72, %c0_73, %c0_74] : memref<8x8x256xf32, #tpu.memory_space<vmem>>, vector<1x8x128xf32>
    %255 = vector.shape_cast %254 : vector<1x8x128xf32> to vector<8x128xf32>
    %256 = vector.shape_cast %213 : vector<8x128xf32> to vector<1x8x128xf32>
    tpu.vector_store %arg21[%c2_72, %c0_73, %c0_74], %256 {strides = array<i32>} : memref<8x8x256xf32, #tpu.memory_space<vmem>>, vector<1x8x128xf32>,
    %c5_75 = arith.constant 5 : index
    %c0_76 = arith.constant 0 : index
    %c128_77 = arith.constant 128 : index
    %257 = vector.load %arg21[%c5_75, %c0_76, %c128_77] : memref<8x8x256xf32, #tpu.memory_space<vmem>>, vector<1x8x128xf32>
    %258 = vector.shape_cast %257 : vector<1x8x128xf32> to vector<8x128xf32>
    %259 = vector.shape_cast %250 : vector<8x128xf32> to vector<1x8x128xf32>
    tpu.vector_store %arg21[%c5_75, %c0_76, %c128_77], %259 {strides = array<i32>} : memref<8x8x256xf32, #tpu.memory_space<vmem>>, vector<1x8x128xf32>,
    %c3 = arith.constant 3 : index
    %c0_78 = arith.constant 0 : index
    %c0_79 = arith.constant 0 : index
    %260 = vector.load %arg22[%c3, %c0_78, %c0_79] : memref<8x8x512xf32, #tpu.memory_space<vmem>>, vector<1x8x512xf32>
    %261 = vector.shape_cast %260 : vector<1x8x512xf32> to vector<8x512xf32>
    %cst_80 = arith.constant dense<0.000000e+00> : vector<8x512xf32>
    %262 = tpu.matmul %213, %17, %cst_80 {dimension_numbers = #tpu.dot_dimension_numbers<[1], [0], [0], [1], [0, 0, 1, 1], [], []>} : vector<8x128xf32>, vector<128x512xf32>, vector<8x512xf32> -> vector<8x512xf32>
    %263 = arith.addf %261, %262 : vector<8x512xf32>
    %264 = vector.extract_strided_slice %263 {offsets = [0, 0], sizes = [8, 128], strides = [1, 1]} : vector<8x512xf32> to vector<8x128xf32>
    %265 = arith.negf %264 : vector<8x128xf32>
    %266 = math.exp %265 : vector<8x128xf32>
    %cst_81 = arith.constant 1.000000e+00 : f32
    %267 = vector.broadcast %cst_81 : f32 to vector<8x128xf32>
    %268 = arith.addf %267, %266 : vector<8x128xf32>
    %269 = arith.divf %267, %268 : vector<8x128xf32>
    %270 = vector.extract_strided_slice %263 {offsets = [0, 128], sizes = [8, 128], strides = [1, 1]} : vector<8x512xf32> to vector<8x128xf32>
    %271 = arith.negf %270 : vector<8x128xf32>
    %272 = math.exp %271 : vector<8x128xf32>
    %cst_82 = arith.constant 1.000000e+00 : f32
    %273 = vector.broadcast %cst_82 : f32 to vector<8x128xf32>
    %274 = arith.addf %273, %272 : vector<8x128xf32>
    %275 = arith.divf %273, %274 : vector<8x128xf32>
    %276 = vector.extract_strided_slice %263 {offsets = [0, 256], sizes = [8, 128], strides = [1, 1]} : vector<8x512xf32> to vector<8x128xf32>
    %277 = math.tanh %276 : vector<8x128xf32>
    %278 = vector.extract_strided_slice %263 {offsets = [0, 384], sizes = [8, 128], strides = [1, 1]} : vector<8x512xf32> to vector<8x128xf32>
    %279 = arith.negf %278 : vector<8x128xf32>
    %280 = math.exp %279 : vector<8x128xf32>
    %cst_83 = arith.constant 1.000000e+00 : f32
    %281 = vector.broadcast %cst_83 : f32 to vector<8x128xf32>
    %282 = arith.addf %281, %280 : vector<8x128xf32>
    %283 = arith.divf %281, %282 : vector<8x128xf32>
    %284 = arith.mulf %275, %216 : vector<8x128xf32>
    %285 = arith.mulf %269, %277 : vector<8x128xf32>
    %286 = arith.addf %284, %285 : vector<8x128xf32>
    %287 = math.tanh %286 : vector<8x128xf32>
    %288 = arith.mulf %283, %287 : vector<8x128xf32>
    %c3_i32 = arith.constant 3 : i32
    %289 = vector.broadcast %c3_i32 : i32 to vector<8x1xi32>
    %290 = arith.cmpi sgt, %0, %289 : vector<8x1xi32>
    %291 = vector.shape_cast %290 : vector<8x1xi1> to vector<8x1xi1>
    %292 = vector.broadcast %291 : vector<8x1xi1> to vector<8x128xi1>
    %293 = arith.select %292, %288, %213 : vector<8x128xi1>, vector<8x128xf32>
    %294 = vector.shape_cast %290 : vector<8x1xi1> to vector<8x1xi1>
    %295 = vector.broadcast %294 : vector<8x1xi1> to vector<8x128xi1>
    %296 = arith.select %295, %286, %216 : vector<8x128xi1>, vector<8x128xf32>
    %c4 = arith.constant 4 : index
    %c0_84 = arith.constant 0 : index
    %c0_85 = arith.constant 0 : index
    %297 = vector.load %arg23[%c4, %c0_84, %c0_85] : memref<8x8x512xf32, #tpu.memory_space<vmem>>, vector<1x8x512xf32>
    %298 = vector.shape_cast %297 : vector<1x8x512xf32> to vector<8x512xf32>
    %cst_86 = arith.constant dense<0.000000e+00> : vector<8x512xf32>
    %299 = tpu.matmul %250, %18, %cst_86 {dimension_numbers = #tpu.dot_dimension_numbers<[1], [0], [0], [1], [0, 0, 1, 1], [], []>} : vector<8x128xf32>, vector<128x512xf32>, vector<8x512xf32> -> vector<8x512xf32>
    %300 = arith.addf %298, %299 : vector<8x512xf32>
    %301 = vector.extract_strided_slice %300 {offsets = [0, 0], sizes = [8, 128], strides = [1, 1]} : vector<8x512xf32> to vector<8x128xf32>
    %302 = arith.negf %301 : vector<8x128xf32>
    %303 = math.exp %302 : vector<8x128xf32>
    %cst_87 = arith.constant 1.000000e+00 : f32
    %304 = vector.broadcast %cst_87 : f32 to vector<8x128xf32>
    %305 = arith.addf %304, %303 : vector<8x128xf32>
    %306 = arith.divf %304, %305 : vector<8x128xf32>
    %307 = vector.extract_strided_slice %300 {offsets = [0, 128], sizes = [8, 128], strides = [1, 1]} : vector<8x512xf32> to vector<8x128xf32>
    %308 = arith.negf %307 : vector<8x128xf32>
    %309 = math.exp %308 : vector<8x128xf32>
    %cst_88 = arith.constant 1.000000e+00 : f32
    %310 = vector.broadcast %cst_88 : f32 to vector<8x128xf32>
    %311 = arith.addf %310, %309 : vector<8x128xf32>
    %312 = arith.divf %310, %311 : vector<8x128xf32>
    %313 = vector.extract_strided_slice %300 {offsets = [0, 256], sizes = [8, 128], strides = [1, 1]} : vector<8x512xf32> to vector<8x128xf32>
    %314 = math.tanh %313 : vector<8x128xf32>
    %315 = vector.extract_strided_slice %300 {offsets = [0, 384], sizes = [8, 128], strides = [1, 1]} : vector<8x512xf32> to vector<8x128xf32>
    %316 = arith.negf %315 : vector<8x128xf32>
    %317 = math.exp %316 : vector<8x128xf32>
    %cst_89 = arith.constant 1.000000e+00 : f32
    %318 = vector.broadcast %cst_89 : f32 to vector<8x128xf32>
    %319 = arith.addf %318, %317 : vector<8x128xf32>
    %320 = arith.divf %318, %319 : vector<8x128xf32>
    %321 = arith.mulf %312, %253 : vector<8x128xf32>
    %322 = arith.mulf %306, %314 : vector<8x128xf32>
    %323 = arith.addf %321, %322 : vector<8x128xf32>
    %324 = math.tanh %323 : vector<8x128xf32>
    %325 = arith.mulf %320, %324 : vector<8x128xf32>
    %c4_i32 = arith.constant 4 : i32
    %326 = vector.broadcast %c4_i32 : i32 to vector<8x1xi32>
    %327 = arith.cmpi sgt, %0, %326 : vector<8x1xi32>
    %328 = vector.shape_cast %327 : vector<8x1xi1> to vector<8x1xi1>
    %329 = vector.broadcast %328 : vector<8x1xi1> to vector<8x128xi1>
    %330 = arith.select %329, %325, %250 : vector<8x128xi1>, vector<8x128xf32>
    %331 = vector.shape_cast %327 : vector<8x1xi1> to vector<8x1xi1>
    %332 = vector.broadcast %331 : vector<8x1xi1> to vector<8x128xi1>
    %333 = arith.select %332, %323, %253 : vector<8x128xi1>, vector<8x128xf32>
    %c3_90 = arith.constant 3 : index
    %c0_91 = arith.constant 0 : index
    %c0_92 = arith.constant 0 : index
    %334 = vector.load %arg21[%c3_90, %c0_91, %c0_92] : memref<8x8x256xf32, #tpu.memory_space<vmem>>, vector<1x8x128xf32>
    %335 = vector.shape_cast %334 : vector<1x8x128xf32> to vector<8x128xf32>
    %336 = vector.shape_cast %293 : vector<8x128xf32> to vector<1x8x128xf32>
    tpu.vector_store %arg21[%c3_90, %c0_91, %c0_92], %336 {strides = array<i32>} : memref<8x8x256xf32, #tpu.memory_space<vmem>>, vector<1x8x128xf32>,
    %c4_93 = arith.constant 4 : index
    %c0_94 = arith.constant 0 : index
    %c128_95 = arith.constant 128 : index
    %337 = vector.load %arg21[%c4_93, %c0_94, %c128_95] : memref<8x8x256xf32, #tpu.memory_space<vmem>>, vector<1x8x128xf32>
    %338 = vector.shape_cast %337 : vector<1x8x128xf32> to vector<8x128xf32>
    %339 = vector.shape_cast %330 : vector<8x128xf32> to vector<1x8x128xf32>
    tpu.vector_store %arg21[%c4_93, %c0_94, %c128_95], %339 {strides = array<i32>} : memref<8x8x256xf32, #tpu.memory_space<vmem>>, vector<1x8x128xf32>,
    %c4_96 = arith.constant 4 : index
    %c0_97 = arith.constant 0 : index
    %c0_98 = arith.constant 0 : index
    %340 = vector.load %arg22[%c4_96, %c0_97, %c0_98] : memref<8x8x512xf32, #tpu.memory_space<vmem>>, vector<1x8x512xf32>
    %341 = vector.shape_cast %340 : vector<1x8x512xf32> to vector<8x512xf32>
    %cst_99 = arith.constant dense<0.000000e+00> : vector<8x512xf32>
    %342 = tpu.matmul %293, %17, %cst_99 {dimension_numbers = #tpu.dot_dimension_numbers<[1], [0], [0], [1], [0, 0, 1, 1], [], []>} : vector<8x128xf32>, vector<128x512xf32>, vector<8x512xf32> -> vector<8x512xf32>
    %343 = arith.addf %341, %342 : vector<8x512xf32>
    %344 = vector.extract_strided_slice %343 {offsets = [0, 0], sizes = [8, 128], strides = [1, 1]} : vector<8x512xf32> to vector<8x128xf32>
    %345 = arith.negf %344 : vector<8x128xf32>
    %346 = math.exp %345 : vector<8x128xf32>
    %cst_100 = arith.constant 1.000000e+00 : f32
    %347 = vector.broadcast %cst_100 : f32 to vector<8x128xf32>
    %348 = arith.addf %347, %346 : vector<8x128xf32>
    %349 = arith.divf %347, %348 : vector<8x128xf32>
    %350 = vector.extract_strided_slice %343 {offsets = [0, 128], sizes = [8, 128], strides = [1, 1]} : vector<8x512xf32> to vector<8x128xf32>
    %351 = arith.negf %350 : vector<8x128xf32>
    %352 = math.exp %351 : vector<8x128xf32>
    %cst_101 = arith.constant 1.000000e+00 : f32
    %353 = vector.broadcast %cst_101 : f32 to vector<8x128xf32>
    %354 = arith.addf %353, %352 : vector<8x128xf32>
    %355 = arith.divf %353, %354 : vector<8x128xf32>
    %356 = vector.extract_strided_slice %343 {offsets = [0, 256], sizes = [8, 128], strides = [1, 1]} : vector<8x512xf32> to vector<8x128xf32>
    %357 = math.tanh %356 : vector<8x128xf32>
    %358 = vector.extract_strided_slice %343 {offsets = [0, 384], sizes = [8, 128], strides = [1, 1]} : vector<8x512xf32> to vector<8x128xf32>
    %359 = arith.negf %358 : vector<8x128xf32>
    %360 = math.exp %359 : vector<8x128xf32>
    %cst_102 = arith.constant 1.000000e+00 : f32
    %361 = vector.broadcast %cst_102 : f32 to vector<8x128xf32>
    %362 = arith.addf %361, %360 : vector<8x128xf32>
    %363 = arith.divf %361, %362 : vector<8x128xf32>
    %364 = arith.mulf %355, %296 : vector<8x128xf32>
    %365 = arith.mulf %349, %357 : vector<8x128xf32>
    %366 = arith.addf %364, %365 : vector<8x128xf32>
    %367 = math.tanh %366 : vector<8x128xf32>
    %368 = arith.mulf %363, %367 : vector<8x128xf32>
    %c4_i32_103 = arith.constant 4 : i32
    %369 = vector.broadcast %c4_i32_103 : i32 to vector<8x1xi32>
    %370 = arith.cmpi sgt, %0, %369 : vector<8x1xi32>
    %371 = vector.shape_cast %370 : vector<8x1xi1> to vector<8x1xi1>
    %372 = vector.broadcast %371 : vector<8x1xi1> to vector<8x128xi1>
    %373 = arith.select %372, %368, %293 : vector<8x128xi1>, vector<8x128xf32>
    %374 = vector.shape_cast %370 : vector<8x1xi1> to vector<8x1xi1>
    %375 = vector.broadcast %374 : vector<8x1xi1> to vector<8x128xi1>
    %376 = arith.select %375, %366, %296 : vector<8x128xi1>, vector<8x128xf32>
    %c3_104 = arith.constant 3 : index
    %c0_105 = arith.constant 0 : index
    %c0_106 = arith.constant 0 : index
    %377 = vector.load %arg23[%c3_104, %c0_105, %c0_106] : memref<8x8x512xf32, #tpu.memory_space<vmem>>, vector<1x8x512xf32>
    %378 = vector.shape_cast %377 : vector<1x8x512xf32> to vector<8x512xf32>
    %cst_107 = arith.constant dense<0.000000e+00> : vector<8x512xf32>
    %379 = tpu.matmul %330, %18, %cst_107 {dimension_numbers = #tpu.dot_dimension_numbers<[1], [0], [0], [1], [0, 0, 1, 1], [], []>} : vector<8x128xf32>, vector<128x512xf32>, vector<8x512xf32> -> vector<8x512xf32>
    %380 = arith.addf %378, %379 : vector<8x512xf32>
    %381 = vector.extract_strided_slice %380 {offsets = [0, 0], sizes = [8, 128], strides = [1, 1]} : vector<8x512xf32> to vector<8x128xf32>
    %382 = arith.negf %381 : vector<8x128xf32>
    %383 = math.exp %382 : vector<8x128xf32>
    %cst_108 = arith.constant 1.000000e+00 : f32
    %384 = vector.broadcast %cst_108 : f32 to vector<8x128xf32>
    %385 = arith.addf %384, %383 : vector<8x128xf32>
    %386 = arith.divf %384, %385 : vector<8x128xf32>
    %387 = vector.extract_strided_slice %380 {offsets = [0, 128], sizes = [8, 128], strides = [1, 1]} : vector<8x512xf32> to vector<8x128xf32>
    %388 = arith.negf %387 : vector<8x128xf32>
    %389 = math.exp %388 : vector<8x128xf32>
    %cst_109 = arith.constant 1.000000e+00 : f32
    %390 = vector.broadcast %cst_109 : f32 to vector<8x128xf32>
    %391 = arith.addf %390, %389 : vector<8x128xf32>
    %392 = arith.divf %390, %391 : vector<8x128xf32>
    %393 = vector.extract_strided_slice %380 {offsets = [0, 256], sizes = [8, 128], strides = [1, 1]} : vector<8x512xf32> to vector<8x128xf32>
    %394 = math.tanh %393 : vector<8x128xf32>
    %395 = vector.extract_strided_slice %380 {offsets = [0, 384], sizes = [8, 128], strides = [1, 1]} : vector<8x512xf32> to vector<8x128xf32>
    %396 = arith.negf %395 : vector<8x128xf32>
    %397 = math.exp %396 : vector<8x128xf32>
    %cst_110 = arith.constant 1.000000e+00 : f32
    %398 = vector.broadcast %cst_110 : f32 to vector<8x128xf32>
    %399 = arith.addf %398, %397 : vector<8x128xf32>
    %400 = arith.divf %398, %399 : vector<8x128xf32>
    %401 = arith.mulf %392, %333 : vector<8x128xf32>
    %402 = arith.mulf %386, %394 : vector<8x128xf32>
    %403 = arith.addf %401, %402 : vector<8x128xf32>
    %404 = math.tanh %403 : vector<8x128xf32>
    %405 = arith.mulf %400, %404 : vector<8x128xf32>
    %c3_i32_111 = arith.constant 3 : i32
    %406 = vector.broadcast %c3_i32_111 : i32 to vector<8x1xi32>
    %407 = arith.cmpi sgt, %0, %406 : vector<8x1xi32>
    %408 = vector.shape_cast %407 : vector<8x1xi1> to vector<8x1xi1>
    %409 = vector.broadcast %408 : vector<8x1xi1> to vector<8x128xi1>
    %410 = arith.select %409, %405, %330 : vector<8x128xi1>, vector<8x128xf32>
    %411 = vector.shape_cast %407 : vector<8x1xi1> to vector<8x1xi1>
    %412 = vector.broadcast %411 : vector<8x1xi1> to vector<8x128xi1>
    %413 = arith.select %412, %403, %333 : vector<8x128xi1>, vector<8x128xf32>
    %c4_112 = arith.constant 4 : index
    %c0_113 = arith.constant 0 : index
    %c0_114 = arith.constant 0 : index
    %414 = vector.load %arg21[%c4_112, %c0_113, %c0_114] : memref<8x8x256xf32, #tpu.memory_space<vmem>>, vector<1x8x128xf32>
    %415 = vector.shape_cast %414 : vector<1x8x128xf32> to vector<8x128xf32>
    %416 = vector.shape_cast %373 : vector<8x128xf32> to vector<1x8x128xf32>
    tpu.vector_store %arg21[%c4_112, %c0_113, %c0_114], %416 {strides = array<i32>} : memref<8x8x256xf32, #tpu.memory_space<vmem>>, vector<1x8x128xf32>,
    %c3_115 = arith.constant 3 : index
    %c0_116 = arith.constant 0 : index
    %c128_117 = arith.constant 128 : index
    %417 = vector.load %arg21[%c3_115, %c0_116, %c128_117] : memref<8x8x256xf32, #tpu.memory_space<vmem>>, vector<1x8x128xf32>
    %418 = vector.shape_cast %417 : vector<1x8x128xf32> to vector<8x128xf32>
    %419 = vector.shape_cast %410 : vector<8x128xf32> to vector<1x8x128xf32>
    tpu.vector_store %arg21[%c3_115, %c0_116, %c128_117], %419 {strides = array<i32>} : memref<8x8x256xf32, #tpu.memory_space<vmem>>, vector<1x8x128xf32>,
    %c5_118 = arith.constant 5 : index
    %c0_119 = arith.constant 0 : index
    %c0_120 = arith.constant 0 : index
    %420 = vector.load %arg22[%c5_118, %c0_119, %c0_120] : memref<8x8x512xf32, #tpu.memory_space<vmem>>, vector<1x8x512xf32>
    %421 = vector.shape_cast %420 : vector<1x8x512xf32> to vector<8x512xf32>
    %cst_121 = arith.constant dense<0.000000e+00> : vector<8x512xf32>
    %422 = tpu.matmul %373, %17, %cst_121 {dimension_numbers = #tpu.dot_dimension_numbers<[1], [0], [0], [1], [0, 0, 1, 1], [], []>} : vector<8x128xf32>, vector<128x512xf32>, vector<8x512xf32> -> vector<8x512xf32>
    %423 = arith.addf %421, %422 : vector<8x512xf32>
    %424 = vector.extract_strided_slice %423 {offsets = [0, 0], sizes = [8, 128], strides = [1, 1]} : vector<8x512xf32> to vector<8x128xf32>
    %425 = arith.negf %424 : vector<8x128xf32>
    %426 = math.exp %425 : vector<8x128xf32>
    %cst_122 = arith.constant 1.000000e+00 : f32
    %427 = vector.broadcast %cst_122 : f32 to vector<8x128xf32>
    %428 = arith.addf %427, %426 : vector<8x128xf32>
    %429 = arith.divf %427, %428 : vector<8x128xf32>
    %430 = vector.extract_strided_slice %423 {offsets = [0, 128], sizes = [8, 128], strides = [1, 1]} : vector<8x512xf32> to vector<8x128xf32>
    %431 = arith.negf %430 : vector<8x128xf32>
    %432 = math.exp %431 : vector<8x128xf32>
    %cst_123 = arith.constant 1.000000e+00 : f32
    %433 = vector.broadcast %cst_123 : f32 to vector<8x128xf32>
    %434 = arith.addf %433, %432 : vector<8x128xf32>
    %435 = arith.divf %433, %434 : vector<8x128xf32>
    %436 = vector.extract_strided_slice %423 {offsets = [0, 256], sizes = [8, 128], strides = [1, 1]} : vector<8x512xf32> to vector<8x128xf32>
    %437 = math.tanh %436 : vector<8x128xf32>
    %438 = vector.extract_strided_slice %423 {offsets = [0, 384], sizes = [8, 128], strides = [1, 1]} : vector<8x512xf32> to vector<8x128xf32>
    %439 = arith.negf %438 : vector<8x128xf32>
    %440 = math.exp %439 : vector<8x128xf32>
    %cst_124 = arith.constant 1.000000e+00 : f32
    %441 = vector.broadcast %cst_124 : f32 to vector<8x128xf32>
    %442 = arith.addf %441, %440 : vector<8x128xf32>
    %443 = arith.divf %441, %442 : vector<8x128xf32>
    %444 = arith.mulf %435, %376 : vector<8x128xf32>
    %445 = arith.mulf %429, %437 : vector<8x128xf32>
    %446 = arith.addf %444, %445 : vector<8x128xf32>
    %447 = math.tanh %446 : vector<8x128xf32>
    %448 = arith.mulf %443, %447 : vector<8x128xf32>
    %c5_i32_125 = arith.constant 5 : i32
    %449 = vector.broadcast %c5_i32_125 : i32 to vector<8x1xi32>
    %450 = arith.cmpi sgt, %0, %449 : vector<8x1xi32>
    %451 = vector.shape_cast %450 : vector<8x1xi1> to vector<8x1xi1>
    %452 = vector.broadcast %451 : vector<8x1xi1> to vector<8x128xi1>
    %453 = arith.select %452, %448, %373 : vector<8x128xi1>, vector<8x128xf32>
    %454 = vector.shape_cast %450 : vector<8x1xi1> to vector<8x1xi1>
    %455 = vector.broadcast %454 : vector<8x1xi1> to vector<8x128xi1>
    %456 = arith.select %455, %446, %376 : vector<8x128xi1>, vector<8x128xf32>
    %c2_126 = arith.constant 2 : index
    %c0_127 = arith.constant 0 : index
    %c0_128 = arith.constant 0 : index
    %457 = vector.load %arg23[%c2_126, %c0_127, %c0_128] : memref<8x8x512xf32, #tpu.memory_space<vmem>>, vector<1x8x512xf32>
    %458 = vector.shape_cast %457 : vector<1x8x512xf32> to vector<8x512xf32>
    %cst_129 = arith.constant dense<0.000000e+00> : vector<8x512xf32>
    %459 = tpu.matmul %410, %18, %cst_129 {dimension_numbers = #tpu.dot_dimension_numbers<[1], [0], [0], [1], [0, 0, 1, 1], [], []>} : vector<8x128xf32>, vector<128x512xf32>, vector<8x512xf32> -> vector<8x512xf32>
    %460 = arith.addf %458, %459 : vector<8x512xf32>
    %461 = vector.extract_strided_slice %460 {offsets = [0, 0], sizes = [8, 128], strides = [1, 1]} : vector<8x512xf32> to vector<8x128xf32>
    %462 = arith.negf %461 : vector<8x128xf32>
    %463 = math.exp %462 : vector<8x128xf32>
    %cst_130 = arith.constant 1.000000e+00 : f32
    %464 = vector.broadcast %cst_130 : f32 to vector<8x128xf32>
    %465 = arith.addf %464, %463 : vector<8x128xf32>
    %466 = arith.divf %464, %465 : vector<8x128xf32>
    %467 = vector.extract_strided_slice %460 {offsets = [0, 128], sizes = [8, 128], strides = [1, 1]} : vector<8x512xf32> to vector<8x128xf32>
    %468 = arith.negf %467 : vector<8x128xf32>
    %469 = math.exp %468 : vector<8x128xf32>
    %cst_131 = arith.constant 1.000000e+00 : f32
    %470 = vector.broadcast %cst_131 : f32 to vector<8x128xf32>
    %471 = arith.addf %470, %469 : vector<8x128xf32>
    %472 = arith.divf %470, %471 : vector<8x128xf32>
    %473 = vector.extract_strided_slice %460 {offsets = [0, 256], sizes = [8, 128], strides = [1, 1]} : vector<8x512xf32> to vector<8x128xf32>
    %474 = math.tanh %473 : vector<8x128xf32>
    %475 = vector.extract_strided_slice %460 {offsets = [0, 384], sizes = [8, 128], strides = [1, 1]} : vector<8x512xf32> to vector<8x128xf32>
    %476 = arith.negf %475 : vector<8x128xf32>
    %477 = math.exp %476 : vector<8x128xf32>
    %cst_132 = arith.constant 1.000000e+00 : f32
    %478 = vector.broadcast %cst_132 : f32 to vector<8x128xf32>
    %479 = arith.addf %478, %477 : vector<8x128xf32>
    %480 = arith.divf %478, %479 : vector<8x128xf32>
    %481 = arith.mulf %472, %413 : vector<8x128xf32>
    %482 = arith.mulf %466, %474 : vector<8x128xf32>
    %483 = arith.addf %481, %482 : vector<8x128xf32>
    %484 = math.tanh %483 : vector<8x128xf32>
    %485 = arith.mulf %480, %484 : vector<8x128xf32>
    %c2_i32_133 = arith.constant 2 : i32
    %486 = vector.broadcast %c2_i32_133 : i32 to vector<8x1xi32>
    %487 = arith.cmpi sgt, %0, %486 : vector<8x1xi32>
    %488 = vector.shape_cast %487 : vector<8x1xi1> to vector<8x1xi1>
    %489 = vector.broadcast %488 : vector<8x1xi1> to vector<8x128xi1>
    %490 = arith.select %489, %485, %410 : vector<8x128xi1>, vector<8x128xf32>
    %491 = vector.shape_cast %487 : vector<8x1xi1> to vector<8x1xi1>
    %492 = vector.broadcast %491 : vector<8x1xi1> to vector<8x128xi1>
    %493 = arith.select %492, %483, %413 : vector<8x128xi1>, vector<8x128xf32>
    %c5_134 = arith.constant 5 : index
    %c0_135 = arith.constant 0 : index
    %c0_136 = arith.constant 0 : index
    %494 = vector.load %arg21[%c5_134, %c0_135, %c0_136] : memref<8x8x256xf32, #tpu.memory_space<vmem>>, vector<1x8x128xf32>
    %495 = vector.shape_cast %494 : vector<1x8x128xf32> to vector<8x128xf32>
    %496 = vector.shape_cast %453 : vector<8x128xf32> to vector<1x8x128xf32>
    tpu.vector_store %arg21[%c5_134, %c0_135, %c0_136], %496 {strides = array<i32>} : memref<8x8x256xf32, #tpu.memory_space<vmem>>, vector<1x8x128xf32>,
    %c2_137 = arith.constant 2 : index
    %c0_138 = arith.constant 0 : index
    %c128_139 = arith.constant 128 : index
    %497 = vector.load %arg21[%c2_137, %c0_138, %c128_139] : memref<8x8x256xf32, #tpu.memory_space<vmem>>, vector<1x8x128xf32>
    %498 = vector.shape_cast %497 : vector<1x8x128xf32> to vector<8x128xf32>
    %499 = vector.shape_cast %490 : vector<8x128xf32> to vector<1x8x128xf32>
    tpu.vector_store %arg21[%c2_137, %c0_138, %c128_139], %499 {strides = array<i32>} : memref<8x8x256xf32, #tpu.memory_space<vmem>>, vector<1x8x128xf32>,
    %c6_140 = arith.constant 6 : index
    %c0_141 = arith.constant 0 : index
    %c0_142 = arith.constant 0 : index
    %500 = vector.load %arg22[%c6_140, %c0_141, %c0_142] : memref<8x8x512xf32, #tpu.memory_space<vmem>>, vector<1x8x512xf32>
    %501 = vector.shape_cast %500 : vector<1x8x512xf32> to vector<8x512xf32>
    %cst_143 = arith.constant dense<0.000000e+00> : vector<8x512xf32>
    %502 = tpu.matmul %453, %17, %cst_143 {dimension_numbers = #tpu.dot_dimension_numbers<[1], [0], [0], [1], [0, 0, 1, 1], [], []>} : vector<8x128xf32>, vector<128x512xf32>, vector<8x512xf32> -> vector<8x512xf32>
    %503 = arith.addf %501, %502 : vector<8x512xf32>
    %504 = vector.extract_strided_slice %503 {offsets = [0, 0], sizes = [8, 128], strides = [1, 1]} : vector<8x512xf32> to vector<8x128xf32>
    %505 = arith.negf %504 : vector<8x128xf32>
    %506 = math.exp %505 : vector<8x128xf32>
    %cst_144 = arith.constant 1.000000e+00 : f32
    %507 = vector.broadcast %cst_144 : f32 to vector<8x128xf32>
    %508 = arith.addf %507, %506 : vector<8x128xf32>
    %509 = arith.divf %507, %508 : vector<8x128xf32>
    %510 = vector.extract_strided_slice %503 {offsets = [0, 128], sizes = [8, 128], strides = [1, 1]} : vector<8x512xf32> to vector<8x128xf32>
    %511 = arith.negf %510 : vector<8x128xf32>
    %512 = math.exp %511 : vector<8x128xf32>
    %cst_145 = arith.constant 1.000000e+00 : f32
    %513 = vector.broadcast %cst_145 : f32 to vector<8x128xf32>
    %514 = arith.addf %513, %512 : vector<8x128xf32>
    %515 = arith.divf %513, %514 : vector<8x128xf32>
    %516 = vector.extract_strided_slice %503 {offsets = [0, 256], sizes = [8, 128], strides = [1, 1]} : vector<8x512xf32> to vector<8x128xf32>
    %517 = math.tanh %516 : vector<8x128xf32>
    %518 = vector.extract_strided_slice %503 {offsets = [0, 384], sizes = [8, 128], strides = [1, 1]} : vector<8x512xf32> to vector<8x128xf32>
    %519 = arith.negf %518 : vector<8x128xf32>
    %520 = math.exp %519 : vector<8x128xf32>
    %cst_146 = arith.constant 1.000000e+00 : f32
    %521 = vector.broadcast %cst_146 : f32 to vector<8x128xf32>
    %522 = arith.addf %521, %520 : vector<8x128xf32>
    %523 = arith.divf %521, %522 : vector<8x128xf32>
    %524 = arith.mulf %515, %456 : vector<8x128xf32>
    %525 = arith.mulf %509, %517 : vector<8x128xf32>
    %526 = arith.addf %524, %525 : vector<8x128xf32>
    %527 = math.tanh %526 : vector<8x128xf32>
    %528 = arith.mulf %523, %527 : vector<8x128xf32>
    %c6_i32_147 = arith.constant 6 : i32
    %529 = vector.broadcast %c6_i32_147 : i32 to vector<8x1xi32>
    %530 = arith.cmpi sgt, %0, %529 : vector<8x1xi32>
    %531 = vector.shape_cast %530 : vector<8x1xi1> to vector<8x1xi1>
    %532 = vector.broadcast %531 : vector<8x1xi1> to vector<8x128xi1>
    %533 = arith.select %532, %528, %453 : vector<8x128xi1>, vector<8x128xf32>
    %534 = vector.shape_cast %530 : vector<8x1xi1> to vector<8x1xi1>
    %535 = vector.broadcast %534 : vector<8x1xi1> to vector<8x128xi1>
    %536 = arith.select %535, %526, %456 : vector<8x128xi1>, vector<8x128xf32>
    %c1_148 = arith.constant 1 : index
    %c0_149 = arith.constant 0 : index
    %c0_150 = arith.constant 0 : index
    %537 = vector.load %arg23[%c1_148, %c0_149, %c0_150] : memref<8x8x512xf32, #tpu.memory_space<vmem>>, vector<1x8x512xf32>
    %538 = vector.shape_cast %537 : vector<1x8x512xf32> to vector<8x512xf32>
    %cst_151 = arith.constant dense<0.000000e+00> : vector<8x512xf32>
    %539 = tpu.matmul %490, %18, %cst_151 {dimension_numbers = #tpu.dot_dimension_numbers<[1], [0], [0], [1], [0, 0, 1, 1], [], []>} : vector<8x128xf32>, vector<128x512xf32>, vector<8x512xf32> -> vector<8x512xf32>
    %540 = arith.addf %538, %539 : vector<8x512xf32>
    %541 = vector.extract_strided_slice %540 {offsets = [0, 0], sizes = [8, 128], strides = [1, 1]} : vector<8x512xf32> to vector<8x128xf32>
    %542 = arith.negf %541 : vector<8x128xf32>
    %543 = math.exp %542 : vector<8x128xf32>
    %cst_152 = arith.constant 1.000000e+00 : f32
    %544 = vector.broadcast %cst_152 : f32 to vector<8x128xf32>
    %545 = arith.addf %544, %543 : vector<8x128xf32>
    %546 = arith.divf %544, %545 : vector<8x128xf32>
    %547 = vector.extract_strided_slice %540 {offsets = [0, 128], sizes = [8, 128], strides = [1, 1]} : vector<8x512xf32> to vector<8x128xf32>
    %548 = arith.negf %547 : vector<8x128xf32>
    %549 = math.exp %548 : vector<8x128xf32>
    %cst_153 = arith.constant 1.000000e+00 : f32
    %550 = vector.broadcast %cst_153 : f32 to vector<8x128xf32>
    %551 = arith.addf %550, %549 : vector<8x128xf32>
    %552 = arith.divf %550, %551 : vector<8x128xf32>
    %553 = vector.extract_strided_slice %540 {offsets = [0, 256], sizes = [8, 128], strides = [1, 1]} : vector<8x512xf32> to vector<8x128xf32>
    %554 = math.tanh %553 : vector<8x128xf32>
    %555 = vector.extract_strided_slice %540 {offsets = [0, 384], sizes = [8, 128], strides = [1, 1]} : vector<8x512xf32> to vector<8x128xf32>
    %556 = arith.negf %555 : vector<8x128xf32>
    %557 = math.exp %556 : vector<8x128xf32>
    %cst_154 = arith.constant 1.000000e+00 : f32
    %558 = vector.broadcast %cst_154 : f32 to vector<8x128xf32>
    %559 = arith.addf %558, %557 : vector<8x128xf32>
    %560 = arith.divf %558, %559 : vector<8x128xf32>
    %561 = arith.mulf %552, %493 : vector<8x128xf32>
    %562 = arith.mulf %546, %554 : vector<8x128xf32>
    %563 = arith.addf %561, %562 : vector<8x128xf32>
    %564 = math.tanh %563 : vector<8x128xf32>
    %565 = arith.mulf %560, %564 : vector<8x128xf32>
    %c1_i32_155 = arith.constant 1 : i32
    %566 = vector.broadcast %c1_i32_155 : i32 to vector<8x1xi32>
    %567 = arith.cmpi sgt, %0, %566 : vector<8x1xi32>
    %568 = vector.shape_cast %567 : vector<8x1xi1> to vector<8x1xi1>
    %569 = vector.broadcast %568 : vector<8x1xi1> to vector<8x128xi1>
    %570 = arith.select %569, %565, %490 : vector<8x128xi1>, vector<8x128xf32>
    %571 = vector.shape_cast %567 : vector<8x1xi1> to vector<8x1xi1>
    %572 = vector.broadcast %571 : vector<8x1xi1> to vector<8x128xi1>
    %573 = arith.select %572, %563, %493 : vector<8x128xi1>, vector<8x128xf32>
    %c6_156 = arith.constant 6 : index
    %c0_157 = arith.constant 0 : index
    %c0_158 = arith.constant 0 : index
    %574 = vector.load %arg21[%c6_156, %c0_157, %c0_158] : memref<8x8x256xf32, #tpu.memory_space<vmem>>, vector<1x8x128xf32>
    %575 = vector.shape_cast %574 : vector<1x8x128xf32> to vector<8x128xf32>
    %576 = vector.shape_cast %533 : vector<8x128xf32> to vector<1x8x128xf32>
    tpu.vector_store %arg21[%c6_156, %c0_157, %c0_158], %576 {strides = array<i32>} : memref<8x8x256xf32, #tpu.memory_space<vmem>>, vector<1x8x128xf32>,
    %c1_159 = arith.constant 1 : index
    %c0_160 = arith.constant 0 : index
    %c128_161 = arith.constant 128 : index
    %577 = vector.load %arg21[%c1_159, %c0_160, %c128_161] : memref<8x8x256xf32, #tpu.memory_space<vmem>>, vector<1x8x128xf32>
    %578 = vector.shape_cast %577 : vector<1x8x128xf32> to vector<8x128xf32>
    %579 = vector.shape_cast %570 : vector<8x128xf32> to vector<1x8x128xf32>
    tpu.vector_store %arg21[%c1_159, %c0_160, %c128_161], %579 {strides = array<i32>} : memref<8x8x256xf32, #tpu.memory_space<vmem>>, vector<1x8x128xf32>,
    %c7_162 = arith.constant 7 : index
    %c0_163 = arith.constant 0 : index
    %c0_164 = arith.constant 0 : index
    %580 = vector.load %arg22[%c7_162, %c0_163, %c0_164] : memref<8x8x512xf32, #tpu.memory_space<vmem>>, vector<1x8x512xf32>
    %581 = vector.shape_cast %580 : vector<1x8x512xf32> to vector<8x512xf32>
    %cst_165 = arith.constant dense<0.000000e+00> : vector<8x512xf32>
    %582 = tpu.matmul %533, %17, %cst_165 {dimension_numbers = #tpu.dot_dimension_numbers<[1], [0], [0], [1], [0, 0, 1, 1], [], []>} : vector<8x128xf32>, vector<128x512xf32>, vector<8x512xf32> -> vector<8x512xf32>
    %583 = arith.addf %581, %582 : vector<8x512xf32>
    %584 = vector.extract_strided_slice %583 {offsets = [0, 0], sizes = [8, 128], strides = [1, 1]} : vector<8x512xf32> to vector<8x128xf32>
    %585 = arith.negf %584 : vector<8x128xf32>
    %586 = math.exp %585 : vector<8x128xf32>
    %cst_166 = arith.constant 1.000000e+00 : f32
    %587 = vector.broadcast %cst_166 : f32 to vector<8x128xf32>
    %588 = arith.addf %587, %586 : vector<8x128xf32>
    %589 = arith.divf %587, %588 : vector<8x128xf32>
    %590 = vector.extract_strided_slice %583 {offsets = [0, 128], sizes = [8, 128], strides = [1, 1]} : vector<8x512xf32> to vector<8x128xf32>
    %591 = arith.negf %590 : vector<8x128xf32>
    %592 = math.exp %591 : vector<8x128xf32>
    %cst_167 = arith.constant 1.000000e+00 : f32
    %593 = vector.broadcast %cst_167 : f32 to vector<8x128xf32>
    %594 = arith.addf %593, %592 : vector<8x128xf32>
    %595 = arith.divf %593, %594 : vector<8x128xf32>
    %596 = vector.extract_strided_slice %583 {offsets = [0, 256], sizes = [8, 128], strides = [1, 1]} : vector<8x512xf32> to vector<8x128xf32>
    %597 = math.tanh %596 : vector<8x128xf32>
    %598 = vector.extract_strided_slice %583 {offsets = [0, 384], sizes = [8, 128], strides = [1, 1]} : vector<8x512xf32> to vector<8x128xf32>
    %599 = arith.negf %598 : vector<8x128xf32>
    %600 = math.exp %599 : vector<8x128xf32>
    %cst_168 = arith.constant 1.000000e+00 : f32
    %601 = vector.broadcast %cst_168 : f32 to vector<8x128xf32>
    %602 = arith.addf %601, %600 : vector<8x128xf32>
    %603 = arith.divf %601, %602 : vector<8x128xf32>
    %604 = arith.mulf %595, %536 : vector<8x128xf32>
    %605 = arith.mulf %589, %597 : vector<8x128xf32>
    %606 = arith.addf %604, %605 : vector<8x128xf32>
    %607 = math.tanh %606 : vector<8x128xf32>
    %608 = arith.mulf %603, %607 : vector<8x128xf32>
    %c7_i32_169 = arith.constant 7 : i32
    %609 = vector.broadcast %c7_i32_169 : i32 to vector<8x1xi32>
    %610 = arith.cmpi sgt, %0, %609 : vector<8x1xi32>
    %611 = vector.shape_cast %610 : vector<8x1xi1> to vector<8x1xi1>
    %612 = vector.broadcast %611 : vector<8x1xi1> to vector<8x128xi1>
    %613 = arith.select %612, %608, %533 : vector<8x128xi1>, vector<8x128xf32>
    %c0_170 = arith.constant 0 : index
    %c0_171 = arith.constant 0 : index
    %c0_172 = arith.constant 0 : index
    %614 = vector.load %arg23[%c0_170, %c0_171, %c0_172] : memref<8x8x512xf32, #tpu.memory_space<vmem>>, vector<1x8x512xf32>
    %615 = vector.shape_cast %614 : vector<1x8x512xf32> to vector<8x512xf32>
    %cst_173 = arith.constant dense<0.000000e+00> : vector<8x512xf32>
    %616 = tpu.matmul %570, %18, %cst_173 {dimension_numbers = #tpu.dot_dimension_numbers<[1], [0], [0], [1], [0, 0, 1, 1], [], []>} : vector<8x128xf32>, vector<128x512xf32>, vector<8x512xf32> -> vector<8x512xf32>
    %617 = arith.addf %615, %616 : vector<8x512xf32>
    %618 = vector.extract_strided_slice %617 {offsets = [0, 0], sizes = [8, 128], strides = [1, 1]} : vector<8x512xf32> to vector<8x128xf32>
    %619 = arith.negf %618 : vector<8x128xf32>
    %620 = math.exp %619 : vector<8x128xf32>
    %cst_174 = arith.constant 1.000000e+00 : f32
    %621 = vector.broadcast %cst_174 : f32 to vector<8x128xf32>
    %622 = arith.addf %621, %620 : vector<8x128xf32>
    %623 = arith.divf %621, %622 : vector<8x128xf32>
    %624 = vector.extract_strided_slice %617 {offsets = [0, 128], sizes = [8, 128], strides = [1, 1]} : vector<8x512xf32> to vector<8x128xf32>
    %625 = arith.negf %624 : vector<8x128xf32>
    %626 = math.exp %625 : vector<8x128xf32>
    %cst_175 = arith.constant 1.000000e+00 : f32
    %627 = vector.broadcast %cst_175 : f32 to vector<8x128xf32>
    %628 = arith.addf %627, %626 : vector<8x128xf32>
    %629 = arith.divf %627, %628 : vector<8x128xf32>
    %630 = vector.extract_strided_slice %617 {offsets = [0, 256], sizes = [8, 128], strides = [1, 1]} : vector<8x512xf32> to vector<8x128xf32>
    %631 = math.tanh %630 : vector<8x128xf32>
    %632 = vector.extract_strided_slice %617 {offsets = [0, 384], sizes = [8, 128], strides = [1, 1]} : vector<8x512xf32> to vector<8x128xf32>
    %633 = arith.negf %632 : vector<8x128xf32>
    %634 = math.exp %633 : vector<8x128xf32>
    %cst_176 = arith.constant 1.000000e+00 : f32
    %635 = vector.broadcast %cst_176 : f32 to vector<8x128xf32>
    %636 = arith.addf %635, %634 : vector<8x128xf32>
    %637 = arith.divf %635, %636 : vector<8x128xf32>
    %638 = arith.mulf %629, %573 : vector<8x128xf32>
    %639 = arith.mulf %623, %631 : vector<8x128xf32>
    %640 = arith.addf %638, %639 : vector<8x128xf32>
    %641 = math.tanh %640 : vector<8x128xf32>
    %642 = arith.mulf %637, %641 : vector<8x128xf32>
    %c0_i32_177 = arith.constant 0 : i32
    %643 = vector.broadcast %c0_i32_177 : i32 to vector<8x1xi32>
    %644 = arith.cmpi sgt, %0, %643 : vector<8x1xi32>
    %645 = vector.shape_cast %644 : vector<8x1xi1> to vector<8x1xi1>
    %646 = vector.broadcast %645 : vector<8x1xi1> to vector<8x128xi1>
    %647 = arith.select %646, %642, %570 : vector<8x128xi1>, vector<8x128xf32>
    %c7_178 = arith.constant 7 : index
    %c0_179 = arith.constant 0 : index
    %c0_180 = arith.constant 0 : index
    %648 = vector.load %arg21[%c7_178, %c0_179, %c0_180] : memref<8x8x256xf32, #tpu.memory_space<vmem>>, vector<1x8x128xf32>
    %649 = vector.shape_cast %648 : vector<1x8x128xf32> to vector<8x128xf32>
    %650 = vector.shape_cast %613 : vector<8x128xf32> to vector<1x8x128xf32>
    tpu.vector_store %arg21[%c7_178, %c0_179, %c0_180], %650 {strides = array<i32>} : memref<8x8x256xf32, #tpu.memory_space<vmem>>, vector<1x8x128xf32>,
    %c0_181 = arith.constant 0 : index
    %c0_182 = arith.constant 0 : index
    %c128_183 = arith.constant 128 : index
    %651 = vector.load %arg21[%c0_181, %c0_182, %c128_183] : memref<8x8x256xf32, #tpu.memory_space<vmem>>, vector<1x8x128xf32>
    %652 = vector.shape_cast %651 : vector<1x8x128xf32> to vector<8x128xf32>
    %653 = vector.shape_cast %647 : vector<8x128xf32> to vector<1x8x128xf32>
    tpu.vector_store %arg21[%c0_181, %c0_182, %c128_183], %653 {strides = array<i32>} : memref<8x8x256xf32, #tpu.memory_space<vmem>>, vector<1x8x128xf32>,
    %c0_184 = arith.constant 0 : index
    %c0_185 = arith.constant 0 : index
    %c0_186 = arith.constant 0 : index
    %654 = vector.load %arg21[%c0_184, %c0_185, %c0_186] : memref<8x8x256xf32, #tpu.memory_space<vmem>>, vector<8x8x256xf32>
    %655 = vector.shape_cast %654 : vector<8x8x256xf32> to vector<64x256xf32>
    %c0_187 = arith.constant 0 : index
    %c0_188 = arith.constant 0 : index
    %656 = vector.load %arg10[%c0_187, %c0_188] : memref<256x512xf32, #tpu.memory_space<vmem>>, vector<256x512xf32>
    %cst_189 = arith.constant dense<0.000000e+00> : vector<64x512xf32>
    %657 = tpu.matmul %655, %656, %cst_189 {dimension_numbers = #tpu.dot_dimension_numbers<[1], [0], [0], [1], [0, 0, 1, 1], [], []>} : vector<64x256xf32>, vector<256x512xf32>, vector<64x512xf32> -> vector<64x512xf32>
    %c0_190 = arith.constant 0 : index
    %c0_191 = arith.constant 0 : index
    %658 = vector.load %arg12[%c0_190, %c0_191] : memref<1x512xf32, #tpu.memory_space<vmem>>, vector<1x512xf32>
    %659 = vector.broadcast %658 : vector<1x512xf32> to vector<64x512xf32>
    %660 = arith.addf %657, %659 : vector<64x512xf32>
    %661 = vector.shape_cast %660 : vector<64x512xf32> to vector<8x8x512xf32>
    %c0_192 = arith.constant 0 : index
    %c0_193 = arith.constant 0 : index
    %c0_194 = arith.constant 0 : index
    %662 = vector.load %arg22[%c0_192, %c0_193, %c0_194] : memref<8x8x512xf32, #tpu.memory_space<vmem>>, vector<8x8x512xf32>
    tpu.vector_store %arg22[%c0_192, %c0_193, %c0_194], %661 {strides = array<i32>} : memref<8x8x512xf32, #tpu.memory_space<vmem>>, vector<8x8x512xf32>,
    %c0_195 = arith.constant 0 : index
    %c0_196 = arith.constant 0 : index
    %663 = vector.load %arg13[%c0_195, %c0_196] : memref<256x512xf32, #tpu.memory_space<vmem>>, vector<256x512xf32>
    %cst_197 = arith.constant dense<0.000000e+00> : vector<64x512xf32>
    %664 = tpu.matmul %655, %663, %cst_197 {dimension_numbers = #tpu.dot_dimension_numbers<[1], [0], [0], [1], [0, 0, 1, 1], [], []>} : vector<64x256xf32>, vector<256x512xf32>, vector<64x512xf32> -> vector<64x512xf32>
    %c0_198 = arith.constant 0 : index
    %c0_199 = arith.constant 0 : index
    %665 = vector.load %arg15[%c0_198, %c0_199] : memref<1x512xf32, #tpu.memory_space<vmem>>, vector<1x512xf32>
    %666 = vector.broadcast %665 : vector<1x512xf32> to vector<64x512xf32>
    %667 = arith.addf %664, %666 : vector<64x512xf32>
    %668 = vector.shape_cast %667 : vector<64x512xf32> to vector<8x8x512xf32>
    %c0_200 = arith.constant 0 : index
    %c0_201 = arith.constant 0 : index
    %c0_202 = arith.constant 0 : index
    %669 = vector.load %arg23[%c0_200, %c0_201, %c0_202] : memref<8x8x512xf32, #tpu.memory_space<vmem>>, vector<8x8x512xf32>
    tpu.vector_store %arg23[%c0_200, %c0_201, %c0_202], %668 {strides = array<i32>} : memref<8x8x512xf32, #tpu.memory_space<vmem>>, vector<8x8x512xf32>,
    %c0_203 = arith.constant 0 : index
    %c0_204 = arith.constant 0 : index
    %670 = vector.load %arg11[%c0_203, %c0_204] : memref<128x512xf32, #tpu.memory_space<vmem>>, vector<128x512xf32>
    %c0_205 = arith.constant 0 : index
    %c0_206 = arith.constant 0 : index
    %671 = vector.load %arg14[%c0_205, %c0_206] : memref<128x512xf32, #tpu.memory_space<vmem>>, vector<128x512xf32>
    %cst_207 = arith.constant 0.000000e+00 : f32
    %672 = vector.broadcast %cst_207 : f32 to vector<8x128xf32>
    %c0_208 = arith.constant 0 : index
    %c0_209 = arith.constant 0 : index
    %c0_210 = arith.constant 0 : index
    %673 = vector.load %arg22[%c0_208, %c0_209, %c0_210] : memref<8x8x512xf32, #tpu.memory_space<vmem>>, vector<1x8x512xf32>
    %674 = vector.shape_cast %673 : vector<1x8x512xf32> to vector<8x512xf32>
    %cst_211 = arith.constant dense<0.000000e+00> : vector<8x512xf32>
    %675 = tpu.matmul %672, %670, %cst_211 {dimension_numbers = #tpu.dot_dimension_numbers<[1], [0], [0], [1], [0, 0, 1, 1], [], []>} : vector<8x128xf32>, vector<128x512xf32>, vector<8x512xf32> -> vector<8x512xf32>
    %676 = arith.addf %674, %675 : vector<8x512xf32>
    %677 = vector.extract_strided_slice %676 {offsets = [0, 0], sizes = [8, 128], strides = [1, 1]} : vector<8x512xf32> to vector<8x128xf32>
    %678 = arith.negf %677 : vector<8x128xf32>
    %679 = math.exp %678 : vector<8x128xf32>
    %cst_212 = arith.constant 1.000000e+00 : f32
    %680 = vector.broadcast %cst_212 : f32 to vector<8x128xf32>
    %681 = arith.addf %680, %679 : vector<8x128xf32>
    %682 = arith.divf %680, %681 : vector<8x128xf32>
    %683 = vector.extract_strided_slice %676 {offsets = [0, 128], sizes = [8, 128], strides = [1, 1]} : vector<8x512xf32> to vector<8x128xf32>
    %684 = arith.negf %683 : vector<8x128xf32>
    %685 = math.exp %684 : vector<8x128xf32>
    %cst_213 = arith.constant 1.000000e+00 : f32
    %686 = vector.broadcast %cst_213 : f32 to vector<8x128xf32>
    %687 = arith.addf %686, %685 : vector<8x128xf32>
    %688 = arith.divf %686, %687 : vector<8x128xf32>
    %689 = vector.extract_strided_slice %676 {offsets = [0, 256], sizes = [8, 128], strides = [1, 1]} : vector<8x512xf32> to vector<8x128xf32>
    %690 = math.tanh %689 : vector<8x128xf32>
    %691 = vector.extract_strided_slice %676 {offsets = [0, 384], sizes = [8, 128], strides = [1, 1]} : vector<8x512xf32> to vector<8x128xf32>
    %692 = arith.negf %691 : vector<8x128xf32>
    %693 = math.exp %692 : vector<8x128xf32>
    %cst_214 = arith.constant 1.000000e+00 : f32
    %694 = vector.broadcast %cst_214 : f32 to vector<8x128xf32>
    %695 = arith.addf %694, %693 : vector<8x128xf32>
    %696 = arith.divf %694, %695 : vector<8x128xf32>
    %697 = arith.mulf %688, %672 : vector<8x128xf32>
    %698 = arith.mulf %682, %690 : vector<8x128xf32>
    %699 = arith.addf %697, %698 : vector<8x128xf32>
    %700 = math.tanh %699 : vector<8x128xf32>
    %701 = arith.mulf %696, %700 : vector<8x128xf32>
    %c0_i32_215 = arith.constant 0 : i32
    %702 = vector.broadcast %c0_i32_215 : i32 to vector<8x1xi32>
    %703 = arith.cmpi sgt, %0, %702 : vector<8x1xi32>
    %704 = vector.shape_cast %703 : vector<8x1xi1> to vector<8x1xi1>
    %705 = vector.broadcast %704 : vector<8x1xi1> to vector<8x128xi1>
    %706 = arith.select %705, %701, %672 : vector<8x128xi1>, vector<8x128xf32>
    %707 = vector.shape_cast %703 : vector<8x1xi1> to vector<8x1xi1>
    %708 = vector.broadcast %707 : vector<8x1xi1> to vector<8x128xi1>
    %709 = arith.select %708, %699, %672 : vector<8x128xi1>, vector<8x128xf32>
    %c7_216 = arith.constant 7 : index
    %c0_217 = arith.constant 0 : index
    %c0_218 = arith.constant 0 : index
    %710 = vector.load %arg23[%c7_216, %c0_217, %c0_218] : memref<8x8x512xf32, #tpu.memory_space<vmem>>, vector<1x8x512xf32>
    %711 = vector.shape_cast %710 : vector<1x8x512xf32> to vector<8x512xf32>
    %cst_219 = arith.constant dense<0.000000e+00> : vector<8x512xf32>
    %712 = tpu.matmul %672, %671, %cst_219 {dimension_numbers = #tpu.dot_dimension_numbers<[1], [0], [0], [1], [0, 0, 1, 1], [], []>} : vector<8x128xf32>, vector<128x512xf32>, vector<8x512xf32> -> vector<8x512xf32>
    %713 = arith.addf %711, %712 : vector<8x512xf32>
    %714 = vector.extract_strided_slice %713 {offsets = [0, 0], sizes = [8, 128], strides = [1, 1]} : vector<8x512xf32> to vector<8x128xf32>
    %715 = arith.negf %714 : vector<8x128xf32>
    %716 = math.exp %715 : vector<8x128xf32>
    %cst_220 = arith.constant 1.000000e+00 : f32
    %717 = vector.broadcast %cst_220 : f32 to vector<8x128xf32>
    %718 = arith.addf %717, %716 : vector<8x128xf32>
    %719 = arith.divf %717, %718 : vector<8x128xf32>
    %720 = vector.extract_strided_slice %713 {offsets = [0, 128], sizes = [8, 128], strides = [1, 1]} : vector<8x512xf32> to vector<8x128xf32>
    %721 = arith.negf %720 : vector<8x128xf32>
    %722 = math.exp %721 : vector<8x128xf32>
    %cst_221 = arith.constant 1.000000e+00 : f32
    %723 = vector.broadcast %cst_221 : f32 to vector<8x128xf32>
    %724 = arith.addf %723, %722 : vector<8x128xf32>
    %725 = arith.divf %723, %724 : vector<8x128xf32>
    %726 = vector.extract_strided_slice %713 {offsets = [0, 256], sizes = [8, 128], strides = [1, 1]} : vector<8x512xf32> to vector<8x128xf32>
    %727 = math.tanh %726 : vector<8x128xf32>
    %728 = vector.extract_strided_slice %713 {offsets = [0, 384], sizes = [8, 128], strides = [1, 1]} : vector<8x512xf32> to vector<8x128xf32>
    %729 = arith.negf %728 : vector<8x128xf32>
    %730 = math.exp %729 : vector<8x128xf32>
    %cst_222 = arith.constant 1.000000e+00 : f32
    %731 = vector.broadcast %cst_222 : f32 to vector<8x128xf32>
    %732 = arith.addf %731, %730 : vector<8x128xf32>
    %733 = arith.divf %731, %732 : vector<8x128xf32>
    %734 = arith.mulf %725, %672 : vector<8x128xf32>
    %735 = arith.mulf %719, %727 : vector<8x128xf32>
    %736 = arith.addf %734, %735 : vector<8x128xf32>
    %737 = math.tanh %736 : vector<8x128xf32>
    %738 = arith.mulf %733, %737 : vector<8x128xf32>
    %c7_i32_223 = arith.constant 7 : i32
    %739 = vector.broadcast %c7_i32_223 : i32 to vector<8x1xi32>
    %740 = arith.cmpi sgt, %0, %739 : vector<8x1xi32>
    %741 = vector.shape_cast %740 : vector<8x1xi1> to vector<8x1xi1>
    %742 = vector.broadcast %741 : vector<8x1xi1> to vector<8x128xi1>
    %743 = arith.select %742, %738, %672 : vector<8x128xi1>, vector<8x128xf32>
    %744 = vector.shape_cast %740 : vector<8x1xi1> to vector<8x1xi1>
    %745 = vector.broadcast %744 : vector<8x1xi1> to vector<8x128xi1>
    %746 = arith.select %745, %736, %672 : vector<8x128xi1>, vector<8x128xf32>
    %c1_224 = arith.constant 1 : index
    %c0_225 = arith.constant 0 : index
    %c0_226 = arith.constant 0 : index
    %747 = vector.load %arg22[%c1_224, %c0_225, %c0_226] : memref<8x8x512xf32, #tpu.memory_space<vmem>>, vector<1x8x512xf32>
    %748 = vector.shape_cast %747 : vector<1x8x512xf32> to vector<8x512xf32>
    %cst_227 = arith.constant dense<0.000000e+00> : vector<8x512xf32>
    %749 = tpu.matmul %706, %670, %cst_227 {dimension_numbers = #tpu.dot_dimension_numbers<[1], [0], [0], [1], [0, 0, 1, 1], [], []>} : vector<8x128xf32>, vector<128x512xf32>, vector<8x512xf32> -> vector<8x512xf32>
    %750 = arith.addf %748, %749 : vector<8x512xf32>
    %751 = vector.extract_strided_slice %750 {offsets = [0, 0], sizes = [8, 128], strides = [1, 1]} : vector<8x512xf32> to vector<8x128xf32>
    %752 = arith.negf %751 : vector<8x128xf32>
    %753 = math.exp %752 : vector<8x128xf32>
    %cst_228 = arith.constant 1.000000e+00 : f32
    %754 = vector.broadcast %cst_228 : f32 to vector<8x128xf32>
    %755 = arith.addf %754, %753 : vector<8x128xf32>
    %756 = arith.divf %754, %755 : vector<8x128xf32>
    %757 = vector.extract_strided_slice %750 {offsets = [0, 128], sizes = [8, 128], strides = [1, 1]} : vector<8x512xf32> to vector<8x128xf32>
    %758 = arith.negf %757 : vector<8x128xf32>
    %759 = math.exp %758 : vector<8x128xf32>
    %cst_229 = arith.constant 1.000000e+00 : f32
    %760 = vector.broadcast %cst_229 : f32 to vector<8x128xf32>
    %761 = arith.addf %760, %759 : vector<8x128xf32>
    %762 = arith.divf %760, %761 : vector<8x128xf32>
    %763 = vector.extract_strided_slice %750 {offsets = [0, 256], sizes = [8, 128], strides = [1, 1]} : vector<8x512xf32> to vector<8x128xf32>
    %764 = math.tanh %763 : vector<8x128xf32>
    %765 = vector.extract_strided_slice %750 {offsets = [0, 384], sizes = [8, 128], strides = [1, 1]} : vector<8x512xf32> to vector<8x128xf32>
    %766 = arith.negf %765 : vector<8x128xf32>
    %767 = math.exp %766 : vector<8x128xf32>
    %cst_230 = arith.constant 1.000000e+00 : f32
    %768 = vector.broadcast %cst_230 : f32 to vector<8x128xf32>
    %769 = arith.addf %768, %767 : vector<8x128xf32>
    %770 = arith.divf %768, %769 : vector<8x128xf32>
    %771 = arith.mulf %762, %709 : vector<8x128xf32>
    %772 = arith.mulf %756, %764 : vector<8x128xf32>
    %773 = arith.addf %771, %772 : vector<8x128xf32>
    %774 = math.tanh %773 : vector<8x128xf32>
    %775 = arith.mulf %770, %774 : vector<8x128xf32>
    %c1_i32_231 = arith.constant 1 : i32
    %776 = vector.broadcast %c1_i32_231 : i32 to vector<8x1xi32>
    %777 = arith.cmpi sgt, %0, %776 : vector<8x1xi32>
    %778 = vector.shape_cast %777 : vector<8x1xi1> to vector<8x1xi1>
    %779 = vector.broadcast %778 : vector<8x1xi1> to vector<8x128xi1>
    %780 = arith.select %779, %775, %706 : vector<8x128xi1>, vector<8x128xf32>
    %781 = vector.shape_cast %777 : vector<8x1xi1> to vector<8x1xi1>
    %782 = vector.broadcast %781 : vector<8x1xi1> to vector<8x128xi1>
    %783 = arith.select %782, %773, %709 : vector<8x128xi1>, vector<8x128xf32>
    %c6_232 = arith.constant 6 : index
    %c0_233 = arith.constant 0 : index
    %c0_234 = arith.constant 0 : index
    %784 = vector.load %arg23[%c6_232, %c0_233, %c0_234] : memref<8x8x512xf32, #tpu.memory_space<vmem>>, vector<1x8x512xf32>
    %785 = vector.shape_cast %784 : vector<1x8x512xf32> to vector<8x512xf32>
    %cst_235 = arith.constant dense<0.000000e+00> : vector<8x512xf32>
    %786 = tpu.matmul %743, %671, %cst_235 {dimension_numbers = #tpu.dot_dimension_numbers<[1], [0], [0], [1], [0, 0, 1, 1], [], []>} : vector<8x128xf32>, vector<128x512xf32>, vector<8x512xf32> -> vector<8x512xf32>
    %787 = arith.addf %785, %786 : vector<8x512xf32>
    %788 = vector.extract_strided_slice %787 {offsets = [0, 0], sizes = [8, 128], strides = [1, 1]} : vector<8x512xf32> to vector<8x128xf32>
    %789 = arith.negf %788 : vector<8x128xf32>
    %790 = math.exp %789 : vector<8x128xf32>
    %cst_236 = arith.constant 1.000000e+00 : f32
    %791 = vector.broadcast %cst_236 : f32 to vector<8x128xf32>
    %792 = arith.addf %791, %790 : vector<8x128xf32>
    %793 = arith.divf %791, %792 : vector<8x128xf32>
    %794 = vector.extract_strided_slice %787 {offsets = [0, 128], sizes = [8, 128], strides = [1, 1]} : vector<8x512xf32> to vector<8x128xf32>
    %795 = arith.negf %794 : vector<8x128xf32>
    %796 = math.exp %795 : vector<8x128xf32>
    %cst_237 = arith.constant 1.000000e+00 : f32
    %797 = vector.broadcast %cst_237 : f32 to vector<8x128xf32>
    %798 = arith.addf %797, %796 : vector<8x128xf32>
    %799 = arith.divf %797, %798 : vector<8x128xf32>
    %800 = vector.extract_strided_slice %787 {offsets = [0, 256], sizes = [8, 128], strides = [1, 1]} : vector<8x512xf32> to vector<8x128xf32>
    %801 = math.tanh %800 : vector<8x128xf32>
    %802 = vector.extract_strided_slice %787 {offsets = [0, 384], sizes = [8, 128], strides = [1, 1]} : vector<8x512xf32> to vector<8x128xf32>
    %803 = arith.negf %802 : vector<8x128xf32>
    %804 = math.exp %803 : vector<8x128xf32>
    %cst_238 = arith.constant 1.000000e+00 : f32
    %805 = vector.broadcast %cst_238 : f32 to vector<8x128xf32>
    %806 = arith.addf %805, %804 : vector<8x128xf32>
    %807 = arith.divf %805, %806 : vector<8x128xf32>
    %808 = arith.mulf %799, %746 : vector<8x128xf32>
    %809 = arith.mulf %793, %801 : vector<8x128xf32>
    %810 = arith.addf %808, %809 : vector<8x128xf32>
    %811 = math.tanh %810 : vector<8x128xf32>
    %812 = arith.mulf %807, %811 : vector<8x128xf32>
    %c6_i32_239 = arith.constant 6 : i32
    %813 = vector.broadcast %c6_i32_239 : i32 to vector<8x1xi32>
    %814 = arith.cmpi sgt, %0, %813 : vector<8x1xi32>
    %815 = vector.shape_cast %814 : vector<8x1xi1> to vector<8x1xi1>
    %816 = vector.broadcast %815 : vector<8x1xi1> to vector<8x128xi1>
    %817 = arith.select %816, %812, %743 : vector<8x128xi1>, vector<8x128xf32>
    %818 = vector.shape_cast %814 : vector<8x1xi1> to vector<8x1xi1>
    %819 = vector.broadcast %818 : vector<8x1xi1> to vector<8x128xi1>
    %820 = arith.select %819, %810, %746 : vector<8x128xi1>, vector<8x128xf32>
    %c2_240 = arith.constant 2 : index
    %c0_241 = arith.constant 0 : index
    %c0_242 = arith.constant 0 : index
    %821 = vector.load %arg22[%c2_240, %c0_241, %c0_242] : memref<8x8x512xf32, #tpu.memory_space<vmem>>, vector<1x8x512xf32>
    %822 = vector.shape_cast %821 : vector<1x8x512xf32> to vector<8x512xf32>
    %cst_243 = arith.constant dense<0.000000e+00> : vector<8x512xf32>
    %823 = tpu.matmul %780, %670, %cst_243 {dimension_numbers = #tpu.dot_dimension_numbers<[1], [0], [0], [1], [0, 0, 1, 1], [], []>} : vector<8x128xf32>, vector<128x512xf32>, vector<8x512xf32> -> vector<8x512xf32>
    %824 = arith.addf %822, %823 : vector<8x512xf32>
    %825 = vector.extract_strided_slice %824 {offsets = [0, 0], sizes = [8, 128], strides = [1, 1]} : vector<8x512xf32> to vector<8x128xf32>
    %826 = arith.negf %825 : vector<8x128xf32>
    %827 = math.exp %826 : vector<8x128xf32>
    %cst_244 = arith.constant 1.000000e+00 : f32
    %828 = vector.broadcast %cst_244 : f32 to vector<8x128xf32>
    %829 = arith.addf %828, %827 : vector<8x128xf32>
    %830 = arith.divf %828, %829 : vector<8x128xf32>
    %831 = vector.extract_strided_slice %824 {offsets = [0, 128], sizes = [8, 128], strides = [1, 1]} : vector<8x512xf32> to vector<8x128xf32>
    %832 = arith.negf %831 : vector<8x128xf32>
    %833 = math.exp %832 : vector<8x128xf32>
    %cst_245 = arith.constant 1.000000e+00 : f32
    %834 = vector.broadcast %cst_245 : f32 to vector<8x128xf32>
    %835 = arith.addf %834, %833 : vector<8x128xf32>
    %836 = arith.divf %834, %835 : vector<8x128xf32>
    %837 = vector.extract_strided_slice %824 {offsets = [0, 256], sizes = [8, 128], strides = [1, 1]} : vector<8x512xf32> to vector<8x128xf32>
    %838 = math.tanh %837 : vector<8x128xf32>
    %839 = vector.extract_strided_slice %824 {offsets = [0, 384], sizes = [8, 128], strides = [1, 1]} : vector<8x512xf32> to vector<8x128xf32>
    %840 = arith.negf %839 : vector<8x128xf32>
    %841 = math.exp %840 : vector<8x128xf32>
    %cst_246 = arith.constant 1.000000e+00 : f32
    %842 = vector.broadcast %cst_246 : f32 to vector<8x128xf32>
    %843 = arith.addf %842, %841 : vector<8x128xf32>
    %844 = arith.divf %842, %843 : vector<8x128xf32>
    %845 = arith.mulf %836, %783 : vector<8x128xf32>
    %846 = arith.mulf %830, %838 : vector<8x128xf32>
    %847 = arith.addf %845, %846 : vector<8x128xf32>
    %848 = math.tanh %847 : vector<8x128xf32>
    %849 = arith.mulf %844, %848 : vector<8x128xf32>
    %c2_i32_247 = arith.constant 2 : i32
    %850 = vector.broadcast %c2_i32_247 : i32 to vector<8x1xi32>
    %851 = arith.cmpi sgt, %0, %850 : vector<8x1xi32>
    %852 = vector.shape_cast %851 : vector<8x1xi1> to vector<8x1xi1>
    %853 = vector.broadcast %852 : vector<8x1xi1> to vector<8x128xi1>
    %854 = arith.select %853, %849, %780 : vector<8x128xi1>, vector<8x128xf32>
    %855 = vector.shape_cast %851 : vector<8x1xi1> to vector<8x1xi1>
    %856 = vector.broadcast %855 : vector<8x1xi1> to vector<8x128xi1>
    %857 = arith.select %856, %847, %783 : vector<8x128xi1>, vector<8x128xf32>
    %c5_248 = arith.constant 5 : index
    %c0_249 = arith.constant 0 : index
    %c0_250 = arith.constant 0 : index
    %858 = vector.load %arg23[%c5_248, %c0_249, %c0_250] : memref<8x8x512xf32, #tpu.memory_space<vmem>>, vector<1x8x512xf32>
    %859 = vector.shape_cast %858 : vector<1x8x512xf32> to vector<8x512xf32>
    %cst_251 = arith.constant dense<0.000000e+00> : vector<8x512xf32>
    %860 = tpu.matmul %817, %671, %cst_251 {dimension_numbers = #tpu.dot_dimension_numbers<[1], [0], [0], [1], [0, 0, 1, 1], [], []>} : vector<8x128xf32>, vector<128x512xf32>, vector<8x512xf32> -> vector<8x512xf32>
    %861 = arith.addf %859, %860 : vector<8x512xf32>
    %862 = vector.extract_strided_slice %861 {offsets = [0, 0], sizes = [8, 128], strides = [1, 1]} : vector<8x512xf32> to vector<8x128xf32>
    %863 = arith.negf %862 : vector<8x128xf32>
    %864 = math.exp %863 : vector<8x128xf32>
    %cst_252 = arith.constant 1.000000e+00 : f32
    %865 = vector.broadcast %cst_252 : f32 to vector<8x128xf32>
    %866 = arith.addf %865, %864 : vector<8x128xf32>
    %867 = arith.divf %865, %866 : vector<8x128xf32>
    %868 = vector.extract_strided_slice %861 {offsets = [0, 128], sizes = [8, 128], strides = [1, 1]} : vector<8x512xf32> to vector<8x128xf32>
    %869 = arith.negf %868 : vector<8x128xf32>
    %870 = math.exp %869 : vector<8x128xf32>
    %cst_253 = arith.constant 1.000000e+00 : f32
    %871 = vector.broadcast %cst_253 : f32 to vector<8x128xf32>
    %872 = arith.addf %871, %870 : vector<8x128xf32>
    %873 = arith.divf %871, %872 : vector<8x128xf32>
    %874 = vector.extract_strided_slice %861 {offsets = [0, 256], sizes = [8, 128], strides = [1, 1]} : vector<8x512xf32> to vector<8x128xf32>
    %875 = math.tanh %874 : vector<8x128xf32>
    %876 = vector.extract_strided_slice %861 {offsets = [0, 384], sizes = [8, 128], strides = [1, 1]} : vector<8x512xf32> to vector<8x128xf32>
    %877 = arith.negf %876 : vector<8x128xf32>
    %878 = math.exp %877 : vector<8x128xf32>
    %cst_254 = arith.constant 1.000000e+00 : f32
    %879 = vector.broadcast %cst_254 : f32 to vector<8x128xf32>
    %880 = arith.addf %879, %878 : vector<8x128xf32>
    %881 = arith.divf %879, %880 : vector<8x128xf32>
    %882 = arith.mulf %873, %820 : vector<8x128xf32>
    %883 = arith.mulf %867, %875 : vector<8x128xf32>
    %884 = arith.addf %882, %883 : vector<8x128xf32>
    %885 = math.tanh %884 : vector<8x128xf32>
    %886 = arith.mulf %881, %885 : vector<8x128xf32>
    %c5_i32_255 = arith.constant 5 : i32
    %887 = vector.broadcast %c5_i32_255 : i32 to vector<8x1xi32>
    %888 = arith.cmpi sgt, %0, %887 : vector<8x1xi32>
    %889 = vector.shape_cast %888 : vector<8x1xi1> to vector<8x1xi1>
    %890 = vector.broadcast %889 : vector<8x1xi1> to vector<8x128xi1>
    %891 = arith.select %890, %886, %817 : vector<8x128xi1>, vector<8x128xf32>
    %892 = vector.shape_cast %888 : vector<8x1xi1> to vector<8x1xi1>
    %893 = vector.broadcast %892 : vector<8x1xi1> to vector<8x128xi1>
    %894 = arith.select %893, %884, %820 : vector<8x128xi1>, vector<8x128xf32>
    %c3_256 = arith.constant 3 : index
    %c0_257 = arith.constant 0 : index
    %c0_258 = arith.constant 0 : index
    %895 = vector.load %arg22[%c3_256, %c0_257, %c0_258] : memref<8x8x512xf32, #tpu.memory_space<vmem>>, vector<1x8x512xf32>
    %896 = vector.shape_cast %895 : vector<1x8x512xf32> to vector<8x512xf32>
    %cst_259 = arith.constant dense<0.000000e+00> : vector<8x512xf32>
    %897 = tpu.matmul %854, %670, %cst_259 {dimension_numbers = #tpu.dot_dimension_numbers<[1], [0], [0], [1], [0, 0, 1, 1], [], []>} : vector<8x128xf32>, vector<128x512xf32>, vector<8x512xf32> -> vector<8x512xf32>
    %898 = arith.addf %896, %897 : vector<8x512xf32>
    %899 = vector.extract_strided_slice %898 {offsets = [0, 0], sizes = [8, 128], strides = [1, 1]} : vector<8x512xf32> to vector<8x128xf32>
    %900 = arith.negf %899 : vector<8x128xf32>
    %901 = math.exp %900 : vector<8x128xf32>
    %cst_260 = arith.constant 1.000000e+00 : f32
    %902 = vector.broadcast %cst_260 : f32 to vector<8x128xf32>
    %903 = arith.addf %902, %901 : vector<8x128xf32>
    %904 = arith.divf %902, %903 : vector<8x128xf32>
    %905 = vector.extract_strided_slice %898 {offsets = [0, 128], sizes = [8, 128], strides = [1, 1]} : vector<8x512xf32> to vector<8x128xf32>
    %906 = arith.negf %905 : vector<8x128xf32>
    %907 = math.exp %906 : vector<8x128xf32>
    %cst_261 = arith.constant 1.000000e+00 : f32
    %908 = vector.broadcast %cst_261 : f32 to vector<8x128xf32>
    %909 = arith.addf %908, %907 : vector<8x128xf32>
    %910 = arith.divf %908, %909 : vector<8x128xf32>
    %911 = vector.extract_strided_slice %898 {offsets = [0, 256], sizes = [8, 128], strides = [1, 1]} : vector<8x512xf32> to vector<8x128xf32>
    %912 = math.tanh %911 : vector<8x128xf32>
    %913 = vector.extract_strided_slice %898 {offsets = [0, 384], sizes = [8, 128], strides = [1, 1]} : vector<8x512xf32> to vector<8x128xf32>
    %914 = arith.negf %913 : vector<8x128xf32>
    %915 = math.exp %914 : vector<8x128xf32>
    %cst_262 = arith.constant 1.000000e+00 : f32
    %916 = vector.broadcast %cst_262 : f32 to vector<8x128xf32>
    %917 = arith.addf %916, %915 : vector<8x128xf32>
    %918 = arith.divf %916, %917 : vector<8x128xf32>
    %919 = arith.mulf %910, %857 : vector<8x128xf32>
    %920 = arith.mulf %904, %912 : vector<8x128xf32>
    %921 = arith.addf %919, %920 : vector<8x128xf32>
    %922 = math.tanh %921 : vector<8x128xf32>
    %923 = arith.mulf %918, %922 : vector<8x128xf32>
    %c3_i32_263 = arith.constant 3 : i32
    %924 = vector.broadcast %c3_i32_263 : i32 to vector<8x1xi32>
    %925 = arith.cmpi sgt, %0, %924 : vector<8x1xi32>
    %926 = vector.shape_cast %925 : vector<8x1xi1> to vector<8x1xi1>
    %927 = vector.broadcast %926 : vector<8x1xi1> to vector<8x128xi1>
    %928 = arith.select %927, %923, %854 : vector<8x128xi1>, vector<8x128xf32>
    %929 = vector.shape_cast %925 : vector<8x1xi1> to vector<8x1xi1>
    %930 = vector.broadcast %929 : vector<8x1xi1> to vector<8x128xi1>
    %931 = arith.select %930, %921, %857 : vector<8x128xi1>, vector<8x128xf32>
    %c4_264 = arith.constant 4 : index
    %c0_265 = arith.constant 0 : index
    %c0_266 = arith.constant 0 : index
    %932 = vector.load %arg23[%c4_264, %c0_265, %c0_266] : memref<8x8x512xf32, #tpu.memory_space<vmem>>, vector<1x8x512xf32>
    %933 = vector.shape_cast %932 : vector<1x8x512xf32> to vector<8x512xf32>
    %cst_267 = arith.constant dense<0.000000e+00> : vector<8x512xf32>
    %934 = tpu.matmul %891, %671, %cst_267 {dimension_numbers = #tpu.dot_dimension_numbers<[1], [0], [0], [1], [0, 0, 1, 1], [], []>} : vector<8x128xf32>, vector<128x512xf32>, vector<8x512xf32> -> vector<8x512xf32>
    %935 = arith.addf %933, %934 : vector<8x512xf32>
    %936 = vector.extract_strided_slice %935 {offsets = [0, 0], sizes = [8, 128], strides = [1, 1]} : vector<8x512xf32> to vector<8x128xf32>
    %937 = arith.negf %936 : vector<8x128xf32>
    %938 = math.exp %937 : vector<8x128xf32>
    %cst_268 = arith.constant 1.000000e+00 : f32
    %939 = vector.broadcast %cst_268 : f32 to vector<8x128xf32>
    %940 = arith.addf %939, %938 : vector<8x128xf32>
    %941 = arith.divf %939, %940 : vector<8x128xf32>
    %942 = vector.extract_strided_slice %935 {offsets = [0, 128], sizes = [8, 128], strides = [1, 1]} : vector<8x512xf32> to vector<8x128xf32>
    %943 = arith.negf %942 : vector<8x128xf32>
    %944 = math.exp %943 : vector<8x128xf32>
    %cst_269 = arith.constant 1.000000e+00 : f32
    %945 = vector.broadcast %cst_269 : f32 to vector<8x128xf32>
    %946 = arith.addf %945, %944 : vector<8x128xf32>
    %947 = arith.divf %945, %946 : vector<8x128xf32>
    %948 = vector.extract_strided_slice %935 {offsets = [0, 256], sizes = [8, 128], strides = [1, 1]} : vector<8x512xf32> to vector<8x128xf32>
    %949 = math.tanh %948 : vector<8x128xf32>
    %950 = vector.extract_strided_slice %935 {offsets = [0, 384], sizes = [8, 128], strides = [1, 1]} : vector<8x512xf32> to vector<8x128xf32>
    %951 = arith.negf %950 : vector<8x128xf32>
    %952 = math.exp %951 : vector<8x128xf32>
    %cst_270 = arith.constant 1.000000e+00 : f32
    %953 = vector.broadcast %cst_270 : f32 to vector<8x128xf32>
    %954 = arith.addf %953, %952 : vector<8x128xf32>
    %955 = arith.divf %953, %954 : vector<8x128xf32>
    %956 = arith.mulf %947, %894 : vector<8x128xf32>
    %957 = arith.mulf %941, %949 : vector<8x128xf32>
    %958 = arith.addf %956, %957 : vector<8x128xf32>
    %959 = math.tanh %958 : vector<8x128xf32>
    %960 = arith.mulf %955, %959 : vector<8x128xf32>
    %c4_i32_271 = arith.constant 4 : i32
    %961 = vector.broadcast %c4_i32_271 : i32 to vector<8x1xi32>
    %962 = arith.cmpi sgt, %0, %961 : vector<8x1xi32>
    %963 = vector.shape_cast %962 : vector<8x1xi1> to vector<8x1xi1>
    %964 = vector.broadcast %963 : vector<8x1xi1> to vector<8x128xi1>
    %965 = arith.select %964, %960, %891 : vector<8x128xi1>, vector<8x128xf32>
    %966 = vector.shape_cast %962 : vector<8x1xi1> to vector<8x1xi1>
    %967 = vector.broadcast %966 : vector<8x1xi1> to vector<8x128xi1>
    %968 = arith.select %967, %958, %894 : vector<8x128xi1>, vector<8x128xf32>
    %c4_272 = arith.constant 4 : index
    %c0_273 = arith.constant 0 : index
    %c0_274 = arith.constant 0 : index
    %969 = vector.load %arg22[%c4_272, %c0_273, %c0_274] : memref<8x8x512xf32, #tpu.memory_space<vmem>>, vector<1x8x512xf32>
    %970 = vector.shape_cast %969 : vector<1x8x512xf32> to vector<8x512xf32>
    %cst_275 = arith.constant dense<0.000000e+00> : vector<8x512xf32>
    %971 = tpu.matmul %928, %670, %cst_275 {dimension_numbers = #tpu.dot_dimension_numbers<[1], [0], [0], [1], [0, 0, 1, 1], [], []>} : vector<8x128xf32>, vector<128x512xf32>, vector<8x512xf32> -> vector<8x512xf32>
    %972 = arith.addf %970, %971 : vector<8x512xf32>
    %973 = vector.extract_strided_slice %972 {offsets = [0, 0], sizes = [8, 128], strides = [1, 1]} : vector<8x512xf32> to vector<8x128xf32>
    %974 = arith.negf %973 : vector<8x128xf32>
    %975 = math.exp %974 : vector<8x128xf32>
    %cst_276 = arith.constant 1.000000e+00 : f32
    %976 = vector.broadcast %cst_276 : f32 to vector<8x128xf32>
    %977 = arith.addf %976, %975 : vector<8x128xf32>
    %978 = arith.divf %976, %977 : vector<8x128xf32>
    %979 = vector.extract_strided_slice %972 {offsets = [0, 128], sizes = [8, 128], strides = [1, 1]} : vector<8x512xf32> to vector<8x128xf32>
    %980 = arith.negf %979 : vector<8x128xf32>
    %981 = math.exp %980 : vector<8x128xf32>
    %cst_277 = arith.constant 1.000000e+00 : f32
    %982 = vector.broadcast %cst_277 : f32 to vector<8x128xf32>
    %983 = arith.addf %982, %981 : vector<8x128xf32>
    %984 = arith.divf %982, %983 : vector<8x128xf32>
    %985 = vector.extract_strided_slice %972 {offsets = [0, 256], sizes = [8, 128], strides = [1, 1]} : vector<8x512xf32> to vector<8x128xf32>
    %986 = math.tanh %985 : vector<8x128xf32>
    %987 = vector.extract_strided_slice %972 {offsets = [0, 384], sizes = [8, 128], strides = [1, 1]} : vector<8x512xf32> to vector<8x128xf32>
    %988 = arith.negf %987 : vector<8x128xf32>
    %989 = math.exp %988 : vector<8x128xf32>
    %cst_278 = arith.constant 1.000000e+00 : f32
    %990 = vector.broadcast %cst_278 : f32 to vector<8x128xf32>
    %991 = arith.addf %990, %989 : vector<8x128xf32>
    %992 = arith.divf %990, %991 : vector<8x128xf32>
    %993 = arith.mulf %984, %931 : vector<8x128xf32>
    %994 = arith.mulf %978, %986 : vector<8x128xf32>
    %995 = arith.addf %993, %994 : vector<8x128xf32>
    %996 = math.tanh %995 : vector<8x128xf32>
    %997 = arith.mulf %992, %996 : vector<8x128xf32>
    %c4_i32_279 = arith.constant 4 : i32
    %998 = vector.broadcast %c4_i32_279 : i32 to vector<8x1xi32>
    %999 = arith.cmpi sgt, %0, %998 : vector<8x1xi32>
    %1000 = vector.shape_cast %999 : vector<8x1xi1> to vector<8x1xi1>
    %1001 = vector.broadcast %1000 : vector<8x1xi1> to vector<8x128xi1>
    %1002 = arith.select %1001, %997, %928 : vector<8x128xi1>, vector<8x128xf32>
    %1003 = vector.shape_cast %999 : vector<8x1xi1> to vector<8x1xi1>
    %1004 = vector.broadcast %1003 : vector<8x1xi1> to vector<8x128xi1>
    %1005 = arith.select %1004, %995, %931 : vector<8x128xi1>, vector<8x128xf32>
    %c3_280 = arith.constant 3 : index
    %c0_281 = arith.constant 0 : index
    %c0_282 = arith.constant 0 : index
    %1006 = vector.load %arg23[%c3_280, %c0_281, %c0_282] : memref<8x8x512xf32, #tpu.memory_space<vmem>>, vector<1x8x512xf32>
    %1007 = vector.shape_cast %1006 : vector<1x8x512xf32> to vector<8x512xf32>
    %cst_283 = arith.constant dense<0.000000e+00> : vector<8x512xf32>
    %1008 = tpu.matmul %965, %671, %cst_283 {dimension_numbers = #tpu.dot_dimension_numbers<[1], [0], [0], [1], [0, 0, 1, 1], [], []>} : vector<8x128xf32>, vector<128x512xf32>, vector<8x512xf32> -> vector<8x512xf32>
    %1009 = arith.addf %1007, %1008 : vector<8x512xf32>
    %1010 = vector.extract_strided_slice %1009 {offsets = [0, 0], sizes = [8, 128], strides = [1, 1]} : vector<8x512xf32> to vector<8x128xf32>
    %1011 = arith.negf %1010 : vector<8x128xf32>
    %1012 = math.exp %1011 : vector<8x128xf32>
    %cst_284 = arith.constant 1.000000e+00 : f32
    %1013 = vector.broadcast %cst_284 : f32 to vector<8x128xf32>
    %1014 = arith.addf %1013, %1012 : vector<8x128xf32>
    %1015 = arith.divf %1013, %1014 : vector<8x128xf32>
    %1016 = vector.extract_strided_slice %1009 {offsets = [0, 128], sizes = [8, 128], strides = [1, 1]} : vector<8x512xf32> to vector<8x128xf32>
    %1017 = arith.negf %1016 : vector<8x128xf32>
    %1018 = math.exp %1017 : vector<8x128xf32>
    %cst_285 = arith.constant 1.000000e+00 : f32
    %1019 = vector.broadcast %cst_285 : f32 to vector<8x128xf32>
    %1020 = arith.addf %1019, %1018 : vector<8x128xf32>
    %1021 = arith.divf %1019, %1020 : vector<8x128xf32>
    %1022 = vector.extract_strided_slice %1009 {offsets = [0, 256], sizes = [8, 128], strides = [1, 1]} : vector<8x512xf32> to vector<8x128xf32>
    %1023 = math.tanh %1022 : vector<8x128xf32>
    %1024 = vector.extract_strided_slice %1009 {offsets = [0, 384], sizes = [8, 128], strides = [1, 1]} : vector<8x512xf32> to vector<8x128xf32>
    %1025 = arith.negf %1024 : vector<8x128xf32>
    %1026 = math.exp %1025 : vector<8x128xf32>
    %cst_286 = arith.constant 1.000000e+00 : f32
    %1027 = vector.broadcast %cst_286 : f32 to vector<8x128xf32>
    %1028 = arith.addf %1027, %1026 : vector<8x128xf32>
    %1029 = arith.divf %1027, %1028 : vector<8x128xf32>
    %1030 = arith.mulf %1021, %968 : vector<8x128xf32>
    %1031 = arith.mulf %1015, %1023 : vector<8x128xf32>
    %1032 = arith.addf %1030, %1031 : vector<8x128xf32>
    %1033 = math.tanh %1032 : vector<8x128xf32>
    %1034 = arith.mulf %1029, %1033 : vector<8x128xf32>
    %c3_i32_287 = arith.constant 3 : i32
    %1035 = vector.broadcast %c3_i32_287 : i32 to vector<8x1xi32>
    %1036 = arith.cmpi sgt, %0, %1035 : vector<8x1xi32>
    %1037 = vector.shape_cast %1036 : vector<8x1xi1> to vector<8x1xi1>
    %1038 = vector.broadcast %1037 : vector<8x1xi1> to vector<8x128xi1>
    %1039 = arith.select %1038, %1034, %965 : vector<8x128xi1>, vector<8x128xf32>
    %1040 = vector.shape_cast %1036 : vector<8x1xi1> to vector<8x1xi1>
    %1041 = vector.broadcast %1040 : vector<8x1xi1> to vector<8x128xi1>
    %1042 = arith.select %1041, %1032, %968 : vector<8x128xi1>, vector<8x128xf32>
    %c5_288 = arith.constant 5 : index
    %c0_289 = arith.constant 0 : index
    %c0_290 = arith.constant 0 : index
    %1043 = vector.load %arg22[%c5_288, %c0_289, %c0_290] : memref<8x8x512xf32, #tpu.memory_space<vmem>>, vector<1x8x512xf32>
    %1044 = vector.shape_cast %1043 : vector<1x8x512xf32> to vector<8x512xf32>
    %cst_291 = arith.constant dense<0.000000e+00> : vector<8x512xf32>
    %1045 = tpu.matmul %1002, %670, %cst_291 {dimension_numbers = #tpu.dot_dimension_numbers<[1], [0], [0], [1], [0, 0, 1, 1], [], []>} : vector<8x128xf32>, vector<128x512xf32>, vector<8x512xf32> -> vector<8x512xf32>
    %1046 = arith.addf %1044, %1045 : vector<8x512xf32>
    %1047 = vector.extract_strided_slice %1046 {offsets = [0, 0], sizes = [8, 128], strides = [1, 1]} : vector<8x512xf32> to vector<8x128xf32>
    %1048 = arith.negf %1047 : vector<8x128xf32>
    %1049 = math.exp %1048 : vector<8x128xf32>
    %cst_292 = arith.constant 1.000000e+00 : f32
    %1050 = vector.broadcast %cst_292 : f32 to vector<8x128xf32>
    %1051 = arith.addf %1050, %1049 : vector<8x128xf32>
    %1052 = arith.divf %1050, %1051 : vector<8x128xf32>
    %1053 = vector.extract_strided_slice %1046 {offsets = [0, 128], sizes = [8, 128], strides = [1, 1]} : vector<8x512xf32> to vector<8x128xf32>
    %1054 = arith.negf %1053 : vector<8x128xf32>
    %1055 = math.exp %1054 : vector<8x128xf32>
    %cst_293 = arith.constant 1.000000e+00 : f32
    %1056 = vector.broadcast %cst_293 : f32 to vector<8x128xf32>
    %1057 = arith.addf %1056, %1055 : vector<8x128xf32>
    %1058 = arith.divf %1056, %1057 : vector<8x128xf32>
    %1059 = vector.extract_strided_slice %1046 {offsets = [0, 256], sizes = [8, 128], strides = [1, 1]} : vector<8x512xf32> to vector<8x128xf32>
    %1060 = math.tanh %1059 : vector<8x128xf32>
    %1061 = vector.extract_strided_slice %1046 {offsets = [0, 384], sizes = [8, 128], strides = [1, 1]} : vector<8x512xf32> to vector<8x128xf32>
    %1062 = arith.negf %1061 : vector<8x128xf32>
    %1063 = math.exp %1062 : vector<8x128xf32>
    %cst_294 = arith.constant 1.000000e+00 : f32
    %1064 = vector.broadcast %cst_294 : f32 to vector<8x128xf32>
    %1065 = arith.addf %1064, %1063 : vector<8x128xf32>
    %1066 = arith.divf %1064, %1065 : vector<8x128xf32>
    %1067 = arith.mulf %1058, %1005 : vector<8x128xf32>
    %1068 = arith.mulf %1052, %1060 : vector<8x128xf32>
    %1069 = arith.addf %1067, %1068 : vector<8x128xf32>
    %1070 = math.tanh %1069 : vector<8x128xf32>
    %1071 = arith.mulf %1066, %1070 : vector<8x128xf32>
    %c5_i32_295 = arith.constant 5 : i32
    %1072 = vector.broadcast %c5_i32_295 : i32 to vector<8x1xi32>
    %1073 = arith.cmpi sgt, %0, %1072 : vector<8x1xi32>
    %1074 = vector.shape_cast %1073 : vector<8x1xi1> to vector<8x1xi1>
    %1075 = vector.broadcast %1074 : vector<8x1xi1> to vector<8x128xi1>
    %1076 = arith.select %1075, %1071, %1002 : vector<8x128xi1>, vector<8x128xf32>
    %1077 = vector.shape_cast %1073 : vector<8x1xi1> to vector<8x1xi1>
    %1078 = vector.broadcast %1077 : vector<8x1xi1> to vector<8x128xi1>
    %1079 = arith.select %1078, %1069, %1005 : vector<8x128xi1>, vector<8x128xf32>
    %c2_296 = arith.constant 2 : index
    %c0_297 = arith.constant 0 : index
    %c0_298 = arith.constant 0 : index
    %1080 = vector.load %arg23[%c2_296, %c0_297, %c0_298] : memref<8x8x512xf32, #tpu.memory_space<vmem>>, vector<1x8x512xf32>
    %1081 = vector.shape_cast %1080 : vector<1x8x512xf32> to vector<8x512xf32>
    %cst_299 = arith.constant dense<0.000000e+00> : vector<8x512xf32>
    %1082 = tpu.matmul %1039, %671, %cst_299 {dimension_numbers = #tpu.dot_dimension_numbers<[1], [0], [0], [1], [0, 0, 1, 1], [], []>} : vector<8x128xf32>, vector<128x512xf32>, vector<8x512xf32> -> vector<8x512xf32>
    %1083 = arith.addf %1081, %1082 : vector<8x512xf32>
    %1084 = vector.extract_strided_slice %1083 {offsets = [0, 0], sizes = [8, 128], strides = [1, 1]} : vector<8x512xf32> to vector<8x128xf32>
    %1085 = arith.negf %1084 : vector<8x128xf32>
    %1086 = math.exp %1085 : vector<8x128xf32>
    %cst_300 = arith.constant 1.000000e+00 : f32
    %1087 = vector.broadcast %cst_300 : f32 to vector<8x128xf32>
    %1088 = arith.addf %1087, %1086 : vector<8x128xf32>
    %1089 = arith.divf %1087, %1088 : vector<8x128xf32>
    %1090 = vector.extract_strided_slice %1083 {offsets = [0, 128], sizes = [8, 128], strides = [1, 1]} : vector<8x512xf32> to vector<8x128xf32>
    %1091 = arith.negf %1090 : vector<8x128xf32>
    %1092 = math.exp %1091 : vector<8x128xf32>
    %cst_301 = arith.constant 1.000000e+00 : f32
    %1093 = vector.broadcast %cst_301 : f32 to vector<8x128xf32>
    %1094 = arith.addf %1093, %1092 : vector<8x128xf32>
    %1095 = arith.divf %1093, %1094 : vector<8x128xf32>
    %1096 = vector.extract_strided_slice %1083 {offsets = [0, 256], sizes = [8, 128], strides = [1, 1]} : vector<8x512xf32> to vector<8x128xf32>
    %1097 = math.tanh %1096 : vector<8x128xf32>
    %1098 = vector.extract_strided_slice %1083 {offsets = [0, 384], sizes = [8, 128], strides = [1, 1]} : vector<8x512xf32> to vector<8x128xf32>
    %1099 = arith.negf %1098 : vector<8x128xf32>
    %1100 = math.exp %1099 : vector<8x128xf32>
    %cst_302 = arith.constant 1.000000e+00 : f32
    %1101 = vector.broadcast %cst_302 : f32 to vector<8x128xf32>
    %1102 = arith.addf %1101, %1100 : vector<8x128xf32>
    %1103 = arith.divf %1101, %1102 : vector<8x128xf32>
    %1104 = arith.mulf %1095, %1042 : vector<8x128xf32>
    %1105 = arith.mulf %1089, %1097 : vector<8x128xf32>
    %1106 = arith.addf %1104, %1105 : vector<8x128xf32>
    %1107 = math.tanh %1106 : vector<8x128xf32>
    %1108 = arith.mulf %1103, %1107 : vector<8x128xf32>
    %c2_i32_303 = arith.constant 2 : i32
    %1109 = vector.broadcast %c2_i32_303 : i32 to vector<8x1xi32>
    %1110 = arith.cmpi sgt, %0, %1109 : vector<8x1xi32>
    %1111 = vector.shape_cast %1110 : vector<8x1xi1> to vector<8x1xi1>
    %1112 = vector.broadcast %1111 : vector<8x1xi1> to vector<8x128xi1>
    %1113 = arith.select %1112, %1108, %1039 : vector<8x128xi1>, vector<8x128xf32>
    %1114 = vector.shape_cast %1110 : vector<8x1xi1> to vector<8x1xi1>
    %1115 = vector.broadcast %1114 : vector<8x1xi1> to vector<8x128xi1>
    %1116 = arith.select %1115, %1106, %1042 : vector<8x128xi1>, vector<8x128xf32>
    %c6_304 = arith.constant 6 : index
    %c0_305 = arith.constant 0 : index
    %c0_306 = arith.constant 0 : index
    %1117 = vector.load %arg22[%c6_304, %c0_305, %c0_306] : memref<8x8x512xf32, #tpu.memory_space<vmem>>, vector<1x8x512xf32>
    %1118 = vector.shape_cast %1117 : vector<1x8x512xf32> to vector<8x512xf32>
    %cst_307 = arith.constant dense<0.000000e+00> : vector<8x512xf32>
    %1119 = tpu.matmul %1076, %670, %cst_307 {dimension_numbers = #tpu.dot_dimension_numbers<[1], [0], [0], [1], [0, 0, 1, 1], [], []>} : vector<8x128xf32>, vector<128x512xf32>, vector<8x512xf32> -> vector<8x512xf32>
    %1120 = arith.addf %1118, %1119 : vector<8x512xf32>
    %1121 = vector.extract_strided_slice %1120 {offsets = [0, 0], sizes = [8, 128], strides = [1, 1]} : vector<8x512xf32> to vector<8x128xf32>
    %1122 = arith.negf %1121 : vector<8x128xf32>
    %1123 = math.exp %1122 : vector<8x128xf32>
    %cst_308 = arith.constant 1.000000e+00 : f32
    %1124 = vector.broadcast %cst_308 : f32 to vector<8x128xf32>
    %1125 = arith.addf %1124, %1123 : vector<8x128xf32>
    %1126 = arith.divf %1124, %1125 : vector<8x128xf32>
    %1127 = vector.extract_strided_slice %1120 {offsets = [0, 128], sizes = [8, 128], strides = [1, 1]} : vector<8x512xf32> to vector<8x128xf32>
    %1128 = arith.negf %1127 : vector<8x128xf32>
    %1129 = math.exp %1128 : vector<8x128xf32>
    %cst_309 = arith.constant 1.000000e+00 : f32
    %1130 = vector.broadcast %cst_309 : f32 to vector<8x128xf32>
    %1131 = arith.addf %1130, %1129 : vector<8x128xf32>
    %1132 = arith.divf %1130, %1131 : vector<8x128xf32>
    %1133 = vector.extract_strided_slice %1120 {offsets = [0, 256], sizes = [8, 128], strides = [1, 1]} : vector<8x512xf32> to vector<8x128xf32>
    %1134 = math.tanh %1133 : vector<8x128xf32>
    %1135 = vector.extract_strided_slice %1120 {offsets = [0, 384], sizes = [8, 128], strides = [1, 1]} : vector<8x512xf32> to vector<8x128xf32>
    %1136 = arith.negf %1135 : vector<8x128xf32>
    %1137 = math.exp %1136 : vector<8x128xf32>
    %cst_310 = arith.constant 1.000000e+00 : f32
    %1138 = vector.broadcast %cst_310 : f32 to vector<8x128xf32>
    %1139 = arith.addf %1138, %1137 : vector<8x128xf32>
    %1140 = arith.divf %1138, %1139 : vector<8x128xf32>
    %1141 = arith.mulf %1132, %1079 : vector<8x128xf32>
    %1142 = arith.mulf %1126, %1134 : vector<8x128xf32>
    %1143 = arith.addf %1141, %1142 : vector<8x128xf32>
    %1144 = math.tanh %1143 : vector<8x128xf32>
    %1145 = arith.mulf %1140, %1144 : vector<8x128xf32>
    %c6_i32_311 = arith.constant 6 : i32
    %1146 = vector.broadcast %c6_i32_311 : i32 to vector<8x1xi32>
    %1147 = arith.cmpi sgt, %0, %1146 : vector<8x1xi32>
    %1148 = vector.shape_cast %1147 : vector<8x1xi1> to vector<8x1xi1>
    %1149 = vector.broadcast %1148 : vector<8x1xi1> to vector<8x128xi1>
    %1150 = arith.select %1149, %1145, %1076 : vector<8x128xi1>, vector<8x128xf32>
    %1151 = vector.shape_cast %1147 : vector<8x1xi1> to vector<8x1xi1>
    %1152 = vector.broadcast %1151 : vector<8x1xi1> to vector<8x128xi1>
    %1153 = arith.select %1152, %1143, %1079 : vector<8x128xi1>, vector<8x128xf32>
    %c1_312 = arith.constant 1 : index
    %c0_313 = arith.constant 0 : index
    %c0_314 = arith.constant 0 : index
    %1154 = vector.load %arg23[%c1_312, %c0_313, %c0_314] : memref<8x8x512xf32, #tpu.memory_space<vmem>>, vector<1x8x512xf32>
    %1155 = vector.shape_cast %1154 : vector<1x8x512xf32> to vector<8x512xf32>
    %cst_315 = arith.constant dense<0.000000e+00> : vector<8x512xf32>
    %1156 = tpu.matmul %1113, %671, %cst_315 {dimension_numbers = #tpu.dot_dimension_numbers<[1], [0], [0], [1], [0, 0, 1, 1], [], []>} : vector<8x128xf32>, vector<128x512xf32>, vector<8x512xf32> -> vector<8x512xf32>
    %1157 = arith.addf %1155, %1156 : vector<8x512xf32>
    %1158 = vector.extract_strided_slice %1157 {offsets = [0, 0], sizes = [8, 128], strides = [1, 1]} : vector<8x512xf32> to vector<8x128xf32>
    %1159 = arith.negf %1158 : vector<8x128xf32>
    %1160 = math.exp %1159 : vector<8x128xf32>
    %cst_316 = arith.constant 1.000000e+00 : f32
    %1161 = vector.broadcast %cst_316 : f32 to vector<8x128xf32>
    %1162 = arith.addf %1161, %1160 : vector<8x128xf32>
    %1163 = arith.divf %1161, %1162 : vector<8x128xf32>
    %1164 = vector.extract_strided_slice %1157 {offsets = [0, 128], sizes = [8, 128], strides = [1, 1]} : vector<8x512xf32> to vector<8x128xf32>
    %1165 = arith.negf %1164 : vector<8x128xf32>
    %1166 = math.exp %1165 : vector<8x128xf32>
    %cst_317 = arith.constant 1.000000e+00 : f32
    %1167 = vector.broadcast %cst_317 : f32 to vector<8x128xf32>
    %1168 = arith.addf %1167, %1166 : vector<8x128xf32>
    %1169 = arith.divf %1167, %1168 : vector<8x128xf32>
    %1170 = vector.extract_strided_slice %1157 {offsets = [0, 256], sizes = [8, 128], strides = [1, 1]} : vector<8x512xf32> to vector<8x128xf32>
    %1171 = math.tanh %1170 : vector<8x128xf32>
    %1172 = vector.extract_strided_slice %1157 {offsets = [0, 384], sizes = [8, 128], strides = [1, 1]} : vector<8x512xf32> to vector<8x128xf32>
    %1173 = arith.negf %1172 : vector<8x128xf32>
    %1174 = math.exp %1173 : vector<8x128xf32>
    %cst_318 = arith.constant 1.000000e+00 : f32
    %1175 = vector.broadcast %cst_318 : f32 to vector<8x128xf32>
    %1176 = arith.addf %1175, %1174 : vector<8x128xf32>
    %1177 = arith.divf %1175, %1176 : vector<8x128xf32>
    %1178 = arith.mulf %1169, %1116 : vector<8x128xf32>
    %1179 = arith.mulf %1163, %1171 : vector<8x128xf32>
    %1180 = arith.addf %1178, %1179 : vector<8x128xf32>
    %1181 = math.tanh %1180 : vector<8x128xf32>
    %1182 = arith.mulf %1177, %1181 : vector<8x128xf32>
    %c1_i32_319 = arith.constant 1 : i32
    %1183 = vector.broadcast %c1_i32_319 : i32 to vector<8x1xi32>
    %1184 = arith.cmpi sgt, %0, %1183 : vector<8x1xi32>
    %1185 = vector.shape_cast %1184 : vector<8x1xi1> to vector<8x1xi1>
    %1186 = vector.broadcast %1185 : vector<8x1xi1> to vector<8x128xi1>
    %1187 = arith.select %1186, %1182, %1113 : vector<8x128xi1>, vector<8x128xf32>
    %1188 = vector.shape_cast %1184 : vector<8x1xi1> to vector<8x1xi1>
    %1189 = vector.broadcast %1188 : vector<8x1xi1> to vector<8x128xi1>
    %1190 = arith.select %1189, %1180, %1116 : vector<8x128xi1>, vector<8x128xf32>
    %c7_320 = arith.constant 7 : index
    %c0_321 = arith.constant 0 : index
    %c0_322 = arith.constant 0 : index
    %1191 = vector.load %arg22[%c7_320, %c0_321, %c0_322] : memref<8x8x512xf32, #tpu.memory_space<vmem>>, vector<1x8x512xf32>
    %1192 = vector.shape_cast %1191 : vector<1x8x512xf32> to vector<8x512xf32>
    %cst_323 = arith.constant dense<0.000000e+00> : vector<8x512xf32>
    %1193 = tpu.matmul %1150, %670, %cst_323 {dimension_numbers = #tpu.dot_dimension_numbers<[1], [0], [0], [1], [0, 0, 1, 1], [], []>} : vector<8x128xf32>, vector<128x512xf32>, vector<8x512xf32> -> vector<8x512xf32>
    %1194 = arith.addf %1192, %1193 : vector<8x512xf32>
    %1195 = vector.extract_strided_slice %1194 {offsets = [0, 0], sizes = [8, 128], strides = [1, 1]} : vector<8x512xf32> to vector<8x128xf32>
    %1196 = arith.negf %1195 : vector<8x128xf32>
    %1197 = math.exp %1196 : vector<8x128xf32>
    %cst_324 = arith.constant 1.000000e+00 : f32
    %1198 = vector.broadcast %cst_324 : f32 to vector<8x128xf32>
    %1199 = arith.addf %1198, %1197 : vector<8x128xf32>
    %1200 = arith.divf %1198, %1199 : vector<8x128xf32>
    %1201 = vector.extract_strided_slice %1194 {offsets = [0, 128], sizes = [8, 128], strides = [1, 1]} : vector<8x512xf32> to vector<8x128xf32>
    %1202 = arith.negf %1201 : vector<8x128xf32>
    %1203 = math.exp %1202 : vector<8x128xf32>
    %cst_325 = arith.constant 1.000000e+00 : f32
    %1204 = vector.broadcast %cst_325 : f32 to vector<8x128xf32>
    %1205 = arith.addf %1204, %1203 : vector<8x128xf32>
    %1206 = arith.divf %1204, %1205 : vector<8x128xf32>
    %1207 = vector.extract_strided_slice %1194 {offsets = [0, 256], sizes = [8, 128], strides = [1, 1]} : vector<8x512xf32> to vector<8x128xf32>
    %1208 = math.tanh %1207 : vector<8x128xf32>
    %1209 = vector.extract_strided_slice %1194 {offsets = [0, 384], sizes = [8, 128], strides = [1, 1]} : vector<8x512xf32> to vector<8x128xf32>
    %1210 = arith.negf %1209 : vector<8x128xf32>
    %1211 = math.exp %1210 : vector<8x128xf32>
    %cst_326 = arith.constant 1.000000e+00 : f32
    %1212 = vector.broadcast %cst_326 : f32 to vector<8x128xf32>
    %1213 = arith.addf %1212, %1211 : vector<8x128xf32>
    %1214 = arith.divf %1212, %1213 : vector<8x128xf32>
    %1215 = arith.mulf %1206, %1153 : vector<8x128xf32>
    %1216 = arith.mulf %1200, %1208 : vector<8x128xf32>
    %1217 = arith.addf %1215, %1216 : vector<8x128xf32>
    %1218 = math.tanh %1217 : vector<8x128xf32>
    %1219 = arith.mulf %1214, %1218 : vector<8x128xf32>
    %c7_i32_327 = arith.constant 7 : i32
    %1220 = vector.broadcast %c7_i32_327 : i32 to vector<8x1xi32>
    %1221 = arith.cmpi sgt, %0, %1220 : vector<8x1xi32>
    %1222 = vector.shape_cast %1221 : vector<8x1xi1> to vector<8x1xi1>
    %1223 = vector.broadcast %1222 : vector<8x1xi1> to vector<8x128xi1>
    %1224 = arith.select %1223, %1219, %1150 : vector<8x128xi1>, vector<8x128xf32>
    %c0_328 = arith.constant 0 : index
    %c0_329 = arith.constant 0 : index
    %c0_330 = arith.constant 0 : index
    %1225 = vector.load %arg23[%c0_328, %c0_329, %c0_330] : memref<8x8x512xf32, #tpu.memory_space<vmem>>, vector<1x8x512xf32>
    %1226 = vector.shape_cast %1225 : vector<1x8x512xf32> to vector<8x512xf32>
    %cst_331 = arith.constant dense<0.000000e+00> : vector<8x512xf32>
    %1227 = tpu.matmul %1187, %671, %cst_331 {dimension_numbers = #tpu.dot_dimension_numbers<[1], [0], [0], [1], [0, 0, 1, 1], [], []>} : vector<8x128xf32>, vector<128x512xf32>, vector<8x512xf32> -> vector<8x512xf32>
    %1228 = arith.addf %1226, %1227 : vector<8x512xf32>
    %1229 = vector.extract_strided_slice %1228 {offsets = [0, 0], sizes = [8, 128], strides = [1, 1]} : vector<8x512xf32> to vector<8x128xf32>
    %1230 = arith.negf %1229 : vector<8x128xf32>
    %1231 = math.exp %1230 : vector<8x128xf32>
    %cst_332 = arith.constant 1.000000e+00 : f32
    %1232 = vector.broadcast %cst_332 : f32 to vector<8x128xf32>
    %1233 = arith.addf %1232, %1231 : vector<8x128xf32>
    %1234 = arith.divf %1232, %1233 : vector<8x128xf32>
    %1235 = vector.extract_strided_slice %1228 {offsets = [0, 128], sizes = [8, 128], strides = [1, 1]} : vector<8x512xf32> to vector<8x128xf32>
    %1236 = arith.negf %1235 : vector<8x128xf32>
    %1237 = math.exp %1236 : vector<8x128xf32>
    %cst_333 = arith.constant 1.000000e+00 : f32
    %1238 = vector.broadcast %cst_333 : f32 to vector<8x128xf32>
    %1239 = arith.addf %1238, %1237 : vector<8x128xf32>
    %1240 = arith.divf %1238, %1239 : vector<8x128xf32>
    %1241 = vector.extract_strided_slice %1228 {offsets = [0, 256], sizes = [8, 128], strides = [1, 1]} : vector<8x512xf32> to vector<8x128xf32>
    %1242 = math.tanh %1241 : vector<8x128xf32>
    %1243 = vector.extract_strided_slice %1228 {offsets = [0, 384], sizes = [8, 128], strides = [1, 1]} : vector<8x512xf32> to vector<8x128xf32>
    %1244 = arith.negf %1243 : vector<8x128xf32>
    %1245 = math.exp %1244 : vector<8x128xf32>
    %cst_334 = arith.constant 1.000000e+00 : f32
    %1246 = vector.broadcast %cst_334 : f32 to vector<8x128xf32>
    %1247 = arith.addf %1246, %1245 : vector<8x128xf32>
    %1248 = arith.divf %1246, %1247 : vector<8x128xf32>
    %1249 = arith.mulf %1240, %1190 : vector<8x128xf32>
    %1250 = arith.mulf %1234, %1242 : vector<8x128xf32>
    %1251 = arith.addf %1249, %1250 : vector<8x128xf32>
    %1252 = math.tanh %1251 : vector<8x128xf32>
    %1253 = arith.mulf %1248, %1252 : vector<8x128xf32>
    %c0_i32_335 = arith.constant 0 : i32
    %1254 = vector.broadcast %c0_i32_335 : i32 to vector<8x1xi32>
    %1255 = arith.cmpi sgt, %0, %1254 : vector<8x1xi32>
    %1256 = vector.shape_cast %1255 : vector<8x1xi1> to vector<8x1xi1>
    %1257 = vector.broadcast %1256 : vector<8x1xi1> to vector<8x128xi1>
    %1258 = arith.select %1257, %1253, %1187 : vector<8x128xi1>, vector<8x128xf32>
    %c0_336 = arith.constant 0 : index
    %c0_337 = arith.constant 0 : index
    %1259 = vector.load %arg3[%c0_336, %c0_337] : memref<8x128xf32, #tpu.memory_space<vmem>>, vector<8x128xf32>
    %c0_338 = arith.constant 0 : index
    %c0_339 = arith.constant 0 : index
    %1260 = vector.load %arg16[%c0_338, %c0_339] : memref<128x128xf32, #tpu.memory_space<vmem>>, vector<128x128xf32>
    %cst_340 = arith.constant dense<0.000000e+00> : vector<8x128xf32>
    %1261 = tpu.matmul %1259, %1260, %cst_340 {dimension_numbers = #tpu.dot_dimension_numbers<[1], [0], [0], [1], [0, 0, 1, 1], [], []>} : vector<8x128xf32>, vector<128x128xf32>, vector<8x128xf32> -> vector<8x128xf32>
    %c0_341 = arith.constant 0 : index
    %c0_342 = arith.constant 0 : index
    %1262 = vector.load %arg17[%c0_341, %c0_342] : memref<128x128xf32, #tpu.memory_space<vmem>>, vector<128x128xf32>
    %cst_343 = arith.constant dense<0.000000e+00> : vector<8x128xf32>
    %1263 = tpu.matmul %1224, %1262, %cst_343 {dimension_numbers = #tpu.dot_dimension_numbers<[1], [0], [0], [1], [0, 0, 1, 1], [], []>} : vector<8x128xf32>, vector<128x128xf32>, vector<8x128xf32> -> vector<8x128xf32>
    %1264 = arith.addf %1261, %1263 : vector<8x128xf32>
    %c0_344 = arith.constant 0 : index
    %c0_345 = arith.constant 0 : index
    %1265 = vector.load %arg18[%c0_344, %c0_345] : memref<128x128xf32, #tpu.memory_space<vmem>>, vector<128x128xf32>
    %cst_346 = arith.constant dense<0.000000e+00> : vector<8x128xf32>
    %1266 = tpu.matmul %1258, %1265, %cst_346 {dimension_numbers = #tpu.dot_dimension_numbers<[1], [0], [0], [1], [0, 0, 1, 1], [], []>} : vector<8x128xf32>, vector<128x128xf32>, vector<8x128xf32> -> vector<8x128xf32>
    %1267 = arith.addf %1264, %1266 : vector<8x128xf32>
    %c0_347 = arith.constant 0 : index
    %c0_348 = arith.constant 0 : index
    %1268 = vector.load %arg19[%c0_347, %c0_348] : memref<1x128xf32, #tpu.memory_space<vmem>>, vector<1x128xf32>
    %1269 = vector.broadcast %1268 : vector<1x128xf32> to vector<8x128xf32>
    %1270 = arith.addf %1267, %1269 : vector<8x128xf32>
    %c0_349 = arith.constant 0 : index
    %c0_350 = arith.constant 0 : index
    %1271 = vector.load %arg20[%c0_349, %c0_350] : memref<8x128xf32, #tpu.memory_space<vmem>>, vector<8x128xf32>
    tpu.vector_store %arg20[%c0_349, %c0_350], %1270 {strides = array<i32>} : memref<8x128xf32, #tpu.memory_space<vmem>>, vector<8x128xf32>,
    return
  }
  func.func @transform_0(%arg0: i32) -> (i32, i32, i32) {
    %c0_i32 = arith.constant 0 : i32
    %c0_i32_0 = arith.constant 0 : i32
    %c0_i32_1 = arith.constant 0 : i32
    return %c0_i32, %arg0, %c0_i32_0 : i32, i32, i32
  }
  func.func @transform_1(%arg0: i32) -> (i32, i32) {
    %c0_i32 = arith.constant 0 : i32
    %c0_i32_0 = arith.constant 0 : i32
    return %arg0, %c0_i32 : i32, i32
  }
  func.func @transform_2(%arg0: i32) -> (i32, i32) {
    %c0_i32 = arith.constant 0 : i32
    %c0_i32_0 = arith.constant 0 : i32
    return %arg0, %c0_i32 : i32, i32
  }
  func.func @transform_3(%arg0: i32) -> (i32, i32) {
    %c0_i32 = arith.constant 0 : i32
    %c0_i32_0 = arith.constant 0 : i32
    %c0_i32_1 = arith.constant 0 : i32
    return %c0_i32, %c0_i32_0 : i32, i32
  }
  func.func @transform_4(%arg0: i32) -> (i32, i32) {
    %c0_i32 = arith.constant 0 : i32
    %c0_i32_0 = arith.constant 0 : i32
    %c0_i32_1 = arith.constant 0 : i32
    return %c0_i32, %c0_i32_0 : i32, i32
  }
  func.func @transform_5(%arg0: i32) -> (i32, i32) {
    %c0_i32 = arith.constant 0 : i32
    %c0_i32_0 = arith.constant 0 : i32
    %c0_i32_1 = arith.constant 0 : i32
    return %c0_i32, %c0_i32_0 : i32, i32
  }
  func.func @transform_6(%arg0: i32) -> (i32, i32) {
    %c0_i32 = arith.constant 0 : i32
    %c0_i32_0 = arith.constant 0 : i32
    %c0_i32_1 = arith.constant 0 : i32
    return %c0_i32, %c0_i32_0 : i32, i32
  }
  func.func @transform_7(%arg0: i32) -> (i32, i32) {
    %c0_i32 = arith.constant 0 : i32
    %c0_i32_0 = arith.constant 0 : i32
    %c0_i32_1 = arith.constant 0 : i32
    return %c0_i32, %c0_i32_0 : i32, i32
  }
  func.func @transform_8(%arg0: i32) -> (i32, i32) {
    %c0_i32 = arith.constant 0 : i32
    %c0_i32_0 = arith.constant 0 : i32
    %c0_i32_1 = arith.constant 0 : i32
    return %c0_i32, %c0_i32_0 : i32, i32
  }
  func.func @transform_9(%arg0: i32) -> (i32, i32) {
    %c0_i32 = arith.constant 0 : i32
    %c0_i32_0 = arith.constant 0 : i32
    %c0_i32_1 = arith.constant 0 : i32
    return %c0_i32, %c0_i32_0 : i32, i32
  }
  func.func @transform_10(%arg0: i32) -> (i32, i32) {
    %c0_i32 = arith.constant 0 : i32
    %c0_i32_0 = arith.constant 0 : i32
    %c0_i32_1 = arith.constant 0 : i32
    return %c0_i32, %c0_i32_0 : i32, i32
  }
  func.func @transform_11(%arg0: i32) -> (i32, i32) {
    %c0_i32 = arith.constant 0 : i32
    %c0_i32_0 = arith.constant 0 : i32
    %c0_i32_1 = arith.constant 0 : i32
    return %c0_i32, %c0_i32_0 : i32, i32
  }
  func.func @transform_12(%arg0: i32) -> (i32, i32) {
    %c0_i32 = arith.constant 0 : i32
    %c0_i32_0 = arith.constant 0 : i32
    %c0_i32_1 = arith.constant 0 : i32
    return %c0_i32, %c0_i32_0 : i32, i32
  }
  func.func @transform_13(%arg0: i32) -> (i32, i32) {
    %c0_i32 = arith.constant 0 : i32
    %c0_i32_0 = arith.constant 0 : i32
    %c0_i32_1 = arith.constant 0 : i32
    return %c0_i32, %c0_i32_0 : i32, i32
  }
  func.func @transform_14(%arg0: i32) -> (i32, i32) {
    %c0_i32 = arith.constant 0 : i32
    %c0_i32_0 = arith.constant 0 : i32
    %c0_i32_1 = arith.constant 0 : i32
    return %c0_i32, %c0_i32_0 : i32, i32
  }
  func.func @transform_15(%arg0: i32) -> (i32, i32) {
    %c0_i32 = arith.constant 0 : i32
    %c0_i32_0 = arith.constant 0 : i32
    %c0_i32_1 = arith.constant 0 : i32
    return %c0_i32, %c0_i32_0 : i32, i32
  }
  func.func @transform_16(%arg0: i32) -> (i32, i32) {
    %c0_i32 = arith.constant 0 : i32
    %c0_i32_0 = arith.constant 0 : i32
    %c0_i32_1 = arith.constant 0 : i32
    return %c0_i32, %c0_i32_0 : i32, i32
  }
  func.func @transform_17(%arg0: i32) -> (i32, i32) {
    %c0_i32 = arith.constant 0 : i32
    %c0_i32_0 = arith.constant 0 : i32
    %c0_i32_1 = arith.constant 0 : i32
    return %c0_i32, %c0_i32_0 : i32, i32
  }
  func.func @transform_18(%arg0: i32) -> (i32, i32) {
    %c0_i32 = arith.constant 0 : i32
    %c0_i32_0 = arith.constant 0 : i32
    %c0_i32_1 = arith.constant 0 : i32
    return %c0_i32, %c0_i32_0 : i32, i32
  }
  func.func @transform_19(%arg0: i32) -> (i32, i32) {
    %c0_i32 = arith.constant 0 : i32
    %c0_i32_0 = arith.constant 0 : i32
    return %arg0, %c0_i32 : i32, i32
  }
}

</mosaic_0001>

<llo_original>
// kernel: _lambda_.1
$region0: #{_lambda_.1}
  #allocation0 [shape = 'u32[]', space=smem, size = 0x4, offset = 0x4, fixed_abs, tag = 'smem constant byte address 0x4 - core index']
  #allocation1 [shape = 'u32[144,128]{1,0:T(1,128)}', space=vmem, size = 0x12000, scoped, tag = 'internal scratch']
  #allocation2 [shape = 'f32[8,8,256]{2,1,0:T(8,128)}', space=vmem, size = 0x10000, scoped, tag = 'scratch operand']
  #allocation3 [shape = 'f32[8,8,512]{2,1,0:T(8,128)}', space=vmem, size = 0x20000, scoped, tag = 'scratch operand']
  #allocation4 [shape = 'f32[8,8,512]{2,1,0:T(8,128)}', space=vmem, size = 0x20000, scoped, tag = 'scratch operand']
  %s0 = inlined_call_operand.vmem [shape: f32[8,8,128], index: 0, kind: input, shape index: {}]
  %s1 = inlined_call_operand.vmem [shape: s32[8,1], index: 1, kind: input, shape index: {}]
  %s2 = inlined_call_operand.vmem [shape: f32[8,128], index: 2, kind: input, shape index: {}]
  %s3 = inlined_call_operand.vmem [shape: f32[128,512], index: 3, kind: input, shape index: {}]
  %s4 = inlined_call_operand.hbm [shape: f32[128,512], index: 4, kind: input, shape index: {}]
  %s5 = inlined_call_operand.vmem [shape: f32[1,512], index: 5, kind: input, shape index: {}]
  %s6 = inlined_call_operand.hbm [shape: f32[128,512], index: 6, kind: input, shape index: {}]
  %s7 = inlined_call_operand.hbm [shape: f32[128,512], index: 7, kind: input, shape index: {}]
  %s8 = inlined_call_operand.vmem [shape: f32[1,512], index: 8, kind: input, shape index: {}]
  %s9 = inlined_call_operand.hbm [shape: f32[256,512], index: 9, kind: input, shape index: {}]
  %s10 = inlined_call_operand.hbm [shape: f32[128,512], index: 10, kind: input, shape index: {}]
  %s11 = inlined_call_operand.vmem [shape: f32[1,512], index: 11, kind: input, shape index: {}]
  %s12 = inlined_call_operand.hbm [shape: f32[256,512], index: 12, kind: input, shape index: {}]
  %s13 = inlined_call_operand.hbm [shape: f32[128,512], index: 13, kind: input, shape index: {}]
  %s14 = inlined_call_operand.vmem [shape: f32[1,512], index: 14, kind: input, shape index: {}]
  %s15 = inlined_call_operand.hbm [shape: f32[128,128], index: 15, kind: input, shape index: {}]
  %s16 = inlined_call_operand.hbm [shape: f32[128,128], index: 16, kind: input, shape index: {}]
  %s17 = inlined_call_operand.hbm [shape: f32[128,128], index: 17, kind: input, shape index: {}]
  %s18 = inlined_call_operand.vmem [shape: f32[1,128], index: 18, kind: input, shape index: {}]
  %s19 = inlined_call_operand.vmem [shape: f32[8,128], index: 19, kind: output, shape index: {}]
  %s20 = sld [smem:[#allocation0]]
  $region126: #{_lambda_.1} parent=0
    _
  %s22 = ssub.s32 1, %s20
  %s23 = scalar_select 0, %s22, %s20
  $region1: #{_lambda_.1} parent=0
    #allocation5 [shape = 'u8[262144]{0}', space=vmem, size = 0x40000, scoped, tag = 'input window, operand 4, single buffered']
    #allocation6 [shape = 's32[1]{0}', space=sflag, size = 0x4, scoped, tag = 'scoped memory for _lambda_.1']
    #allocation7 [shape = 'u8[262144]{0}', space=vmem, size = 0x40000, scoped, tag = 'input window, operand 6, single buffered']
    #allocation8 [shape = 's32[1]{0}', space=sflag, size = 0x4, scoped, tag = 'scoped memory for _lambda_.1']
    #allocation9 [shape = 'u8[262144]{0}', space=vmem, size = 0x40000, scoped, tag = 'input window, operand 7, single buffered']
    #allocation10 [shape = 'u8[524288]{0}', space=vmem, size = 0x80000, scoped, tag = 'input window, operand 9, single buffered']
    #allocation11 [shape = 's32[1]{0}', space=sflag, size = 0x4, scoped, tag = 'scoped memory for _lambda_.1']
    #allocation12 [shape = 'u8[262144]{0}', space=vmem, size = 0x40000, scoped, tag = 'input window, operand 10, single buffered']
    #allocation13 [shape = 'u8[524288]{0}', space=vmem, size = 0x80000, scoped, tag = 'input window, operand 12, single buffered']
    #allocation14 [shape = 's32[1]{0}', space=sflag, size = 0x4, scoped, tag = 'scoped memory for _lambda_.1']
    #allocation15 [shape = 'u8[262144]{0}', space=vmem, size = 0x40000, scoped, tag = 'input window, operand 13, single buffered']
    #allocation16 [shape = 'u8[65536]{0}', space=vmem, size = 0x10000, scoped, tag = 'input window, operand 15, single buffered']
    #allocation17 [shape = 's32[1]{0}', space=sflag, size = 0x4, scoped, tag = 'scoped memory for _lambda_.1']
    #allocation18 [shape = 'u8[65536]{0}', space=vmem, size = 0x10000, scoped, tag = 'input window, operand 16, single buffered']
    #allocation19 [shape = 'u8[65536]{0}', space=vmem, size = 0x10000, scoped, tag = 'input window, operand 17, single buffered']
    #allocation20 [shape = 's32[1]{0}', space=sflag, size = 0x4, scoped, tag = 'scoped memory for _lambda_.1']
    %24 = vsyncpa [#allocation6], 0
    %25 = vsyncpa [#allocation8], 0
    %26 = vsyncpa [#allocation11], 0
    %27 = vsyncpa [#allocation14], 0
    %28 = vsyncpa [#allocation17], 0
    %29 = vsyncpa [#allocation20], 0
    // Predicated region
    $region2: #{_lambda_.1} parent=1 // pred_check
      _
    $region3: #{_lambda_.1} parent=1 // pred_check_branch
      %31 = sbr.rel (0) target = $region5
    $region4: #{_lambda_.1} parent=1 // pred_region
      _
    $region5: #{_lambda_.1} parent=1 // pred_fallthru
      _
    // Predicated region
    $region6: #{_lambda_.1} parent=1 // pred_check
      _
    $region7: #{_lambda_.1} parent=1 // pred_check_branch
      %33 = sbr.rel (0) target = $region9
    $region8: #{_lambda_.1} parent=1 // pred_region
      _
    $region9: #{_lambda_.1} parent=1 // pred_fallthru
      _
    // Predicated region
    $region10: #{_lambda_.1} parent=1 // pred_check
      _
    $region11: #{_lambda_.1} parent=1 // pred_check_branch
      %35 = sbr.rel (0) target = $region13
    $region12: #{_lambda_.1} parent=1 // pred_region
      _
    $region13: #{_lambda_.1} parent=1 // pred_fallthru
      _
    // Predicated region
    $region14: #{_lambda_.1} parent=1 // pred_check
      _
    $region15: #{_lambda_.1} parent=1 // pred_check_branch
      %37 = sbr.rel (0) target = $region17
    $region16: #{_lambda_.1} parent=1 // pred_region
      _
    $region17: #{_lambda_.1} parent=1 // pred_fallthru
      _
    // Predicated region
    $region18: #{_lambda_.1} parent=1 // pred_check
      _
    $region19: #{_lambda_.1} parent=1 // pred_check_branch
      %39 = sbr.rel (0) target = $region21
    $region20: #{_lambda_.1} parent=1 // pred_region
      %s41 = ssub.s32 8192, 8192
      %42 = vsyncadd [#allocation6], %s41
      %s43 = sshll.u32 [#allocation5], 4
      %s44 = int_to_ptr.vmem [resolvable:$true] %s43
      %49 = dma.hbm_to_vmem [thread:$0]  %s4, 8192, %s44, [#allocation6], 512, 512, 32
    $region21: #{_lambda_.1} parent=1 // pred_fallthru
      _
    // Predicated region
    $region22: #{_lambda_.1} parent=1 // pred_check
      _
    $region23: #{_lambda_.1} parent=1 // pred_check_branch
      %51 = sbr.rel (0) target = $region25
    $region24: #{_lambda_.1} parent=1 // pred_region
      _
    $region25: #{_lambda_.1} parent=1 // pred_fallthru
      _
    // Predicated region
    $region26: #{_lambda_.1} parent=1 // pred_check
      _
    $region27: #{_lambda_.1} parent=1 // pred_check_branch
      %53 = sbr.rel (0) target = $region29
    $region28: #{_lambda_.1} parent=1 // pred_region
      %s55 = ssub.s32 8192, 8192
      %56 = vsyncadd [#allocation8], %s55
      %s57 = sshll.u32 [#allocation7], 4
      %s58 = int_to_ptr.vmem [resolvable:$true] %s57
      %63 = dma.hbm_to_vmem [thread:$0]  %s6, 8192, %s58, [#allocation8], 512, 512, 32
    $region29: #{_lambda_.1} parent=1 // pred_fallthru
      _
    // Predicated region
    $region30: #{_lambda_.1} parent=1 // pred_check
      _
    $region31: #{_lambda_.1} parent=1 // pred_check_branch
      %65 = sbr.rel (0) target = $region33
    $region32: #{_lambda_.1} parent=1 // pred_region
      %s67 = ssub.s32 8192, 8192
      %68 = vsyncadd [#allocation8], %s67
      %s69 = sshll.u32 [#allocation9], 4
      %s70 = int_to_ptr.vmem [resolvable:$true] %s69
      %75 = dma.hbm_to_vmem [thread:$0]  %s7, 8192, %s70, [#allocation8], 512, 512, 32
    $region33: #{_lambda_.1} parent=1 // pred_fallthru
      _
    // Predicated region
    $region34: #{_lambda_.1} parent=1 // pred_check
      _
    $region35: #{_lambda_.1} parent=1 // pred_check_branch
      %77 = sbr.rel (0) target = $region37
    $region36: #{_lambda_.1} parent=1 // pred_region
      _
    $region37: #{_lambda_.1} parent=1 // pred_fallthru
      _
    // Predicated region
    $region38: #{_lambda_.1} parent=1 // pred_check
      _
    $region39: #{_lambda_.1} parent=1 // pred_check_branch
      %79 = sbr.rel (0) target = $region41
    $region40: #{_lambda_.1} parent=1 // pred_region
      %s81 = ssub.s32 16384, 16384
      %82 = vsyncadd [#allocation11], %s81
      %s83 = sshll.u32 [#allocation10], 4
      %s84 = int_to_ptr.vmem [resolvable:$true] %s83
      %89 = dma.hbm_to_vmem [thread:$0]  %s9, 16384, %s84, [#allocation11], 512, 512, 32
    $region41: #{_lambda_.1} parent=1 // pred_fallthru
      _
    // Predicated region
    $region42: #{_lambda_.1} parent=1 // pred_check
      _
    $region43: #{_lambda_.1} parent=1 // pred_check_branch
      %91 = sbr.rel (0) target = $region45
    $region44: #{_lambda_.1} parent=1 // pred_region
      %s93 = ssub.s32 8192, 8192
      %94 = vsyncadd [#allocation11], %s93
      %s95 = sshll.u32 [#allocation12], 4
      %s96 = int_to_ptr.vmem [resolvable:$true] %s95
      %101 = dma.hbm_to_vmem [thread:$0]  %s10, 8192, %s96, [#allocation11], 512, 512, 32
    $region45: #{_lambda_.1} parent=1 // pred_fallthru
      _
    // Predicated region
    $region46: #{_lambda_.1} parent=1 // pred_check
      _
    $region47: #{_lambda_.1} parent=1 // pred_check_branch
      %103 = sbr.rel (0) target = $region49
    $region48: #{_lambda_.1} parent=1 // pred_region
      _
    $region49: #{_lambda_.1} parent=1 // pred_fallthru
      _
    // Predicated region
    $region50: #{_lambda_.1} parent=1 // pred_check
      _
    $region51: #{_lambda_.1} parent=1 // pred_check_branch
      %105 = sbr.rel (0) target = $region53
    $region52: #{_lambda_.1} parent=1 // pred_region
      %s107 = ssub.s32 16384, 16384
      %108 = vsyncadd [#allocation14], %s107
      %s109 = sshll.u32 [#allocation13], 4
      %s110 = int_to_ptr.vmem [resolvable:$true] %s109
      %115 = dma.hbm_to_vmem [thread:$0]  %s12, 16384, %s110, [#allocation14], 512, 512, 32
    $region53: #{_lambda_.1} parent=1 // pred_fallthru
      _
    // Predicated region
    $region54: #{_lambda_.1} parent=1 // pred_check
      _
    $region55: #{_lambda_.1} parent=1 // pred_check_branch
      %117 = sbr.rel (0) target = $region57
    $region56: #{_lambda_.1} parent=1 // pred_region
      %s119 = ssub.s32 8192, 8192
      %120 = vsyncadd [#allocation14], %s119
      %s121 = sshll.u32 [#allocation15], 4
      %s122 = int_to_ptr.vmem [resolvable:$true] %s121
      %127 = dma.hbm_to_vmem [thread:$0]  %s13, 8192, %s122, [#allocation14], 512, 512, 32
    $region57: #{_lambda_.1} parent=1 // pred_fallthru
      _
    // Predicated region
    $region58: #{_lambda_.1} parent=1 // pred_check
      _
    $region59: #{_lambda_.1} parent=1 // pred_check_branch
      %129 = sbr.rel (0) target = $region61
    $region60: #{_lambda_.1} parent=1 // pred_region
      _
    $region61: #{_lambda_.1} parent=1 // pred_fallthru
      _
    // Predicated region
    $region62: #{_lambda_.1} parent=1 // pred_check
      _
    $region63: #{_lambda_.1} parent=1 // pred_check_branch
      %131 = sbr.rel (0) target = $region65
    $region64: #{_lambda_.1} parent=1 // pred_region
      %s133 = ssub.s32 2048, 2048
      %134 = vsyncadd [#allocation17], %s133
      %s135 = sshll.u32 [#allocation16], 4
      %s136 = int_to_ptr.vmem [resolvable:$true] %s135
      %141 = dma.hbm_to_vmem [thread:$0]  %s15, 2048, %s136, [#allocation17], 128, 128, 8
    $region65: #{_lambda_.1} parent=1 // pred_fallthru
      _
    // Predicated region
    $region66: #{_lambda_.1} parent=1 // pred_check
      _
    $region67: #{_lambda_.1} parent=1 // pred_check_branch
      %143 = sbr.rel (0) target = $region69
    $region68: #{_lambda_.1} parent=1 // pred_region
      %s145 = ssub.s32 2048, 2048
      %146 = vsyncadd [#allocation17], %s145
      %s147 = sshll.u32 [#allocation18], 4
      %s148 = int_to_ptr.vmem [resolvable:$true] %s147
      %153 = dma.hbm_to_vmem [thread:$0]  %s16, 2048, %s148, [#allocation17], 128, 128, 8
    $region69: #{_lambda_.1} parent=1 // pred_fallthru
      _
    // Predicated region
    $region70: #{_lambda_.1} parent=1 // pred_check
      _
    $region71: #{_lambda_.1} parent=1 // pred_check_branch
      %155 = sbr.rel (0) target = $region73
    $region72: #{_lambda_.1} parent=1 // pred_region
      %s157 = ssub.s32 2048, 2048
      %158 = vsyncadd [#allocation20], %s157
      %s159 = sshll.u32 [#allocation19], 4
      %s160 = int_to_ptr.vmem [resolvable:$true] %s159
      %165 = dma.hbm_to_vmem [thread:$0]  %s17, 2048, %s160, [#allocation20], 128, 128, 8
    $region73: #{_lambda_.1} parent=1 // pred_fallthru
      _
    // Predicated region
    $region74: #{_lambda_.1} parent=1 // pred_check
      _
    $region75: #{_lambda_.1} parent=1 // pred_check_branch
      %167 = sbr.rel (0) target = $region77
    $region76: #{_lambda_.1} parent=1 // pred_region
      _
    $region77: #{_lambda_.1} parent=1 // pred_fallthru
      _
    // Predicated region
    $region78: #{_lambda_.1} parent=1 // pred_check
      _
    $region79: #{_lambda_.1} parent=1 // pred_check_branch
      %169 = sbr.rel (0) target = $region81
    $region80: #{_lambda_.1} parent=1 // pred_region
      %170 = dma.done [#allocation6], 8192
    $region81: #{_lambda_.1} parent=1 // pred_fallthru
      _
    // Predicated region
    $region82: #{_lambda_.1} parent=1 // pred_check
      _
    $region83: #{_lambda_.1} parent=1 // pred_check_branch
      %172 = sbr.rel (0) target = $region85
    $region84: #{_lambda_.1} parent=1 // pred_region
      %173 = dma.done [#allocation8], 8192
    $region85: #{_lambda_.1} parent=1 // pred_fallthru
      _
    // Predicated region
    $region86: #{_lambda_.1} parent=1 // pred_check
      _
    $region87: #{_lambda_.1} parent=1 // pred_check_branch
      %175 = sbr.rel (0) target = $region89
    $region88: #{_lambda_.1} parent=1 // pred_region
      %176 = dma.done [#allocation8], 8192
    $region89: #{_lambda_.1} parent=1 // pred_fallthru
      _
    // Predicated region
    $region90: #{_lambda_.1} parent=1 // pred_check
      _
    $region91: #{_lambda_.1} parent=1 // pred_check_branch
      %178 = sbr.rel (0) target = $region93
    $region92: #{_lambda_.1} parent=1 // pred_region
      %179 = dma.done [#allocation11], 16384
    $region93: #{_lambda_.1} parent=1 // pred_fallthru
      _
    // Predicated region
    $region94: #{_lambda_.1} parent=1 // pred_check
      _
    $region95: #{_lambda_.1} parent=1 // pred_check_branch
      %181 = sbr.rel (0) target = $region97
    $region96: #{_lambda_.1} parent=1 // pred_region
      %182 = dma.done [#allocation11], 8192
    $region97: #{_lambda_.1} parent=1 // pred_fallthru
      _
    // Predicated region
    $region98: #{_lambda_.1} parent=1 // pred_check
      _
    $region99: #{_lambda_.1} parent=1 // pred_check_branch
      %184 = sbr.rel (0) target = $region101
    $region100: #{_lambda_.1} parent=1 // pred_region
      %185 = dma.done [#allocation14], 16384
    $region101: #{_lambda_.1} parent=1 // pred_fallthru
      _
    // Predicated region
    $region102: #{_lambda_.1} parent=1 // pred_check
      _
    $region103: #{_lambda_.1} parent=1 // pred_check_branch
      %187 = sbr.rel (0) target = $region105
    $region104: #{_lambda_.1} parent=1 // pred_region
      %188 = dma.done [#allocation14], 8192
    $region105: #{_lambda_.1} parent=1 // pred_fallthru
      _
    // Predicated region
    $region106: #{_lambda_.1} parent=1 // pred_check
      _
    $region107: #{_lambda_.1} parent=1 // pred_check_branch
      %190 = sbr.rel (0) target = $region109
    $region108: #{_lambda_.1} parent=1 // pred_region
      %191 = dma.done [#allocation17], 2048
    $region109: #{_lambda_.1} parent=1 // pred_fallthru
      _
    // Predicated region
    $region110: #{_lambda_.1} parent=1 // pred_check
      _
    $region111: #{_lambda_.1} parent=1 // pred_check_branch
      %193 = sbr.rel (0) target = $region113
    $region112: #{_lambda_.1} parent=1 // pred_region
      %194 = dma.done [#allocation17], 2048
    $region113: #{_lambda_.1} parent=1 // pred_fallthru
      _
    // Predicated region
    $region114: #{_lambda_.1} parent=1 // pred_check
      _
    $region115: #{_lambda_.1} parent=1 // pred_check_branch
      %196 = sbr.rel (0) target = $region117
    $region116: #{_lambda_.1} parent=1 // pred_region
      %197 = dma.done [#allocation20], 2048
    $region117: #{_lambda_.1} parent=1 // pred_fallthru
      _
    %v198 = vld [vmem:[%s1] sm:$0xff]
    %v199 = vld [vmem:[%s0] sm:$0xff]
    %v200 = vld [vmem:[%s0 + $0x8] sm:$0xff]
    %v201 = vld [vmem:[%s0 + $0x10] sm:$0xff]
    %v202 = vld [vmem:[%s0 + $0x18] sm:$0xff]
    %v203 = vld [vmem:[%s0 + $0x20] sm:$0xff]
    %v204 = vld [vmem:[%s0 + $0x28] sm:$0xff]
    %v205 = vld [vmem:[%s0 + $0x30] sm:$0xff]
    %v206 = vld [vmem:[%s0 + $0x38] sm:$0xff]
    %v207 = vld [vmem:[%s3] sm:$0xff]
    %v208 = vld [vmem:[%s3 + $0x8] sm:$0xff]
    %v209 = vld [vmem:[%s3 + $0x10] sm:$0xff]
    %v210 = vld [vmem:[%s3 + $0x18] sm:$0xff]
    %v211 = vld [vmem:[%s3 + $0x20] sm:$0xff]
    %v212 = vld [vmem:[%s3 + $0x28] sm:$0xff]
    %v213 = vld [vmem:[%s3 + $0x30] sm:$0xff]
    %v214 = vld [vmem:[%s3 + $0x38] sm:$0xff]
    %v215 = vld [vmem:[%s3 + $0x40] sm:$0xff]
    %v216 = vld [vmem:[%s3 + $0x48] sm:$0xff]
    %v217 = vld [vmem:[%s3 + $0x50] sm:$0xff]
    %v218 = vld [vmem:[%s3 + $0x58] sm:$0xff]
    %v219 = vld [vmem:[%s3 + $0x60] sm:$0xff]
    %v220 = vld [vmem:[%s3 + $0x68] sm:$0xff]
    %v221 = vld [vmem:[%s3 + $0x70] sm:$0xff]
    %v222 = vld [vmem:[%s3 + $0x78] sm:$0xff]
    %v223 = vld [vmem:[%s3 + $0x80] sm:$0xff]
    %v224 = vld [vmem:[%s3 + $0x88] sm:$0xff]
    %v225 = vld [vmem:[%s3 + $0x90] sm:$0xff]
    %v226 = vld [vmem:[%s3 + $0x98] sm:$0xff]
    %v227 = vld [vmem:[%s3 + $0xa0] sm:$0xff]
    %v228 = vld [vmem:[%s3 + $0xa8] sm:$0xff]
    %v229 = vld [vmem:[%s3 + $0xb0] sm:$0xff]
    %v230 = vld [vmem:[%s3 + $0xb8] sm:$0xff]
    %v231 = vld [vmem:[%s3 + $0xc0] sm:$0xff]
    %v232 = vld [vmem:[%s3 + $0xc8] sm:$0xff]
    %v233 = vld [vmem:[%s3 + $0xd0] sm:$0xff]
    %v234 = vld [vmem:[%s3 + $0xd8] sm:$0xff]
    %v235 = vld [vmem:[%s3 + $0xe0] sm:$0xff]
    %v236 = vld [vmem:[%s3 + $0xe8] sm:$0xff]
    %v237 = vld [vmem:[%s3 + $0xf0] sm:$0xff]
    %v238 = vld [vmem:[%s3 + $0xf8] sm:$0xff]
    %v239 = vld [vmem:[%s3 + $0x100] sm:$0xff]
    %v240 = vld [vmem:[%s3 + $0x108] sm:$0xff]
    %v241 = vld [vmem:[%s3 + $0x110] sm:$0xff]
    %v242 = vld [vmem:[%s3 + $0x118] sm:$0xff]
    %v243 = vld [vmem:[%s3 + $0x120] sm:$0xff]
    %v244 = vld [vmem:[%s3 + $0x128] sm:$0xff]
    %v245 = vld [vmem:[%s3 + $0x130] sm:$0xff]
    %v246 = vld [vmem:[%s3 + $0x138] sm:$0xff]
    %v247 = vld [vmem:[%s3 + $0x140] sm:$0xff]
    %v248 = vld [vmem:[%s3 + $0x148] sm:$0xff]
    %v249 = vld [vmem:[%s3 + $0x150] sm:$0xff]
    %v250 = vld [vmem:[%s3 + $0x158] sm:$0xff]
    %v251 = vld [vmem:[%s3 + $0x160] sm:$0xff]
    %v252 = vld [vmem:[%s3 + $0x168] sm:$0xff]
    %v253 = vld [vmem:[%s3 + $0x170] sm:$0xff]
    %v254 = vld [vmem:[%s3 + $0x178] sm:$0xff]
    %v255 = vld [vmem:[%s3 + $0x180] sm:$0xff]
    %v256 = vld [vmem:[%s3 + $0x188] sm:$0xff]
    %v257 = vld [vmem:[%s3 + $0x190] sm:$0xff]
    %v258 = vld [vmem:[%s3 + $0x198] sm:$0xff]
    %v259 = vld [vmem:[%s3 + $0x1a0] sm:$0xff]
    %v260 = vld [vmem:[%s3 + $0x1a8] sm:$0xff]
    %v261 = vld [vmem:[%s3 + $0x1b0] sm:$0xff]
    %v262 = vld [vmem:[%s3 + $0x1b8] sm:$0xff]
    %v263 = vld [vmem:[%s3 + $0x1c0] sm:$0xff]
    %v264 = vld [vmem:[%s3 + $0x1c8] sm:$0xff]
    %v265 = vld [vmem:[%s3 + $0x1d0] sm:$0xff]
    %v266 = vld [vmem:[%s3 + $0x1d8] sm:$0xff]
    %v267 = vld [vmem:[%s3 + $0x1e0] sm:$0xff]
    %v268 = vld [vmem:[%s3 + $0x1e8] sm:$0xff]
    %v269 = vld [vmem:[%s3 + $0x1f0] sm:$0xff]
    %v270 = vld [vmem:[%s3 + $0x1f8] sm:$0xff]
    %v271 = vld [vmem:[%s5] sm:$0xf]
    %v273 = vlaneseq
    %v274 = vshrl.u32 %v273, 7
    %v275 = vsub.s32 0, %v274
    %v276 = vrot.slane %v271, %v275
    %v277 = vlaneseq
    %v278 = vshrl.u32 %v277, 7
    %v279 = vsub.s32 1, %v278
    %v280 = vrot.slane %v271, %v279
    %v281 = vlaneseq
    %v282 = vshrl.u32 %v281, 7
    %v283 = vsub.s32 2, %v282
    %v284 = vrot.slane %v271, %v283
    %v285 = vlaneseq
    %v286 = vshrl.u32 %v285, 7
    %v287 = vsub.s32 3, %v286
    %v288 = vrot.slane %v271, %v287
    %293 = vmatprep.subr.mxu0 %v208
    %294 = vmatpush1.msra.mxu0 %v207
    %295 = vmatprep.subr.mxu0 %v212
    %296 = vmatpush1.msra.mxu0 %v211
    %297 = vmatprep.subr.mxu0 %v216
    %298 = vmatpush1.msra.mxu0 %v215
    %299 = vmatprep.subr.mxu0 %v220
    %300 = vmatpush1.msra.mxu0 %v219
    %301 = vmatprep.subr.mxu0 %v224
    %302 = vmatpush1.msra.mxu0 %v223
    %303 = vmatprep.subr.mxu0 %v228
    %304 = vmatpush1.msra.mxu0 %v227
    %305 = vmatprep.subr.mxu0 %v232
    %306 = vmatpush1.msra.mxu0 %v231
    %307 = vmatprep.subr.mxu0 %v236
    %308 = vmatpush1.msra.mxu0 %v235
    %309 = vmatprep.subr.mxu0 %v240
    %310 = vmatpush1.msra.mxu0 %v239
    %311 = vmatprep.subr.mxu0 %v244
    %312 = vmatpush1.msra.mxu0 %v243
    %313 = vmatprep.subr.mxu0 %v248
    %314 = vmatpush1.msra.mxu0 %v247
    %315 = vmatprep.subr.mxu0 %v252
    %316 = vmatpush1.msra.mxu0 %v251
    %317 = vmatprep.subr.mxu0 %v256
    %318 = vmatpush1.msra.mxu0 %v255
    %319 = vmatprep.subr.mxu0 %v260
    %320 = vmatpush1.msra.mxu0 %v259
    %321 = vmatprep.subr.mxu0 %v264
    %322 = vmatpush1.msra.mxu0 %v263
    %323 = vmatprep.subr.mxu0 %v268
    %324 = vmatpush1.msra.mxu0 %v267
    %325 = vmatprep.subr.mxu0 0.0
    %326 = vmatpush1.msra.mxu0 0.0
    %327 = vmatprep.subr.mxu0 0.0
    %328 = vmatpush1.msra.mxu0 0.0
    %329 = vmatprep.subr.mxu0 0.0
    %330 = vmatpush1.msra.mxu0 0.0
    %331 = vmatprep.subr.mxu0 0.0
    %332 = vmatpush1.msra.mxu0 0.0
    %333 = vmatprep.subr.mxu0 0.0
    %334 = vmatpush1.msra.mxu0 0.0
    %335 = vmatprep.subr.mxu0 0.0
    %336 = vmatpush1.msra.mxu0 0.0
    %337 = vmatprep.subr.mxu0 0.0
    %338 = vmatpush1.msra.mxu0 0.0
    %339 = vmatprep.subr.mxu0 0.0
    %340 = vmatpush1.msra.mxu0 0.0
    %341 = vmatprep.subr.mxu0 0.0
    %342 = vmatpush1.msra.mxu0 0.0
    %343 = vmatprep.subr.mxu0 0.0
    %344 = vmatpush1.msra.mxu0 0.0
    %345 = vmatprep.subr.mxu0 0.0
    %346 = vmatpush1.msra.mxu0 0.0
    %347 = vmatprep.subr.mxu0 0.0
    %348 = vmatpush1.msra.mxu0 0.0
    %349 = vmatprep.subr.mxu0 0.0
    %350 = vmatpush1.msra.mxu0 0.0
    %351 = vmatprep.subr.mxu0 0.0
    %352 = vmatpush1.msra.mxu0 0.0
    %353 = vmatprep.subr.mxu0 0.0
    %354 = vmatpush1.msra.mxu0 0.0
    %355 = vmatprep.subr.mxu0 0.0
    %356 = vmatpush1.msra.mxu0 0.0
    %357 = vmatprep.mubr.f32.mxu0 0.0
    %358 = vmatmul.mubr.f32.gmra.mrb[0].mxu0 %v199
    %v359 = vpop.f32.mrb[0].mxu0
    %v360 = vadd.f32 %v276, %v359
    %v361 = vpop.f32.mrb[0].mxu0
    %v362 = vadd.f32 %v280, %v361
    %363 = vmatprep.mubr.f32.mxu0 0.0
    %364 = vmatmul.mubr.f32.gmra.mrb[0].mxu0 %v200
    %v365 = vpop.f32.mrb[0].mxu0
    %v366 = vadd.f32 %v276, %v365
    %v367 = vpop.f32.mrb[0].mxu0
    %v368 = vadd.f32 %v280, %v367
    %369 = vmatprep.mubr.f32.mxu0 0.0
    %370 = vmatmul.mubr.f32.gmra.mrb[0].mxu0 %v201
    %v371 = vpop.f32.mrb[0].mxu0
    %v372 = vadd.f32 %v276, %v371
    %v373 = vpop.f32.mrb[0].mxu0
    %v374 = vadd.f32 %v280, %v373
    %375 = vmatprep.mubr.f32.mxu0 0.0
    %376 = vmatmul.mubr.f32.gmra.mrb[0].mxu0 %v202
    %v377 = vpop.f32.mrb[0].mxu0
    %v378 = vadd.f32 %v276, %v377
    %v379 = vpop.f32.mrb[0].mxu0
    %v380 = vadd.f32 %v280, %v379
    %381 = vmatprep.mubr.f32.mxu0 0.0
    %382 = vmatmul.mubr.f32.gmra.mrb[0].mxu0 %v203
    %v383 = vpop.f32.mrb[0].mxu0
    %v384 = vadd.f32 %v276, %v383
    %v385 = vpop.f32.mrb[0].mxu0
    %v386 = vadd.f32 %v280, %v385
    %387 = vmatprep.mubr.f32.mxu0 0.0
    %388 = vmatmul.mubr.f32.gmra.mrb[0].mxu0 %v204
    %v389 = vpop.f32.mrb[0].mxu0
    %v390 = vadd.f32 %v276, %v389
    %v391 = vpop.f32.mrb[0].mxu0
    %v392 = vadd.f32 %v280, %v391
    %393 = vmatprep.mubr.f32.mxu0 0.0
    %394 = vmatmul.mubr.f32.gmra.mrb[0].mxu0 %v205
    %v395 = vpop.f32.mrb[0].mxu0
    %v396 = vadd.f32 %v276, %v395
    %v397 = vpop.f32.mrb[0].mxu0
    %v398 = vadd.f32 %v280, %v397
    %399 = vmatprep.mubr.f32.mxu0 0.0
    %400 = vmatmul.mubr.f32.gmra.mrb[0].mxu0 %v206
    %v401 = vpop.f32.mrb[0].mxu0
    %v402 = vadd.f32 %v276, %v401
    %v403 = vpop.f32.mrb[0].mxu0
    %v404 = vadd.f32 %v280, %v403
    %405 = vdwg.mxu0
    %406 = vmatprep.subr.mxu0 %v210
    %407 = vmatpush1.msra.mxu0 %v209
    %408 = vmatprep.subr.mxu0 %v214
    %409 = vmatpush1.msra.mxu0 %v213
    %410 = vmatprep.subr.mxu0 %v218
    %411 = vmatpush1.msra.mxu0 %v217
    %412 = vmatprep.subr.mxu0 %v222
    %413 = vmatpush1.msra.mxu0 %v221
    %414 = vmatprep.subr.mxu0 %v226
    %415 = vmatpush1.msra.mxu0 %v225
    %416 = vmatprep.subr.mxu0 %v230
    %417 = vmatpush1.msra.mxu0 %v229
    %418 = vmatprep.subr.mxu0 %v234
    %419 = vmatpush1.msra.mxu0 %v233
    %420 = vmatprep.subr.mxu0 %v238
    %421 = vmatpush1.msra.mxu0 %v237
    %422 = vmatprep.subr.mxu0 %v242
    %423 = vmatpush1.msra.mxu0 %v241
    %424 = vmatprep.subr.mxu0 %v246
    %425 = vmatpush1.msra.mxu0 %v245
    %426 = vmatprep.subr.mxu0 %v250
    %427 = vmatpush1.msra.mxu0 %v249
    %428 = vmatprep.subr.mxu0 %v254
    %429 = vmatpush1.msra.mxu0 %v253
    %430 = vmatprep.subr.mxu0 %v258
    %431 = vmatpush1.msra.mxu0 %v257
    %432 = vmatprep.subr.mxu0 %v262
    %433 = vmatpush1.msra.mxu0 %v261
    %434 = vmatprep.subr.mxu0 %v266
    %435 = vmatpush1.msra.mxu0 %v265
    %436 = vmatprep.subr.mxu0 %v270
    %437 = vmatpush1.msra.mxu0 %v269
    %438 = vmatprep.subr.mxu0 0.0
    %439 = vmatpush1.msra.mxu0 0.0
    %440 = vmatprep.subr.mxu0 0.0
    %441 = vmatpush1.msra.mxu0 0.0
    %442 = vmatprep.subr.mxu0 0.0
    %443 = vmatpush1.msra.mxu0 0.0
    %444 = vmatprep.subr.mxu0 0.0
    %445 = vmatpush1.msra.mxu0 0.0
    %446 = vmatprep.subr.mxu0 0.0
    %447 = vmatpush1.msra.mxu0 0.0
    %448 = vmatprep.subr.mxu0 0.0
    %449 = vmatpush1.msra.mxu0 0.0
    %450 = vmatprep.subr.mxu0 0.0
    %451 = vmatpush1.msra.mxu0 0.0
    %452 = vmatprep.subr.mxu0 0.0
    %453 = vmatpush1.msra.mxu0 0.0
    %454 = vmatprep.subr.mxu0 0.0
    %455 = vmatpush1.msra.mxu0 0.0
    %456 = vmatprep.subr.mxu0 0.0
    %457 = vmatpush1.msra.mxu0 0.0
    %458 = vmatprep.subr.mxu0 0.0
    %459 = vmatpush1.msra.mxu0 0.0
    %460 = vmatprep.subr.mxu0 0.0
    %461 = vmatpush1.msra.mxu0 0.0
    %462 = vmatprep.subr.mxu0 0.0
    %463 = vmatpush1.msra.mxu0 0.0
    %464 = vmatprep.subr.mxu0 0.0
    %465 = vmatpush1.msra.mxu0 0.0
    %466 = vmatprep.subr.mxu0 0.0
    %467 = vmatpush1.msra.mxu0 0.0
    %468 = vmatprep.subr.mxu0 0.0
    %469 = vmatpush1.msra.mxu0 0.0
    %470 = vmatprep.mubr.f32.mxu0 0.0
    %471 = vmatmul.mubr.f32.gmra.mrb[0].mxu0 %v199
    %v472 = vpop.f32.mrb[0].mxu0
    %v473 = vadd.f32 %v284, %v472
    %v474 = vpop.f32.mrb[0].mxu0
    %v475 = vadd.f32 %v288, %v474
    %476 = vmatprep.mubr.f32.mxu0 0.0
    %477 = vmatmul.mubr.f32.gmra.mrb[0].mxu0 %v200
    %v478 = vpop.f32.mrb[0].mxu0
    %v479 = vadd.f32 %v284, %v478
    %v480 = vpop.f32.mrb[0].mxu0
    %v481 = vadd.f32 %v288, %v480
    %482 = vmatprep.mubr.f32.mxu0 0.0
    %483 = vmatmul.mubr.f32.gmra.mrb[0].mxu0 %v201
    %v484 = vpop.f32.mrb[0].mxu0
    %v485 = vadd.f32 %v284, %v484
    %v486 = vpop.f32.mrb[0].mxu0
    %v487 = vadd.f32 %v288, %v486
    %488 = vmatprep.mubr.f32.mxu0 0.0
    %489 = vmatmul.mubr.f32.gmra.mrb[0].mxu0 %v202
    %v490 = vpop.f32.mrb[0].mxu0
    %v491 = vadd.f32 %v284, %v490
    %v492 = vpop.f32.mrb[0].mxu0
    %v493 = vadd.f32 %v288, %v492
    %494 = vmatprep.mubr.f32.mxu0 0.0
    %495 = vmatmul.mubr.f32.gmra.mrb[0].mxu0 %v203
    %v496 = vpop.f32.mrb[0].mxu0
    %v497 = vadd.f32 %v284, %v496
    %v498 = vpop.f32.mrb[0].mxu0
    %v499 = vadd.f32 %v288, %v498
    %500 = vmatprep.mubr.f32.mxu0 0.0
    %501 = vmatmul.mubr.f32.gmra.mrb[0].mxu0 %v204
    %v502 = vpop.f32.mrb[0].mxu0
    %v503 = vadd.f32 %v284, %v502
    %v504 = vpop.f32.mrb[0].mxu0
    %v505 = vadd.f32 %v288, %v504
    %506 = vmatprep.mubr.f32.mxu0 0.0
    %507 = vmatmul.mubr.f32.gmra.mrb[0].mxu0 %v205
    %v508 = vpop.f32.mrb[0].mxu0
    %v509 = vadd.f32 %v284, %v508
    %v510 = vpop.f32.mrb[0].mxu0
    %v511 = vadd.f32 %v288, %v510
    %512 = vmatprep.mubr.f32.mxu0 0.0
    %513 = vmatmul.mubr.f32.gmra.mrb[0].mxu0 %v206
    %v514 = vpop.f32.mrb[0].mxu0
    %v515 = vadd.f32 %v284, %v514
    %v516 = vpop.f32.mrb[0].mxu0
    %v517 = vadd.f32 %v288, %v516
    %518 = vdwg.mxu0
    %519 = vst [vmem:[#allocation3] sm:$0xff] %v360
    %520 = vst [vmem:[#allocation3 + $0x8] sm:$0xff] %v362
    %521 = vst [vmem:[#allocation3 + $0x10] sm:$0xff] %v473
    %522 = vst [vmem:[#allocation3 + $0x18] sm:$0xff] %v475
    %523 = vst [vmem:[#allocation3 + $0x20] sm:$0xff] %v366
    %524 = vst [vmem:[#allocation3 + $0x28] sm:$0xff] %v368
    %525 = vst [vmem:[#allocation3 + $0x30] sm:$0xff] %v479
    %526 = vst [vmem:[#allocation3 + $0x38] sm:$0xff] %v481
    %527 = vst [vmem:[#allocation3 + $0x40] sm:$0xff] %v372
    %528 = vst [vmem:[#allocation3 + $0x48] sm:$0xff] %v374
    %529 = vst [vmem:[#allocation3 + $0x50] sm:$0xff] %v485
    %530 = vst [vmem:[#allocation3 + $0x58] sm:$0xff] %v487
    %531 = vst [vmem:[#allocation3 + $0x60] sm:$0xff] %v378
    %532 = vst [vmem:[#allocation3 + $0x68] sm:$0xff] %v380
    %533 = vst [vmem:[#allocation3 + $0x70] sm:$0xff] %v491
    %534 = vst [vmem:[#allocation3 + $0x78] sm:$0xff] %v493
    %535 = vst [vmem:[#allocation3 + $0x80] sm:$0xff] %v384
    %536 = vst [vmem:[#allocation3 + $0x88] sm:$0xff] %v386
    %537 = vst [vmem:[#allocation3 + $0x90] sm:$0xff] %v497
    %538 = vst [vmem:[#allocation3 + $0x98] sm:$0xff] %v499
    %539 = vst [vmem:[#allocation3 + $0xa0] sm:$0xff] %v390
    %540 = vst [vmem:[#allocation3 + $0xa8] sm:$0xff] %v392
    %541 = vst [vmem:[#allocation3 + $0xb0] sm:$0xff] %v503
    %542 = vst [vmem:[#allocation3 + $0xb8] sm:$0xff] %v505
    %543 = vst [vmem:[#allocation3 + $0xc0] sm:$0xff] %v396
    %544 = vst [vmem:[#allocation3 + $0xc8] sm:$0xff] %v398
    %545 = vst [vmem:[#allocation3 + $0xd0] sm:$0xff] %v509
    %546 = vst [vmem:[#allocation3 + $0xd8] sm:$0xff] %v511
    %547 = vst [vmem:[#allocation3 + $0xe0] sm:$0xff] %v402
    %548 = vst [vmem:[#allocation3 + $0xe8] sm:$0xff] %v404
    %549 = vst [vmem:[#allocation3 + $0xf0] sm:$0xff] %v515
    %550 = vst [vmem:[#allocation3 + $0xf8] sm:$0xff] %v517
    %v551 = vld [vmem:[#allocation7] sm:$0xff]
    %v552 = vld [vmem:[#allocation7 + $0x8] sm:$0xff]
    %v553 = vld [vmem:[#allocation7 + $0x10] sm:$0xff]
    %v554 = vld [vmem:[#allocation7 + $0x18] sm:$0xff]
    %v555 = vld [vmem:[#allocation7 + $0x20] sm:$0xff]
    %v556 = vld [vmem:[#allocation7 + $0x28] sm:$0xff]
    %v557 = vld [vmem:[#allocation7 + $0x30] sm:$0xff]
    %v558 = vld [vmem:[#allocation7 + $0x38] sm:$0xff]
    %v559 = vld [vmem:[#allocation7 + $0x40] sm:$0xff]
    %v560 = vld [vmem:[#allocation7 + $0x48] sm:$0xff]
    %v561 = vld [vmem:[#allocation7 + $0x50] sm:$0xff]
    %v562 = vld [vmem:[#allocation7 + $0x58] sm:$0xff]
    %v563 = vld [vmem:[#allocation7 + $0x60] sm:$0xff]
    %v564 = vld [vmem:[#allocation7 + $0x68] sm:$0xff]
    %v565 = vld [vmem:[#allocation7 + $0x70] sm:$0xff]
    %v566 = vld [vmem:[#allocation7 + $0x78] sm:$0xff]
    %v567 = vld [vmem:[#allocation7 + $0x80] sm:$0xff]
    %v568 = vld [vmem:[#allocation7 + $0x88] sm:$0xff]
    %v569 = vld [vmem:[#allocation7 + $0x90] sm:$0xff]
    %v570 = vld [vmem:[#allocation7 + $0x98] sm:$0xff]
    %v571 = vld [vmem:[#allocation7 + $0xa0] sm:$0xff]
    %v572 = vld [vmem:[#allocation7 + $0xa8] sm:$0xff]
    %v573 = vld [vmem:[#allocation7 + $0xb0] sm:$0xff]
    %v574 = vld [vmem:[#allocation7 + $0xb8] sm:$0xff]
    %v575 = vld [vmem:[#allocation7 + $0xc0] sm:$0xff]
    %v576 = vld [vmem:[#allocation7 + $0xc8] sm:$0xff]
    %v577 = vld [vmem:[#allocation7 + $0xd0] sm:$0xff]
    %v578 = vld [vmem:[#allocation7 + $0xd8] sm:$0xff]
    %v579 = vld [vmem:[#allocation7 + $0xe0] sm:$0xff]
    %v580 = vld [vmem:[#allocation7 + $0xe8] sm:$0xff]
    %v581 = vld [vmem:[#allocation7 + $0xf0] sm:$0xff]
    %v582 = vld [vmem:[#allocation7 + $0xf8] sm:$0xff]
    %v583 = vld [vmem:[#allocation7 + $0x100] sm:$0xff]
    %v584 = vld [vmem:[#allocation7 + $0x108] sm:$0xff]
    %v585 = vld [vmem:[#allocation7 + $0x110] sm:$0xff]
    %v586 = vld [vmem:[#allocation7 + $0x118] sm:$0xff]
    %v587 = vld [vmem:[#allocation7 + $0x120] sm:$0xff]
    %v588 = vld [vmem:[#allocation7 + $0x128] sm:$0xff]
    %v589 = vld [vmem:[#allocation7 + $0x130] sm:$0xff]
    %v590 = vld [vmem:[#allocation7 + $0x138] sm:$0xff]
    %v591 = vld [vmem:[#allocation7 + $0x140] sm:$0xff]
    %v592 = vld [vmem:[#allocation7 + $0x148] sm:$0xff]
    %v593 = vld [vmem:[#allocation7 + $0x150] sm:$0xff]
    %v594 = vld [vmem:[#allocation7 + $0x158] sm:$0xff]
    %v595 = vld [vmem:[#allocation7 + $0x160] sm:$0xff]
    %v596 = vld [vmem:[#allocation7 + $0x168] sm:$0xff]
    %v597 = vld [vmem:[#allocation7 + $0x170] sm:$0xff]
    %v598 = vld [vmem:[#allocation7 + $0x178] sm:$0xff]
    %v599 = vld [vmem:[#allocation7 + $0x180] sm:$0xff]
    %v600 = vld [vmem:[#allocation7 + $0x188] sm:$0xff]
    %v601 = vld [vmem:[#allocation7 + $0x190] sm:$0xff]
    %v602 = vld [vmem:[#allocation7 + $0x198] sm:$0xff]
    %v603 = vld [vmem:[#allocation7 + $0x1a0] sm:$0xff]
    %v604 = vld [vmem:[#allocation7 + $0x1a8] sm:$0xff]
    %v605 = vld [vmem:[#allocation7 + $0x1b0] sm:$0xff]
    %v606 = vld [vmem:[#allocation7 + $0x1b8] sm:$0xff]
    %v607 = vld [vmem:[#allocation7 + $0x1c0] sm:$0xff]
    %v608 = vld [vmem:[#allocation7 + $0x1c8] sm:$0xff]
    %v609 = vld [vmem:[#allocation7 + $0x1d0] sm:$0xff]
    %v610 = vld [vmem:[#allocation7 + $0x1d8] sm:$0xff]
    %v611 = vld [vmem:[#allocation7 + $0x1e0] sm:$0xff]
    %v612 = vld [vmem:[#allocation7 + $0x1e8] sm:$0xff]
    %v613 = vld [vmem:[#allocation7 + $0x1f0] sm:$0xff]
    %v614 = vld [vmem:[#allocation7 + $0x1f8] sm:$0xff]
    %v615 = vld [vmem:[%s8] sm:$0xf]
    %v617 = vlaneseq
    %v618 = vshrl.u32 %v617, 7
    %v619 = vsub.s32 0, %v618
    %v620 = vrot.slane %v615, %v619
    %v621 = vlaneseq
    %v622 = vshrl.u32 %v621, 7
    %v623 = vsub.s32 1, %v622
    %v624 = vrot.slane %v615, %v623
    %v625 = vlaneseq
    %v626 = vshrl.u32 %v625, 7
    %v627 = vsub.s32 2, %v626
    %v628 = vrot.slane %v615, %v627
    %v629 = vlaneseq
    %v630 = vshrl.u32 %v629, 7
    %v631 = vsub.s32 3, %v630
    %v632 = vrot.slane %v615, %v631
    %637 = vmatprep.subr.mxu0 %v552
    %638 = vmatpush1.msra.mxu0 %v551
    %639 = vmatprep.subr.mxu0 %v556
    %640 = vmatpush1.msra.mxu0 %v555
    %641 = vmatprep.subr.mxu0 %v560
    %642 = vmatpush1.msra.mxu0 %v559
    %643 = vmatprep.subr.mxu0 %v564
    %644 = vmatpush1.msra.mxu0 %v563
    %645 = vmatprep.subr.mxu0 %v568
    %646 = vmatpush1.msra.mxu0 %v567
    %647 = vmatprep.subr.mxu0 %v572
    %648 = vmatpush1.msra.mxu0 %v571
    %649 = vmatprep.subr.mxu0 %v576
    %650 = vmatpush1.msra.mxu0 %v575
    %651 = vmatprep.subr.mxu0 %v580
    %652 = vmatpush1.msra.mxu0 %v579
    %653 = vmatprep.subr.mxu0 %v584
    %654 = vmatpush1.msra.mxu0 %v583
    %655 = vmatprep.subr.mxu0 %v588
    %656 = vmatpush1.msra.mxu0 %v587
    %657 = vmatprep.subr.mxu0 %v592
    %658 = vmatpush1.msra.mxu0 %v591
    %659 = vmatprep.subr.mxu0 %v596
    %660 = vmatpush1.msra.mxu0 %v595
    %661 = vmatprep.subr.mxu0 %v600
    %662 = vmatpush1.msra.mxu0 %v599
    %663 = vmatprep.subr.mxu0 %v604
    %664 = vmatpush1.msra.mxu0 %v603
    %665 = vmatprep.subr.mxu0 %v608
    %666 = vmatpush1.msra.mxu0 %v607
    %667 = vmatprep.subr.mxu0 %v612
    %668 = vmatpush1.msra.mxu0 %v611
    %669 = vmatprep.subr.mxu0 0.0
    %670 = vmatpush1.msra.mxu0 0.0
    %671 = vmatprep.subr.mxu0 0.0
    %672 = vmatpush1.msra.mxu0 0.0
    %673 = vmatprep.subr.mxu0 0.0
    %674 = vmatpush1.msra.mxu0 0.0
    %675 = vmatprep.subr.mxu0 0.0
    %676 = vmatpush1.msra.mxu0 0.0
    %677 = vmatprep.subr.mxu0 0.0
    %678 = vmatpush1.msra.mxu0 0.0
    %679 = vmatprep.subr.mxu0 0.0
    %680 = vmatpush1.msra.mxu0 0.0
    %681 = vmatprep.subr.mxu0 0.0
    %682 = vmatpush1.msra.mxu0 0.0
    %683 = vmatprep.subr.mxu0 0.0
    %684 = vmatpush1.msra.mxu0 0.0
    %685 = vmatprep.subr.mxu0 0.0
    %686 = vmatpush1.msra.mxu0 0.0
    %687 = vmatprep.subr.mxu0 0.0
    %688 = vmatpush1.msra.mxu0 0.0
    %689 = vmatprep.subr.mxu0 0.0
    %690 = vmatpush1.msra.mxu0 0.0
    %691 = vmatprep.subr.mxu0 0.0
    %692 = vmatpush1.msra.mxu0 0.0
    %693 = vmatprep.subr.mxu0 0.0
    %694 = vmatpush1.msra.mxu0 0.0
    %695 = vmatprep.subr.mxu0 0.0
    %696 = vmatpush1.msra.mxu0 0.0
    %697 = vmatprep.subr.mxu0 0.0
    %698 = vmatpush1.msra.mxu0 0.0
    %699 = vmatprep.subr.mxu0 0.0
    %700 = vmatpush1.msra.mxu0 0.0
    %701 = vmatprep.mubr.f32.mxu0 0.0
    %702 = vmatmul.mubr.f32.gmra.mrb[0].mxu0 %v199
    %v703 = vpop.f32.mrb[0].mxu0
    %v704 = vadd.f32 %v620, %v703
    %v705 = vpop.f32.mrb[0].mxu0
    %v706 = vadd.f32 %v624, %v705
    %707 = vmatprep.mubr.f32.mxu0 0.0
    %708 = vmatmul.mubr.f32.gmra.mrb[0].mxu0 %v200
    %v709 = vpop.f32.mrb[0].mxu0
    %v710 = vadd.f32 %v620, %v709
    %v711 = vpop.f32.mrb[0].mxu0
    %v712 = vadd.f32 %v624, %v711
    %713 = vmatprep.mubr.f32.mxu0 0.0
    %714 = vmatmul.mubr.f32.gmra.mrb[0].mxu0 %v201
    %v715 = vpop.f32.mrb[0].mxu0
    %v716 = vadd.f32 %v620, %v715
    %v717 = vpop.f32.mrb[0].mxu0
    %v718 = vadd.f32 %v624, %v717
    %719 = vmatprep.mubr.f32.mxu0 0.0
    %720 = vmatmul.mubr.f32.gmra.mrb[0].mxu0 %v202
    %v721 = vpop.f32.mrb[0].mxu0
    %v722 = vadd.f32 %v620, %v721
    %v723 = vpop.f32.mrb[0].mxu0
    %v724 = vadd.f32 %v624, %v723
    %725 = vmatprep.mubr.f32.mxu0 0.0
    %726 = vmatmul.mubr.f32.gmra.mrb[0].mxu0 %v203
    %v727 = vpop.f32.mrb[0].mxu0
    %v728 = vadd.f32 %v620, %v727
    %v729 = vpop.f32.mrb[0].mxu0
    %v730 = vadd.f32 %v624, %v729
    %731 = vmatprep.mubr.f32.mxu0 0.0
    %732 = vmatmul.mubr.f32.gmra.mrb[0].mxu0 %v204
    %v733 = vpop.f32.mrb[0].mxu0
    %v734 = vadd.f32 %v620, %v733
    %v735 = vpop.f32.mrb[0].mxu0
    %v736 = vadd.f32 %v624, %v735
    %737 = vmatprep.mubr.f32.mxu0 0.0
    %738 = vmatmul.mubr.f32.gmra.mrb[0].mxu0 %v205
    %v739 = vpop.f32.mrb[0].mxu0
    %v740 = vadd.f32 %v620, %v739
    %v741 = vpop.f32.mrb[0].mxu0
    %v742 = vadd.f32 %v624, %v741
    %743 = vmatprep.mubr.f32.mxu0 0.0
    %744 = vmatmul.mubr.f32.gmra.mrb[0].mxu0 %v206
    %v745 = vpop.f32.mrb[0].mxu0
    %v746 = vadd.f32 %v620, %v745
    %v747 = vpop.f32.mrb[0].mxu0
    %v748 = vadd.f32 %v624, %v747
    %749 = vdwg.mxu0
    %750 = vmatprep.subr.mxu0 %v554
    %751 = vmatpush1.msra.mxu0 %v553
    %752 = vmatprep.subr.mxu0 %v558
    %753 = vmatpush1.msra.mxu0 %v557
    %754 = vmatprep.subr.mxu0 %v562
    %755 = vmatpush1.msra.mxu0 %v561
    %756 = vmatprep.subr.mxu0 %v566
    %757 = vmatpush1.msra.mxu0 %v565
    %758 = vmatprep.subr.mxu0 %v570
    %759 = vmatpush1.msra.mxu0 %v569
    %760 = vmatprep.subr.mxu0 %v574
    %761 = vmatpush1.msra.mxu0 %v573
    %762 = vmatprep.subr.mxu0 %v578
    %763 = vmatpush1.msra.mxu0 %v577
    %764 = vmatprep.subr.mxu0 %v582
    %765 = vmatpush1.msra.mxu0 %v581
    %766 = vmatprep.subr.mxu0 %v586
    %767 = vmatpush1.msra.mxu0 %v585
    %768 = vmatprep.subr.mxu0 %v590
    %769 = vmatpush1.msra.mxu0 %v589
    %770 = vmatprep.subr.mxu0 %v594
    %771 = vmatpush1.msra.mxu0 %v593
    %772 = vmatprep.subr.mxu0 %v598
    %773 = vmatpush1.msra.mxu0 %v597
    %774 = vmatprep.subr.mxu0 %v602
    %775 = vmatpush1.msra.mxu0 %v601
    %776 = vmatprep.subr.mxu0 %v606
    %777 = vmatpush1.msra.mxu0 %v605
    %778 = vmatprep.subr.mxu0 %v610
    %779 = vmatpush1.msra.mxu0 %v609
    %780 = vmatprep.subr.mxu0 %v614
    %781 = vmatpush1.msra.mxu0 %v613
    %782 = vmatprep.subr.mxu0 0.0
    %783 = vmatpush1.msra.mxu0 0.0
    %784 = vmatprep.subr.mxu0 0.0
    %785 = vmatpush1.msra.mxu0 0.0
    %786 = vmatprep.subr.mxu0 0.0
    %787 = vmatpush1.msra.mxu0 0.0
    %788 = vmatprep.subr.mxu0 0.0
    %789 = vmatpush1.msra.mxu0 0.0
    %790 = vmatprep.subr.mxu0 0.0
    %791 = vmatpush1.msra.mxu0 0.0
    %792 = vmatprep.subr.mxu0 0.0
    %793 = vmatpush1.msra.mxu0 0.0
    %794 = vmatprep.subr.mxu0 0.0
    %795 = vmatpush1.msra.mxu0 0.0
    %796 = vmatprep.subr.mxu0 0.0
    %797 = vmatpush1.msra.mxu0 0.0
    %798 = vmatprep.subr.mxu0 0.0
    %799 = vmatpush1.msra.mxu0 0.0
    %800 = vmatprep.subr.mxu0 0.0
    %801 = vmatpush1.msra.mxu0 0.0
    %802 = vmatprep.subr.mxu0 0.0
    %803 = vmatpush1.msra.mxu0 0.0
    %804 = vmatprep.subr.mxu0 0.0
    %805 = vmatpush1.msra.mxu0 0.0
    %806 = vmatprep.subr.mxu0 0.0
    %807 = vmatpush1.msra.mxu0 0.0
    %808 = vmatprep.subr.mxu0 0.0
    %809 = vmatpush1.msra.mxu0 0.0
    %810 = vmatprep.subr.mxu0 0.0
    %811 = vmatpush1.msra.mxu0 0.0
    %812 = vmatprep.subr.mxu0 0.0
    %813 = vmatpush1.msra.mxu0 0.0
    %814 = vmatprep.mubr.f32.mxu0 0.0
    %815 = vmatmul.mubr.f32.gmra.mrb[0].mxu0 %v199
    %v816 = vpop.f32.mrb[0].mxu0
    %v817 = vadd.f32 %v628, %v816
    %v818 = vpop.f32.mrb[0].mxu0
    %v819 = vadd.f32 %v632, %v818
    %820 = vmatprep.mubr.f32.mxu0 0.0
    %821 = vmatmul.mubr.f32.gmra.mrb[0].mxu0 %v200
    %v822 = vpop.f32.mrb[0].mxu0
    %v823 = vadd.f32 %v628, %v822
    %v824 = vpop.f32.mrb[0].mxu0
    %v825 = vadd.f32 %v632, %v824
    %826 = vmatprep.mubr.f32.mxu0 0.0
    %827 = vmatmul.mubr.f32.gmra.mrb[0].mxu0 %v201
    %v828 = vpop.f32.mrb[0].mxu0
    %v829 = vadd.f32 %v628, %v828
    %v830 = vpop.f32.mrb[0].mxu0
    %v831 = vadd.f32 %v632, %v830
    %832 = vmatprep.mubr.f32.mxu0 0.0
    %833 = vmatmul.mubr.f32.gmra.mrb[0].mxu0 %v202
    %v834 = vpop.f32.mrb[0].mxu0
    %v835 = vadd.f32 %v628, %v834
    %v836 = vpop.f32.mrb[0].mxu0
    %v837 = vadd.f32 %v632, %v836
    %838 = vmatprep.mubr.f32.mxu0 0.0
    %839 = vmatmul.mubr.f32.gmra.mrb[0].mxu0 %v203
    %v840 = vpop.f32.mrb[0].mxu0
    %v841 = vadd.f32 %v628, %v840
    %v842 = vpop.f32.mrb[0].mxu0
    %v843 = vadd.f32 %v632, %v842
    %844 = vmatprep.mubr.f32.mxu0 0.0
    %845 = vmatmul.mubr.f32.gmra.mrb[0].mxu0 %v204
    %v846 = vpop.f32.mrb[0].mxu0
    %v847 = vadd.f32 %v628, %v846
    %v848 = vpop.f32.mrb[0].mxu0
    %v849 = vadd.f32 %v632, %v848
    %850 = vmatprep.mubr.f32.mxu0 0.0
    %851 = vmatmul.mubr.f32.gmra.mrb[0].mxu0 %v205
    %v852 = vpop.f32.mrb[0].mxu0
    %v853 = vadd.f32 %v628, %v852
    %v854 = vpop.f32.mrb[0].mxu0
    %v855 = vadd.f32 %v632, %v854
    %856 = vmatprep.mubr.f32.mxu0 0.0
    %857 = vmatmul.mubr.f32.gmra.mrb[0].mxu0 %v206
    %v858 = vpop.f32.mrb[0].mxu0
    %v859 = vadd.f32 %v628, %v858
    %v860 = vpop.f32.mrb[0].mxu0
    %v861 = vadd.f32 %v632, %v860
    %862 = vdwg.mxu0
    %863 = vst [vmem:[#allocation4] sm:$0xff] %v704
    %864 = vst [vmem:[#allocation4 + $0x8] sm:$0xff] %v706
    %865 = vst [vmem:[#allocation4 + $0x10] sm:$0xff] %v817
    %866 = vst [vmem:[#allocation4 + $0x18] sm:$0xff] %v819
    %867 = vst [vmem:[#allocation4 + $0x20] sm:$0xff] %v710
    %868 = vst [vmem:[#allocation4 + $0x28] sm:$0xff] %v712
    %869 = vst [vmem:[#allocation4 + $0x30] sm:$0xff] %v823
    %870 = vst [vmem:[#allocation4 + $0x38] sm:$0xff] %v825
    %871 = vst [vmem:[#allocation4 + $0x40] sm:$0xff] %v716
    %872 = vst [vmem:[#allocation4 + $0x48] sm:$0xff] %v718
    %873 = vst [vmem:[#allocation4 + $0x50] sm:$0xff] %v829
    %874 = vst [vmem:[#allocation4 + $0x58] sm:$0xff] %v831
    %875 = vst [vmem:[#allocation4 + $0x60] sm:$0xff] %v722
    %876 = vst [vmem:[#allocation4 + $0x68] sm:$0xff] %v724
    %877 = vst [vmem:[#allocation4 + $0x70] sm:$0xff] %v835
    %878 = vst [vmem:[#allocation4 + $0x78] sm:$0xff] %v837
    %879 = vst [vmem:[#allocation4 + $0x80] sm:$0xff] %v728
    %880 = vst [vmem:[#allocation4 + $0x88] sm:$0xff] %v730
    %881 = vst [vmem:[#allocation4 + $0x90] sm:$0xff] %v841
    %882 = vst [vmem:[#allocation4 + $0x98] sm:$0xff] %v843
    %883 = vst [vmem:[#allocation4 + $0xa0] sm:$0xff] %v734
    %884 = vst [vmem:[#allocation4 + $0xa8] sm:$0xff] %v736
    %885 = vst [vmem:[#allocation4 + $0xb0] sm:$0xff] %v847
    %886 = vst [vmem:[#allocation4 + $0xb8] sm:$0xff] %v849
    %887 = vst [vmem:[#allocation4 + $0xc0] sm:$0xff] %v740
    %888 = vst [vmem:[#allocation4 + $0xc8] sm:$0xff] %v742
    %889 = vst [vmem:[#allocation4 + $0xd0] sm:$0xff] %v853
    %890 = vst [vmem:[#allocation4 + $0xd8] sm:$0xff] %v855
    %891 = vst [vmem:[#allocation4 + $0xe0] sm:$0xff] %v746
    %892 = vst [vmem:[#allocation4 + $0xe8] sm:$0xff] %v748
    %893 = vst [vmem:[#allocation4 + $0xf0] sm:$0xff] %v859
    %894 = vst [vmem:[#allocation4 + $0xf8] sm:$0xff] %v861
    %v895 = vld [vmem:[#allocation5] sm:$0xff]
    %v896 = vld [vmem:[#allocation5 + $0x8] sm:$0xff]
    %v897 = vld [vmem:[#allocation5 + $0x10] sm:$0xff]
    %v898 = vld [vmem:[#allocation5 + $0x18] sm:$0xff]
    %v899 = vld [vmem:[#allocation5 + $0x20] sm:$0xff]
    %v900 = vld [vmem:[#allocation5 + $0x28] sm:$0xff]
    %v901 = vld [vmem:[#allocation5 + $0x30] sm:$0xff]
    %v902 = vld [vmem:[#allocation5 + $0x38] sm:$0xff]
    %v903 = vld [vmem:[#allocation5 + $0x40] sm:$0xff]
    %v904 = vld [vmem:[#allocation5 + $0x48] sm:$0xff]
    %v905 = vld [vmem:[#allocation5 + $0x50] sm:$0xff]
    %v906 = vld [vmem:[#allocation5 + $0x58] sm:$0xff]
    %v907 = vld [vmem:[#allocation5 + $0x60] sm:$0xff]
    %v908 = vld [vmem:[#allocation5 + $0x68] sm:$0xff]
    %v909 = vld [vmem:[#allocation5 + $0x70] sm:$0xff]
    %v910 = vld [vmem:[#allocation5 + $0x78] sm:$0xff]
    %v911 = vld [vmem:[#allocation5 + $0x80] sm:$0xff]
    %v912 = vld [vmem:[#allocation5 + $0x88] sm:$0xff]
    %v913 = vld [vmem:[#allocation5 + $0x90] sm:$0xff]
    %v914 = vld [vmem:[#allocation5 + $0x98] sm:$0xff]
    %v915 = vld [vmem:[#allocation5 + $0xa0] sm:$0xff]
    %v916 = vld [vmem:[#allocation5 + $0xa8] sm:$0xff]
    %v917 = vld [vmem:[#allocation5 + $0xb0] sm:$0xff]
    %v918 = vld [vmem:[#allocation5 + $0xb8] sm:$0xff]
    %v919 = vld [vmem:[#allocation5 + $0xc0] sm:$0xff]
    %v920 = vld [vmem:[#allocation5 + $0xc8] sm:$0xff]
    %v921 = vld [vmem:[#allocation5 + $0xd0] sm:$0xff]
    %v922 = vld [vmem:[#allocation5 + $0xd8] sm:$0xff]
    %v923 = vld [vmem:[#allocation5 + $0xe0] sm:$0xff]
    %v924 = vld [vmem:[#allocation5 + $0xe8] sm:$0xff]
    %v925 = vld [vmem:[#allocation5 + $0xf0] sm:$0xff]
    %v926 = vld [vmem:[#allocation5 + $0xf8] sm:$0xff]
    %v927 = vld [vmem:[#allocation5 + $0x100] sm:$0xff]
    %v928 = vld [vmem:[#allocation5 + $0x108] sm:$0xff]
    %v929 = vld [vmem:[#allocation5 + $0x110] sm:$0xff]
    %v930 = vld [vmem:[#allocation5 + $0x118] sm:$0xff]
    %v931 = vld [vmem:[#allocation5 + $0x120] sm:$0xff]
    %v932 = vld [vmem:[#allocation5 + $0x128] sm:$0xff]
    %v933 = vld [vmem:[#allocation5 + $0x130] sm:$0xff]
    %v934 = vld [vmem:[#allocation5 + $0x138] sm:$0xff]
    %v935 = vld [vmem:[#allocation5 + $0x140] sm:$0xff]
    %v936 = vld [vmem:[#allocation5 + $0x148] sm:$0xff]
    %v937 = vld [vmem:[#allocation5 + $0x150] sm:$0xff]
    %v938 = vld [vmem:[#allocation5 + $0x158] sm:$0xff]
    %v939 = vld [vmem:[#allocation5 + $0x160] sm:$0xff]
    %v940 = vld [vmem:[#allocation5 + $0x168] sm:$0xff]
    %v941 = vld [vmem:[#allocation5 + $0x170] sm:$0xff]
    %v942 = vld [vmem:[#allocation5 + $0x178] sm:$0xff]
    %v943 = vld [vmem:[#allocation5 + $0x180] sm:$0xff]
    %v944 = vld [vmem:[#allocation5 + $0x188] sm:$0xff]
    %v945 = vld [vmem:[#allocation5 + $0x190] sm:$0xff]
    %v946 = vld [vmem:[#allocation5 + $0x198] sm:$0xff]
    %v947 = vld [vmem:[#allocation5 + $0x1a0] sm:$0xff]
    %v948 = vld [vmem:[#allocation5 + $0x1a8] sm:$0xff]
    %v949 = vld [vmem:[#allocation5 + $0x1b0] sm:$0xff]
    %v950 = vld [vmem:[#allocation5 + $0x1b8] sm:$0xff]
    %v951 = vld [vmem:[#allocation5 + $0x1c0] sm:$0xff]
    %v952 = vld [vmem:[#allocation5 + $0x1c8] sm:$0xff]
    %v953 = vld [vmem:[#allocation5 + $0x1d0] sm:$0xff]
    %v954 = vld [vmem:[#allocation5 + $0x1d8] sm:$0xff]
    %v955 = vld [vmem:[#allocation5 + $0x1e0] sm:$0xff]
    %v956 = vld [vmem:[#allocation5 + $0x1e8] sm:$0xff]
    %v957 = vld [vmem:[#allocation5 + $0x1f0] sm:$0xff]
    %v958 = vld [vmem:[#allocation5 + $0x1f8] sm:$0xff]
    %v959 = vld [vmem:[#allocation9] sm:$0xff]
    %v960 = vld [vmem:[#allocation9 + $0x8] sm:$0xff]
    %v961 = vld [vmem:[#allocation9 + $0x10] sm:$0xff]
    %v962 = vld [vmem:[#allocation9 + $0x18] sm:$0xff]
    %v963 = vld [vmem:[#allocation9 + $0x20] sm:$0xff]
    %v964 = vld [vmem:[#allocation9 + $0x28] sm:$0xff]
    %v965 = vld [vmem:[#allocation9 + $0x30] sm:$0xff]
    %v966 = vld [vmem:[#allocation9 + $0x38] sm:$0xff]
    %v967 = vld [vmem:[#allocation9 + $0x40] sm:$0xff]
    %v968 = vld [vmem:[#allocation9 + $0x48] sm:$0xff]
    %v969 = vld [vmem:[#allocation9 + $0x50] sm:$0xff]
    %v970 = vld [vmem:[#allocation9 + $0x58] sm:$0xff]
    %v971 = vld [vmem:[#allocation9 + $0x60] sm:$0xff]
    %v972 = vld [vmem:[#allocation9 + $0x68] sm:$0xff]
    %v973 = vld [vmem:[#allocation9 + $0x70] sm:$0xff]
    %v974 = vld [vmem:[#allocation9 + $0x78] sm:$0xff]
    %v975 = vld [vmem:[#allocation9 + $0x80] sm:$0xff]
    %v976 = vld [vmem:[#allocation9 + $0x88] sm:$0xff]
    %v977 = vld [vmem:[#allocation9 + $0x90] sm:$0xff]
    %v978 = vld [vmem:[#allocation9 + $0x98] sm:$0xff]
    %v979 = vld [vmem:[#allocation9 + $0xa0] sm:$0xff]
    %v980 = vld [vmem:[#allocation9 + $0xa8] sm:$0xff]
    %v981 = vld [vmem:[#allocation9 + $0xb0] sm:$0xff]
    %v982 = vld [vmem:[#allocation9 + $0xb8] sm:$0xff]
    %v983 = vld [vmem:[#allocation9 + $0xc0] sm:$0xff]
    %v984 = vld [vmem:[#allocation9 + $0xc8] sm:$0xff]
    %v985 = vld [vmem:[#allocation9 + $0xd0] sm:$0xff]
    %v986 = vld [vmem:[#allocation9 + $0xd8] sm:$0xff]
    %v987 = vld [vmem:[#allocation9 + $0xe0] sm:$0xff]
    %v988 = vld [vmem:[#allocation9 + $0xe8] sm:$0xff]
    %v989 = vld [vmem:[#allocation9 + $0xf0] sm:$0xff]
    %v990 = vld [vmem:[#allocation9 + $0xf8] sm:$0xff]
    %v991 = vld [vmem:[#allocation9 + $0x100] sm:$0xff]
    %v992 = vld [vmem:[#allocation9 + $0x108] sm:$0xff]
    %v993 = vld [vmem:[#allocation9 + $0x110] sm:$0xff]
    %v994 = vld [vmem:[#allocation9 + $0x118] sm:$0xff]
    %v995 = vld [vmem:[#allocation9 + $0x120] sm:$0xff]
    %v996 = vld [vmem:[#allocation9 + $0x128] sm:$0xff]
    %v997 = vld [vmem:[#allocation9 + $0x130] sm:$0xff]
    %v998 = vld [vmem:[#allocation9 + $0x138] sm:$0xff]
    %v999 = vld [vmem:[#allocation9 + $0x140] sm:$0xff]
    %v1000 = vld [vmem:[#allocation9 + $0x148] sm:$0xff]
    %v1001 = vld [vmem:[#allocation9 + $0x150] sm:$0xff]
    %v1002 = vld [vmem:[#allocation9 + $0x158] sm:$0xff]
    %v1003 = vld [vmem:[#allocation9 + $0x160] sm:$0xff]
    %v1004 = vld [vmem:[#allocation9 + $0x168] sm:$0xff]
    %v1005 = vld [vmem:[#allocation9 + $0x170] sm:$0xff]
    %v1006 = vld [vmem:[#allocation9 + $0x178] sm:$0xff]
    %v1007 = vld [vmem:[#allocation9 + $0x180] sm:$0xff]
    %v1008 = vld [vmem:[#allocation9 + $0x188] sm:$0xff]
    %v1009 = vld [vmem:[#allocation9 + $0x190] sm:$0xff]
    %v1010 = vld [vmem:[#allocation9 + $0x198] sm:$0xff]
    %v1011 = vld [vmem:[#allocation9 + $0x1a0] sm:$0xff]
    %v1012 = vld [vmem:[#allocation9 + $0x1a8] sm:$0xff]
    %v1013 = vld [vmem:[#allocation9 + $0x1b0] sm:$0xff]
    %v1014 = vld [vmem:[#allocation9 + $0x1b8] sm:$0xff]
    %v1015 = vld [vmem:[#allocation9 + $0x1c0] sm:$0xff]
    %v1016 = vld [vmem:[#allocation9 + $0x1c8] sm:$0xff]
    %v1017 = vld [vmem:[#allocation9 + $0x1d0] sm:$0xff]
    %v1018 = vld [vmem:[#allocation9 + $0x1d8] sm:$0xff]
    %v1019 = vld [vmem:[#allocation9 + $0x1e0] sm:$0xff]
    %v1020 = vld [vmem:[#allocation9 + $0x1e8] sm:$0xff]
    %v1021 = vld [vmem:[#allocation9 + $0x1f0] sm:$0xff]
    %v1022 = vld [vmem:[#allocation9 + $0x1f8] sm:$0xff]
    %v1023 = vld [vmem:[#allocation3] sm:$0xff]
    %v1024 = vld [vmem:[#allocation3 + $0x8] sm:$0xff]
    %v1025 = vld [vmem:[#allocation3 + $0x10] sm:$0xff]
    %v1026 = vld [vmem:[#allocation3 + $0x18] sm:$0xff]
    %1027 = vmatprep.subr.mxu0 %v896
    %1028 = vmatpush1.msra.mxu0 %v895
    %1029 = vmatprep.subr.mxu0 %v900
    %1030 = vmatpush1.msra.mxu0 %v899
    %1031 = vmatprep.subr.mxu0 %v904
    %1032 = vmatpush1.msra.mxu0 %v903
    %1033 = vmatprep.subr.mxu0 %v908
    %1034 = vmatpush1.msra.mxu0 %v907
    %1035 = vmatprep.subr.mxu0 %v912
    %1036 = vmatpush1.msra.mxu0 %v911
    %1037 = vmatprep.subr.mxu0 %v916
    %1038 = vmatpush1.msra.mxu0 %v915
    %1039 = vmatprep.subr.mxu0 %v920
    %1040 = vmatpush1.msra.mxu0 %v919
    %1041 = vmatprep.subr.mxu0 %v924
    %1042 = vmatpush1.msra.mxu0 %v923
    %1043 = vmatprep.subr.mxu0 %v928
    %1044 = vmatpush1.msra.mxu0 %v927
    %1045 = vmatprep.subr.mxu0 %v932
    %1046 = vmatpush1.msra.mxu0 %v931
    %1047 = vmatprep.subr.mxu0 %v936
    %1048 = vmatpush1.msra.mxu0 %v935
    %1049 = vmatprep.subr.mxu0 %v940
    %1050 = vmatpush1.msra.mxu0 %v939
    %1051 = vmatprep.subr.mxu0 %v944
    %1052 = vmatpush1.msra.mxu0 %v943
    %1053 = vmatprep.subr.mxu0 %v948
    %1054 = vmatpush1.msra.mxu0 %v947
    %1055 = vmatprep.subr.mxu0 %v952
    %1056 = vmatpush1.msra.mxu0 %v951
    %1057 = vmatprep.subr.mxu0 %v956
    %1058 = vmatpush1.msra.mxu0 %v955
    %1059 = vmatprep.subr.mxu0 0.0
    %1060 = vmatpush1.msra.mxu0 0.0
    %1061 = vmatprep.subr.mxu0 0.0
    %1062 = vmatpush1.msra.mxu0 0.0
    %1063 = vmatprep.subr.mxu0 0.0
    %1064 = vmatpush1.msra.mxu0 0.0
    %1065 = vmatprep.subr.mxu0 0.0
    %1066 = vmatpush1.msra.mxu0 0.0
    %1067 = vmatprep.subr.mxu0 0.0
    %1068 = vmatpush1.msra.mxu0 0.0
    %1069 = vmatprep.subr.mxu0 0.0
    %1070 = vmatpush1.msra.mxu0 0.0
    %1071 = vmatprep.subr.mxu0 0.0
    %1072 = vmatpush1.msra.mxu0 0.0
    %1073 = vmatprep.subr.mxu0 0.0
    %1074 = vmatpush1.msra.mxu0 0.0
    %1075 = vmatprep.subr.mxu0 0.0
    %1076 = vmatpush1.msra.mxu0 0.0
    %1077 = vmatprep.subr.mxu0 0.0
    %1078 = vmatpush1.msra.mxu0 0.0
    %1079 = vmatprep.subr.mxu0 0.0
    %1080 = vmatpush1.msra.mxu0 0.0
    %1081 = vmatprep.subr.mxu0 0.0
    %1082 = vmatpush1.msra.mxu0 0.0
    %1083 = vmatprep.subr.mxu0 0.0
    %1084 = vmatpush1.msra.mxu0 0.0
    %1085 = vmatprep.subr.mxu0 0.0
    %1086 = vmatpush1.msra.mxu0 0.0
    %1087 = vmatprep.subr.mxu0 0.0
    %1088 = vmatpush1.msra.mxu0 0.0
    %1089 = vmatprep.subr.mxu0 0.0
    %1090 = vmatpush1.msra.mxu0 0.0
    %1091 = vmatprep.mubr.f32.mxu0 0.0
    %1092 = vmatmul.mubr.f32.gmra.mrb[0].mxu0 0.0
    %v1093 = vpop.f32.mrb[0].mxu0
    %v1094 = vadd.f32 0.0, %v1093
    %v1095 = vpop.f32.mrb[0].mxu0
    %v1096 = vadd.f32 0.0, %v1095
    %1097 = vdwg.mxu0
    %1098 = vmatprep.subr.mxu0 %v898
    %1099 = vmatpush1.msra.mxu0 %v897
    %1100 = vmatprep.subr.mxu0 %v902
    %1101 = vmatpush1.msra.mxu0 %v901
    %1102 = vmatprep.subr.mxu0 %v906
    %1103 = vmatpush1.msra.mxu0 %v905
    %1104 = vmatprep.subr.mxu0 %v910
    %1105 = vmatpush1.msra.mxu0 %v909
    %1106 = vmatprep.subr.mxu0 %v914
    %1107 = vmatpush1.msra.mxu0 %v913
    %1108 = vmatprep.subr.mxu0 %v918
    %1109 = vmatpush1.msra.mxu0 %v917
    %1110 = vmatprep.subr.mxu0 %v922
    %1111 = vmatpush1.msra.mxu0 %v921
    %1112 = vmatprep.subr.mxu0 %v926
    %1113 = vmatpush1.msra.mxu0 %v925
    %1114 = vmatprep.subr.mxu0 %v930
    %1115 = vmatpush1.msra.mxu0 %v929
    %1116 = vmatprep.subr.mxu0 %v934
    %1117 = vmatpush1.msra.mxu0 %v933
    %1118 = vmatprep.subr.mxu0 %v938
    %1119 = vmatpush1.msra.mxu0 %v937
    %1120 = vmatprep.subr.mxu0 %v942
    %1121 = vmatpush1.msra.mxu0 %v941
    %1122 = vmatprep.subr.mxu0 %v946
    %1123 = vmatpush1.msra.mxu0 %v945
    %1124 = vmatprep.subr.mxu0 %v950
    %1125 = vmatpush1.msra.mxu0 %v949
    %1126 = vmatprep.subr.mxu0 %v954
    %1127 = vmatpush1.msra.mxu0 %v953
    %1128 = vmatprep.subr.mxu0 %v958
    %1129 = vmatpush1.msra.mxu0 %v957
    %1130 = vmatprep.subr.mxu0 0.0
    %1131 = vmatpush1.msra.mxu0 0.0
    %1132 = vmatprep.subr.mxu0 0.0
    %1133 = vmatpush1.msra.mxu0 0.0
    %1134 = vmatprep.subr.mxu0 0.0
    %1135 = vmatpush1.msra.mxu0 0.0
    %1136 = vmatprep.subr.mxu0 0.0
    %1137 = vmatpush1.msra.mxu0 0.0
    %1138 = vmatprep.subr.mxu0 0.0
    %1139 = vmatpush1.msra.mxu0 0.0
    %1140 = vmatprep.subr.mxu0 0.0
    %1141 = vmatpush1.msra.mxu0 0.0
    %1142 = vmatprep.subr.mxu0 0.0
    %1143 = vmatpush1.msra.mxu0 0.0
    %1144 = vmatprep.subr.mxu0 0.0
    %1145 = vmatpush1.msra.mxu0 0.0
    %1146 = vmatprep.subr.mxu0 0.0
    %1147 = vmatpush1.msra.mxu0 0.0
    %1148 = vmatprep.subr.mxu0 0.0
    %1149 = vmatpush1.msra.mxu0 0.0
    %1150 = vmatprep.subr.mxu0 0.0
    %1151 = vmatpush1.msra.mxu0 0.0
    %1152 = vmatprep.subr.mxu0 0.0
    %1153 = vmatpush1.msra.mxu0 0.0
    %1154 = vmatprep.subr.mxu0 0.0
    %1155 = vmatpush1.msra.mxu0 0.0
    %1156 = vmatprep.subr.mxu0 0.0
    %1157 = vmatpush1.msra.mxu0 0.0
    %1158 = vmatprep.subr.mxu0 0.0
    %1159 = vmatpush1.msra.mxu0 0.0
    %1160 = vmatprep.subr.mxu0 0.0
    %1161 = vmatpush1.msra.mxu0 0.0
    %1162 = vmatprep.mubr.f32.mxu0 0.0
    %1163 = vmatmul.mubr.f32.gmra.mrb[0].mxu0 0.0
    %v1164 = vpop.f32.mrb[0].mxu0
    %v1165 = vadd.f32 0.0, %v1164
    %v1166 = vpop.f32.mrb[0].mxu0
    %v1167 = vadd.f32 0.0, %v1166
    %1168 = vdwg.mxu0
    %v1169 = vadd.f32 %v1023, %v1094
    %v1170 = vadd.f32 %v1024, %v1096
    %v1171 = vadd.f32 %v1025, %v1165
    %v1172 = vadd.f32 %v1026, %v1167
    %v1173 = vxor.u32 %v1169, 2147483648
    %v1174 = vmul.f32 %v1173, 1.442695
    %v1175 = vpow.pop %v1174
    %v1176 = vadd.f32 %v1175, 1.0
    %v1177 = vrcp.pop %v1176
    %v1178 = vmul.f32 1.0, %v1177
    %v1179 = vxor.u32 %v1170, 2147483648
    %v1180 = vmul.f32 %v1179, 1.442695
    %v1181 = vpow.pop %v1180
    %v1182 = vadd.f32 %v1181, 1.0
    %v1183 = vrcp.pop %v1182
    %v1184 = vmul.f32 1.0, %v1183
    %v1185 = vtanh.pop %v1171
    %v1186 = vxor.u32 %v1172, 2147483648
    %v1187 = vmul.f32 %v1186, 1.442695
    %v1188 = vpow.pop %v1187
    %v1189 = vadd.f32 %v1188, 1.0
    %v1190 = vrcp.pop %v1189
    %v1191 = vmul.f32 1.0, %v1190
    %v1192 = vmul.f32 %v1184, 0.0
    %v1193 = vmul.f32 %v1178, %v1185
    %v1194 = vadd.f32 %v1192, %v1193
    %v1195 = vtanh.pop %v1194
    %v1196 = vmul.f32 %v1191, %v1195
    %vm1197 = vcmp.gt.s32.totalorder %v198, 0
    %v1198 = vsel %vm1197, 1, 0
    %1199 = vset.pattern.permute.xlu0 0
    %1200 = vperm.xlu0 %1199, %v1198
    %v1201 = vpop.permute.xlu0 %1200
    %vm1202 = vcmp.eq.s32.totalorder %v1201, 1
    %v1203 = vsel %vm1202, %v1196, 0.0
    %v1204 = vsel %vm1202, %v1194, 0.0
    %s1205 = scalar_lea.vmem [#allocation4], 224
    %v1206 = vld [vmem:[%s1205] sm:$0xff]
    %v1207 = vld [vmem:[%s1205 + $0x8] sm:$0xff]
    %v1208 = vld [vmem:[%s1205 + $0x10] sm:$0xff]
    %v1209 = vld [vmem:[%s1205 + $0x18] sm:$0xff]
    %1210 = vmatprep.subr.mxu0 %v960
    %1211 = vmatpush1.msra.mxu0 %v959
    %1212 = vmatprep.subr.mxu0 %v964
    %1213 = vmatpush1.msra.mxu0 %v963
    %1214 = vmatprep.subr.mxu0 %v968
    %1215 = vmatpush1.msra.mxu0 %v967
    %1216 = vmatprep.subr.mxu0 %v972
    %1217 = vmatpush1.msra.mxu0 %v971
    %1218 = vmatprep.subr.mxu0 %v976
    %1219 = vmatpush1.msra.mxu0 %v975
    %1220 = vmatprep.subr.mxu0 %v980
    %1221 = vmatpush1.msra.mxu0 %v979
    %1222 = vmatprep.subr.mxu0 %v984
    %1223 = vmatpush1.msra.mxu0 %v983
    %1224 = vmatprep.subr.mxu0 %v988
    %1225 = vmatpush1.msra.mxu0 %v987
    %1226 = vmatprep.subr.mxu0 %v992
    %1227 = vmatpush1.msra.mxu0 %v991
    %1228 = vmatprep.subr.mxu0 %v996
    %1229 = vmatpush1.msra.mxu0 %v995
    %1230 = vmatprep.subr.mxu0 %v1000
    %1231 = vmatpush1.msra.mxu0 %v999
    %1232 = vmatprep.subr.mxu0 %v1004
    %1233 = vmatpush1.msra.mxu0 %v1003
    %1234 = vmatprep.subr.mxu0 %v1008
    %1235 = vmatpush1.msra.mxu0 %v1007
    %1236 = vmatprep.subr.mxu0 %v1012
    %1237 = vmatpush1.msra.mxu0 %v1011
    %1238 = vmatprep.subr.mxu0 %v1016
    %1239 = vmatpush1.msra.mxu0 %v1015
    %1240 = vmatprep.subr.mxu0 %v1020
    %1241 = vmatpush1.msra.mxu0 %v1019
    %1242 = vmatprep.subr.mxu0 0.0
    %1243 = vmatpush1.msra.mxu0 0.0
    %1244 = vmatprep.subr.mxu0 0.0
    %1245 = vmatpush1.msra.mxu0 0.0
    %1246 = vmatprep.subr.mxu0 0.0
    %1247 = vmatpush1.msra.mxu0 0.0
    %1248 = vmatprep.subr.mxu0 0.0
    %1249 = vmatpush1.msra.mxu0 0.0
    %1250 = vmatprep.subr.mxu0 0.0
    %1251 = vmatpush1.msra.mxu0 0.0
    %1252 = vmatprep.subr.mxu0 0.0
    %1253 = vmatpush1.msra.mxu0 0.0
    %1254 = vmatprep.subr.mxu0 0.0
    %1255 = vmatpush1.msra.mxu0 0.0
    %1256 = vmatprep.subr.mxu0 0.0
    %1257 = vmatpush1.msra.mxu0 0.0
    %1258 = vmatprep.subr.mxu0 0.0
    %1259 = vmatpush1.msra.mxu0 0.0
    %1260 = vmatprep.subr.mxu0 0.0
    %1261 = vmatpush1.msra.mxu0 0.0
    %1262 = vmatprep.subr.mxu0 0.0
    %1263 = vmatpush1.msra.mxu0 0.0
    %1264 = vmatprep.subr.mxu0 0.0
    %1265 = vmatpush1.msra.mxu0 0.0
    %1266 = vmatprep.subr.mxu0 0.0
    %1267 = vmatpush1.msra.mxu0 0.0
    %1268 = vmatprep.subr.mxu0 0.0
    %1269 = vmatpush1.msra.mxu0 0.0
    %1270 = vmatprep.subr.mxu0 0.0
    %1271 = vmatpush1.msra.mxu0 0.0
    %1272 = vmatprep.subr.mxu0 0.0
    %1273 = vmatpush1.msra.mxu0 0.0
    %1274 = vmatprep.mubr.f32.mxu0 0.0
    %1275 = vmatmul.mubr.f32.gmra.mrb[0].mxu0 0.0
    %v1276 = vpop.f32.mrb[0].mxu0
    %v1277 = vadd.f32 0.0, %v1276
    %v1278 = vpop.f32.mrb[0].mxu0
    %v1279 = vadd.f32 0.0, %v1278
    %1280 = vdwg.mxu0
    %1281 = vmatprep.subr.mxu0 %v962
    %1282 = vmatpush1.msra.mxu0 %v961
    %1283 = vmatprep.subr.mxu0 %v966
    %1284 = vmatpush1.msra.mxu0 %v965
    %1285 = vmatprep.subr.mxu0 %v970
    %1286 = vmatpush1.msra.mxu0 %v969
    %1287 = vmatprep.subr.mxu0 %v974
    %1288 = vmatpush1.msra.mxu0 %v973
    %1289 = vmatprep.subr.mxu0 %v978
    %1290 = vmatpush1.msra.mxu0 %v977
    %1291 = vmatprep.subr.mxu0 %v982
    %1292 = vmatpush1.msra.mxu0 %v981
    %1293 = vmatprep.subr.mxu0 %v986
    %1294 = vmatpush1.msra.mxu0 %v985
    %1295 = vmatprep.subr.mxu0 %v990
    %1296 = vmatpush1.msra.mxu0 %v989
    %1297 = vmatprep.subr.mxu0 %v994
    %1298 = vmatpush1.msra.mxu0 %v993
    %1299 = vmatprep.subr.mxu0 %v998
    %1300 = vmatpush1.msra.mxu0 %v997
    %1301 = vmatprep.subr.mxu0 %v1002
    %1302 = vmatpush1.msra.mxu0 %v1001
    %1303 = vmatprep.subr.mxu0 %v1006
    %1304 = vmatpush1.msra.mxu0 %v1005
    %1305 = vmatprep.subr.mxu0 %v1010
    %1306 = vmatpush1.msra.mxu0 %v1009
    %1307 = vmatprep.subr.mxu0 %v1014
    %1308 = vmatpush1.msra.mxu0 %v1013
    %1309 = vmatprep.subr.mxu0 %v1018
    %1310 = vmatpush1.msra.mxu0 %v1017
    %1311 = vmatprep.subr.mxu0 %v1022
    %1312 = vmatpush1.msra.mxu0 %v1021
    %1313 = vmatprep.subr.mxu0 0.0
    %1314 = vmatpush1.msra.mxu0 0.0
    %1315 = vmatprep.subr.mxu0 0.0
    %1316 = vmatpush1.msra.mxu0 0.0
    %1317 = vmatprep.subr.mxu0 0.0
    %1318 = vmatpush1.msra.mxu0 0.0
    %1319 = vmatprep.subr.mxu0 0.0
    %1320 = vmatpush1.msra.mxu0 0.0
    %1321 = vmatprep.subr.mxu0 0.0
    %1322 = vmatpush1.msra.mxu0 0.0
    %1323 = vmatprep.subr.mxu0 0.0
    %1324 = vmatpush1.msra.mxu0 0.0
    %1325 = vmatprep.subr.mxu0 0.0
    %1326 = vmatpush1.msra.mxu0 0.0
    %1327 = vmatprep.subr.mxu0 0.0
    %1328 = vmatpush1.msra.mxu0 0.0
    %1329 = vmatprep.subr.mxu0 0.0
    %1330 = vmatpush1.msra.mxu0 0.0
    %1331 = vmatprep.subr.mxu0 0.0
    %1332 = vmatpush1.msra.mxu0 0.0
    %1333 = vmatprep.subr.mxu0 0.0
    %1334 = vmatpush1.msra.mxu0 0.0
    %1335 = vmatprep.subr.mxu0 0.0
    %1336 = vmatpush1.msra.mxu0 0.0
    %1337 = vmatprep.subr.mxu0 0.0
    %1338 = vmatpush1.msra.mxu0 0.0
    %1339 = vmatprep.subr.mxu0 0.0
    %1340 = vmatpush1.msra.mxu0 0.0
    %1341 = vmatprep.subr.mxu0 0.0
    %1342 = vmatpush1.msra.mxu0 0.0
    %1343 = vmatprep.subr.mxu0 0.0
    %1344 = vmatpush1.msra.mxu0 0.0
    %1345 = vmatprep.mubr.f32.mxu0 0.0
    %1346 = vmatmul.mubr.f32.gmra.mrb[0].mxu0 0.0
    %v1347 = vpop.f32.mrb[0].mxu0
    %v1348 = vadd.f32 0.0, %v1347
    %v1349 = vpop.f32.mrb[0].mxu0
    %v1350 = vadd.f32 0.0, %v1349
    %1351 = vdwg.mxu0
    %v1352 = vadd.f32 %v1206, %v1277
    %v1353 = vadd.f32 %v1207, %v1279
    %v1354 = vadd.f32 %v1208, %v1348
    %v1355 = vadd.f32 %v1209, %v1350
    %v1356 = vxor.u32 %v1352, 2147483648
    %v1357 = vmul.f32 %v1356, 1.442695
    %v1358 = vpow.pop %v1357
    %v1359 = vadd.f32 %v1358, 1.0
    %v1360 = vrcp.pop %v1359
    %v1361 = vmul.f32 1.0, %v1360
    %v1362 = vxor.u32 %v1353, 2147483648
    %v1363 = vmul.f32 %v1362, 1.442695
    %v1364 = vpow.pop %v1363
    %v1365 = vadd.f32 %v1364, 1.0
    %v1366 = vrcp.pop %v1365
    %v1367 = vmul.f32 1.0, %v1366
    %v1368 = vtanh.pop %v1354
    %v1369 = vxor.u32 %v1355, 2147483648
    %v1370 = vmul.f32 %v1369, 1.442695
    %v1371 = vpow.pop %v1370
    %v1372 = vadd.f32 %v1371, 1.0
    %v1373 = vrcp.pop %v1372
    %v1374 = vmul.f32 1.0, %v1373
    %v1375 = vmul.f32 %v1367, 0.0
    %v1376 = vmul.f32 %v1361, %v1368
    %v1377 = vadd.f32 %v1375, %v1376
    %v1378 = vtanh.pop %v1377
    %v1379 = vmul.f32 %v1374, %v1378
    %vm1380 = vcmp.gt.s32.totalorder %v198, 7
    %v1381 = vsel %vm1380, 1, 0
    %1382 = vset.pattern.permute.xlu0 0
    %1383 = vperm.xlu0 %1382, %v1381
    %v1384 = vpop.permute.xlu0 %1383
    %vm1385 = vcmp.eq.s32.totalorder %v1384, 1
    %v1386 = vsel %vm1385, %v1379, 0.0
    %v1387 = vsel %vm1385, %v1377, 0.0
    %1388 = vst [vmem:[#allocation2] sm:$0xff] %v1203
    %s1389 = scalar_lea.vmem [#allocation2], 112
    %1390 = vst [vmem:[%s1389 + $0x8] sm:$0xff] %v1386
    %s1391 = scalar_lea.vmem [#allocation3], 32
    %v1392 = vld [vmem:[%s1391] sm:$0xff]
    %v1393 = vld [vmem:[%s1391 + $0x8] sm:$0xff]
    %v1394 = vld [vmem:[%s1391 + $0x10] sm:$0xff]
    %v1395 = vld [vmem:[%s1391 + $0x18] sm:$0xff]
    %1396 = vmatprep.subr.mxu0 %v896
    %1397 = vmatpush1.msra.mxu0 %v895
    %1398 = vmatprep.subr.mxu0 %v900
    %1399 = vmatpush1.msra.mxu0 %v899
    %1400 = vmatprep.subr.mxu0 %v904
    %1401 = vmatpush1.msra.mxu0 %v903
    %1402 = vmatprep.subr.mxu0 %v908
    %1403 = vmatpush1.msra.mxu0 %v907
    %1404 = vmatprep.subr.mxu0 %v912
    %1405 = vmatpush1.msra.mxu0 %v911
    %1406 = vmatprep.subr.mxu0 %v916
    %1407 = vmatpush1.msra.mxu0 %v915
    %1408 = vmatprep.subr.mxu0 %v920
    %1409 = vmatpush1.msra.mxu0 %v919
    %1410 = vmatprep.subr.mxu0 %v924
    %1411 = vmatpush1.msra.mxu0 %v923
    %1412 = vmatprep.subr.mxu0 %v928
    %1413 = vmatpush1.msra.mxu0 %v927
    %1414 = vmatprep.subr.mxu0 %v932
    %1415 = vmatpush1.msra.mxu0 %v931
    %1416 = vmatprep.subr.mxu0 %v936
    %1417 = vmatpush1.msra.mxu0 %v935
    %1418 = vmatprep.subr.mxu0 %v940
    %1419 = vmatpush1.msra.mxu0 %v939
    %1420 = vmatprep.subr.mxu0 %v944
    %1421 = vmatpush1.msra.mxu0 %v943
    %1422 = vmatprep.subr.mxu0 %v948
    %1423 = vmatpush1.msra.mxu0 %v947
    %1424 = vmatprep.subr.mxu0 %v952
    %1425 = vmatpush1.msra.mxu0 %v951
    %1426 = vmatprep.subr.mxu0 %v956
    %1427 = vmatpush1.msra.mxu0 %v955
    %1428 = vmatprep.subr.mxu0 0.0
    %1429 = vmatpush1.msra.mxu0 0.0
    %1430 = vmatprep.subr.mxu0 0.0
    %1431 = vmatpush1.msra.mxu0 0.0
    %1432 = vmatprep.subr.mxu0 0.0
    %1433 = vmatpush1.msra.mxu0 0.0
    %1434 = vmatprep.subr.mxu0 0.0
    %1435 = vmatpush1.msra.mxu0 0.0
    %1436 = vmatprep.subr.mxu0 0.0
    %1437 = vmatpush1.msra.mxu0 0.0
    %1438 = vmatprep.subr.mxu0 0.0
    %1439 = vmatpush1.msra.mxu0 0.0
    %1440 = vmatprep.subr.mxu0 0.0
    %1441 = vmatpush1.msra.mxu0 0.0
    %1442 = vmatprep.subr.mxu0 0.0
    %1443 = vmatpush1.msra.mxu0 0.0
    %1444 = vmatprep.subr.mxu0 0.0
    %1445 = vmatpush1.msra.mxu0 0.0
    %1446 = vmatprep.subr.mxu0 0.0
    %1447 = vmatpush1.msra.mxu0 0.0
    %1448 = vmatprep.subr.mxu0 0.0
    %1449 = vmatpush1.msra.mxu0 0.0
    %1450 = vmatprep.subr.mxu0 0.0
    %1451 = vmatpush1.msra.mxu0 0.0
    %1452 = vmatprep.subr.mxu0 0.0
    %1453 = vmatpush1.msra.mxu0 0.0
    %1454 = vmatprep.subr.mxu0 0.0
    %1455 = vmatpush1.msra.mxu0 0.0
    %1456 = vmatprep.subr.mxu0 0.0
    %1457 = vmatpush1.msra.mxu0 0.0
    %1458 = vmatprep.subr.mxu0 0.0
    %1459 = vmatpush1.msra.mxu0 0.0
    %1460 = vmatprep.mubr.f32.mxu0 0.0
    %1461 = vmatmul.mubr.f32.gmra.mrb[0].mxu0 %v1203
    %v1462 = vpop.f32.mrb[0].mxu0
    %v1463 = vadd.f32 0.0, %v1462
    %v1464 = vpop.f32.mrb[0].mxu0
    %v1465 = vadd.f32 0.0, %v1464
    %1466 = vdwg.mxu0
    %1467 = vmatprep.subr.mxu0 %v898
    %1468 = vmatpush1.msra.mxu0 %v897
    %1469 = vmatprep.subr.mxu0 %v902
    %1470 = vmatpush1.msra.mxu0 %v901
    %1471 = vmatprep.subr.mxu0 %v906
    %1472 = vmatpush1.msra.mxu0 %v905
    %1473 = vmatprep.subr.mxu0 %v910
    %1474 = vmatpush1.msra.mxu0 %v909
    %1475 = vmatprep.subr.mxu0 %v914
    %1476 = vmatpush1.msra.mxu0 %v913
    %1477 = vmatprep.subr.mxu0 %v918
    %1478 = vmatpush1.msra.mxu0 %v917
    %1479 = vmatprep.subr.mxu0 %v922
    %1480 = vmatpush1.msra.mxu0 %v921
    %1481 = vmatprep.subr.mxu0 %v926
    %1482 = vmatpush1.msra.mxu0 %v925
    %1483 = vmatprep.subr.mxu0 %v930
    %1484 = vmatpush1.msra.mxu0 %v929
    %1485 = vmatprep.subr.mxu0 %v934
    %1486 = vmatpush1.msra.mxu0 %v933
    %1487 = vmatprep.subr.mxu0 %v938
    %1488 = vmatpush1.msra.mxu0 %v937
    %1489 = vmatprep.subr.mxu0 %v942
    %1490 = vmatpush1.msra.mxu0 %v941
    %1491 = vmatprep.subr.mxu0 %v946
    %1492 = vmatpush1.msra.mxu0 %v945
    %1493 = vmatprep.subr.mxu0 %v950
    %1494 = vmatpush1.msra.mxu0 %v949
    %1495 = vmatprep.subr.mxu0 %v954
    %1496 = vmatpush1.msra.mxu0 %v953
    %1497 = vmatprep.subr.mxu0 %v958
    %1498 = vmatpush1.msra.mxu0 %v957
    %1499 = vmatprep.subr.mxu0 0.0
    %1500 = vmatpush1.msra.mxu0 0.0
    %1501 = vmatprep.subr.mxu0 0.0
    %1502 = vmatpush1.msra.mxu0 0.0
    %1503 = vmatprep.subr.mxu0 0.0
    %1504 = vmatpush1.msra.mxu0 0.0
    %1505 = vmatprep.subr.mxu0 0.0
    %1506 = vmatpush1.msra.mxu0 0.0
    %1507 = vmatprep.subr.mxu0 0.0
    %1508 = vmatpush1.msra.mxu0 0.0
    %1509 = vmatprep.subr.mxu0 0.0
    %1510 = vmatpush1.msra.mxu0 0.0
    %1511 = vmatprep.subr.mxu0 0.0
    %1512 = vmatpush1.msra.mxu0 0.0
    %1513 = vmatprep.subr.mxu0 0.0
    %1514 = vmatpush1.msra.mxu0 0.0
    %1515 = vmatprep.subr.mxu0 0.0
    %1516 = vmatpush1.msra.mxu0 0.0
    %1517 = vmatprep.subr.mxu0 0.0
    %1518 = vmatpush1.msra.mxu0 0.0
    %1519 = vmatprep.subr.mxu0 0.0
    %1520 = vmatpush1.msra.mxu0 0.0
    %1521 = vmatprep.subr.mxu0 0.0
    %1522 = vmatpush1.msra.mxu0 0.0
    %1523 = vmatprep.subr.mxu0 0.0
    %1524 = vmatpush1.msra.mxu0 0.0
    %1525 = vmatprep.subr.mxu0 0.0
    %1526 = vmatpush1.msra.mxu0 0.0
    %1527 = vmatprep.subr.mxu0 0.0
    %1528 = vmatpush1.msra.mxu0 0.0
    %1529 = vmatprep.subr.mxu0 0.0
    %1530 = vmatpush1.msra.mxu0 0.0
    %1531 = vmatprep.mubr.f32.mxu0 0.0
    %1532 = vmatmul.mubr.f32.gmra.mrb[0].mxu0 %v1203
    %v1533 = vpop.f32.mrb[0].mxu0
    %v1534 = vadd.f32 0.0, %v1533
    %v1535 = vpop.f32.mrb[0].mxu0
    %v1536 = vadd.f32 0.0, %v1535
    %1537 = vdwg.mxu0
    %v1538 = vadd.f32 %v1392, %v1463
    %v1539 = vadd.f32 %v1393, %v1465
    %v1540 = vadd.f32 %v1394, %v1534
    %v1541 = vadd.f32 %v1395, %v1536
    %v1542 = vxor.u32 %v1538, 2147483648
    %v1543 = vmul.f32 %v1542, 1.442695
    %v1544 = vpow.pop %v1543
    %v1545 = vadd.f32 %v1544, 1.0
    %v1546 = vrcp.pop %v1545
    %v1547 = vmul.f32 1.0, %v1546
    %v1548 = vxor.u32 %v1539, 2147483648
    %v1549 = vmul.f32 %v1548, 1.442695
    %v1550 = vpow.pop %v1549
    %v1551 = vadd.f32 %v1550, 1.0
    %v1552 = vrcp.pop %v1551
    %v1553 = vmul.f32 1.0, %v1552
    %v1554 = vtanh.pop %v1540
    %v1555 = vxor.u32 %v1541, 2147483648
    %v1556 = vmul.f32 %v1555, 1.442695
    %v1557 = vpow.pop %v1556
    %v1558 = vadd.f32 %v1557, 1.0
    %v1559 = vrcp.pop %v1558
    %v1560 = vmul.f32 1.0, %v1559
    %v1561 = vmul.f32 %v1553, %v1204
    %v1562 = vmul.f32 %v1547, %v1554
    %v1563 = vadd.f32 %v1561, %v1562
    %v1564 = vtanh.pop %v1563
    %v1565 = vmul.f32 %v1560, %v1564
    %vm1566 = vcmp.gt.s32.totalorder %v198, 1
    %v1567 = vsel %vm1566, 1, 0
    %1568 = vset.pattern.permute.xlu0 0
    %1569 = vperm.xlu0 %1568, %v1567
    %v1570 = vpop.permute.xlu0 %1569
    %vm1571 = vcmp.eq.s32.totalorder %v1570, 1
    %v1572 = vsel %vm1571, %v1565, %v1203
    %v1573 = vsel %vm1571, %v1563, %v1204
    %s1574 = scalar_lea.vmem [#allocation4], 192
    %v1575 = vld [vmem:[%s1574] sm:$0xff]
    %v1576 = vld [vmem:[%s1574 + $0x8] sm:$0xff]
    %v1577 = vld [vmem:[%s1574 + $0x10] sm:$0xff]
    %v1578 = vld [vmem:[%s1574 + $0x18] sm:$0xff]
    %1579 = vmatprep.subr.mxu0 %v960
    %1580 = vmatpush1.msra.mxu0 %v959
    %1581 = vmatprep.subr.mxu0 %v964
    %1582 = vmatpush1.msra.mxu0 %v963
    %1583 = vmatprep.subr.mxu0 %v968
    %1584 = vmatpush1.msra.mxu0 %v967
    %1585 = vmatprep.subr.mxu0 %v972
    %1586 = vmatpush1.msra.mxu0 %v971
    %1587 = vmatprep.subr.mxu0 %v976
    %1588 = vmatpush1.msra.mxu0 %v975
    %1589 = vmatprep.subr.mxu0 %v980
    %1590 = vmatpush1.msra.mxu0 %v979
    %1591 = vmatprep.subr.mxu0 %v984
    %1592 = vmatpush1.msra.mxu0 %v983
    %1593 = vmatprep.subr.mxu0 %v988
    %1594 = vmatpush1.msra.mxu0 %v987
    %1595 = vmatprep.subr.mxu0 %v992
    %1596 = vmatpush1.msra.mxu0 %v991
    %1597 = vmatprep.subr.mxu0 %v996
    %1598 = vmatpush1.msra.mxu0 %v995
    %1599 = vmatprep.subr.mxu0 %v1000
    %1600 = vmatpush1.msra.mxu0 %v999
    %1601 = vmatprep.subr.mxu0 %v1004
    %1602 = vmatpush1.msra.mxu0 %v1003
    %1603 = vmatprep.subr.mxu0 %v1008
    %1604 = vmatpush1.msra.mxu0 %v1007
    %1605 = vmatprep.subr.mxu0 %v1012
    %1606 = vmatpush1.msra.mxu0 %v1011
    %1607 = vmatprep.subr.mxu0 %v1016
    %1608 = vmatpush1.msra.mxu0 %v1015
    %1609 = vmatprep.subr.mxu0 %v1020
    %1610 = vmatpush1.msra.mxu0 %v1019
    %1611 = vmatprep.subr.mxu0 0.0
    %1612 = vmatpush1.msra.mxu0 0.0
    %1613 = vmatprep.subr.mxu0 0.0
    %1614 = vmatpush1.msra.mxu0 0.0
    %1615 = vmatprep.subr.mxu0 0.0
    %1616 = vmatpush1.msra.mxu0 0.0
    %1617 = vmatprep.subr.mxu0 0.0
    %1618 = vmatpush1.msra.mxu0 0.0
    %1619 = vmatprep.subr.mxu0 0.0
    %1620 = vmatpush1.msra.mxu0 0.0
    %1621 = vmatprep.subr.mxu0 0.0
    %1622 = vmatpush1.msra.mxu0 0.0
    %1623 = vmatprep.subr.mxu0 0.0
    %1624 = vmatpush1.msra.mxu0 0.0
    %1625 = vmatprep.subr.mxu0 0.0
    %1626 = vmatpush1.msra.mxu0 0.0
    %1627 = vmatprep.subr.mxu0 0.0
    %1628 = vmatpush1.msra.mxu0 0.0
    %1629 = vmatprep.subr.mxu0 0.0
    %1630 = vmatpush1.msra.mxu0 0.0
    %1631 = vmatprep.subr.mxu0 0.0
    %1632 = vmatpush1.msra.mxu0 0.0
    %1633 = vmatprep.subr.mxu0 0.0
    %1634 = vmatpush1.msra.mxu0 0.0
    %1635 = vmatprep.subr.mxu0 0.0
    %1636 = vmatpush1.msra.mxu0 0.0
    %1637 = vmatprep.subr.mxu0 0.0
    %1638 = vmatpush1.msra.mxu0 0.0
    %1639 = vmatprep.subr.mxu0 0.0
    %1640 = vmatpush1.msra.mxu0 0.0
    %1641 = vmatprep.subr.mxu0 0.0
    %1642 = vmatpush1.msra.mxu0 0.0
    %1643 = vmatprep.mubr.f32.mxu0 0.0
    %1644 = vmatmul.mubr.f32.gmra.mrb[0].mxu0 %v1386
    %v1645 = vpop.f32.mrb[0].mxu0
    %v1646 = vadd.f32 0.0, %v1645
    %v1647 = vpop.f32.mrb[0].mxu0
    %v1648 = vadd.f32 0.0, %v1647
    %1649 = vdwg.mxu0
    %1650 = vmatprep.subr.mxu0 %v962
    %1651 = vmatpush1.msra.mxu0 %v961
    %1652 = vmatprep.subr.mxu0 %v966
    %1653 = vmatpush1.msra.mxu0 %v965
    %1654 = vmatprep.subr.mxu0 %v970
    %1655 = vmatpush1.msra.mxu0 %v969
    %1656 = vmatprep.subr.mxu0 %v974
    %1657 = vmatpush1.msra.mxu0 %v973
    %1658 = vmatprep.subr.mxu0 %v978
    %1659 = vmatpush1.msra.mxu0 %v977
    %1660 = vmatprep.subr.mxu0 %v982
    %1661 = vmatpush1.msra.mxu0 %v981
    %1662 = vmatprep.subr.mxu0 %v986
    %1663 = vmatpush1.msra.mxu0 %v985
    %1664 = vmatprep.subr.mxu0 %v990
    %1665 = vmatpush1.msra.mxu0 %v989
    %1666 = vmatprep.subr.mxu0 %v994
    %1667 = vmatpush1.msra.mxu0 %v993
    %1668 = vmatprep.subr.mxu0 %v998
    %1669 = vmatpush1.msra.mxu0 %v997
    %1670 = vmatprep.subr.mxu0 %v1002
    %1671 = vmatpush1.msra.mxu0 %v1001
    %1672 = vmatprep.subr.mxu0 %v1006
    %1673 = vmatpush1.msra.mxu0 %v1005
    %1674 = vmatprep.subr.mxu0 %v1010
    %1675 = vmatpush1.msra.mxu0 %v1009
    %1676 = vmatprep.subr.mxu0 %v1014
    %1677 = vmatpush1.msra.mxu0 %v1013
    %1678 = vmatprep.subr.mxu0 %v1018
    %1679 = vmatpush1.msra.mxu0 %v1017
    %1680 = vmatprep.subr.mxu0 %v1022
    %1681 = vmatpush1.msra.mxu0 %v1021
    %1682 = vmatprep.subr.mxu0 0.0
    %1683 = vmatpush1.msra.mxu0 0.0
    %1684 = vmatprep.subr.mxu0 0.0
    %1685 = vmatpush1.msra.mxu0 0.0
    %1686 = vmatprep.subr.mxu0 0.0
    %1687 = vmatpush1.msra.mxu0 0.0
    %1688 = vmatprep.subr.mxu0 0.0
    %1689 = vmatpush1.msra.mxu0 0.0
    %1690 = vmatprep.subr.mxu0 0.0
    %1691 = vmatpush1.msra.mxu0 0.0
    %1692 = vmatprep.subr.mxu0 0.0
    %1693 = vmatpush1.msra.mxu0 0.0
    %1694 = vmatprep.subr.mxu0 0.0
    %1695 = vmatpush1.msra.mxu0 0.0
    %1696 = vmatprep.subr.mxu0 0.0
    %1697 = vmatpush1.msra.mxu0 0.0
    %1698 = vmatprep.subr.mxu0 0.0
    %1699 = vmatpush1.msra.mxu0 0.0
    %1700 = vmatprep.subr.mxu0 0.0
    %1701 = vmatpush1.msra.mxu0 0.0
    %1702 = vmatprep.subr.mxu0 0.0
    %1703 = vmatpush1.msra.mxu0 0.0
    %1704 = vmatprep.subr.mxu0 0.0
    %1705 = vmatpush1.msra.mxu0 0.0
    %1706 = vmatprep.subr.mxu0 0.0
    %1707 = vmatpush1.msra.mxu0 0.0
    %1708 = vmatprep.subr.mxu0 0.0
    %1709 = vmatpush1.msra.mxu0 0.0
    %1710 = vmatprep.subr.mxu0 0.0
    %1711 = vmatpush1.msra.mxu0 0.0
    %1712 = vmatprep.subr.mxu0 0.0
    %1713 = vmatpush1.msra.mxu0 0.0
    %1714 = vmatprep.mubr.f32.mxu0 0.0
    %1715 = vmatmul.mubr.f32.gmra.mrb[0].mxu0 %v1386
    %v1716 = vpop.f32.mrb[0].mxu0
    %v1717 = vadd.f32 0.0, %v1716
    %v1718 = vpop.f32.mrb[0].mxu0
    %v1719 = vadd.f32 0.0, %v1718
    %1720 = vdwg.mxu0
    %v1721 = vadd.f32 %v1575, %v1646
    %v1722 = vadd.f32 %v1576, %v1648
    %v1723 = vadd.f32 %v1577, %v1717
    %v1724 = vadd.f32 %v1578, %v1719
    %v1725 = vxor.u32 %v1721, 2147483648
    %v1726 = vmul.f32 %v1725, 1.442695
    %v1727 = vpow.pop %v1726
    %v1728 = vadd.f32 %v1727, 1.0
    %v1729 = vrcp.pop %v1728
    %v1730 = vmul.f32 1.0, %v1729
    %v1731 = vxor.u32 %v1722, 2147483648
    %v1732 = vmul.f32 %v1731, 1.442695
    %v1733 = vpow.pop %v1732
    %v1734 = vadd.f32 %v1733, 1.0
    %v1735 = vrcp.pop %v1734
    %v1736 = vmul.f32 1.0, %v1735
    %v1737 = vtanh.pop %v1723
    %v1738 = vxor.u32 %v1724, 2147483648
    %v1739 = vmul.f32 %v1738, 1.442695
    %v1740 = vpow.pop %v1739
    %v1741 = vadd.f32 %v1740, 1.0
    %v1742 = vrcp.pop %v1741
    %v1743 = vmul.f32 1.0, %v1742
    %v1744 = vmul.f32 %v1736, %v1387
    %v1745 = vmul.f32 %v1730, %v1737
    %v1746 = vadd.f32 %v1744, %v1745
    %v1747 = vtanh.pop %v1746
    %v1748 = vmul.f32 %v1743, %v1747
    %vm1749 = vcmp.gt.s32.totalorder %v198, 6
    %v1750 = vsel %vm1749, 1, 0
    %1751 = vset.pattern.permute.xlu0 0
    %1752 = vperm.xlu0 %1751, %v1750
    %v1753 = vpop.permute.xlu0 %1752
    %vm1754 = vcmp.eq.s32.totalorder %v1753, 1
    %v1755 = vsel %vm1754, %v1748, %v1386
    %v1756 = vsel %vm1754, %v1746, %v1387
    %s1757 = scalar_lea.vmem [#allocation2], 16
    %1758 = vst [vmem:[%s1757] sm:$0xff] %v1572
    %s1759 = scalar_lea.vmem [#allocation2], 96
    %1760 = vst [vmem:[%s1759 + $0x8] sm:$0xff] %v1755
    %s1761 = scalar_lea.vmem [#allocation3], 64
    %v1762 = vld [vmem:[%s1761] sm:$0xff]
    %v1763 = vld [vmem:[%s1761 + $0x8] sm:$0xff]
    %v1764 = vld [vmem:[%s1761 + $0x10] sm:$0xff]
    %v1765 = vld [vmem:[%s1761 + $0x18] sm:$0xff]
    %1766 = vmatprep.subr.mxu0 %v896
    %1767 = vmatpush1.msra.mxu0 %v895
    %1768 = vmatprep.subr.mxu0 %v900
    %1769 = vmatpush1.msra.mxu0 %v899
    %1770 = vmatprep.subr.mxu0 %v904
    %1771 = vmatpush1.msra.mxu0 %v903
    %1772 = vmatprep.subr.mxu0 %v908
    %1773 = vmatpush1.msra.mxu0 %v907
    %1774 = vmatprep.subr.mxu0 %v912
    %1775 = vmatpush1.msra.mxu0 %v911
    %1776 = vmatprep.subr.mxu0 %v916
    %1777 = vmatpush1.msra.mxu0 %v915
    %1778 = vmatprep.subr.mxu0 %v920
    %1779 = vmatpush1.msra.mxu0 %v919
    %1780 = vmatprep.subr.mxu0 %v924
    %1781 = vmatpush1.msra.mxu0 %v923
    %1782 = vmatprep.subr.mxu0 %v928
    %1783 = vmatpush1.msra.mxu0 %v927
    %1784 = vmatprep.subr.mxu0 %v932
    %1785 = vmatpush1.msra.mxu0 %v931
    %1786 = vmatprep.subr.mxu0 %v936
    %1787 = vmatpush1.msra.mxu0 %v935
    %1788 = vmatprep.subr.mxu0 %v940
    %1789 = vmatpush1.msra.mxu0 %v939
    %1790 = vmatprep.subr.mxu0 %v944
    %1791 = vmatpush1.msra.mxu0 %v943
    %1792 = vmatprep.subr.mxu0 %v948
    %1793 = vmatpush1.msra.mxu0 %v947
    %1794 = vmatprep.subr.mxu0 %v952
    %1795 = vmatpush1.msra.mxu0 %v951
    %1796 = vmatprep.subr.mxu0 %v956
    %1797 = vmatpush1.msra.mxu0 %v955
    %1798 = vmatprep.subr.mxu0 0.0
    %1799 = vmatpush1.msra.mxu0 0.0
    %1800 = vmatprep.subr.mxu0 0.0
    %1801 = vmatpush1.msra.mxu0 0.0
    %1802 = vmatprep.subr.mxu0 0.0
    %1803 = vmatpush1.msra.mxu0 0.0
    %1804 = vmatprep.subr.mxu0 0.0
    %1805 = vmatpush1.msra.mxu0 0.0
    %1806 = vmatprep.subr.mxu0 0.0
    %1807 = vmatpush1.msra.mxu0 0.0
    %1808 = vmatprep.subr.mxu0 0.0
    %1809 = vmatpush1.msra.mxu0 0.0
    %1810 = vmatprep.subr.mxu0 0.0
    %1811 = vmatpush1.msra.mxu0 0.0
    %1812 = vmatprep.subr.mxu0 0.0
    %1813 = vmatpush1.msra.mxu0 0.0
    %1814 = vmatprep.subr.mxu0 0.0
    %1815 = vmatpush1.msra.mxu0 0.0
    %1816 = vmatprep.subr.mxu0 0.0
    %1817 = vmatpush1.msra.mxu0 0.0
    %1818 = vmatprep.subr.mxu0 0.0
    %1819 = vmatpush1.msra.mxu0 0.0
    %1820 = vmatprep.subr.mxu0 0.0
    %1821 = vmatpush1.msra.mxu0 0.0
    %1822 = vmatprep.subr.mxu0 0.0
    %1823 = vmatpush1.msra.mxu0 0.0
    %1824 = vmatprep.subr.mxu0 0.0
    %1825 = vmatpush1.msra.mxu0 0.0
    %1826 = vmatprep.subr.mxu0 0.0
    %1827 = vmatpush1.msra.mxu0 0.0
    %1828 = vmatprep.subr.mxu0 0.0
    %1829 = vmatpush1.msra.mxu0 0.0
    %1830 = vmatprep.mubr.f32.mxu0 0.0
    %1831 = vmatmul.mubr.f32.gmra.mrb[0].mxu0 %v1572
    %v1832 = vpop.f32.mrb[0].mxu0
    %v1833 = vadd.f32 0.0, %v1832
    %v1834 = vpop.f32.mrb[0].mxu0
    %v1835 = vadd.f32 0.0, %v1834
    %1836 = vdwg.mxu0
    %1837 = vmatprep.subr.mxu0 %v898
    %1838 = vmatpush1.msra.mxu0 %v897
    %1839 = vmatprep.subr.mxu0 %v902
    %1840 = vmatpush1.msra.mxu0 %v901
    %1841 = vmatprep.subr.mxu0 %v906
    %1842 = vmatpush1.msra.mxu0 %v905
    %1843 = vmatprep.subr.mxu0 %v910
    %1844 = vmatpush1.msra.mxu0 %v909
    %1845 = vmatprep.subr.mxu0 %v914
    %1846 = vmatpush1.msra.mxu0 %v913
    %1847 = vmatprep.subr.mxu0 %v918
    %1848 = vmatpush1.msra.mxu0 %v917
    %1849 = vmatprep.subr.mxu0 %v922
    %1850 = vmatpush1.msra.mxu0 %v921
    %1851 = vmatprep.subr.mxu0 %v926
    %1852 = vmatpush1.msra.mxu0 %v925
    %1853 = vmatprep.subr.mxu0 %v930
    %1854 = vmatpush1.msra.mxu0 %v929
    %1855 = vmatprep.subr.mxu0 %v934
    %1856 = vmatpush1.msra.mxu0 %v933
    %1857 = vmatprep.subr.mxu0 %v938
    %1858 = vmatpush1.msra.mxu0 %v937
    %1859 = vmatprep.subr.mxu0 %v942
    %1860 = vmatpush1.msra.mxu0 %v941
    %1861 = vmatprep.subr.mxu0 %v946
    %1862 = vmatpush1.msra.mxu0 %v945
    %1863 = vmatprep.subr.mxu0 %v950
    %1864 = vmatpush1.msra.mxu0 %v949
    %1865 = vmatprep.subr.mxu0 %v954
    %1866 = vmatpush1.msra.mxu0 %v953
    %1867 = vmatprep.subr.mxu0 %v958
    %1868 = vmatpush1.msra.mxu0 %v957
    %1869 = vmatprep.subr.mxu0 0.0
    %1870 = vmatpush1.msra.mxu0 0.0
    %1871 = vmatprep.subr.mxu0 0.0
    %1872 = vmatpush1.msra.mxu0 0.0
    %1873 = vmatprep.subr.mxu0 0.0
    %1874 = vmatpush1.msra.mxu0 0.0
    %1875 = vmatprep.subr.mxu0 0.0
    %1876 = vmatpush1.msra.mxu0 0.0
    %1877 = vmatprep.subr.mxu0 0.0
    %1878 = vmatpush1.msra.mxu0 0.0
    %1879 = vmatprep.subr.mxu0 0.0
    %1880 = vmatpush1.msra.mxu0 0.0
    %1881 = vmatprep.subr.mxu0 0.0
    %1882 = vmatpush1.msra.mxu0 0.0
    %1883 = vmatprep.subr.mxu0 0.0
    %1884 = vmatpush1.msra.mxu0 0.0
    %1885 = vmatprep.subr.mxu0 0.0
    %1886 = vmatpush1.msra.mxu0 0.0
    %1887 = vmatprep.subr.mxu0 0.0
    %1888 = vmatpush1.msra.mxu0 0.0
    %1889 = vmatprep.subr.mxu0 0.0
    %1890 = vmatpush1.msra.mxu0 0.0
    %1891 = vmatprep.subr.mxu0 0.0
    %1892 = vmatpush1.msra.mxu0 0.0
    %1893 = vmatprep.subr.mxu0 0.0
    %1894 = vmatpush1.msra.mxu0 0.0
    %1895 = vmatprep.subr.mxu0 0.0
    %1896 = vmatpush1.msra.mxu0 0.0
    %1897 = vmatprep.subr.mxu0 0.0
    %1898 = vmatpush1.msra.mxu0 0.0
    %1899 = vmatprep.subr.mxu0 0.0
    %1900 = vmatpush1.msra.mxu0 0.0
    %1901 = vmatprep.mubr.f32.mxu0 0.0
    %1902 = vmatmul.mubr.f32.gmra.mrb[0].mxu0 %v1572
    %v1903 = vpop.f32.mrb[0].mxu0
    %v1904 = vadd.f32 0.0, %v1903
    %v1905 = vpop.f32.mrb[0].mxu0
    %v1906 = vadd.f32 0.0, %v1905
    %1907 = vdwg.mxu0
    %v1908 = vadd.f32 %v1762, %v1833
    %v1909 = vadd.f32 %v1763, %v1835
    %v1910 = vadd.f32 %v1764, %v1904
    %v1911 = vadd.f32 %v1765, %v1906
    %v1912 = vxor.u32 %v1908, 2147483648
    %v1913 = vmul.f32 %v1912, 1.442695
    %v1914 = vpow.pop %v1913
    %v1915 = vadd.f32 %v1914, 1.0
    %v1916 = vrcp.pop %v1915
    %v1917 = vmul.f32 1.0, %v1916
    %v1918 = vxor.u32 %v1909, 2147483648
    %v1919 = vmul.f32 %v1918, 1.442695
    %v1920 = vpow.pop %v1919
    %v1921 = vadd.f32 %v1920, 1.0
    %v1922 = vrcp.pop %v1921
    %v1923 = vmul.f32 1.0, %v1922
    %v1924 = vtanh.pop %v1910
    %v1925 = vxor.u32 %v1911, 2147483648
    %v1926 = vmul.f32 %v1925, 1.442695
    %v1927 = vpow.pop %v1926
    %v1928 = vadd.f32 %v1927, 1.0
    %v1929 = vrcp.pop %v1928
    %v1930 = vmul.f32 1.0, %v1929
    %v1931 = vmul.f32 %v1923, %v1573
    %v1932 = vmul.f32 %v1917, %v1924
    %v1933 = vadd.f32 %v1931, %v1932
    %v1934 = vtanh.pop %v1933
    %v1935 = vmul.f32 %v1930, %v1934
    %vm1936 = vcmp.gt.s32.totalorder %v198, 2
    %v1937 = vsel %vm1936, 1, 0
    %1938 = vset.pattern.permute.xlu0 0
    %1939 = vperm.xlu0 %1938, %v1937
    %v1940 = vpop.permute.xlu0 %1939
    %vm1941 = vcmp.eq.s32.totalorder %v1940, 1
    %v1942 = vsel %vm1941, %v1935, %v1572
    %v1943 = vsel %vm1941, %v1933, %v1573
    %s1944 = scalar_lea.vmem [#allocation4], 160
    %v1945 = vld [vmem:[%s1944] sm:$0xff]
    %v1946 = vld [vmem:[%s1944 + $0x8] sm:$0xff]
    %v1947 = vld [vmem:[%s1944 + $0x10] sm:$0xff]
    %v1948 = vld [vmem:[%s1944 + $0x18] sm:$0xff]
    %1949 = vmatprep.subr.mxu0 %v960
    %1950 = vmatpush1.msra.mxu0 %v959
    %1951 = vmatprep.subr.mxu0 %v964
    %1952 = vmatpush1.msra.mxu0 %v963
    %1953 = vmatprep.subr.mxu0 %v968
    %1954 = vmatpush1.msra.mxu0 %v967
    %1955 = vmatprep.subr.mxu0 %v972
    %1956 = vmatpush1.msra.mxu0 %v971
    %1957 = vmatprep.subr.mxu0 %v976
    %1958 = vmatpush1.msra.mxu0 %v975
    %1959 = vmatprep.subr.mxu0 %v980
    %1960 = vmatpush1.msra.mxu0 %v979
    %1961 = vmatprep.subr.mxu0 %v984
    %1962 = vmatpush1.msra.mxu0 %v983
    %1963 = vmatprep.subr.mxu0 %v988
    %1964 = vmatpush1.msra.mxu0 %v987
    %1965 = vmatprep.subr.mxu0 %v992
    %1966 = vmatpush1.msra.mxu0 %v991
    %1967 = vmatprep.subr.mxu0 %v996
    %1968 = vmatpush1.msra.mxu0 %v995
    %1969 = vmatprep.subr.mxu0 %v1000
    %1970 = vmatpush1.msra.mxu0 %v999
    %1971 = vmatprep.subr.mxu0 %v1004
    %1972 = vmatpush1.msra.mxu0 %v1003
    %1973 = vmatprep.subr.mxu0 %v1008
    %1974 = vmatpush1.msra.mxu0 %v1007
    %1975 = vmatprep.subr.mxu0 %v1012
    %1976 = vmatpush1.msra.mxu0 %v1011
    %1977 = vmatprep.subr.mxu0 %v1016
    %1978 = vmatpush1.msra.mxu0 %v1015
    %1979 = vmatprep.subr.mxu0 %v1020
    %1980 = vmatpush1.msra.mxu0 %v1019
    %1981 = vmatprep.subr.mxu0 0.0
    %1982 = vmatpush1.msra.mxu0 0.0
    %1983 = vmatprep.subr.mxu0 0.0
    %1984 = vmatpush1.msra.mxu0 0.0
    %1985 = vmatprep.subr.mxu0 0.0
    %1986 = vmatpush1.msra.mxu0 0.0
    %1987 = vmatprep.subr.mxu0 0.0
    %1988 = vmatpush1.msra.mxu0 0.0
    %1989 = vmatprep.subr.mxu0 0.0
    %1990 = vmatpush1.msra.mxu0 0.0
    %1991 = vmatprep.subr.mxu0 0.0
    %1992 = vmatpush1.msra.mxu0 0.0
    %1993 = vmatprep.subr.mxu0 0.0
    %1994 = vmatpush1.msra.mxu0 0.0
    %1995 = vmatprep.subr.mxu0 0.0
    %1996 = vmatpush1.msra.mxu0 0.0
    %1997 = vmatprep.subr.mxu0 0.0
    %1998 = vmatpush1.msra.mxu0 0.0
    %1999 = vmatprep.subr.mxu0 0.0
    %2000 = vmatpush1.msra.mxu0 0.0
    %2001 = vmatprep.subr.mxu0 0.0
    %2002 = vmatpush1.msra.mxu0 0.0
    %2003 = vmatprep.subr.mxu0 0.0
    %2004 = vmatpush1.msra.mxu0 0.0
    %2005 = vmatprep.subr.mxu0 0.0
    %2006 = vmatpush1.msra.mxu0 0.0
    %2007 = vmatprep.subr.mxu0 0.0
    %2008 = vmatpush1.msra.mxu0 0.0
    %2009 = vmatprep.subr.mxu0 0.0
    %2010 = vmatpush1.msra.mxu0 0.0
    %2011 = vmatprep.subr.mxu0 0.0
    %2012 = vmatpush1.msra.mxu0 0.0
    %2013 = vmatprep.mubr.f32.mxu0 0.0
    %2014 = vmatmul.mubr.f32.gmra.mrb[0].mxu0 %v1755
    %v2015 = vpop.f32.mrb[0].mxu0
    %v2016 = vadd.f32 0.0, %v2015
    %v2017 = vpop.f32.mrb[0].mxu0
    %v2018 = vadd.f32 0.0, %v2017
    %2019 = vdwg.mxu0
    %2020 = vmatprep.subr.mxu0 %v962
    %2021 = vmatpush1.msra.mxu0 %v961
    %2022 = vmatprep.subr.mxu0 %v966
    %2023 = vmatpush1.msra.mxu0 %v965
    %2024 = vmatprep.subr.mxu0 %v970
    %2025 = vmatpush1.msra.mxu0 %v969
    %2026 = vmatprep.subr.mxu0 %v974
    %2027 = vmatpush1.msra.mxu0 %v973
    %2028 = vmatprep.subr.mxu0 %v978
    %2029 = vmatpush1.msra.mxu0 %v977
    %2030 = vmatprep.subr.mxu0 %v982
    %2031 = vmatpush1.msra.mxu0 %v981
    %2032 = vmatprep.subr.mxu0 %v986
    %2033 = vmatpush1.msra.mxu0 %v985
    %2034 = vmatprep.subr.mxu0 %v990
    %2035 = vmatpush1.msra.mxu0 %v989
    %2036 = vmatprep.subr.mxu0 %v994
    %2037 = vmatpush1.msra.mxu0 %v993
    %2038 = vmatprep.subr.mxu0 %v998
    %2039 = vmatpush1.msra.mxu0 %v997
    %2040 = vmatprep.subr.mxu0 %v1002
    %2041 = vmatpush1.msra.mxu0 %v1001
    %2042 = vmatprep.subr.mxu0 %v1006
    %2043 = vmatpush1.msra.mxu0 %v1005
    %2044 = vmatprep.subr.mxu0 %v1010
    %2045 = vmatpush1.msra.mxu0 %v1009
    %2046 = vmatprep.subr.mxu0 %v1014
    %2047 = vmatpush1.msra.mxu0 %v1013
    %2048 = vmatprep.subr.mxu0 %v1018
    %2049 = vmatpush1.msra.mxu0 %v1017
    %2050 = vmatprep.subr.mxu0 %v1022
    %2051 = vmatpush1.msra.mxu0 %v1021
    %2052 = vmatprep.subr.mxu0 0.0
    %2053 = vmatpush1.msra.mxu0 0.0
    %2054 = vmatprep.subr.mxu0 0.0
    %2055 = vmatpush1.msra.mxu0 0.0
    %2056 = vmatprep.subr.mxu0 0.0
    %2057 = vmatpush1.msra.mxu0 0.0
    %2058 = vmatprep.subr.mxu0 0.0
    %2059 = vmatpush1.msra.mxu0 0.0
    %2060 = vmatprep.subr.mxu0 0.0
    %2061 = vmatpush1.msra.mxu0 0.0
    %2062 = vmatprep.subr.mxu0 0.0
    %2063 = vmatpush1.msra.mxu0 0.0
    %2064 = vmatprep.subr.mxu0 0.0
    %2065 = vmatpush1.msra.mxu0 0.0
    %2066 = vmatprep.subr.mxu0 0.0
    %2067 = vmatpush1.msra.mxu0 0.0
    %2068 = vmatprep.subr.mxu0 0.0
    %2069 = vmatpush1.msra.mxu0 0.0
    %2070 = vmatprep.subr.mxu0 0.0
    %2071 = vmatpush1.msra.mxu0 0.0
    %2072 = vmatprep.subr.mxu0 0.0
    %2073 = vmatpush1.msra.mxu0 0.0
    %2074 = vmatprep.subr.mxu0 0.0
    %2075 = vmatpush1.msra.mxu0 0.0
    %2076 = vmatprep.subr.mxu0 0.0
    %2077 = vmatpush1.msra.mxu0 0.0
    %2078 = vmatprep.subr.mxu0 0.0
    %2079 = vmatpush1.msra.mxu0 0.0
    %2080 = vmatprep.subr.mxu0 0.0
    %2081 = vmatpush1.msra.mxu0 0.0
    %2082 = vmatprep.subr.mxu0 0.0
    %2083 = vmatpush1.msra.mxu0 0.0
    %2084 = vmatprep.mubr.f32.mxu0 0.0
    %2085 = vmatmul.mubr.f32.gmra.mrb[0].mxu0 %v1755
    %v2086 = vpop.f32.mrb[0].mxu0
    %v2087 = vadd.f32 0.0, %v2086
    %v2088 = vpop.f32.mrb[0].mxu0
    %v2089 = vadd.f32 0.0, %v2088
    %2090 = vdwg.mxu0
    %v2091 = vadd.f32 %v1945, %v2016
    %v2092 = vadd.f32 %v1946, %v2018
    %v2093 = vadd.f32 %v1947, %v2087
    %v2094 = vadd.f32 %v1948, %v2089
    %v2095 = vxor.u32 %v2091, 2147483648
    %v2096 = vmul.f32 %v2095, 1.442695
    %v2097 = vpow.pop %v2096
    %v2098 = vadd.f32 %v2097, 1.0
    %v2099 = vrcp.pop %v2098
    %v2100 = vmul.f32 1.0, %v2099
    %v2101 = vxor.u32 %v2092, 2147483648
    %v2102 = vmul.f32 %v2101, 1.442695
    %v2103 = vpow.pop %v2102
    %v2104 = vadd.f32 %v2103, 1.0
    %v2105 = vrcp.pop %v2104
    %v2106 = vmul.f32 1.0, %v2105
    %v2107 = vtanh.pop %v2093
    %v2108 = vxor.u32 %v2094, 2147483648
    %v2109 = vmul.f32 %v2108, 1.442695
    %v2110 = vpow.pop %v2109
    %v2111 = vadd.f32 %v2110, 1.0
    %v2112 = vrcp.pop %v2111
    %v2113 = vmul.f32 1.0, %v2112
    %v2114 = vmul.f32 %v2106, %v1756
    %v2115 = vmul.f32 %v2100, %v2107
    %v2116 = vadd.f32 %v2114, %v2115
    %v2117 = vtanh.pop %v2116
    %v2118 = vmul.f32 %v2113, %v2117
    %vm2119 = vcmp.gt.s32.totalorder %v198, 5
    %v2120 = vsel %vm2119, 1, 0
    %2121 = vset.pattern.permute.xlu0 0
    %2122 = vperm.xlu0 %2121, %v2120
    %v2123 = vpop.permute.xlu0 %2122
    %vm2124 = vcmp.eq.s32.totalorder %v2123, 1
    %v2125 = vsel %vm2124, %v2118, %v1755
    %v2126 = vsel %vm2124, %v2116, %v1756
    %s2127 = scalar_lea.vmem [#allocation2], 32
    %2128 = vst [vmem:[%s2127] sm:$0xff] %v1942
    %s2129 = scalar_lea.vmem [#allocation2], 80
    %2130 = vst [vmem:[%s2129 + $0x8] sm:$0xff] %v2125
    %s2131 = scalar_lea.vmem [#allocation3], 96
    %v2132 = vld [vmem:[%s2131] sm:$0xff]
    %v2133 = vld [vmem:[%s2131 + $0x8] sm:$0xff]
    %v2134 = vld [vmem:[%s2131 + $0x10] sm:$0xff]
    %v2135 = vld [vmem:[%s2131 + $0x18] sm:$0xff]
    %2136 = vmatprep.subr.mxu0 %v896
    %2137 = vmatpush1.msra.mxu0 %v895
    %2138 = vmatprep.subr.mxu0 %v900
    %2139 = vmatpush1.msra.mxu0 %v899
    %2140 = vmatprep.subr.mxu0 %v904
    %2141 = vmatpush1.msra.mxu0 %v903
    %2142 = vmatprep.subr.mxu0 %v908
    %2143 = vmatpush1.msra.mxu0 %v907
    %2144 = vmatprep.subr.mxu0 %v912
    %2145 = vmatpush1.msra.mxu0 %v911
    %2146 = vmatprep.subr.mxu0 %v916
    %2147 = vmatpush1.msra.mxu0 %v915
    %2148 = vmatprep.subr.mxu0 %v920
    %2149 = vmatpush1.msra.mxu0 %v919
    %2150 = vmatprep.subr.mxu0 %v924
    %2151 = vmatpush1.msra.mxu0 %v923
    %2152 = vmatprep.subr.mxu0 %v928
    %2153 = vmatpush1.msra.mxu0 %v927
    %2154 = vmatprep.subr.mxu0 %v932
    %2155 = vmatpush1.msra.mxu0 %v931
    %2156 = vmatprep.subr.mxu0 %v936
    %2157 = vmatpush1.msra.mxu0 %v935
    %2158 = vmatprep.subr.mxu0 %v940
    %2159 = vmatpush1.msra.mxu0 %v939
    %2160 = vmatprep.subr.mxu0 %v944
    %2161 = vmatpush1.msra.mxu0 %v943
    %2162 = vmatprep.subr.mxu0 %v948
    %2163 = vmatpush1.msra.mxu0 %v947
    %2164 = vmatprep.subr.mxu0 %v952
    %2165 = vmatpush1.msra.mxu0 %v951
    %2166 = vmatprep.subr.mxu0 %v956
    %2167 = vmatpush1.msra.mxu0 %v955
    %2168 = vmatprep.subr.mxu0 0.0
    %2169 = vmatpush1.msra.mxu0 0.0
    %2170 = vmatprep.subr.mxu0 0.0
    %2171 = vmatpush1.msra.mxu0 0.0
    %2172 = vmatprep.subr.mxu0 0.0
    %2173 = vmatpush1.msra.mxu0 0.0
    %2174 = vmatprep.subr.mxu0 0.0
    %2175 = vmatpush1.msra.mxu0 0.0
    %2176 = vmatprep.subr.mxu0 0.0
    %2177 = vmatpush1.msra.mxu0 0.0
    %2178 = vmatprep.subr.mxu0 0.0
    %2179 = vmatpush1.msra.mxu0 0.0
    %2180 = vmatprep.subr.mxu0 0.0
    %2181 = vmatpush1.msra.mxu0 0.0
    %2182 = vmatprep.subr.mxu0 0.0
    %2183 = vmatpush1.msra.mxu0 0.0
    %2184 = vmatprep.subr.mxu0 0.0
    %2185 = vmatpush1.msra.mxu0 0.0
    %2186 = vmatprep.subr.mxu0 0.0
    %2187 = vmatpush1.msra.mxu0 0.0
    %2188 = vmatprep.subr.mxu0 0.0
    %2189 = vmatpush1.msra.mxu0 0.0
    %2190 = vmatprep.subr.mxu0 0.0
    %2191 = vmatpush1.msra.mxu0 0.0
    %2192 = vmatprep.subr.mxu0 0.0
    %2193 = vmatpush1.msra.mxu0 0.0
    %2194 = vmatprep.subr.mxu0 0.0
    %2195 = vmatpush1.msra.mxu0 0.0
    %2196 = vmatprep.subr.mxu0 0.0
    %2197 = vmatpush1.msra.mxu0 0.0
    %2198 = vmatprep.subr.mxu0 0.0
    %2199 = vmatpush1.msra.mxu0 0.0
    %2200 = vmatprep.mubr.f32.mxu0 0.0
    %2201 = vmatmul.mubr.f32.gmra.mrb[0].mxu0 %v1942
    %v2202 = vpop.f32.mrb[0].mxu0
    %v2203 = vadd.f32 0.0, %v2202
    %v2204 = vpop.f32.mrb[0].mxu0
    %v2205 = vadd.f32 0.0, %v2204
    %2206 = vdwg.mxu0
    %2207 = vmatprep.subr.mxu0 %v898
    %2208 = vmatpush1.msra.mxu0 %v897
    %2209 = vmatprep.subr.mxu0 %v902
    %2210 = vmatpush1.msra.mxu0 %v901
    %2211 = vmatprep.subr.mxu0 %v906
    %2212 = vmatpush1.msra.mxu0 %v905
    %2213 = vmatprep.subr.mxu0 %v910
    %2214 = vmatpush1.msra.mxu0 %v909
    %2215 = vmatprep.subr.mxu0 %v914
    %2216 = vmatpush1.msra.mxu0 %v913
    %2217 = vmatprep.subr.mxu0 %v918
    %2218 = vmatpush1.msra.mxu0 %v917
    %2219 = vmatprep.subr.mxu0 %v922
    %2220 = vmatpush1.msra.mxu0 %v921
    %2221 = vmatprep.subr.mxu0 %v926
    %2222 = vmatpush1.msra.mxu0 %v925
    %2223 = vmatprep.subr.mxu0 %v930
    %2224 = vmatpush1.msra.mxu0 %v929
    %2225 = vmatprep.subr.mxu0 %v934
    %2226 = vmatpush1.msra.mxu0 %v933
    %2227 = vmatprep.subr.mxu0 %v938
    %2228 = vmatpush1.msra.mxu0 %v937
    %2229 = vmatprep.subr.mxu0 %v942
    %2230 = vmatpush1.msra.mxu0 %v941
    %2231 = vmatprep.subr.mxu0 %v946
    %2232 = vmatpush1.msra.mxu0 %v945
    %2233 = vmatprep.subr.mxu0 %v950
    %2234 = vmatpush1.msra.mxu0 %v949
    %2235 = vmatprep.subr.mxu0 %v954
    %2236 = vmatpush1.msra.mxu0 %v953
    %2237 = vmatprep.subr.mxu0 %v958
    %2238 = vmatpush1.msra.mxu0 %v957
    %2239 = vmatprep.subr.mxu0 0.0
    %2240 = vmatpush1.msra.mxu0 0.0
    %2241 = vmatprep.subr.mxu0 0.0
    %2242 = vmatpush1.msra.mxu0 0.0
    %2243 = vmatprep.subr.mxu0 0.0
    %2244 = vmatpush1.msra.mxu0 0.0
    %2245 = vmatprep.subr.mxu0 0.0
    %2246 = vmatpush1.msra.mxu0 0.0
    %2247 = vmatprep.subr.mxu0 0.0
    %2248 = vmatpush1.msra.mxu0 0.0
    %2249 = vmatprep.subr.mxu0 0.0
    %2250 = vmatpush1.msra.mxu0 0.0
    %2251 = vmatprep.subr.mxu0 0.0
    %2252 = vmatpush1.msra.mxu0 0.0
    %2253 = vmatprep.subr.mxu0 0.0
    %2254 = vmatpush1.msra.mxu0 0.0
    %2255 = vmatprep.subr.mxu0 0.0
    %2256 = vmatpush1.msra.mxu0 0.0
    %2257 = vmatprep.subr.mxu0 0.0
    %2258 = vmatpush1.msra.mxu0 0.0
    %2259 = vmatprep.subr.mxu0 0.0
    %2260 = vmatpush1.msra.mxu0 0.0
    %2261 = vmatprep.subr.mxu0 0.0
    %2262 = vmatpush1.msra.mxu0 0.0
    %2263 = vmatprep.subr.mxu0 0.0
    %2264 = vmatpush1.msra.mxu0 0.0
    %2265 = vmatprep.subr.mxu0 0.0
    %2266 = vmatpush1.msra.mxu0 0.0
    %2267 = vmatprep.subr.mxu0 0.0
    %2268 = vmatpush1.msra.mxu0 0.0
    %2269 = vmatprep.subr.mxu0 0.0
    %2270 = vmatpush1.msra.mxu0 0.0
    %2271 = vmatprep.mubr.f32.mxu0 0.0
    %2272 = vmatmul.mubr.f32.gmra.mrb[0].mxu0 %v1942
    %v2273 = vpop.f32.mrb[0].mxu0
    %v2274 = vadd.f32 0.0, %v2273
    %v2275 = vpop.f32.mrb[0].mxu0
    %v2276 = vadd.f32 0.0, %v2275
    %2277 = vdwg.mxu0
    %v2278 = vadd.f32 %v2132, %v2203
    %v2279 = vadd.f32 %v2133, %v2205
    %v2280 = vadd.f32 %v2134, %v2274
    %v2281 = vadd.f32 %v2135, %v2276
    %v2282 = vxor.u32 %v2278, 2147483648
    %v2283 = vmul.f32 %v2282, 1.442695
    %v2284 = vpow.pop %v2283
    %v2285 = vadd.f32 %v2284, 1.0
    %v2286 = vrcp.pop %v2285
    %v2287 = vmul.f32 1.0, %v2286
    %v2288 = vxor.u32 %v2279, 2147483648
    %v2289 = vmul.f32 %v2288, 1.442695
    %v2290 = vpow.pop %v2289
    %v2291 = vadd.f32 %v2290, 1.0
    %v2292 = vrcp.pop %v2291
    %v2293 = vmul.f32 1.0, %v2292
    %v2294 = vtanh.pop %v2280
    %v2295 = vxor.u32 %v2281, 2147483648
    %v2296 = vmul.f32 %v2295, 1.442695
    %v2297 = vpow.pop %v2296
    %v2298 = vadd.f32 %v2297, 1.0
    %v2299 = vrcp.pop %v2298
    %v2300 = vmul.f32 1.0, %v2299
    %v2301 = vmul.f32 %v2293, %v1943
    %v2302 = vmul.f32 %v2287, %v2294
    %v2303 = vadd.f32 %v2301, %v2302
    %v2304 = vtanh.pop %v2303
    %v2305 = vmul.f32 %v2300, %v2304
    %vm2306 = vcmp.gt.s32.totalorder %v198, 3
    %v2307 = vsel %vm2306, 1, 0
    %2308 = vset.pattern.permute.xlu0 0
    %2309 = vperm.xlu0 %2308, %v2307
    %v2310 = vpop.permute.xlu0 %2309
    %vm2311 = vcmp.eq.s32.totalorder %v2310, 1
    %v2312 = vsel %vm2311, %v2305, %v1942
    %v2313 = vsel %vm2311, %v2303, %v1943
    %s2314 = scalar_lea.vmem [#allocation4], 128
    %v2315 = vld [vmem:[%s2314] sm:$0xff]
    %v2316 = vld [vmem:[%s2314 + $0x8] sm:$0xff]
    %v2317 = vld [vmem:[%s2314 + $0x10] sm:$0xff]
    %v2318 = vld [vmem:[%s2314 + $0x18] sm:$0xff]
    %2319 = vmatprep.subr.mxu0 %v960
    %2320 = vmatpush1.msra.mxu0 %v959
    %2321 = vmatprep.subr.mxu0 %v964
    %2322 = vmatpush1.msra.mxu0 %v963
    %2323 = vmatprep.subr.mxu0 %v968
    %2324 = vmatpush1.msra.mxu0 %v967
    %2325 = vmatprep.subr.mxu0 %v972
    %2326 = vmatpush1.msra.mxu0 %v971
    %2327 = vmatprep.subr.mxu0 %v976
    %2328 = vmatpush1.msra.mxu0 %v975
    %2329 = vmatprep.subr.mxu0 %v980
    %2330 = vmatpush1.msra.mxu0 %v979
    %2331 = vmatprep.subr.mxu0 %v984
    %2332 = vmatpush1.msra.mxu0 %v983
    %2333 = vmatprep.subr.mxu0 %v988
    %2334 = vmatpush1.msra.mxu0 %v987
    %2335 = vmatprep.subr.mxu0 %v992
    %2336 = vmatpush1.msra.mxu0 %v991
    %2337 = vmatprep.subr.mxu0 %v996
    %2338 = vmatpush1.msra.mxu0 %v995
    %2339 = vmatprep.subr.mxu0 %v1000
    %2340 = vmatpush1.msra.mxu0 %v999
    %2341 = vmatprep.subr.mxu0 %v1004
    %2342 = vmatpush1.msra.mxu0 %v1003
    %2343 = vmatprep.subr.mxu0 %v1008
    %2344 = vmatpush1.msra.mxu0 %v1007
    %2345 = vmatprep.subr.mxu0 %v1012
    %2346 = vmatpush1.msra.mxu0 %v1011
    %2347 = vmatprep.subr.mxu0 %v1016
    %2348 = vmatpush1.msra.mxu0 %v1015
    %2349 = vmatprep.subr.mxu0 %v1020
    %2350 = vmatpush1.msra.mxu0 %v1019
    %2351 = vmatprep.subr.mxu0 0.0
    %2352 = vmatpush1.msra.mxu0 0.0
    %2353 = vmatprep.subr.mxu0 0.0
    %2354 = vmatpush1.msra.mxu0 0.0
    %2355 = vmatprep.subr.mxu0 0.0
    %2356 = vmatpush1.msra.mxu0 0.0
    %2357 = vmatprep.subr.mxu0 0.0
    %2358 = vmatpush1.msra.mxu0 0.0
    %2359 = vmatprep.subr.mxu0 0.0
    %2360 = vmatpush1.msra.mxu0 0.0
    %2361 = vmatprep.subr.mxu0 0.0
    %2362 = vmatpush1.msra.mxu0 0.0
    %2363 = vmatprep.subr.mxu0 0.0
    %2364 = vmatpush1.msra.mxu0 0.0
    %2365 = vmatprep.subr.mxu0 0.0
    %2366 = vmatpush1.msra.mxu0 0.0
    %2367 = vmatprep.subr.mxu0 0.0
    %2368 = vmatpush1.msra.mxu0 0.0
    %2369 = vmatprep.subr.mxu0 0.0
    %2370 = vmatpush1.msra.mxu0 0.0
    %2371 = vmatprep.subr.mxu0 0.0
    %2372 = vmatpush1.msra.mxu0 0.0
    %2373 = vmatprep.subr.mxu0 0.0
    %2374 = vmatpush1.msra.mxu0 0.0
    %2375 = vmatprep.subr.mxu0 0.0
    %2376 = vmatpush1.msra.mxu0 0.0
    %2377 = vmatprep.subr.mxu0 0.0
    %2378 = vmatpush1.msra.mxu0 0.0
    %2379 = vmatprep.subr.mxu0 0.0
    %2380 = vmatpush1.msra.mxu0 0.0
    %2381 = vmatprep.subr.mxu0 0.0
    %2382 = vmatpush1.msra.mxu0 0.0
    %2383 = vmatprep.mubr.f32.mxu0 0.0
    %2384 = vmatmul.mubr.f32.gmra.mrb[0].mxu0 %v2125
    %v2385 = vpop.f32.mrb[0].mxu0
    %v2386 = vadd.f32 0.0, %v2385
    %v2387 = vpop.f32.mrb[0].mxu0
    %v2388 = vadd.f32 0.0, %v2387
    %2389 = vdwg.mxu0
    %2390 = vmatprep.subr.mxu0 %v962
    %2391 = vmatpush1.msra.mxu0 %v961
    %2392 = vmatprep.subr.mxu0 %v966
    %2393 = vmatpush1.msra.mxu0 %v965
    %2394 = vmatprep.subr.mxu0 %v970
    %2395 = vmatpush1.msra.mxu0 %v969
    %2396 = vmatprep.subr.mxu0 %v974
    %2397 = vmatpush1.msra.mxu0 %v973
    %2398 = vmatprep.subr.mxu0 %v978
    %2399 = vmatpush1.msra.mxu0 %v977
    %2400 = vmatprep.subr.mxu0 %v982
    %2401 = vmatpush1.msra.mxu0 %v981
    %2402 = vmatprep.subr.mxu0 %v986
    %2403 = vmatpush1.msra.mxu0 %v985
    %2404 = vmatprep.subr.mxu0 %v990
    %2405 = vmatpush1.msra.mxu0 %v989
    %2406 = vmatprep.subr.mxu0 %v994
    %2407 = vmatpush1.msra.mxu0 %v993
    %2408 = vmatprep.subr.mxu0 %v998
    %2409 = vmatpush1.msra.mxu0 %v997
    %2410 = vmatprep.subr.mxu0 %v1002
    %2411 = vmatpush1.msra.mxu0 %v1001
    %2412 = vmatprep.subr.mxu0 %v1006
    %2413 = vmatpush1.msra.mxu0 %v1005
    %2414 = vmatprep.subr.mxu0 %v1010
    %2415 = vmatpush1.msra.mxu0 %v1009
    %2416 = vmatprep.subr.mxu0 %v1014
    %2417 = vmatpush1.msra.mxu0 %v1013
    %2418 = vmatprep.subr.mxu0 %v1018
    %2419 = vmatpush1.msra.mxu0 %v1017
    %2420 = vmatprep.subr.mxu0 %v1022
    %2421 = vmatpush1.msra.mxu0 %v1021
    %2422 = vmatprep.subr.mxu0 0.0
    %2423 = vmatpush1.msra.mxu0 0.0
    %2424 = vmatprep.subr.mxu0 0.0
    %2425 = vmatpush1.msra.mxu0 0.0
    %2426 = vmatprep.subr.mxu0 0.0
    %2427 = vmatpush1.msra.mxu0 0.0
    %2428 = vmatprep.subr.mxu0 0.0
    %2429 = vmatpush1.msra.mxu0 0.0
    %2430 = vmatprep.subr.mxu0 0.0
    %2431 = vmatpush1.msra.mxu0 0.0
    %2432 = vmatprep.subr.mxu0 0.0
    %2433 = vmatpush1.msra.mxu0 0.0
    %2434 = vmatprep.subr.mxu0 0.0
    %2435 = vmatpush1.msra.mxu0 0.0
    %2436 = vmatprep.subr.mxu0 0.0
    %2437 = vmatpush1.msra.mxu0 0.0
    %2438 = vmatprep.subr.mxu0 0.0
    %2439 = vmatpush1.msra.mxu0 0.0
    %2440 = vmatprep.subr.mxu0 0.0
    %2441 = vmatpush1.msra.mxu0 0.0
    %2442 = vmatprep.subr.mxu0 0.0
    %2443 = vmatpush1.msra.mxu0 0.0
    %2444 = vmatprep.subr.mxu0 0.0
    %2445 = vmatpush1.msra.mxu0 0.0
    %2446 = vmatprep.subr.mxu0 0.0
    %2447 = vmatpush1.msra.mxu0 0.0
    %2448 = vmatprep.subr.mxu0 0.0
    %2449 = vmatpush1.msra.mxu0 0.0
    %2450 = vmatprep.subr.mxu0 0.0
    %2451 = vmatpush1.msra.mxu0 0.0
    %2452 = vmatprep.subr.mxu0 0.0
    %2453 = vmatpush1.msra.mxu0 0.0
    %2454 = vmatprep.mubr.f32.mxu0 0.0
    %2455 = vmatmul.mubr.f32.gmra.mrb[0].mxu0 %v2125
    %v2456 = vpop.f32.mrb[0].mxu0
    %v2457 = vadd.f32 0.0, %v2456
    %v2458 = vpop.f32.mrb[0].mxu0
    %v2459 = vadd.f32 0.0, %v2458
    %2460 = vdwg.mxu0
    %v2461 = vadd.f32 %v2315, %v2386
    %v2462 = vadd.f32 %v2316, %v2388
    %v2463 = vadd.f32 %v2317, %v2457
    %v2464 = vadd.f32 %v2318, %v2459
    %v2465 = vxor.u32 %v2461, 2147483648
    %v2466 = vmul.f32 %v2465, 1.442695
    %v2467 = vpow.pop %v2466
    %v2468 = vadd.f32 %v2467, 1.0
    %v2469 = vrcp.pop %v2468
    %v2470 = vmul.f32 1.0, %v2469
    %v2471 = vxor.u32 %v2462, 2147483648
    %v2472 = vmul.f32 %v2471, 1.442695
    %v2473 = vpow.pop %v2472
    %v2474 = vadd.f32 %v2473, 1.0
    %v2475 = vrcp.pop %v2474
    %v2476 = vmul.f32 1.0, %v2475
    %v2477 = vtanh.pop %v2463
    %v2478 = vxor.u32 %v2464, 2147483648
    %v2479 = vmul.f32 %v2478, 1.442695
    %v2480 = vpow.pop %v2479
    %v2481 = vadd.f32 %v2480, 1.0
    %v2482 = vrcp.pop %v2481
    %v2483 = vmul.f32 1.0, %v2482
    %v2484 = vmul.f32 %v2476, %v2126
    %v2485 = vmul.f32 %v2470, %v2477
    %v2486 = vadd.f32 %v2484, %v2485
    %v2487 = vtanh.pop %v2486
    %v2488 = vmul.f32 %v2483, %v2487
    %vm2489 = vcmp.gt.s32.totalorder %v198, 4
    %v2490 = vsel %vm2489, 1, 0
    %2491 = vset.pattern.permute.xlu0 0
    %2492 = vperm.xlu0 %2491, %v2490
    %v2493 = vpop.permute.xlu0 %2492
    %vm2494 = vcmp.eq.s32.totalorder %v2493, 1
    %v2495 = vsel %vm2494, %v2488, %v2125
    %v2496 = vsel %vm2494, %v2486, %v2126
    %s2497 = scalar_lea.vmem [#allocation2], 48
    %2498 = vst [vmem:[%s2497] sm:$0xff] %v2312
    %s2499 = scalar_lea.vmem [#allocation2], 64
    %2500 = vst [vmem:[%s2499 + $0x8] sm:$0xff] %v2495
    %s2501 = scalar_lea.vmem [#allocation3], 128
    %v2502 = vld [vmem:[%s2501] sm:$0xff]
    %v2503 = vld [vmem:[%s2501 + $0x8] sm:$0xff]
    %v2504 = vld [vmem:[%s2501 + $0x10] sm:$0xff]
    %v2505 = vld [vmem:[%s2501 + $0x18] sm:$0xff]
    %2506 = vmatprep.subr.mxu0 %v896
    %2507 = vmatpush1.msra.mxu0 %v895
    %2508 = vmatprep.subr.mxu0 %v900
    %2509 = vmatpush1.msra.mxu0 %v899
    %2510 = vmatprep.subr.mxu0 %v904
    %2511 = vmatpush1.msra.mxu0 %v903
    %2512 = vmatprep.subr.mxu0 %v908
    %2513 = vmatpush1.msra.mxu0 %v907
    %2514 = vmatprep.subr.mxu0 %v912
    %2515 = vmatpush1.msra.mxu0 %v911
    %2516 = vmatprep.subr.mxu0 %v916
    %2517 = vmatpush1.msra.mxu0 %v915
    %2518 = vmatprep.subr.mxu0 %v920
    %2519 = vmatpush1.msra.mxu0 %v919
    %2520 = vmatprep.subr.mxu0 %v924
    %2521 = vmatpush1.msra.mxu0 %v923
    %2522 = vmatprep.subr.mxu0 %v928
    %2523 = vmatpush1.msra.mxu0 %v927
    %2524 = vmatprep.subr.mxu0 %v932
    %2525 = vmatpush1.msra.mxu0 %v931
    %2526 = vmatprep.subr.mxu0 %v936
    %2527 = vmatpush1.msra.mxu0 %v935
    %2528 = vmatprep.subr.mxu0 %v940
    %2529 = vmatpush1.msra.mxu0 %v939
    %2530 = vmatprep.subr.mxu0 %v944
    %2531 = vmatpush1.msra.mxu0 %v943
    %2532 = vmatprep.subr.mxu0 %v948
    %2533 = vmatpush1.msra.mxu0 %v947
    %2534 = vmatprep.subr.mxu0 %v952
    %2535 = vmatpush1.msra.mxu0 %v951
    %2536 = vmatprep.subr.mxu0 %v956
    %2537 = vmatpush1.msra.mxu0 %v955
    %2538 = vmatprep.subr.mxu0 0.0
    %2539 = vmatpush1.msra.mxu0 0.0
    %2540 = vmatprep.subr.mxu0 0.0
    %2541 = vmatpush1.msra.mxu0 0.0
    %2542 = vmatprep.subr.mxu0 0.0
    %2543 = vmatpush1.msra.mxu0 0.0
    %2544 = vmatprep.subr.mxu0 0.0
    %2545 = vmatpush1.msra.mxu0 0.0
    %2546 = vmatprep.subr.mxu0 0.0
    %2547 = vmatpush1.msra.mxu0 0.0
    %2548 = vmatprep.subr.mxu0 0.0
    %2549 = vmatpush1.msra.mxu0 0.0
    %2550 = vmatprep.subr.mxu0 0.0
    %2551 = vmatpush1.msra.mxu0 0.0
    %2552 = vmatprep.subr.mxu0 0.0
    %2553 = vmatpush1.msra.mxu0 0.0
    %2554 = vmatprep.subr.mxu0 0.0
    %2555 = vmatpush1.msra.mxu0 0.0
    %2556 = vmatprep.subr.mxu0 0.0
    %2557 = vmatpush1.msra.mxu0 0.0
    %2558 = vmatprep.subr.mxu0 0.0
    %2559 = vmatpush1.msra.mxu0 0.0
    %2560 = vmatprep.subr.mxu0 0.0
    %2561 = vmatpush1.msra.mxu0 0.0
    %2562 = vmatprep.subr.mxu0 0.0
    %2563 = vmatpush1.msra.mxu0 0.0
    %2564 = vmatprep.subr.mxu0 0.0
    %2565 = vmatpush1.msra.mxu0 0.0
    %2566 = vmatprep.subr.mxu0 0.0
    %2567 = vmatpush1.msra.mxu0 0.0
    %2568 = vmatprep.subr.mxu0 0.0
    %2569 = vmatpush1.msra.mxu0 0.0
    %2570 = vmatprep.mubr.f32.mxu0 0.0
    %2571 = vmatmul.mubr.f32.gmra.mrb[0].mxu0 %v2312
    %v2572 = vpop.f32.mrb[0].mxu0
    %v2573 = vadd.f32 0.0, %v2572
    %v2574 = vpop.f32.mrb[0].mxu0
    %v2575 = vadd.f32 0.0, %v2574
    %2576 = vdwg.mxu0
    %2577 = vmatprep.subr.mxu0 %v898
    %2578 = vmatpush1.msra.mxu0 %v897
    %2579 = vmatprep.subr.mxu0 %v902
    %2580 = vmatpush1.msra.mxu0 %v901
    %2581 = vmatprep.subr.mxu0 %v906
    %2582 = vmatpush1.msra.mxu0 %v905
    %2583 = vmatprep.subr.mxu0 %v910
    %2584 = vmatpush1.msra.mxu0 %v909
    %2585 = vmatprep.subr.mxu0 %v914
    %2586 = vmatpush1.msra.mxu0 %v913
    %2587 = vmatprep.subr.mxu0 %v918
    %2588 = vmatpush1.msra.mxu0 %v917
    %2589 = vmatprep.subr.mxu0 %v922
    %2590 = vmatpush1.msra.mxu0 %v921
    %2591 = vmatprep.subr.mxu0 %v926
    %2592 = vmatpush1.msra.mxu0 %v925
    %2593 = vmatprep.subr.mxu0 %v930
    %2594 = vmatpush1.msra.mxu0 %v929
    %2595 = vmatprep.subr.mxu0 %v934
    %2596 = vmatpush1.msra.mxu0 %v933
    %2597 = vmatprep.subr.mxu0 %v938
    %2598 = vmatpush1.msra.mxu0 %v937
    %2599 = vmatprep.subr.mxu0 %v942
    %2600 = vmatpush1.msra.mxu0 %v941
    %2601 = vmatprep.subr.mxu0 %v946
    %2602 = vmatpush1.msra.mxu0 %v945
    %2603 = vmatprep.subr.mxu0 %v950
    %2604 = vmatpush1.msra.mxu0 %v949
    %2605 = vmatprep.subr.mxu0 %v954
    %2606 = vmatpush1.msra.mxu0 %v953
    %2607 = vmatprep.subr.mxu0 %v958
    %2608 = vmatpush1.msra.mxu0 %v957
    %2609 = vmatprep.subr.mxu0 0.0
    %2610 = vmatpush1.msra.mxu0 0.0
    %2611 = vmatprep.subr.mxu0 0.0
    %2612 = vmatpush1.msra.mxu0 0.0
    %2613 = vmatprep.subr.mxu0 0.0
    %2614 = vmatpush1.msra.mxu0 0.0
    %2615 = vmatprep.subr.mxu0 0.0
    %2616 = vmatpush1.msra.mxu0 0.0
    %2617 = vmatprep.subr.mxu0 0.0
    %2618 = vmatpush1.msra.mxu0 0.0
    %2619 = vmatprep.subr.mxu0 0.0
    %2620 = vmatpush1.msra.mxu0 0.0
    %2621 = vmatprep.subr.mxu0 0.0
    %2622 = vmatpush1.msra.mxu0 0.0
    %2623 = vmatprep.subr.mxu0 0.0
    %2624 = vmatpush1.msra.mxu0 0.0
    %2625 = vmatprep.subr.mxu0 0.0
    %2626 = vmatpush1.msra.mxu0 0.0
    %2627 = vmatprep.subr.mxu0 0.0
    %2628 = vmatpush1.msra.mxu0 0.0
    %2629 = vmatprep.subr.mxu0 0.0
    %2630 = vmatpush1.msra.mxu0 0.0
    %2631 = vmatprep.subr.mxu0 0.0
    %2632 = vmatpush1.msra.mxu0 0.0
    %2633 = vmatprep.subr.mxu0 0.0
    %2634 = vmatpush1.msra.mxu0 0.0
    %2635 = vmatprep.subr.mxu0 0.0
    %2636 = vmatpush1.msra.mxu0 0.0
    %2637 = vmatprep.subr.mxu0 0.0
    %2638 = vmatpush1.msra.mxu0 0.0
    %2639 = vmatprep.subr.mxu0 0.0
    %2640 = vmatpush1.msra.mxu0 0.0
    %2641 = vmatprep.mubr.f32.mxu0 0.0
    %2642 = vmatmul.mubr.f32.gmra.mrb[0].mxu0 %v2312
    %v2643 = vpop.f32.mrb[0].mxu0
    %v2644 = vadd.f32 0.0, %v2643
    %v2645 = vpop.f32.mrb[0].mxu0
    %v2646 = vadd.f32 0.0, %v2645
    %2647 = vdwg.mxu0
    %v2648 = vadd.f32 %v2502, %v2573
    %v2649 = vadd.f32 %v2503, %v2575
    %v2650 = vadd.f32 %v2504, %v2644
    %v2651 = vadd.f32 %v2505, %v2646
    %v2652 = vxor.u32 %v2648, 2147483648
    %v2653 = vmul.f32 %v2652, 1.442695
    %v2654 = vpow.pop %v2653
    %v2655 = vadd.f32 %v2654, 1.0
    %v2656 = vrcp.pop %v2655
    %v2657 = vmul.f32 1.0, %v2656
    %v2658 = vxor.u32 %v2649, 2147483648
    %v2659 = vmul.f32 %v2658, 1.442695
    %v2660 = vpow.pop %v2659
    %v2661 = vadd.f32 %v2660, 1.0
    %v2662 = vrcp.pop %v2661
    %v2663 = vmul.f32 1.0, %v2662
    %v2664 = vtanh.pop %v2650
    %v2665 = vxor.u32 %v2651, 2147483648
    %v2666 = vmul.f32 %v2665, 1.442695
    %v2667 = vpow.pop %v2666
    %v2668 = vadd.f32 %v2667, 1.0
    %v2669 = vrcp.pop %v2668
    %v2670 = vmul.f32 1.0, %v2669
    %v2671 = vmul.f32 %v2663, %v2313
    %v2672 = vmul.f32 %v2657, %v2664
    %v2673 = vadd.f32 %v2671, %v2672
    %v2674 = vtanh.pop %v2673
    %v2675 = vmul.f32 %v2670, %v2674
    %v2676 = vsel %vm2494, %v2675, %v2312
    %v2677 = vsel %vm2494, %v2673, %v2313
    %s2678 = scalar_lea.vmem [#allocation4], 96
    %v2679 = vld [vmem:[%s2678] sm:$0xff]
    %v2680 = vld [vmem:[%s2678 + $0x8] sm:$0xff]
    %v2681 = vld [vmem:[%s2678 + $0x10] sm:$0xff]
    %v2682 = vld [vmem:[%s2678 + $0x18] sm:$0xff]
    %2683 = vmatprep.subr.mxu0 %v960
    %2684 = vmatpush1.msra.mxu0 %v959
    %2685 = vmatprep.subr.mxu0 %v964
    %2686 = vmatpush1.msra.mxu0 %v963
    %2687 = vmatprep.subr.mxu0 %v968
    %2688 = vmatpush1.msra.mxu0 %v967
    %2689 = vmatprep.subr.mxu0 %v972
    %2690 = vmatpush1.msra.mxu0 %v971
    %2691 = vmatprep.subr.mxu0 %v976
    %2692 = vmatpush1.msra.mxu0 %v975
    %2693 = vmatprep.subr.mxu0 %v980
    %2694 = vmatpush1.msra.mxu0 %v979
    %2695 = vmatprep.subr.mxu0 %v984
    %2696 = vmatpush1.msra.mxu0 %v983
    %2697 = vmatprep.subr.mxu0 %v988
    %2698 = vmatpush1.msra.mxu0 %v987
    %2699 = vmatprep.subr.mxu0 %v992
    %2700 = vmatpush1.msra.mxu0 %v991
    %2701 = vmatprep.subr.mxu0 %v996
    %2702 = vmatpush1.msra.mxu0 %v995
    %2703 = vmatprep.subr.mxu0 %v1000
    %2704 = vmatpush1.msra.mxu0 %v999
    %2705 = vmatprep.subr.mxu0 %v1004
    %2706 = vmatpush1.msra.mxu0 %v1003
    %2707 = vmatprep.subr.mxu0 %v1008
    %2708 = vmatpush1.msra.mxu0 %v1007
    %2709 = vmatprep.subr.mxu0 %v1012
    %2710 = vmatpush1.msra.mxu0 %v1011
    %2711 = vmatprep.subr.mxu0 %v1016
    %2712 = vmatpush1.msra.mxu0 %v1015
    %2713 = vmatprep.subr.mxu0 %v1020
    %2714 = vmatpush1.msra.mxu0 %v1019
    %2715 = vmatprep.subr.mxu0 0.0
    %2716 = vmatpush1.msra.mxu0 0.0
    %2717 = vmatprep.subr.mxu0 0.0
    %2718 = vmatpush1.msra.mxu0 0.0
    %2719 = vmatprep.subr.mxu0 0.0
    %2720 = vmatpush1.msra.mxu0 0.0
    %2721 = vmatprep.subr.mxu0 0.0
    %2722 = vmatpush1.msra.mxu0 0.0
    %2723 = vmatprep.subr.mxu0 0.0
    %2724 = vmatpush1.msra.mxu0 0.0
    %2725 = vmatprep.subr.mxu0 0.0
    %2726 = vmatpush1.msra.mxu0 0.0
    %2727 = vmatprep.subr.mxu0 0.0
    %2728 = vmatpush1.msra.mxu0 0.0
    %2729 = vmatprep.subr.mxu0 0.0
    %2730 = vmatpush1.msra.mxu0 0.0
    %2731 = vmatprep.subr.mxu0 0.0
    %2732 = vmatpush1.msra.mxu0 0.0
    %2733 = vmatprep.subr.mxu0 0.0
    %2734 = vmatpush1.msra.mxu0 0.0
    %2735 = vmatprep.subr.mxu0 0.0
    %2736 = vmatpush1.msra.mxu0 0.0
    %2737 = vmatprep.subr.mxu0 0.0
    %2738 = vmatpush1.msra.mxu0 0.0
    %2739 = vmatprep.subr.mxu0 0.0
    %2740 = vmatpush1.msra.mxu0 0.0
    %2741 = vmatprep.subr.mxu0 0.0
    %2742 = vmatpush1.msra.mxu0 0.0
    %2743 = vmatprep.subr.mxu0 0.0
    %2744 = vmatpush1.msra.mxu0 0.0
    %2745 = vmatprep.subr.mxu0 0.0
    %2746 = vmatpush1.msra.mxu0 0.0
    %2747 = vmatprep.mubr.f32.mxu0 0.0
    %2748 = vmatmul.mubr.f32.gmra.mrb[0].mxu0 %v2495
    %v2749 = vpop.f32.mrb[0].mxu0
    %v2750 = vadd.f32 0.0, %v2749
    %v2751 = vpop.f32.mrb[0].mxu0
    %v2752 = vadd.f32 0.0, %v2751
    %2753 = vdwg.mxu0
    %2754 = vmatprep.subr.mxu0 %v962
    %2755 = vmatpush1.msra.mxu0 %v961
    %2756 = vmatprep.subr.mxu0 %v966
    %2757 = vmatpush1.msra.mxu0 %v965
    %2758 = vmatprep.subr.mxu0 %v970
    %2759 = vmatpush1.msra.mxu0 %v969
    %2760 = vmatprep.subr.mxu0 %v974
    %2761 = vmatpush1.msra.mxu0 %v973
    %2762 = vmatprep.subr.mxu0 %v978
    %2763 = vmatpush1.msra.mxu0 %v977
    %2764 = vmatprep.subr.mxu0 %v982
    %2765 = vmatpush1.msra.mxu0 %v981
    %2766 = vmatprep.subr.mxu0 %v986
    %2767 = vmatpush1.msra.mxu0 %v985
    %2768 = vmatprep.subr.mxu0 %v990
    %2769 = vmatpush1.msra.mxu0 %v989
    %2770 = vmatprep.subr.mxu0 %v994
    %2771 = vmatpush1.msra.mxu0 %v993
    %2772 = vmatprep.subr.mxu0 %v998
    %2773 = vmatpush1.msra.mxu0 %v997
    %2774 = vmatprep.subr.mxu0 %v1002
    %2775 = vmatpush1.msra.mxu0 %v1001
    %2776 = vmatprep.subr.mxu0 %v1006
    %2777 = vmatpush1.msra.mxu0 %v1005
    %2778 = vmatprep.subr.mxu0 %v1010
    %2779 = vmatpush1.msra.mxu0 %v1009
    %2780 = vmatprep.subr.mxu0 %v1014
    %2781 = vmatpush1.msra.mxu0 %v1013
    %2782 = vmatprep.subr.mxu0 %v1018
    %2783 = vmatpush1.msra.mxu0 %v1017
    %2784 = vmatprep.subr.mxu0 %v1022
    %2785 = vmatpush1.msra.mxu0 %v1021
    %2786 = vmatprep.subr.mxu0 0.0
    %2787 = vmatpush1.msra.mxu0 0.0
    %2788 = vmatprep.subr.mxu0 0.0
    %2789 = vmatpush1.msra.mxu0 0.0
    %2790 = vmatprep.subr.mxu0 0.0
    %2791 = vmatpush1.msra.mxu0 0.0
    %2792 = vmatprep.subr.mxu0 0.0
    %2793 = vmatpush1.msra.mxu0 0.0
    %2794 = vmatprep.subr.mxu0 0.0
    %2795 = vmatpush1.msra.mxu0 0.0
    %2796 = vmatprep.subr.mxu0 0.0
    %2797 = vmatpush1.msra.mxu0 0.0
    %2798 = vmatprep.subr.mxu0 0.0
    %2799 = vmatpush1.msra.mxu0 0.0
    %2800 = vmatprep.subr.mxu0 0.0
    %2801 = vmatpush1.msra.mxu0 0.0
    %2802 = vmatprep.subr.mxu0 0.0
    %2803 = vmatpush1.msra.mxu0 0.0
    %2804 = vmatprep.subr.mxu0 0.0
    %2805 = vmatpush1.msra.mxu0 0.0
    %2806 = vmatprep.subr.mxu0 0.0
    %2807 = vmatpush1.msra.mxu0 0.0
    %2808 = vmatprep.subr.mxu0 0.0
    %2809 = vmatpush1.msra.mxu0 0.0
    %2810 = vmatprep.subr.mxu0 0.0
    %2811 = vmatpush1.msra.mxu0 0.0
    %2812 = vmatprep.subr.mxu0 0.0
    %2813 = vmatpush1.msra.mxu0 0.0
    %2814 = vmatprep.subr.mxu0 0.0
    %2815 = vmatpush1.msra.mxu0 0.0
    %2816 = vmatprep.subr.mxu0 0.0
    %2817 = vmatpush1.msra.mxu0 0.0
    %2818 = vmatprep.mubr.f32.mxu0 0.0
    %2819 = vmatmul.mubr.f32.gmra.mrb[0].mxu0 %v2495
    %v2820 = vpop.f32.mrb[0].mxu0
    %v2821 = vadd.f32 0.0, %v2820
    %v2822 = vpop.f32.mrb[0].mxu0
    %v2823 = vadd.f32 0.0, %v2822
    %2824 = vdwg.mxu0
    %v2825 = vadd.f32 %v2679, %v2750
    %v2826 = vadd.f32 %v2680, %v2752
    %v2827 = vadd.f32 %v2681, %v2821
    %v2828 = vadd.f32 %v2682, %v2823
    %v2829 = vxor.u32 %v2825, 2147483648
    %v2830 = vmul.f32 %v2829, 1.442695
    %v2831 = vpow.pop %v2830
    %v2832 = vadd.f32 %v2831, 1.0
    %v2833 = vrcp.pop %v2832
    %v2834 = vmul.f32 1.0, %v2833
    %v2835 = vxor.u32 %v2826, 2147483648
    %v2836 = vmul.f32 %v2835, 1.442695
    %v2837 = vpow.pop %v2836
    %v2838 = vadd.f32 %v2837, 1.0
    %v2839 = vrcp.pop %v2838
    %v2840 = vmul.f32 1.0, %v2839
    %v2841 = vtanh.pop %v2827
    %v2842 = vxor.u32 %v2828, 2147483648
    %v2843 = vmul.f32 %v2842, 1.442695
    %v2844 = vpow.pop %v2843
    %v2845 = vadd.f32 %v2844, 1.0
    %v2846 = vrcp.pop %v2845
    %v2847 = vmul.f32 1.0, %v2846
    %v2848 = vmul.f32 %v2840, %v2496
    %v2849 = vmul.f32 %v2834, %v2841
    %v2850 = vadd.f32 %v2848, %v2849
    %v2851 = vtanh.pop %v2850
    %v2852 = vmul.f32 %v2847, %v2851
    %v2853 = vsel %vm2311, %v2852, %v2495
    %v2854 = vsel %vm2311, %v2850, %v2496
    %2855 = vst [vmem:[%s2499] sm:$0xff] %v2676
    %2856 = vst [vmem:[%s2497 + $0x8] sm:$0xff] %v2853
    %s2857 = scalar_lea.vmem [#allocation3], 160
    %v2858 = vld [vmem:[%s2857] sm:$0xff]
    %v2859 = vld [vmem:[%s2857 + $0x8] sm:$0xff]
    %v2860 = vld [vmem:[%s2857 + $0x10] sm:$0xff]
    %v2861 = vld [vmem:[%s2857 + $0x18] sm:$0xff]
    %2862 = vmatprep.subr.mxu0 %v896
    %2863 = vmatpush1.msra.mxu0 %v895
    %2864 = vmatprep.subr.mxu0 %v900
    %2865 = vmatpush1.msra.mxu0 %v899
    %2866 = vmatprep.subr.mxu0 %v904
    %2867 = vmatpush1.msra.mxu0 %v903
    %2868 = vmatprep.subr.mxu0 %v908
    %2869 = vmatpush1.msra.mxu0 %v907
    %2870 = vmatprep.subr.mxu0 %v912
    %2871 = vmatpush1.msra.mxu0 %v911
    %2872 = vmatprep.subr.mxu0 %v916
    %2873 = vmatpush1.msra.mxu0 %v915
    %2874 = vmatprep.subr.mxu0 %v920
    %2875 = vmatpush1.msra.mxu0 %v919
    %2876 = vmatprep.subr.mxu0 %v924
    %2877 = vmatpush1.msra.mxu0 %v923
    %2878 = vmatprep.subr.mxu0 %v928
    %2879 = vmatpush1.msra.mxu0 %v927
    %2880 = vmatprep.subr.mxu0 %v932
    %2881 = vmatpush1.msra.mxu0 %v931
    %2882 = vmatprep.subr.mxu0 %v936
    %2883 = vmatpush1.msra.mxu0 %v935
    %2884 = vmatprep.subr.mxu0 %v940
    %2885 = vmatpush1.msra.mxu0 %v939
    %2886 = vmatprep.subr.mxu0 %v944
    %2887 = vmatpush1.msra.mxu0 %v943
    %2888 = vmatprep.subr.mxu0 %v948
    %2889 = vmatpush1.msra.mxu0 %v947
    %2890 = vmatprep.subr.mxu0 %v952
    %2891 = vmatpush1.msra.mxu0 %v951
    %2892 = vmatprep.subr.mxu0 %v956
    %2893 = vmatpush1.msra.mxu0 %v955
    %2894 = vmatprep.subr.mxu0 0.0
    %2895 = vmatpush1.msra.mxu0 0.0
    %2896 = vmatprep.subr.mxu0 0.0
    %2897 = vmatpush1.msra.mxu0 0.0
    %2898 = vmatprep.subr.mxu0 0.0
    %2899 = vmatpush1.msra.mxu0 0.0
    %2900 = vmatprep.subr.mxu0 0.0
    %2901 = vmatpush1.msra.mxu0 0.0
    %2902 = vmatprep.subr.mxu0 0.0
    %2903 = vmatpush1.msra.mxu0 0.0
    %2904 = vmatprep.subr.mxu0 0.0
    %2905 = vmatpush1.msra.mxu0 0.0
    %2906 = vmatprep.subr.mxu0 0.0
    %2907 = vmatpush1.msra.mxu0 0.0
    %2908 = vmatprep.subr.mxu0 0.0
    %2909 = vmatpush1.msra.mxu0 0.0
    %2910 = vmatprep.subr.mxu0 0.0
    %2911 = vmatpush1.msra.mxu0 0.0
    %2912 = vmatprep.subr.mxu0 0.0
    %2913 = vmatpush1.msra.mxu0 0.0
    %2914 = vmatprep.subr.mxu0 0.0
    %2915 = vmatpush1.msra.mxu0 0.0
    %2916 = vmatprep.subr.mxu0 0.0
    %2917 = vmatpush1.msra.mxu0 0.0
    %2918 = vmatprep.subr.mxu0 0.0
    %2919 = vmatpush1.msra.mxu0 0.0
    %2920 = vmatprep.subr.mxu0 0.0
    %2921 = vmatpush1.msra.mxu0 0.0
    %2922 = vmatprep.subr.mxu0 0.0
    %2923 = vmatpush1.msra.mxu0 0.0
    %2924 = vmatprep.subr.mxu0 0.0
    %2925 = vmatpush1.msra.mxu0 0.0
    %2926 = vmatprep.mubr.f32.mxu0 0.0
    %2927 = vmatmul.mubr.f32.gmra.mrb[0].mxu0 %v2676
    %v2928 = vpop.f32.mrb[0].mxu0
    %v2929 = vadd.f32 0.0, %v2928
    %v2930 = vpop.f32.mrb[0].mxu0
    %v2931 = vadd.f32 0.0, %v2930
    %2932 = vdwg.mxu0
    %2933 = vmatprep.subr.mxu0 %v898
    %2934 = vmatpush1.msra.mxu0 %v897
    %2935 = vmatprep.subr.mxu0 %v902
    %2936 = vmatpush1.msra.mxu0 %v901
    %2937 = vmatprep.subr.mxu0 %v906
    %2938 = vmatpush1.msra.mxu0 %v905
    %2939 = vmatprep.subr.mxu0 %v910
    %2940 = vmatpush1.msra.mxu0 %v909
    %2941 = vmatprep.subr.mxu0 %v914
    %2942 = vmatpush1.msra.mxu0 %v913
    %2943 = vmatprep.subr.mxu0 %v918
    %2944 = vmatpush1.msra.mxu0 %v917
    %2945 = vmatprep.subr.mxu0 %v922
    %2946 = vmatpush1.msra.mxu0 %v921
    %2947 = vmatprep.subr.mxu0 %v926
    %2948 = vmatpush1.msra.mxu0 %v925
    %2949 = vmatprep.subr.mxu0 %v930
    %2950 = vmatpush1.msra.mxu0 %v929
    %2951 = vmatprep.subr.mxu0 %v934
    %2952 = vmatpush1.msra.mxu0 %v933
    %2953 = vmatprep.subr.mxu0 %v938
    %2954 = vmatpush1.msra.mxu0 %v937
    %2955 = vmatprep.subr.mxu0 %v942
    %2956 = vmatpush1.msra.mxu0 %v941
    %2957 = vmatprep.subr.mxu0 %v946
    %2958 = vmatpush1.msra.mxu0 %v945
    %2959 = vmatprep.subr.mxu0 %v950
    %2960 = vmatpush1.msra.mxu0 %v949
    %2961 = vmatprep.subr.mxu0 %v954
    %2962 = vmatpush1.msra.mxu0 %v953
    %2963 = vmatprep.subr.mxu0 %v958
    %2964 = vmatpush1.msra.mxu0 %v957
    %2965 = vmatprep.subr.mxu0 0.0
    %2966 = vmatpush1.msra.mxu0 0.0
    %2967 = vmatprep.subr.mxu0 0.0
    %2968 = vmatpush1.msra.mxu0 0.0
    %2969 = vmatprep.subr.mxu0 0.0
    %2970 = vmatpush1.msra.mxu0 0.0
    %2971 = vmatprep.subr.mxu0 0.0
    %2972 = vmatpush1.msra.mxu0 0.0
    %2973 = vmatprep.subr.mxu0 0.0
    %2974 = vmatpush1.msra.mxu0 0.0
    %2975 = vmatprep.subr.mxu0 0.0
    %2976 = vmatpush1.msra.mxu0 0.0
    %2977 = vmatprep.subr.mxu0 0.0
    %2978 = vmatpush1.msra.mxu0 0.0
    %2979 = vmatprep.subr.mxu0 0.0
    %2980 = vmatpush1.msra.mxu0 0.0
    %2981 = vmatprep.subr.mxu0 0.0
    %2982 = vmatpush1.msra.mxu0 0.0
    %2983 = vmatprep.subr.mxu0 0.0
    %2984 = vmatpush1.msra.mxu0 0.0
    %2985 = vmatprep.subr.mxu0 0.0
    %2986 = vmatpush1.msra.mxu0 0.0
    %2987 = vmatprep.subr.mxu0 0.0
    %2988 = vmatpush1.msra.mxu0 0.0
    %2989 = vmatprep.subr.mxu0 0.0
    %2990 = vmatpush1.msra.mxu0 0.0
    %2991 = vmatprep.subr.mxu0 0.0
    %2992 = vmatpush1.msra.mxu0 0.0
    %2993 = vmatprep.subr.mxu0 0.0
    %2994 = vmatpush1.msra.mxu0 0.0
    %2995 = vmatprep.subr.mxu0 0.0
    %2996 = vmatpush1.msra.mxu0 0.0
    %2997 = vmatprep.mubr.f32.mxu0 0.0
    %2998 = vmatmul.mubr.f32.gmra.mrb[0].mxu0 %v2676
    %v2999 = vpop.f32.mrb[0].mxu0
    %v3000 = vadd.f32 0.0, %v2999
    %v3001 = vpop.f32.mrb[0].mxu0
    %v3002 = vadd.f32 0.0, %v3001
    %3003 = vdwg.mxu0
    %v3004 = vadd.f32 %v2858, %v2929
    %v3005 = vadd.f32 %v2859, %v2931
    %v3006 = vadd.f32 %v2860, %v3000
    %v3007 = vadd.f32 %v2861, %v3002
    %v3008 = vxor.u32 %v3004, 2147483648
    %v3009 = vmul.f32 %v3008, 1.442695
    %v3010 = vpow.pop %v3009
    %v3011 = vadd.f32 %v3010, 1.0
    %v3012 = vrcp.pop %v3011
    %v3013 = vmul.f32 1.0, %v3012
    %v3014 = vxor.u32 %v3005, 2147483648
    %v3015 = vmul.f32 %v3014, 1.442695
    %v3016 = vpow.pop %v3015
    %v3017 = vadd.f32 %v3016, 1.0
    %v3018 = vrcp.pop %v3017
    %v3019 = vmul.f32 1.0, %v3018
    %v3020 = vtanh.pop %v3006
    %v3021 = vxor.u32 %v3007, 2147483648
    %v3022 = vmul.f32 %v3021, 1.442695
    %v3023 = vpow.pop %v3022
    %v3024 = vadd.f32 %v3023, 1.0
    %v3025 = vrcp.pop %v3024
    %v3026 = vmul.f32 1.0, %v3025
    %v3027 = vmul.f32 %v3019, %v2677
    %v3028 = vmul.f32 %v3013, %v3020
    %v3029 = vadd.f32 %v3027, %v3028
    %v3030 = vtanh.pop %v3029
    %v3031 = vmul.f32 %v3026, %v3030
    %v3032 = vsel %vm2124, %v3031, %v2676
    %v3033 = vsel %vm2124, %v3029, %v2677
    %s3034 = scalar_lea.vmem [#allocation4], 64
    %v3035 = vld [vmem:[%s3034] sm:$0xff]
    %v3036 = vld [vmem:[%s3034 + $0x8] sm:$0xff]
    %v3037 = vld [vmem:[%s3034 + $0x10] sm:$0xff]
    %v3038 = vld [vmem:[%s3034 + $0x18] sm:$0xff]
    %3039 = vmatprep.subr.mxu0 %v960
    %3040 = vmatpush1.msra.mxu0 %v959
    %3041 = vmatprep.subr.mxu0 %v964
    %3042 = vmatpush1.msra.mxu0 %v963
    %3043 = vmatprep.subr.mxu0 %v968
    %3044 = vmatpush1.msra.mxu0 %v967
    %3045 = vmatprep.subr.mxu0 %v972
    %3046 = vmatpush1.msra.mxu0 %v971
    %3047 = vmatprep.subr.mxu0 %v976
    %3048 = vmatpush1.msra.mxu0 %v975
    %3049 = vmatprep.subr.mxu0 %v980
    %3050 = vmatpush1.msra.mxu0 %v979
    %3051 = vmatprep.subr.mxu0 %v984
    %3052 = vmatpush1.msra.mxu0 %v983
    %3053 = vmatprep.subr.mxu0 %v988
    %3054 = vmatpush1.msra.mxu0 %v987
    %3055 = vmatprep.subr.mxu0 %v992
    %3056 = vmatpush1.msra.mxu0 %v991
    %3057 = vmatprep.subr.mxu0 %v996
    %3058 = vmatpush1.msra.mxu0 %v995
    %3059 = vmatprep.subr.mxu0 %v1000
    %3060 = vmatpush1.msra.mxu0 %v999
    %3061 = vmatprep.subr.mxu0 %v1004
    %3062 = vmatpush1.msra.mxu0 %v1003
    %3063 = vmatprep.subr.mxu0 %v1008
    %3064 = vmatpush1.msra.mxu0 %v1007
    %3065 = vmatprep.subr.mxu0 %v1012
    %3066 = vmatpush1.msra.mxu0 %v1011
    %3067 = vmatprep.subr.mxu0 %v1016
    %3068 = vmatpush1.msra.mxu0 %v1015
    %3069 = vmatprep.subr.mxu0 %v1020
    %3070 = vmatpush1.msra.mxu0 %v1019
    %3071 = vmatprep.subr.mxu0 0.0
    %3072 = vmatpush1.msra.mxu0 0.0
    %3073 = vmatprep.subr.mxu0 0.0
    %3074 = vmatpush1.msra.mxu0 0.0
    %3075 = vmatprep.subr.mxu0 0.0
    %3076 = vmatpush1.msra.mxu0 0.0
    %3077 = vmatprep.subr.mxu0 0.0
    %3078 = vmatpush1.msra.mxu0 0.0
    %3079 = vmatprep.subr.mxu0 0.0
    %3080 = vmatpush1.msra.mxu0 0.0
    %3081 = vmatprep.subr.mxu0 0.0
    %3082 = vmatpush1.msra.mxu0 0.0
    %3083 = vmatprep.subr.mxu0 0.0
    %3084 = vmatpush1.msra.mxu0 0.0
    %3085 = vmatprep.subr.mxu0 0.0
    %3086 = vmatpush1.msra.mxu0 0.0
    %3087 = vmatprep.subr.mxu0 0.0
    %3088 = vmatpush1.msra.mxu0 0.0
    %3089 = vmatprep.subr.mxu0 0.0
    %3090 = vmatpush1.msra.mxu0 0.0
    %3091 = vmatprep.subr.mxu0 0.0
    %3092 = vmatpush1.msra.mxu0 0.0
    %3093 = vmatprep.subr.mxu0 0.0
    %3094 = vmatpush1.msra.mxu0 0.0
    %3095 = vmatprep.subr.mxu0 0.0
    %3096 = vmatpush1.msra.mxu0 0.0
    %3097 = vmatprep.subr.mxu0 0.0
    %3098 = vmatpush1.msra.mxu0 0.0
    %3099 = vmatprep.subr.mxu0 0.0
    %3100 = vmatpush1.msra.mxu0 0.0
    %3101 = vmatprep.subr.mxu0 0.0
    %3102 = vmatpush1.msra.mxu0 0.0
    %3103 = vmatprep.mubr.f32.mxu0 0.0
    %3104 = vmatmul.mubr.f32.gmra.mrb[0].mxu0 %v2853
    %v3105 = vpop.f32.mrb[0].mxu0
    %v3106 = vadd.f32 0.0, %v3105
    %v3107 = vpop.f32.mrb[0].mxu0
    %v3108 = vadd.f32 0.0, %v3107
    %3109 = vdwg.mxu0
    %3110 = vmatprep.subr.mxu0 %v962
    %3111 = vmatpush1.msra.mxu0 %v961
    %3112 = vmatprep.subr.mxu0 %v966
    %3113 = vmatpush1.msra.mxu0 %v965
    %3114 = vmatprep.subr.mxu0 %v970
    %3115 = vmatpush1.msra.mxu0 %v969
    %3116 = vmatprep.subr.mxu0 %v974
    %3117 = vmatpush1.msra.mxu0 %v973
    %3118 = vmatprep.subr.mxu0 %v978
    %3119 = vmatpush1.msra.mxu0 %v977
    %3120 = vmatprep.subr.mxu0 %v982
    %3121 = vmatpush1.msra.mxu0 %v981
    %3122 = vmatprep.subr.mxu0 %v986
    %3123 = vmatpush1.msra.mxu0 %v985
    %3124 = vmatprep.subr.mxu0 %v990
    %3125 = vmatpush1.msra.mxu0 %v989
    %3126 = vmatprep.subr.mxu0 %v994
    %3127 = vmatpush1.msra.mxu0 %v993
    %3128 = vmatprep.subr.mxu0 %v998
    %3129 = vmatpush1.msra.mxu0 %v997
    %3130 = vmatprep.subr.mxu0 %v1002
    %3131 = vmatpush1.msra.mxu0 %v1001
    %3132 = vmatprep.subr.mxu0 %v1006
    %3133 = vmatpush1.msra.mxu0 %v1005
    %3134 = vmatprep.subr.mxu0 %v1010
    %3135 = vmatpush1.msra.mxu0 %v1009
    %3136 = vmatprep.subr.mxu0 %v1014
    %3137 = vmatpush1.msra.mxu0 %v1013
    %3138 = vmatprep.subr.mxu0 %v1018
    %3139 = vmatpush1.msra.mxu0 %v1017
    %3140 = vmatprep.subr.mxu0 %v1022
    %3141 = vmatpush1.msra.mxu0 %v1021
    %3142 = vmatprep.subr.mxu0 0.0
    %3143 = vmatpush1.msra.mxu0 0.0
    %3144 = vmatprep.subr.mxu0 0.0
    %3145 = vmatpush1.msra.mxu0 0.0
    %3146 = vmatprep.subr.mxu0 0.0
    %3147 = vmatpush1.msra.mxu0 0.0
    %3148 = vmatprep.subr.mxu0 0.0
    %3149 = vmatpush1.msra.mxu0 0.0
    %3150 = vmatprep.subr.mxu0 0.0
    %3151 = vmatpush1.msra.mxu0 0.0
    %3152 = vmatprep.subr.mxu0 0.0
    %3153 = vmatpush1.msra.mxu0 0.0
    %3154 = vmatprep.subr.mxu0 0.0
    %3155 = vmatpush1.msra.mxu0 0.0
    %3156 = vmatprep.subr.mxu0 0.0
    %3157 = vmatpush1.msra.mxu0 0.0
    %3158 = vmatprep.subr.mxu0 0.0
    %3159 = vmatpush1.msra.mxu0 0.0
    %3160 = vmatprep.subr.mxu0 0.0
    %3161 = vmatpush1.msra.mxu0 0.0
    %3162 = vmatprep.subr.mxu0 0.0
    %3163 = vmatpush1.msra.mxu0 0.0
    %3164 = vmatprep.subr.mxu0 0.0
    %3165 = vmatpush1.msra.mxu0 0.0
    %3166 = vmatprep.subr.mxu0 0.0
    %3167 = vmatpush1.msra.mxu0 0.0
    %3168 = vmatprep.subr.mxu0 0.0
    %3169 = vmatpush1.msra.mxu0 0.0
    %3170 = vmatprep.subr.mxu0 0.0
    %3171 = vmatpush1.msra.mxu0 0.0
    %3172 = vmatprep.subr.mxu0 0.0
    %3173 = vmatpush1.msra.mxu0 0.0
    %3174 = vmatprep.mubr.f32.mxu0 0.0
    %3175 = vmatmul.mubr.f32.gmra.mrb[0].mxu0 %v2853
    %v3176 = vpop.f32.mrb[0].mxu0
    %v3177 = vadd.f32 0.0, %v3176
    %v3178 = vpop.f32.mrb[0].mxu0
    %v3179 = vadd.f32 0.0, %v3178
    %3180 = vdwg.mxu0
    %v3181 = vadd.f32 %v3035, %v3106
    %v3182 = vadd.f32 %v3036, %v3108
    %v3183 = vadd.f32 %v3037, %v3177
    %v3184 = vadd.f32 %v3038, %v3179
    %v3185 = vxor.u32 %v3181, 2147483648
    %v3186 = vmul.f32 %v3185, 1.442695
    %v3187 = vpow.pop %v3186
    %v3188 = vadd.f32 %v3187, 1.0
    %v3189 = vrcp.pop %v3188
    %v3190 = vmul.f32 1.0, %v3189
    %v3191 = vxor.u32 %v3182, 2147483648
    %v3192 = vmul.f32 %v3191, 1.442695
    %v3193 = vpow.pop %v3192
    %v3194 = vadd.f32 %v3193, 1.0
    %v3195 = vrcp.pop %v3194
    %v3196 = vmul.f32 1.0, %v3195
    %v3197 = vtanh.pop %v3183
    %v3198 = vxor.u32 %v3184, 2147483648
    %v3199 = vmul.f32 %v3198, 1.442695
    %v3200 = vpow.pop %v3199
    %v3201 = vadd.f32 %v3200, 1.0
    %v3202 = vrcp.pop %v3201
    %v3203 = vmul.f32 1.0, %v3202
    %v3204 = vmul.f32 %v3196, %v2854
    %v3205 = vmul.f32 %v3190, %v3197
    %v3206 = vadd.f32 %v3204, %v3205
    %v3207 = vtanh.pop %v3206
    %v3208 = vmul.f32 %v3203, %v3207
    %v3209 = vsel %vm1941, %v3208, %v2853
    %v3210 = vsel %vm1941, %v3206, %v2854
    %3211 = vst [vmem:[%s2129] sm:$0xff] %v3032
    %3212 = vst [vmem:[%s2127 + $0x8] sm:$0xff] %v3209
    %s3213 = scalar_lea.vmem [#allocation3], 192
    %v3214 = vld [vmem:[%s3213] sm:$0xff]
    %v3215 = vld [vmem:[%s3213 + $0x8] sm:$0xff]
    %v3216 = vld [vmem:[%s3213 + $0x10] sm:$0xff]
    %v3217 = vld [vmem:[%s3213 + $0x18] sm:$0xff]
    %3218 = vmatprep.subr.mxu0 %v896
    %3219 = vmatpush1.msra.mxu0 %v895
    %3220 = vmatprep.subr.mxu0 %v900
    %3221 = vmatpush1.msra.mxu0 %v899
    %3222 = vmatprep.subr.mxu0 %v904
    %3223 = vmatpush1.msra.mxu0 %v903
    %3224 = vmatprep.subr.mxu0 %v908
    %3225 = vmatpush1.msra.mxu0 %v907
    %3226 = vmatprep.subr.mxu0 %v912
    %3227 = vmatpush1.msra.mxu0 %v911
    %3228 = vmatprep.subr.mxu0 %v916
    %3229 = vmatpush1.msra.mxu0 %v915
    %3230 = vmatprep.subr.mxu0 %v920
    %3231 = vmatpush1.msra.mxu0 %v919
    %3232 = vmatprep.subr.mxu0 %v924
    %3233 = vmatpush1.msra.mxu0 %v923
    %3234 = vmatprep.subr.mxu0 %v928
    %3235 = vmatpush1.msra.mxu0 %v927
    %3236 = vmatprep.subr.mxu0 %v932
    %3237 = vmatpush1.msra.mxu0 %v931
    %3238 = vmatprep.subr.mxu0 %v936
    %3239 = vmatpush1.msra.mxu0 %v935
    %3240 = vmatprep.subr.mxu0 %v940
    %3241 = vmatpush1.msra.mxu0 %v939
    %3242 = vmatprep.subr.mxu0 %v944
    %3243 = vmatpush1.msra.mxu0 %v943
    %3244 = vmatprep.subr.mxu0 %v948
    %3245 = vmatpush1.msra.mxu0 %v947
    %3246 = vmatprep.subr.mxu0 %v952
    %3247 = vmatpush1.msra.mxu0 %v951
    %3248 = vmatprep.subr.mxu0 %v956
    %3249 = vmatpush1.msra.mxu0 %v955
    %3250 = vmatprep.subr.mxu0 0.0
    %3251 = vmatpush1.msra.mxu0 0.0
    %3252 = vmatprep.subr.mxu0 0.0
    %3253 = vmatpush1.msra.mxu0 0.0
    %3254 = vmatprep.subr.mxu0 0.0
    %3255 = vmatpush1.msra.mxu0 0.0
    %3256 = vmatprep.subr.mxu0 0.0
    %3257 = vmatpush1.msra.mxu0 0.0
    %3258 = vmatprep.subr.mxu0 0.0
    %3259 = vmatpush1.msra.mxu0 0.0
    %3260 = vmatprep.subr.mxu0 0.0
    %3261 = vmatpush1.msra.mxu0 0.0
    %3262 = vmatprep.subr.mxu0 0.0
    %3263 = vmatpush1.msra.mxu0 0.0
    %3264 = vmatprep.subr.mxu0 0.0
    %3265 = vmatpush1.msra.mxu0 0.0
    %3266 = vmatprep.subr.mxu0 0.0
    %3267 = vmatpush1.msra.mxu0 0.0
    %3268 = vmatprep.subr.mxu0 0.0
    %3269 = vmatpush1.msra.mxu0 0.0
    %3270 = vmatprep.subr.mxu0 0.0
    %3271 = vmatpush1.msra.mxu0 0.0
    %3272 = vmatprep.subr.mxu0 0.0
    %3273 = vmatpush1.msra.mxu0 0.0
    %3274 = vmatprep.subr.mxu0 0.0
    %3275 = vmatpush1.msra.mxu0 0.0
    %3276 = vmatprep.subr.mxu0 0.0
    %3277 = vmatpush1.msra.mxu0 0.0
    %3278 = vmatprep.subr.mxu0 0.0
    %3279 = vmatpush1.msra.mxu0 0.0
    %3280 = vmatprep.subr.mxu0 0.0
    %3281 = vmatpush1.msra.mxu0 0.0
    %3282 = vmatprep.mubr.f32.mxu0 0.0
    %3283 = vmatmul.mubr.f32.gmra.mrb[0].mxu0 %v3032
    %v3284 = vpop.f32.mrb[0].mxu0
    %v3285 = vadd.f32 0.0, %v3284
    %v3286 = vpop.f32.mrb[0].mxu0
    %v3287 = vadd.f32 0.0, %v3286
    %3288 = vdwg.mxu0
    %3289 = vmatprep.subr.mxu0 %v898
    %3290 = vmatpush1.msra.mxu0 %v897
    %3291 = vmatprep.subr.mxu0 %v902
    %3292 = vmatpush1.msra.mxu0 %v901
    %3293 = vmatprep.subr.mxu0 %v906
    %3294 = vmatpush1.msra.mxu0 %v905
    %3295 = vmatprep.subr.mxu0 %v910
    %3296 = vmatpush1.msra.mxu0 %v909
    %3297 = vmatprep.subr.mxu0 %v914
    %3298 = vmatpush1.msra.mxu0 %v913
    %3299 = vmatprep.subr.mxu0 %v918
    %3300 = vmatpush1.msra.mxu0 %v917
    %3301 = vmatprep.subr.mxu0 %v922
    %3302 = vmatpush1.msra.mxu0 %v921
    %3303 = vmatprep.subr.mxu0 %v926
    %3304 = vmatpush1.msra.mxu0 %v925
    %3305 = vmatprep.subr.mxu0 %v930
    %3306 = vmatpush1.msra.mxu0 %v929
    %3307 = vmatprep.subr.mxu0 %v934
    %3308 = vmatpush1.msra.mxu0 %v933
    %3309 = vmatprep.subr.mxu0 %v938
    %3310 = vmatpush1.msra.mxu0 %v937
    %3311 = vmatprep.subr.mxu0 %v942
    %3312 = vmatpush1.msra.mxu0 %v941
    %3313 = vmatprep.subr.mxu0 %v946
    %3314 = vmatpush1.msra.mxu0 %v945
    %3315 = vmatprep.subr.mxu0 %v950
    %3316 = vmatpush1.msra.mxu0 %v949
    %3317 = vmatprep.subr.mxu0 %v954
    %3318 = vmatpush1.msra.mxu0 %v953
    %3319 = vmatprep.subr.mxu0 %v958
    %3320 = vmatpush1.msra.mxu0 %v957
    %3321 = vmatprep.subr.mxu0 0.0
    %3322 = vmatpush1.msra.mxu0 0.0
    %3323 = vmatprep.subr.mxu0 0.0
    %3324 = vmatpush1.msra.mxu0 0.0
    %3325 = vmatprep.subr.mxu0 0.0
    %3326 = vmatpush1.msra.mxu0 0.0
    %3327 = vmatprep.subr.mxu0 0.0
    %3328 = vmatpush1.msra.mxu0 0.0
    %3329 = vmatprep.subr.mxu0 0.0
    %3330 = vmatpush1.msra.mxu0 0.0
    %3331 = vmatprep.subr.mxu0 0.0
    %3332 = vmatpush1.msra.mxu0 0.0
    %3333 = vmatprep.subr.mxu0 0.0
    %3334 = vmatpush1.msra.mxu0 0.0
    %3335 = vmatprep.subr.mxu0 0.0
    %3336 = vmatpush1.msra.mxu0 0.0
    %3337 = vmatprep.subr.mxu0 0.0
    %3338 = vmatpush1.msra.mxu0 0.0
    %3339 = vmatprep.subr.mxu0 0.0
    %3340 = vmatpush1.msra.mxu0 0.0
    %3341 = vmatprep.subr.mxu0 0.0
    %3342 = vmatpush1.msra.mxu0 0.0
    %3343 = vmatprep.subr.mxu0 0.0
    %3344 = vmatpush1.msra.mxu0 0.0
    %3345 = vmatprep.subr.mxu0 0.0
    %3346 = vmatpush1.msra.mxu0 0.0
    %3347 = vmatprep.subr.mxu0 0.0
    %3348 = vmatpush1.msra.mxu0 0.0
    %3349 = vmatprep.subr.mxu0 0.0
    %3350 = vmatpush1.msra.mxu0 0.0
    %3351 = vmatprep.subr.mxu0 0.0
    %3352 = vmatpush1.msra.mxu0 0.0
    %3353 = vmatprep.mubr.f32.mxu0 0.0
    %3354 = vmatmul.mubr.f32.gmra.mrb[0].mxu0 %v3032
    %v3355 = vpop.f32.mrb[0].mxu0
    %v3356 = vadd.f32 0.0, %v3355
    %v3357 = vpop.f32.mrb[0].mxu0
    %v3358 = vadd.f32 0.0, %v3357
    %3359 = vdwg.mxu0
    %v3360 = vadd.f32 %v3214, %v3285
    %v3361 = vadd.f32 %v3215, %v3287
    %v3362 = vadd.f32 %v3216, %v3356
    %v3363 = vadd.f32 %v3217, %v3358
    %v3364 = vxor.u32 %v3360, 2147483648
    %v3365 = vmul.f32 %v3364, 1.442695
    %v3366 = vpow.pop %v3365
    %v3367 = vadd.f32 %v3366, 1.0
    %v3368 = vrcp.pop %v3367
    %v3369 = vmul.f32 1.0, %v3368
    %v3370 = vxor.u32 %v3361, 2147483648
    %v3371 = vmul.f32 %v3370, 1.442695
    %v3372 = vpow.pop %v3371
    %v3373 = vadd.f32 %v3372, 1.0
    %v3374 = vrcp.pop %v3373
    %v3375 = vmul.f32 1.0, %v3374
    %v3376 = vtanh.pop %v3362
    %v3377 = vxor.u32 %v3363, 2147483648
    %v3378 = vmul.f32 %v3377, 1.442695
    %v3379 = vpow.pop %v3378
    %v3380 = vadd.f32 %v3379, 1.0
    %v3381 = vrcp.pop %v3380
    %v3382 = vmul.f32 1.0, %v3381
    %v3383 = vmul.f32 %v3375, %v3033
    %v3384 = vmul.f32 %v3369, %v3376
    %v3385 = vadd.f32 %v3383, %v3384
    %v3386 = vtanh.pop %v3385
    %v3387 = vmul.f32 %v3382, %v3386
    %v3388 = vsel %vm1754, %v3387, %v3032
    %v3389 = vsel %vm1754, %v3385, %v3033
    %s3390 = scalar_lea.vmem [#allocation4], 32
    %v3391 = vld [vmem:[%s3390] sm:$0xff]
    %v3392 = vld [vmem:[%s3390 + $0x8] sm:$0xff]
    %v3393 = vld [vmem:[%s3390 + $0x10] sm:$0xff]
    %v3394 = vld [vmem:[%s3390 + $0x18] sm:$0xff]
    %3395 = vmatprep.subr.mxu0 %v960
    %3396 = vmatpush1.msra.mxu0 %v959
    %3397 = vmatprep.subr.mxu0 %v964
    %3398 = vmatpush1.msra.mxu0 %v963
    %3399 = vmatprep.subr.mxu0 %v968
    %3400 = vmatpush1.msra.mxu0 %v967
    %3401 = vmatprep.subr.mxu0 %v972
    %3402 = vmatpush1.msra.mxu0 %v971
    %3403 = vmatprep.subr.mxu0 %v976
    %3404 = vmatpush1.msra.mxu0 %v975
    %3405 = vmatprep.subr.mxu0 %v980
    %3406 = vmatpush1.msra.mxu0 %v979
    %3407 = vmatprep.subr.mxu0 %v984
    %3408 = vmatpush1.msra.mxu0 %v983
    %3409 = vmatprep.subr.mxu0 %v988
    %3410 = vmatpush1.msra.mxu0 %v987
    %3411 = vmatprep.subr.mxu0 %v992
    %3412 = vmatpush1.msra.mxu0 %v991
    %3413 = vmatprep.subr.mxu0 %v996
    %3414 = vmatpush1.msra.mxu0 %v995
    %3415 = vmatprep.subr.mxu0 %v1000
    %3416 = vmatpush1.msra.mxu0 %v999
    %3417 = vmatprep.subr.mxu0 %v1004
    %3418 = vmatpush1.msra.mxu0 %v1003
    %3419 = vmatprep.subr.mxu0 %v1008
    %3420 = vmatpush1.msra.mxu0 %v1007
    %3421 = vmatprep.subr.mxu0 %v1012
    %3422 = vmatpush1.msra.mxu0 %v1011
    %3423 = vmatprep.subr.mxu0 %v1016
    %3424 = vmatpush1.msra.mxu0 %v1015
    %3425 = vmatprep.subr.mxu0 %v1020
    %3426 = vmatpush1.msra.mxu0 %v1019
    %3427 = vmatprep.subr.mxu0 0.0
    %3428 = vmatpush1.msra.mxu0 0.0
    %3429 = vmatprep.subr.mxu0 0.0
    %3430 = vmatpush1.msra.mxu0 0.0
    %3431 = vmatprep.subr.mxu0 0.0
    %3432 = vmatpush1.msra.mxu0 0.0
    %3433 = vmatprep.subr.mxu0 0.0
    %3434 = vmatpush1.msra.mxu0 0.0
    %3435 = vmatprep.subr.mxu0 0.0
    %3436 = vmatpush1.msra.mxu0 0.0
    %3437 = vmatprep.subr.mxu0 0.0
    %3438 = vmatpush1.msra.mxu0 0.0
    %3439 = vmatprep.subr.mxu0 0.0
    %3440 = vmatpush1.msra.mxu0 0.0
    %3441 = vmatprep.subr.mxu0 0.0
    %3442 = vmatpush1.msra.mxu0 0.0
    %3443 = vmatprep.subr.mxu0 0.0
    %3444 = vmatpush1.msra.mxu0 0.0
    %3445 = vmatprep.subr.mxu0 0.0
    %3446 = vmatpush1.msra.mxu0 0.0
    %3447 = vmatprep.subr.mxu0 0.0
    %3448 = vmatpush1.msra.mxu0 0.0
    %3449 = vmatprep.subr.mxu0 0.0
    %3450 = vmatpush1.msra.mxu0 0.0
    %3451 = vmatprep.subr.mxu0 0.0
    %3452 = vmatpush1.msra.mxu0 0.0
    %3453 = vmatprep.subr.mxu0 0.0
    %3454 = vmatpush1.msra.mxu0 0.0
    %3455 = vmatprep.subr.mxu0 0.0
    %3456 = vmatpush1.msra.mxu0 0.0
    %3457 = vmatprep.subr.mxu0 0.0
    %3458 = vmatpush1.msra.mxu0 0.0
    %3459 = vmatprep.mubr.f32.mxu0 0.0
    %3460 = vmatmul.mubr.f32.gmra.mrb[0].mxu0 %v3209
    %v3461 = vpop.f32.mrb[0].mxu0
    %v3462 = vadd.f32 0.0, %v3461
    %v3463 = vpop.f32.mrb[0].mxu0
    %v3464 = vadd.f32 0.0, %v3463
    %3465 = vdwg.mxu0
    %3466 = vmatprep.subr.mxu0 %v962
    %3467 = vmatpush1.msra.mxu0 %v961
    %3468 = vmatprep.subr.mxu0 %v966
    %3469 = vmatpush1.msra.mxu0 %v965
    %3470 = vmatprep.subr.mxu0 %v970
    %3471 = vmatpush1.msra.mxu0 %v969
    %3472 = vmatprep.subr.mxu0 %v974
    %3473 = vmatpush1.msra.mxu0 %v973
    %3474 = vmatprep.subr.mxu0 %v978
    %3475 = vmatpush1.msra.mxu0 %v977
    %3476 = vmatprep.subr.mxu0 %v982
    %3477 = vmatpush1.msra.mxu0 %v981
    %3478 = vmatprep.subr.mxu0 %v986
    %3479 = vmatpush1.msra.mxu0 %v985
    %3480 = vmatprep.subr.mxu0 %v990
    %3481 = vmatpush1.msra.mxu0 %v989
    %3482 = vmatprep.subr.mxu0 %v994
    %3483 = vmatpush1.msra.mxu0 %v993
    %3484 = vmatprep.subr.mxu0 %v998
    %3485 = vmatpush1.msra.mxu0 %v997
    %3486 = vmatprep.subr.mxu0 %v1002
    %3487 = vmatpush1.msra.mxu0 %v1001
    %3488 = vmatprep.subr.mxu0 %v1006
    %3489 = vmatpush1.msra.mxu0 %v1005
    %3490 = vmatprep.subr.mxu0 %v1010
    %3491 = vmatpush1.msra.mxu0 %v1009
    %3492 = vmatprep.subr.mxu0 %v1014
    %3493 = vmatpush1.msra.mxu0 %v1013
    %3494 = vmatprep.subr.mxu0 %v1018
    %3495 = vmatpush1.msra.mxu0 %v1017
    %3496 = vmatprep.subr.mxu0 %v1022
    %3497 = vmatpush1.msra.mxu0 %v1021
    %3498 = vmatprep.subr.mxu0 0.0
    %3499 = vmatpush1.msra.mxu0 0.0
    %3500 = vmatprep.subr.mxu0 0.0
    %3501 = vmatpush1.msra.mxu0 0.0
    %3502 = vmatprep.subr.mxu0 0.0
    %3503 = vmatpush1.msra.mxu0 0.0
    %3504 = vmatprep.subr.mxu0 0.0
    %3505 = vmatpush1.msra.mxu0 0.0
    %3506 = vmatprep.subr.mxu0 0.0
    %3507 = vmatpush1.msra.mxu0 0.0
    %3508 = vmatprep.subr.mxu0 0.0
    %3509 = vmatpush1.msra.mxu0 0.0
    %3510 = vmatprep.subr.mxu0 0.0
    %3511 = vmatpush1.msra.mxu0 0.0
    %3512 = vmatprep.subr.mxu0 0.0
    %3513 = vmatpush1.msra.mxu0 0.0
    %3514 = vmatprep.subr.mxu0 0.0
    %3515 = vmatpush1.msra.mxu0 0.0
    %3516 = vmatprep.subr.mxu0 0.0
    %3517 = vmatpush1.msra.mxu0 0.0
    %3518 = vmatprep.subr.mxu0 0.0
    %3519 = vmatpush1.msra.mxu0 0.0
    %3520 = vmatprep.subr.mxu0 0.0
    %3521 = vmatpush1.msra.mxu0 0.0
    %3522 = vmatprep.subr.mxu0 0.0
    %3523 = vmatpush1.msra.mxu0 0.0
    %3524 = vmatprep.subr.mxu0 0.0
    %3525 = vmatpush1.msra.mxu0 0.0
    %3526 = vmatprep.subr.mxu0 0.0
    %3527 = vmatpush1.msra.mxu0 0.0
    %3528 = vmatprep.subr.mxu0 0.0
    %3529 = vmatpush1.msra.mxu0 0.0
    %3530 = vmatprep.mubr.f32.mxu0 0.0
    %3531 = vmatmul.mubr.f32.gmra.mrb[0].mxu0 %v3209
    %v3532 = vpop.f32.mrb[0].mxu0
    %v3533 = vadd.f32 0.0, %v3532
    %v3534 = vpop.f32.mrb[0].mxu0
    %v3535 = vadd.f32 0.0, %v3534
    %3536 = vdwg.mxu0
    %v3537 = vadd.f32 %v3391, %v3462
    %v3538 = vadd.f32 %v3392, %v3464
    %v3539 = vadd.f32 %v3393, %v3533
    %v3540 = vadd.f32 %v3394, %v3535
    %v3541 = vxor.u32 %v3537, 2147483648
    %v3542 = vmul.f32 %v3541, 1.442695
    %v3543 = vpow.pop %v3542
    %v3544 = vadd.f32 %v3543, 1.0
    %v3545 = vrcp.pop %v3544
    %v3546 = vmul.f32 1.0, %v3545
    %v3547 = vxor.u32 %v3538, 2147483648
    %v3548 = vmul.f32 %v3547, 1.442695
    %v3549 = vpow.pop %v3548
    %v3550 = vadd.f32 %v3549, 1.0
    %v3551 = vrcp.pop %v3550
    %v3552 = vmul.f32 1.0, %v3551
    %v3553 = vtanh.pop %v3539
    %v3554 = vxor.u32 %v3540, 2147483648
    %v3555 = vmul.f32 %v3554, 1.442695
    %v3556 = vpow.pop %v3555
    %v3557 = vadd.f32 %v3556, 1.0
    %v3558 = vrcp.pop %v3557
    %v3559 = vmul.f32 1.0, %v3558
    %v3560 = vmul.f32 %v3552, %v3210
    %v3561 = vmul.f32 %v3546, %v3553
    %v3562 = vadd.f32 %v3560, %v3561
    %v3563 = vtanh.pop %v3562
    %v3564 = vmul.f32 %v3559, %v3563
    %v3565 = vsel %vm1571, %v3564, %v3209
    %v3566 = vsel %vm1571, %v3562, %v3210
    %3567 = vst [vmem:[%s1759] sm:$0xff] %v3388
    %3568 = vst [vmem:[%s1757 + $0x8] sm:$0xff] %v3565
    %s3569 = scalar_lea.vmem [#allocation3], 224
    %v3570 = vld [vmem:[%s3569] sm:$0xff]
    %v3571 = vld [vmem:[%s3569 + $0x8] sm:$0xff]
    %v3572 = vld [vmem:[%s3569 + $0x10] sm:$0xff]
    %v3573 = vld [vmem:[%s3569 + $0x18] sm:$0xff]
    %3574 = vmatprep.subr.mxu0 %v896
    %3575 = vmatpush1.msra.mxu0 %v895
    %3576 = vmatprep.subr.mxu0 %v900
    %3577 = vmatpush1.msra.mxu0 %v899
    %3578 = vmatprep.subr.mxu0 %v904
    %3579 = vmatpush1.msra.mxu0 %v903
    %3580 = vmatprep.subr.mxu0 %v908
    %3581 = vmatpush1.msra.mxu0 %v907
    %3582 = vmatprep.subr.mxu0 %v912
    %3583 = vmatpush1.msra.mxu0 %v911
    %3584 = vmatprep.subr.mxu0 %v916
    %3585 = vmatpush1.msra.mxu0 %v915
    %3586 = vmatprep.subr.mxu0 %v920
    %3587 = vmatpush1.msra.mxu0 %v919
    %3588 = vmatprep.subr.mxu0 %v924
    %3589 = vmatpush1.msra.mxu0 %v923
    %3590 = vmatprep.subr.mxu0 %v928
    %3591 = vmatpush1.msra.mxu0 %v927
    %3592 = vmatprep.subr.mxu0 %v932
    %3593 = vmatpush1.msra.mxu0 %v931
    %3594 = vmatprep.subr.mxu0 %v936
    %3595 = vmatpush1.msra.mxu0 %v935
    %3596 = vmatprep.subr.mxu0 %v940
    %3597 = vmatpush1.msra.mxu0 %v939
    %3598 = vmatprep.subr.mxu0 %v944
    %3599 = vmatpush1.msra.mxu0 %v943
    %3600 = vmatprep.subr.mxu0 %v948
    %3601 = vmatpush1.msra.mxu0 %v947
    %3602 = vmatprep.subr.mxu0 %v952
    %3603 = vmatpush1.msra.mxu0 %v951
    %3604 = vmatprep.subr.mxu0 %v956
    %3605 = vmatpush1.msra.mxu0 %v955
    %3606 = vmatprep.subr.mxu0 0.0
    %3607 = vmatpush1.msra.mxu0 0.0
    %3608 = vmatprep.subr.mxu0 0.0
    %3609 = vmatpush1.msra.mxu0 0.0
    %3610 = vmatprep.subr.mxu0 0.0
    %3611 = vmatpush1.msra.mxu0 0.0
    %3612 = vmatprep.subr.mxu0 0.0
    %3613 = vmatpush1.msra.mxu0 0.0
    %3614 = vmatprep.subr.mxu0 0.0
    %3615 = vmatpush1.msra.mxu0 0.0
    %3616 = vmatprep.subr.mxu0 0.0
    %3617 = vmatpush1.msra.mxu0 0.0
    %3618 = vmatprep.subr.mxu0 0.0
    %3619 = vmatpush1.msra.mxu0 0.0
    %3620 = vmatprep.subr.mxu0 0.0
    %3621 = vmatpush1.msra.mxu0 0.0
    %3622 = vmatprep.subr.mxu0 0.0
    %3623 = vmatpush1.msra.mxu0 0.0
    %3624 = vmatprep.subr.mxu0 0.0
    %3625 = vmatpush1.msra.mxu0 0.0
    %3626 = vmatprep.subr.mxu0 0.0
    %3627 = vmatpush1.msra.mxu0 0.0
    %3628 = vmatprep.subr.mxu0 0.0
    %3629 = vmatpush1.msra.mxu0 0.0
    %3630 = vmatprep.subr.mxu0 0.0
    %3631 = vmatpush1.msra.mxu0 0.0
    %3632 = vmatprep.subr.mxu0 0.0
    %3633 = vmatpush1.msra.mxu0 0.0
    %3634 = vmatprep.subr.mxu0 0.0
    %3635 = vmatpush1.msra.mxu0 0.0
    %3636 = vmatprep.subr.mxu0 0.0
    %3637 = vmatpush1.msra.mxu0 0.0
    %3638 = vmatprep.mubr.f32.mxu0 0.0
    %3639 = vmatmul.mubr.f32.gmra.mrb[0].mxu0 %v3388
    %v3640 = vpop.f32.mrb[0].mxu0
    %v3641 = vadd.f32 0.0, %v3640
    %v3642 = vpop.f32.mrb[0].mxu0
    %v3643 = vadd.f32 0.0, %v3642
    %3644 = vdwg.mxu0
    %3645 = vmatprep.subr.mxu0 %v898
    %3646 = vmatpush1.msra.mxu0 %v897
    %3647 = vmatprep.subr.mxu0 %v902
    %3648 = vmatpush1.msra.mxu0 %v901
    %3649 = vmatprep.subr.mxu0 %v906
    %3650 = vmatpush1.msra.mxu0 %v905
    %3651 = vmatprep.subr.mxu0 %v910
    %3652 = vmatpush1.msra.mxu0 %v909
    %3653 = vmatprep.subr.mxu0 %v914
    %3654 = vmatpush1.msra.mxu0 %v913
    %3655 = vmatprep.subr.mxu0 %v918
    %3656 = vmatpush1.msra.mxu0 %v917
    %3657 = vmatprep.subr.mxu0 %v922
    %3658 = vmatpush1.msra.mxu0 %v921
    %3659 = vmatprep.subr.mxu0 %v926
    %3660 = vmatpush1.msra.mxu0 %v925
    %3661 = vmatprep.subr.mxu0 %v930
    %3662 = vmatpush1.msra.mxu0 %v929
    %3663 = vmatprep.subr.mxu0 %v934
    %3664 = vmatpush1.msra.mxu0 %v933
    %3665 = vmatprep.subr.mxu0 %v938
    %3666 = vmatpush1.msra.mxu0 %v937
    %3667 = vmatprep.subr.mxu0 %v942
    %3668 = vmatpush1.msra.mxu0 %v941
    %3669 = vmatprep.subr.mxu0 %v946
    %3670 = vmatpush1.msra.mxu0 %v945
    %3671 = vmatprep.subr.mxu0 %v950
    %3672 = vmatpush1.msra.mxu0 %v949
    %3673 = vmatprep.subr.mxu0 %v954
    %3674 = vmatpush1.msra.mxu0 %v953
    %3675 = vmatprep.subr.mxu0 %v958
    %3676 = vmatpush1.msra.mxu0 %v957
    %3677 = vmatprep.subr.mxu0 0.0
    %3678 = vmatpush1.msra.mxu0 0.0
    %3679 = vmatprep.subr.mxu0 0.0
    %3680 = vmatpush1.msra.mxu0 0.0
    %3681 = vmatprep.subr.mxu0 0.0
    %3682 = vmatpush1.msra.mxu0 0.0
    %3683 = vmatprep.subr.mxu0 0.0
    %3684 = vmatpush1.msra.mxu0 0.0
    %3685 = vmatprep.subr.mxu0 0.0
    %3686 = vmatpush1.msra.mxu0 0.0
    %3687 = vmatprep.subr.mxu0 0.0
    %3688 = vmatpush1.msra.mxu0 0.0
    %3689 = vmatprep.subr.mxu0 0.0
    %3690 = vmatpush1.msra.mxu0 0.0
    %3691 = vmatprep.subr.mxu0 0.0
    %3692 = vmatpush1.msra.mxu0 0.0
    %3693 = vmatprep.subr.mxu0 0.0
    %3694 = vmatpush1.msra.mxu0 0.0
    %3695 = vmatprep.subr.mxu0 0.0
    %3696 = vmatpush1.msra.mxu0 0.0
    %3697 = vmatprep.subr.mxu0 0.0
    %3698 = vmatpush1.msra.mxu0 0.0
    %3699 = vmatprep.subr.mxu0 0.0
    %3700 = vmatpush1.msra.mxu0 0.0
    %3701 = vmatprep.subr.mxu0 0.0
    %3702 = vmatpush1.msra.mxu0 0.0
    %3703 = vmatprep.subr.mxu0 0.0
    %3704 = vmatpush1.msra.mxu0 0.0
    %3705 = vmatprep.subr.mxu0 0.0
    %3706 = vmatpush1.msra.mxu0 0.0
    %3707 = vmatprep.subr.mxu0 0.0
    %3708 = vmatpush1.msra.mxu0 0.0
    %3709 = vmatprep.mubr.f32.mxu0 0.0
    %3710 = vmatmul.mubr.f32.gmra.mrb[0].mxu0 %v3388
    %v3711 = vpop.f32.mrb[0].mxu0
    %v3712 = vadd.f32 0.0, %v3711
    %v3713 = vpop.f32.mrb[0].mxu0
    %v3714 = vadd.f32 0.0, %v3713
    %3715 = vdwg.mxu0
    %v3716 = vadd.f32 %v3570, %v3641
    %v3717 = vadd.f32 %v3571, %v3643
    %v3718 = vadd.f32 %v3572, %v3712
    %v3719 = vadd.f32 %v3573, %v3714
    %v3720 = vxor.u32 %v3716, 2147483648
    %v3721 = vmul.f32 %v3720, 1.442695
    %v3722 = vpow.pop %v3721
    %v3723 = vadd.f32 %v3722, 1.0
    %v3724 = vrcp.pop %v3723
    %v3725 = vmul.f32 1.0, %v3724
    %v3726 = vxor.u32 %v3717, 2147483648
    %v3727 = vmul.f32 %v3726, 1.442695
    %v3728 = vpow.pop %v3727
    %v3729 = vadd.f32 %v3728, 1.0
    %v3730 = vrcp.pop %v3729
    %v3731 = vmul.f32 1.0, %v3730
    %v3732 = vtanh.pop %v3718
    %v3733 = vxor.u32 %v3719, 2147483648
    %v3734 = vmul.f32 %v3733, 1.442695
    %v3735 = vpow.pop %v3734
    %v3736 = vadd.f32 %v3735, 1.0
    %v3737 = vrcp.pop %v3736
    %v3738 = vmul.f32 1.0, %v3737
    %v3739 = vmul.f32 %v3731, %v3389
    %v3740 = vmul.f32 %v3725, %v3732
    %v3741 = vadd.f32 %v3739, %v3740
    %v3742 = vtanh.pop %v3741
    %v3743 = vmul.f32 %v3738, %v3742
    %v3744 = vsel %vm1385, %v3743, %v3388
    %v3745 = vld [vmem:[#allocation4] sm:$0xff]
    %v3746 = vld [vmem:[#allocation4 + $0x8] sm:$0xff]
    %v3747 = vld [vmem:[#allocation4 + $0x10] sm:$0xff]
    %v3748 = vld [vmem:[#allocation4 + $0x18] sm:$0xff]
    %3749 = vmatprep.subr.mxu0 %v960
    %3750 = vmatpush1.msra.mxu0 %v959
    %3751 = vmatprep.subr.mxu0 %v964
    %3752 = vmatpush1.msra.mxu0 %v963
    %3753 = vmatprep.subr.mxu0 %v968
    %3754 = vmatpush1.msra.mxu0 %v967
    %3755 = vmatprep.subr.mxu0 %v972
    %3756 = vmatpush1.msra.mxu0 %v971
    %3757 = vmatprep.subr.mxu0 %v976
    %3758 = vmatpush1.msra.mxu0 %v975
    %3759 = vmatprep.subr.mxu0 %v980
    %3760 = vmatpush1.msra.mxu0 %v979
    %3761 = vmatprep.subr.mxu0 %v984
    %3762 = vmatpush1.msra.mxu0 %v983
    %3763 = vmatprep.subr.mxu0 %v988
    %3764 = vmatpush1.msra.mxu0 %v987
    %3765 = vmatprep.subr.mxu0 %v992
    %3766 = vmatpush1.msra.mxu0 %v991
    %3767 = vmatprep.subr.mxu0 %v996
    %3768 = vmatpush1.msra.mxu0 %v995
    %3769 = vmatprep.subr.mxu0 %v1000
    %3770 = vmatpush1.msra.mxu0 %v999
    %3771 = vmatprep.subr.mxu0 %v1004
    %3772 = vmatpush1.msra.mxu0 %v1003
    %3773 = vmatprep.subr.mxu0 %v1008
    %3774 = vmatpush1.msra.mxu0 %v1007
    %3775 = vmatprep.subr.mxu0 %v1012
    %3776 = vmatpush1.msra.mxu0 %v1011
    %3777 = vmatprep.subr.mxu0 %v1016
    %3778 = vmatpush1.msra.mxu0 %v1015
    %3779 = vmatprep.subr.mxu0 %v1020
    %3780 = vmatpush1.msra.mxu0 %v1019
    %3781 = vmatprep.subr.mxu0 0.0
    %3782 = vmatpush1.msra.mxu0 0.0
    %3783 = vmatprep.subr.mxu0 0.0
    %3784 = vmatpush1.msra.mxu0 0.0
    %3785 = vmatprep.subr.mxu0 0.0
    %3786 = vmatpush1.msra.mxu0 0.0
    %3787 = vmatprep.subr.mxu0 0.0
    %3788 = vmatpush1.msra.mxu0 0.0
    %3789 = vmatprep.subr.mxu0 0.0
    %3790 = vmatpush1.msra.mxu0 0.0
    %3791 = vmatprep.subr.mxu0 0.0
    %3792 = vmatpush1.msra.mxu0 0.0
    %3793 = vmatprep.subr.mxu0 0.0
    %3794 = vmatpush1.msra.mxu0 0.0
    %3795 = vmatprep.subr.mxu0 0.0
    %3796 = vmatpush1.msra.mxu0 0.0
    %3797 = vmatprep.subr.mxu0 0.0
    %3798 = vmatpush1.msra.mxu0 0.0
    %3799 = vmatprep.subr.mxu0 0.0
    %3800 = vmatpush1.msra.mxu0 0.0
    %3801 = vmatprep.subr.mxu0 0.0
    %3802 = vmatpush1.msra.mxu0 0.0
    %3803 = vmatprep.subr.mxu0 0.0
    %3804 = vmatpush1.msra.mxu0 0.0
    %3805 = vmatprep.subr.mxu0 0.0
    %3806 = vmatpush1.msra.mxu0 0.0
    %3807 = vmatprep.subr.mxu0 0.0
    %3808 = vmatpush1.msra.mxu0 0.0
    %3809 = vmatprep.subr.mxu0 0.0
    %3810 = vmatpush1.msra.mxu0 0.0
    %3811 = vmatprep.subr.mxu0 0.0
    %3812 = vmatpush1.msra.mxu0 0.0
    %3813 = vmatprep.mubr.f32.mxu0 0.0
    %3814 = vmatmul.mubr.f32.gmra.mrb[0].mxu0 %v3565
    %v3815 = vpop.f32.mrb[0].mxu0
    %v3816 = vadd.f32 0.0, %v3815
    %v3817 = vpop.f32.mrb[0].mxu0
    %v3818 = vadd.f32 0.0, %v3817
    %3819 = vdwg.mxu0
    %3820 = vmatprep.subr.mxu0 %v962
    %3821 = vmatpush1.msra.mxu0 %v961
    %3822 = vmatprep.subr.mxu0 %v966
    %3823 = vmatpush1.msra.mxu0 %v965
    %3824 = vmatprep.subr.mxu0 %v970
    %3825 = vmatpush1.msra.mxu0 %v969
    %3826 = vmatprep.subr.mxu0 %v974
    %3827 = vmatpush1.msra.mxu0 %v973
    %3828 = vmatprep.subr.mxu0 %v978
    %3829 = vmatpush1.msra.mxu0 %v977
    %3830 = vmatprep.subr.mxu0 %v982
    %3831 = vmatpush1.msra.mxu0 %v981
    %3832 = vmatprep.subr.mxu0 %v986
    %3833 = vmatpush1.msra.mxu0 %v985
    %3834 = vmatprep.subr.mxu0 %v990
    %3835 = vmatpush1.msra.mxu0 %v989
    %3836 = vmatprep.subr.mxu0 %v994
    %3837 = vmatpush1.msra.mxu0 %v993
    %3838 = vmatprep.subr.mxu0 %v998
    %3839 = vmatpush1.msra.mxu0 %v997
    %3840 = vmatprep.subr.mxu0 %v1002
    %3841 = vmatpush1.msra.mxu0 %v1001
    %3842 = vmatprep.subr.mxu0 %v1006
    %3843 = vmatpush1.msra.mxu0 %v1005
    %3844 = vmatprep.subr.mxu0 %v1010
    %3845 = vmatpush1.msra.mxu0 %v1009
    %3846 = vmatprep.subr.mxu0 %v1014
    %3847 = vmatpush1.msra.mxu0 %v1013
    %3848 = vmatprep.subr.mxu0 %v1018
    %3849 = vmatpush1.msra.mxu0 %v1017
    %3850 = vmatprep.subr.mxu0 %v1022
    %3851 = vmatpush1.msra.mxu0 %v1021
    %3852 = vmatprep.subr.mxu0 0.0
    %3853 = vmatpush1.msra.mxu0 0.0
    %3854 = vmatprep.subr.mxu0 0.0
    %3855 = vmatpush1.msra.mxu0 0.0
    %3856 = vmatprep.subr.mxu0 0.0
    %3857 = vmatpush1.msra.mxu0 0.0
    %3858 = vmatprep.subr.mxu0 0.0
    %3859 = vmatpush1.msra.mxu0 0.0
    %3860 = vmatprep.subr.mxu0 0.0
    %3861 = vmatpush1.msra.mxu0 0.0
    %3862 = vmatprep.subr.mxu0 0.0
    %3863 = vmatpush1.msra.mxu0 0.0
    %3864 = vmatprep.subr.mxu0 0.0
    %3865 = vmatpush1.msra.mxu0 0.0
    %3866 = vmatprep.subr.mxu0 0.0
    %3867 = vmatpush1.msra.mxu0 0.0
    %3868 = vmatprep.subr.mxu0 0.0
    %3869 = vmatpush1.msra.mxu0 0.0
    %3870 = vmatprep.subr.mxu0 0.0
    %3871 = vmatpush1.msra.mxu0 0.0
    %3872 = vmatprep.subr.mxu0 0.0
    %3873 = vmatpush1.msra.mxu0 0.0
    %3874 = vmatprep.subr.mxu0 0.0
    %3875 = vmatpush1.msra.mxu0 0.0
    %3876 = vmatprep.subr.mxu0 0.0
    %3877 = vmatpush1.msra.mxu0 0.0
    %3878 = vmatprep.subr.mxu0 0.0
    %3879 = vmatpush1.msra.mxu0 0.0
    %3880 = vmatprep.subr.mxu0 0.0
    %3881 = vmatpush1.msra.mxu0 0.0
    %3882 = vmatprep.subr.mxu0 0.0
    %3883 = vmatpush1.msra.mxu0 0.0
    %3884 = vmatprep.mubr.f32.mxu0 0.0
    %3885 = vmatmul.mubr.f32.gmra.mrb[0].mxu0 %v3565
    %v3886 = vpop.f32.mrb[0].mxu0
    %v3887 = vadd.f32 0.0, %v3886
    %v3888 = vpop.f32.mrb[0].mxu0
    %v3889 = vadd.f32 0.0, %v3888
    %3890 = vdwg.mxu0
    %v3891 = vadd.f32 %v3745, %v3816
    %v3892 = vadd.f32 %v3746, %v3818
    %v3893 = vadd.f32 %v3747, %v3887
    %v3894 = vadd.f32 %v3748, %v3889
    %v3895 = vxor.u32 %v3891, 2147483648
    %v3896 = vmul.f32 %v3895, 1.442695
    %v3897 = vpow.pop %v3896
    %v3898 = vadd.f32 %v3897, 1.0
    %v3899 = vrcp.pop %v3898
    %v3900 = vmul.f32 1.0, %v3899
    %v3901 = vxor.u32 %v3892, 2147483648
    %v3902 = vmul.f32 %v3901, 1.442695
    %v3903 = vpow.pop %v3902
    %v3904 = vadd.f32 %v3903, 1.0
    %v3905 = vrcp.pop %v3904
    %v3906 = vmul.f32 1.0, %v3905
    %v3907 = vtanh.pop %v3893
    %v3908 = vxor.u32 %v3894, 2147483648
    %v3909 = vmul.f32 %v3908, 1.442695
    %v3910 = vpow.pop %v3909
    %v3911 = vadd.f32 %v3910, 1.0
    %v3912 = vrcp.pop %v3911
    %v3913 = vmul.f32 1.0, %v3912
    %v3914 = vmul.f32 %v3906, %v3566
    %v3915 = vmul.f32 %v3900, %v3907
    %v3916 = vadd.f32 %v3914, %v3915
    %v3917 = vtanh.pop %v3916
    %v3918 = vmul.f32 %v3913, %v3917
    %v3919 = vsel %vm1202, %v3918, %v3565
    %3920 = vst [vmem:[%s1389] sm:$0xff] %v3744
    %3921 = vst [vmem:[#allocation2 + $0x8] sm:$0xff] %v3919
    %v3922 = vld [vmem:[#allocation2] sm:$0xff]
    %v3923 = vld [vmem:[#allocation2 + $0x8] sm:$0xff]
    %v3924 = vld [vmem:[#allocation2 + $0x10] sm:$0xff]
    %v3925 = vld [vmem:[#allocation2 + $0x18] sm:$0xff]
    %v3926 = vld [vmem:[#allocation2 + $0x20] sm:$0xff]
    %v3927 = vld [vmem:[#allocation2 + $0x28] sm:$0xff]
    %v3928 = vld [vmem:[#allocation2 + $0x30] sm:$0xff]
    %v3929 = vld [vmem:[#allocation2 + $0x38] sm:$0xff]
    %v3930 = vld [vmem:[#allocation2 + $0x40] sm:$0xff]
    %v3931 = vld [vmem:[#allocation2 + $0x48] sm:$0xff]
    %v3932 = vld [vmem:[#allocation2 + $0x50] sm:$0xff]
    %v3933 = vld [vmem:[#allocation2 + $0x58] sm:$0xff]
    %v3934 = vld [vmem:[#allocation2 + $0x60] sm:$0xff]
    %v3935 = vld [vmem:[#allocation2 + $0x68] sm:$0xff]
    %v3936 = vld [vmem:[#allocation2 + $0x70] sm:$0xff]
    %v3937 = vld [vmem:[#allocation2 + $0x78] sm:$0xff]
    %v3938 = vld [vmem:[#allocation10] sm:$0xff]
    %v3939 = vld [vmem:[#allocation10 + $0x8] sm:$0xff]
    %v3940 = vld [vmem:[#allocation10 + $0x10] sm:$0xff]
    %v3941 = vld [vmem:[#allocation10 + $0x18] sm:$0xff]
    %v3942 = vld [vmem:[#allocation10 + $0x20] sm:$0xff]
    %v3943 = vld [vmem:[#allocation10 + $0x28] sm:$0xff]
    %v3944 = vld [vmem:[#allocation10 + $0x30] sm:$0xff]
    %v3945 = vld [vmem:[#allocation10 + $0x38] sm:$0xff]
    %v3946 = vld [vmem:[#allocation10 + $0x40] sm:$0xff]
    %v3947 = vld [vmem:[#allocation10 + $0x48] sm:$0xff]
    %v3948 = vld [vmem:[#allocation10 + $0x50] sm:$0xff]
    %v3949 = vld [vmem:[#allocation10 + $0x58] sm:$0xff]
    %v3950 = vld [vmem:[#allocation10 + $0x60] sm:$0xff]
    %v3951 = vld [vmem:[#allocation10 + $0x68] sm:$0xff]
    %v3952 = vld [vmem:[#allocation10 + $0x70] sm:$0xff]
    %v3953 = vld [vmem:[#allocation10 + $0x78] sm:$0xff]
    %v3954 = vld [vmem:[#allocation10 + $0x80] sm:$0xff]
    %v3955 = vld [vmem:[#allocation10 + $0x88] sm:$0xff]
    %v3956 = vld [vmem:[#allocation10 + $0x90] sm:$0xff]
    %v3957 = vld [vmem:[#allocation10 + $0x98] sm:$0xff]
    %v3958 = vld [vmem:[#allocation10 + $0xa0] sm:$0xff]
    %v3959 = vld [vmem:[#allocation10 + $0xa8] sm:$0xff]
    %v3960 = vld [vmem:[#allocation10 + $0xb0] sm:$0xff]
    %v3961 = vld [vmem:[#allocation10 + $0xb8] sm:$0xff]
    %v3962 = vld [vmem:[#allocation10 + $0xc0] sm:$0xff]
    %v3963 = vld [vmem:[#allocation10 + $0xc8] sm:$0xff]
    %v3964 = vld [vmem:[#allocation10 + $0xd0] sm:$0xff]
    %v3965 = vld [vmem:[#allocation10 + $0xd8] sm:$0xff]
    %v3966 = vld [vmem:[#allocation10 + $0xe0] sm:$0xff]
    %v3967 = vld [vmem:[#allocation10 + $0xe8] sm:$0xff]
    %v3968 = vld [vmem:[#allocation10 + $0xf0] sm:$0xff]
    %v3969 = vld [vmem:[#allocation10 + $0xf8] sm:$0xff]
    %v3970 = vld [vmem:[#allocation10 + $0x100] sm:$0xff]
    %v3971 = vld [vmem:[#allocation10 + $0x108] sm:$0xff]
    %v3972 = vld [vmem:[#allocation10 + $0x110] sm:$0xff]
    %v3973 = vld [vmem:[#allocation10 + $0x118] sm:$0xff]
    %v3974 = vld [vmem:[#allocation10 + $0x120] sm:$0xff]
    %v3975 = vld [vmem:[#allocation10 + $0x128] sm:$0xff]
    %v3976 = vld [vmem:[#allocation10 + $0x130] sm:$0xff]
    %v3977 = vld [vmem:[#allocation10 + $0x138] sm:$0xff]
    %v3978 = vld [vmem:[#allocation10 + $0x140] sm:$0xff]
    %v3979 = vld [vmem:[#allocation10 + $0x148] sm:$0xff]
    %v3980 = vld [vmem:[#allocation10 + $0x150] sm:$0xff]
    %v3981 = vld [vmem:[#allocation10 + $0x158] sm:$0xff]
    %v3982 = vld [vmem:[#allocation10 + $0x160] sm:$0xff]
    %v3983 = vld [vmem:[#allocation10 + $0x168] sm:$0xff]
    %v3984 = vld [vmem:[#allocation10 + $0x170] sm:$0xff]
    %v3985 = vld [vmem:[#allocation10 + $0x178] sm:$0xff]
    %v3986 = vld [vmem:[#allocation10 + $0x180] sm:$0xff]
    %v3987 = vld [vmem:[#allocation10 + $0x188] sm:$0xff]
    %v3988 = vld [vmem:[#allocation10 + $0x190] sm:$0xff]
    %v3989 = vld [vmem:[#allocation10 + $0x198] sm:$0xff]
    %v3990 = vld [vmem:[#allocation10 + $0x1a0] sm:$0xff]
    %v3991 = vld [vmem:[#allocation10 + $0x1a8] sm:$0xff]
    %v3992 = vld [vmem:[#allocation10 + $0x1b0] sm:$0xff]
    %v3993 = vld [vmem:[#allocation10 + $0x1b8] sm:$0xff]
    %v3994 = vld [vmem:[#allocation10 + $0x1c0] sm:$0xff]
    %v3995 = vld [vmem:[#allocation10 + $0x1c8] sm:$0xff]
    %v3996 = vld [vmem:[#allocation10 + $0x1d0] sm:$0xff]
    %v3997 = vld [vmem:[#allocation10 + $0x1d8] sm:$0xff]
    %v3998 = vld [vmem:[#allocation10 + $0x1e0] sm:$0xff]
    %v3999 = vld [vmem:[#allocation10 + $0x1e8] sm:$0xff]
    %v4000 = vld [vmem:[#allocation10 + $0x1f0] sm:$0xff]
    %v4001 = vld [vmem:[#allocation10 + $0x1f8] sm:$0xff]
    %v4002 = vld [vmem:[#allocation10 + $0x200] sm:$0xff]
    %v4003 = vld [vmem:[#allocation10 + $0x208] sm:$0xff]
    %v4004 = vld [vmem:[#allocation10 + $0x210] sm:$0xff]
    %v4005 = vld [vmem:[#allocation10 + $0x218] sm:$0xff]
    %v4006 = vld [vmem:[#allocation10 + $0x220] sm:$0xff]
    %v4007 = vld [vmem:[#allocation10 + $0x228] sm:$0xff]
    %v4008 = vld [vmem:[#allocation10 + $0x230] sm:$0xff]
    %v4009 = vld [vmem:[#allocation10 + $0x238] sm:$0xff]
    %v4010 = vld [vmem:[#allocation10 + $0x240] sm:$0xff]
    %v4011 = vld [vmem:[#allocation10 + $0x248] sm:$0xff]
    %v4012 = vld [vmem:[#allocation10 + $0x250] sm:$0xff]
    %v4013 = vld [vmem:[#allocation10 + $0x258] sm:$0xff]
    %v4014 = vld [vmem:[#allocation10 + $0x260] sm:$0xff]
    %v4015 = vld [vmem:[#allocation10 + $0x268] sm:$0xff]
    %v4016 = vld [vmem:[#allocation10 + $0x270] sm:$0xff]
    %v4017 = vld [vmem:[#allocation10 + $0x278] sm:$0xff]
    %v4018 = vld [vmem:[#allocation10 + $0x280] sm:$0xff]
    %v4019 = vld [vmem:[#allocation10 + $0x288] sm:$0xff]
    %v4020 = vld [vmem:[#allocation10 + $0x290] sm:$0xff]
    %v4021 = vld [vmem:[#allocation10 + $0x298] sm:$0xff]
    %v4022 = vld [vmem:[#allocation10 + $0x2a0] sm:$0xff]
    %v4023 = vld [vmem:[#allocation10 + $0x2a8] sm:$0xff]
    %v4024 = vld [vmem:[#allocation10 + $0x2b0] sm:$0xff]
    %v4025 = vld [vmem:[#allocation10 + $0x2b8] sm:$0xff]
    %v4026 = vld [vmem:[#allocation10 + $0x2c0] sm:$0xff]
    %v4027 = vld [vmem:[#allocation10 + $0x2c8] sm:$0xff]
    %v4028 = vld [vmem:[#allocation10 + $0x2d0] sm:$0xff]
    %v4029 = vld [vmem:[#allocation10 + $0x2d8] sm:$0xff]
    %v4030 = vld [vmem:[#allocation10 + $0x2e0] sm:$0xff]
    %v4031 = vld [vmem:[#allocation10 + $0x2e8] sm:$0xff]
    %v4032 = vld [vmem:[#allocation10 + $0x2f0] sm:$0xff]
    %v4033 = vld [vmem:[#allocation10 + $0x2f8] sm:$0xff]
    %v4034 = vld [vmem:[#allocation10 + $0x300] sm:$0xff]
    %v4035 = vld [vmem:[#allocation10 + $0x308] sm:$0xff]
    %v4036 = vld [vmem:[#allocation10 + $0x310] sm:$0xff]
    %v4037 = vld [vmem:[#allocation10 + $0x318] sm:$0xff]
    %v4038 = vld [vmem:[#allocation10 + $0x320] sm:$0xff]
    %v4039 = vld [vmem:[#allocation10 + $0x328] sm:$0xff]
    %v4040 = vld [vmem:[#allocation10 + $0x330] sm:$0xff]
    %v4041 = vld [vmem:[#allocation10 + $0x338] sm:$0xff]
    %v4042 = vld [vmem:[#allocation10 + $0x340] sm:$0xff]
    %v4043 = vld [vmem:[#allocation10 + $0x348] sm:$0xff]
    %v4044 = vld [vmem:[#allocation10 + $0x350] sm:$0xff]
    %v4045 = vld [vmem:[#allocation10 + $0x358] sm:$0xff]
    %v4046 = vld [vmem:[#allocation10 + $0x360] sm:$0xff]
    %v4047 = vld [vmem:[#allocation10 + $0x368] sm:$0xff]
    %v4048 = vld [vmem:[#allocation10 + $0x370] sm:$0xff]
    %v4049 = vld [vmem:[#allocation10 + $0x378] sm:$0xff]
    %v4050 = vld [vmem:[#allocation10 + $0x380] sm:$0xff]
    %v4051 = vld [vmem:[#allocation10 + $0x388] sm:$0xff]
    %v4052 = vld [vmem:[#allocation10 + $0x390] sm:$0xff]
    %v4053 = vld [vmem:[#allocation10 + $0x398] sm:$0xff]
    %v4054 = vld [vmem:[#allocation10 + $0x3a0] sm:$0xff]
    %v4055 = vld [vmem:[#allocation10 + $0x3a8] sm:$0xff]
    %v4056 = vld [vmem:[#allocation10 + $0x3b0] sm:$0xff]
    %v4057 = vld [vmem:[#allocation10 + $0x3b8] sm:$0xff]
    %v4058 = vld [vmem:[#allocation10 + $0x3c0] sm:$0xff]
    %v4059 = vld [vmem:[#allocation10 + $0x3c8] sm:$0xff]
    %v4060 = vld [vmem:[#allocation10 + $0x3d0] sm:$0xff]
    %v4061 = vld [vmem:[#allocation10 + $0x3d8] sm:$0xff]
    %v4062 = vld [vmem:[#allocation10 + $0x3e0] sm:$0xff]
    %v4063 = vld [vmem:[#allocation10 + $0x3e8] sm:$0xff]
    %v4064 = vld [vmem:[#allocation10 + $0x3f0] sm:$0xff]
    %v4065 = vld [vmem:[#allocation10 + $0x3f8] sm:$0xff]
    %v4066 = vld [vmem:[%s11] sm:$0xf]
    %v4068 = vlaneseq
    %v4069 = vshrl.u32 %v4068, 7
    %v4070 = vsub.s32 0, %v4069
    %v4071 = vrot.slane %v4066, %v4070
    %v4072 = vlaneseq
    %v4073 = vshrl.u32 %v4072, 7
    %v4074 = vsub.s32 1, %v4073
    %v4075 = vrot.slane %v4066, %v4074
    %v4076 = vlaneseq
    %v4077 = vshrl.u32 %v4076, 7
    %v4078 = vsub.s32 2, %v4077
    %v4079 = vrot.slane %v4066, %v4078
    %v4080 = vlaneseq
    %v4081 = vshrl.u32 %v4080, 7
    %v4082 = vsub.s32 3, %v4081
    %v4083 = vrot.slane %v4066, %v4082
    %4088 = vmatprep.subr.mxu0 %v3939
    %4089 = vmatpush1.msra.mxu0 %v3938
    %4090 = vmatprep.subr.mxu0 %v3943
    %4091 = vmatpush1.msra.mxu0 %v3942
    %4092 = vmatprep.subr.mxu0 %v3947
    %4093 = vmatpush1.msra.mxu0 %v3946
    %4094 = vmatprep.subr.mxu0 %v3951
    %4095 = vmatpush1.msra.mxu0 %v3950
    %4096 = vmatprep.subr.mxu0 %v3955
    %4097 = vmatpush1.msra.mxu0 %v3954
    %4098 = vmatprep.subr.mxu0 %v3959
    %4099 = vmatpush1.msra.mxu0 %v3958
    %4100 = vmatprep.subr.mxu0 %v3963
    %4101 = vmatpush1.msra.mxu0 %v3962
    %4102 = vmatprep.subr.mxu0 %v3967
    %4103 = vmatpush1.msra.mxu0 %v3966
    %4104 = vmatprep.subr.mxu0 %v3971
    %4105 = vmatpush1.msra.mxu0 %v3970
    %4106 = vmatprep.subr.mxu0 %v3975
    %4107 = vmatpush1.msra.mxu0 %v3974
    %4108 = vmatprep.subr.mxu0 %v3979
    %4109 = vmatpush1.msra.mxu0 %v3978
    %4110 = vmatprep.subr.mxu0 %v3983
    %4111 = vmatpush1.msra.mxu0 %v3982
    %4112 = vmatprep.subr.mxu0 %v3987
    %4113 = vmatpush1.msra.mxu0 %v3986
    %4114 = vmatprep.subr.mxu0 %v3991
    %4115 = vmatpush1.msra.mxu0 %v3990
    %4116 = vmatprep.subr.mxu0 %v3995
    %4117 = vmatpush1.msra.mxu0 %v3994
    %4118 = vmatprep.subr.mxu0 %v3999
    %4119 = vmatpush1.msra.mxu0 %v3998
    %4120 = vmatprep.subr.mxu0 %v4003
    %4121 = vmatpush1.msra.mxu0 %v4002
    %4122 = vmatprep.subr.mxu0 %v4007
    %4123 = vmatpush1.msra.mxu0 %v4006
    %4124 = vmatprep.subr.mxu0 %v4011
    %4125 = vmatpush1.msra.mxu0 %v4010
    %4126 = vmatprep.subr.mxu0 %v4015
    %4127 = vmatpush1.msra.mxu0 %v4014
    %4128 = vmatprep.subr.mxu0 %v4019
    %4129 = vmatpush1.msra.mxu0 %v4018
    %4130 = vmatprep.subr.mxu0 %v4023
    %4131 = vmatpush1.msra.mxu0 %v4022
    %4132 = vmatprep.subr.mxu0 %v4027
    %4133 = vmatpush1.msra.mxu0 %v4026
    %4134 = vmatprep.subr.mxu0 %v4031
    %4135 = vmatpush1.msra.mxu0 %v4030
    %4136 = vmatprep.subr.mxu0 %v4035
    %4137 = vmatpush1.msra.mxu0 %v4034
    %4138 = vmatprep.subr.mxu0 %v4039
    %4139 = vmatpush1.msra.mxu0 %v4038
    %4140 = vmatprep.subr.mxu0 %v4043
    %4141 = vmatpush1.msra.mxu0 %v4042
    %4142 = vmatprep.subr.mxu0 %v4047
    %4143 = vmatpush1.msra.mxu0 %v4046
    %4144 = vmatprep.subr.mxu0 %v4051
    %4145 = vmatpush1.msra.mxu0 %v4050
    %4146 = vmatprep.subr.mxu0 %v4055
    %4147 = vmatpush1.msra.mxu0 %v4054
    %4148 = vmatprep.subr.mxu0 %v4059
    %4149 = vmatpush1.msra.mxu0 %v4058
    %4150 = vmatprep.subr.mxu0 %v4063
    %4151 = vmatpush1.msra.mxu0 %v4062
    %4152 = vmatprep.mubr.f32.mxu0 %v3923
    %4153 = vmatmul.mubr.f32.gmra.mrb[0].mxu0 %v3922
    %v4154 = vpop.f32.mrb[0].mxu0
    %v4155 = vadd.f32 %v4071, %v4154
    %v4156 = vpop.f32.mrb[0].mxu0
    %v4157 = vadd.f32 %v4075, %v4156
    %4158 = vmatprep.mubr.f32.mxu0 %v3925
    %4159 = vmatmul.mubr.f32.gmra.mrb[0].mxu0 %v3924
    %v4160 = vpop.f32.mrb[0].mxu0
    %v4161 = vadd.f32 %v4071, %v4160
    %v4162 = vpop.f32.mrb[0].mxu0
    %v4163 = vadd.f32 %v4075, %v4162
    %4164 = vmatprep.mubr.f32.mxu0 %v3927
    %4165 = vmatmul.mubr.f32.gmra.mrb[0].mxu0 %v3926
    %v4166 = vpop.f32.mrb[0].mxu0
    %v4167 = vadd.f32 %v4071, %v4166
    %v4168 = vpop.f32.mrb[0].mxu0
    %v4169 = vadd.f32 %v4075, %v4168
    %4170 = vmatprep.mubr.f32.mxu0 %v3929
    %4171 = vmatmul.mubr.f32.gmra.mrb[0].mxu0 %v3928
    %v4172 = vpop.f32.mrb[0].mxu0
    %v4173 = vadd.f32 %v4071, %v4172
    %v4174 = vpop.f32.mrb[0].mxu0
    %v4175 = vadd.f32 %v4075, %v4174
    %4176 = vmatprep.mubr.f32.mxu0 %v3931
    %4177 = vmatmul.mubr.f32.gmra.mrb[0].mxu0 %v3930
    %v4178 = vpop.f32.mrb[0].mxu0
    %v4179 = vadd.f32 %v4071, %v4178
    %v4180 = vpop.f32.mrb[0].mxu0
    %v4181 = vadd.f32 %v4075, %v4180
    %4182 = vmatprep.mubr.f32.mxu0 %v3933
    %4183 = vmatmul.mubr.f32.gmra.mrb[0].mxu0 %v3932
    %v4184 = vpop.f32.mrb[0].mxu0
    %v4185 = vadd.f32 %v4071, %v4184
    %v4186 = vpop.f32.mrb[0].mxu0
    %v4187 = vadd.f32 %v4075, %v4186
    %4188 = vmatprep.mubr.f32.mxu0 %v3935
    %4189 = vmatmul.mubr.f32.gmra.mrb[0].mxu0 %v3934
    %v4190 = vpop.f32.mrb[0].mxu0
    %v4191 = vadd.f32 %v4071, %v4190
    %v4192 = vpop.f32.mrb[0].mxu0
    %v4193 = vadd.f32 %v4075, %v4192
    %4194 = vmatprep.mubr.f32.mxu0 %v3937
    %4195 = vmatmul.mubr.f32.gmra.mrb[0].mxu0 %v3936
    %v4196 = vpop.f32.mrb[0].mxu0
    %v4197 = vadd.f32 %v4071, %v4196
    %v4198 = vpop.f32.mrb[0].mxu0
    %v4199 = vadd.f32 %v4075, %v4198
    %4200 = vdwg.mxu0
    %4201 = vmatprep.subr.mxu0 %v3941
    %4202 = vmatpush1.msra.mxu0 %v3940
    %4203 = vmatprep.subr.mxu0 %v3945
    %4204 = vmatpush1.msra.mxu0 %v3944
    %4205 = vmatprep.subr.mxu0 %v3949
    %4206 = vmatpush1.msra.mxu0 %v3948
    %4207 = vmatprep.subr.mxu0 %v3953
    %4208 = vmatpush1.msra.mxu0 %v3952
    %4209 = vmatprep.subr.mxu0 %v3957
    %4210 = vmatpush1.msra.mxu0 %v3956
    %4211 = vmatprep.subr.mxu0 %v3961
    %4212 = vmatpush1.msra.mxu0 %v3960
    %4213 = vmatprep.subr.mxu0 %v3965
    %4214 = vmatpush1.msra.mxu0 %v3964
    %4215 = vmatprep.subr.mxu0 %v3969
    %4216 = vmatpush1.msra.mxu0 %v3968
    %4217 = vmatprep.subr.mxu0 %v3973
    %4218 = vmatpush1.msra.mxu0 %v3972
    %4219 = vmatprep.subr.mxu0 %v3977
    %4220 = vmatpush1.msra.mxu0 %v3976
    %4221 = vmatprep.subr.mxu0 %v3981
    %4222 = vmatpush1.msra.mxu0 %v3980
    %4223 = vmatprep.subr.mxu0 %v3985
    %4224 = vmatpush1.msra.mxu0 %v3984
    %4225 = vmatprep.subr.mxu0 %v3989
    %4226 = vmatpush1.msra.mxu0 %v3988
    %4227 = vmatprep.subr.mxu0 %v3993
    %4228 = vmatpush1.msra.mxu0 %v3992
    %4229 = vmatprep.subr.mxu0 %v3997
    %4230 = vmatpush1.msra.mxu0 %v3996
    %4231 = vmatprep.subr.mxu0 %v4001
    %4232 = vmatpush1.msra.mxu0 %v4000
    %4233 = vmatprep.subr.mxu0 %v4005
    %4234 = vmatpush1.msra.mxu0 %v4004
    %4235 = vmatprep.subr.mxu0 %v4009
    %4236 = vmatpush1.msra.mxu0 %v4008
    %4237 = vmatprep.subr.mxu0 %v4013
    %4238 = vmatpush1.msra.mxu0 %v4012
    %4239 = vmatprep.subr.mxu0 %v4017
    %4240 = vmatpush1.msra.mxu0 %v4016
    %4241 = vmatprep.subr.mxu0 %v4021
    %4242 = vmatpush1.msra.mxu0 %v4020
    %4243 = vmatprep.subr.mxu0 %v4025
    %4244 = vmatpush1.msra.mxu0 %v4024
    %4245 = vmatprep.subr.mxu0 %v4029
    %4246 = vmatpush1.msra.mxu0 %v4028
    %4247 = vmatprep.subr.mxu0 %v4033
    %4248 = vmatpush1.msra.mxu0 %v4032
    %4249 = vmatprep.subr.mxu0 %v4037
    %4250 = vmatpush1.msra.mxu0 %v4036
    %4251 = vmatprep.subr.mxu0 %v4041
    %4252 = vmatpush1.msra.mxu0 %v4040
    %4253 = vmatprep.subr.mxu0 %v4045
    %4254 = vmatpush1.msra.mxu0 %v4044
    %4255 = vmatprep.subr.mxu0 %v4049
    %4256 = vmatpush1.msra.mxu0 %v4048
    %4257 = vmatprep.subr.mxu0 %v4053
    %4258 = vmatpush1.msra.mxu0 %v4052
    %4259 = vmatprep.subr.mxu0 %v4057
    %4260 = vmatpush1.msra.mxu0 %v4056
    %4261 = vmatprep.subr.mxu0 %v4061
    %4262 = vmatpush1.msra.mxu0 %v4060
    %4263 = vmatprep.subr.mxu0 %v4065
    %4264 = vmatpush1.msra.mxu0 %v4064
    %4265 = vmatprep.mubr.f32.mxu0 %v3923
    %4266 = vmatmul.mubr.f32.gmra.mrb[0].mxu0 %v3922
    %v4267 = vpop.f32.mrb[0].mxu0
    %v4268 = vadd.f32 %v4079, %v4267
    %v4269 = vpop.f32.mrb[0].mxu0
    %v4270 = vadd.f32 %v4083, %v4269
    %4271 = vmatprep.mubr.f32.mxu0 %v3925
    %4272 = vmatmul.mubr.f32.gmra.mrb[0].mxu0 %v3924
    %v4273 = vpop.f32.mrb[0].mxu0
    %v4274 = vadd.f32 %v4079, %v4273
    %v4275 = vpop.f32.mrb[0].mxu0
    %v4276 = vadd.f32 %v4083, %v4275
    %4277 = vmatprep.mubr.f32.mxu0 %v3927
    %4278 = vmatmul.mubr.f32.gmra.mrb[0].mxu0 %v3926
    %v4279 = vpop.f32.mrb[0].mxu0
    %v4280 = vadd.f32 %v4079, %v4279
    %v4281 = vpop.f32.mrb[0].mxu0
    %v4282 = vadd.f32 %v4083, %v4281
    %4283 = vmatprep.mubr.f32.mxu0 %v3929
    %4284 = vmatmul.mubr.f32.gmra.mrb[0].mxu0 %v3928
    %v4285 = vpop.f32.mrb[0].mxu0
    %v4286 = vadd.f32 %v4079, %v4285
    %v4287 = vpop.f32.mrb[0].mxu0
    %v4288 = vadd.f32 %v4083, %v4287
    %4289 = vmatprep.mubr.f32.mxu0 %v3931
    %4290 = vmatmul.mubr.f32.gmra.mrb[0].mxu0 %v3930
    %v4291 = vpop.f32.mrb[0].mxu0
    %v4292 = vadd.f32 %v4079, %v4291
    %v4293 = vpop.f32.mrb[0].mxu0
    %v4294 = vadd.f32 %v4083, %v4293
    %4295 = vmatprep.mubr.f32.mxu0 %v3933
    %4296 = vmatmul.mubr.f32.gmra.mrb[0].mxu0 %v3932
    %v4297 = vpop.f32.mrb[0].mxu0
    %v4298 = vadd.f32 %v4079, %v4297
    %v4299 = vpop.f32.mrb[0].mxu0
    %v4300 = vadd.f32 %v4083, %v4299
    %4301 = vmatprep.mubr.f32.mxu0 %v3935
    %4302 = vmatmul.mubr.f32.gmra.mrb[0].mxu0 %v3934
    %v4303 = vpop.f32.mrb[0].mxu0
    %v4304 = vadd.f32 %v4079, %v4303
    %v4305 = vpop.f32.mrb[0].mxu0
    %v4306 = vadd.f32 %v4083, %v4305
    %4307 = vmatprep.mubr.f32.mxu0 %v3937
    %4308 = vmatmul.mubr.f32.gmra.mrb[0].mxu0 %v3936
    %v4309 = vpop.f32.mrb[0].mxu0
    %v4310 = vadd.f32 %v4079, %v4309
    %v4311 = vpop.f32.mrb[0].mxu0
    %v4312 = vadd.f32 %v4083, %v4311
    %4313 = vdwg.mxu0
    %4314 = vst [vmem:[#allocation3] sm:$0xff] %v4155
    %4315 = vst [vmem:[#allocation3 + $0x8] sm:$0xff] %v4157
    %4316 = vst [vmem:[#allocation3 + $0x10] sm:$0xff] %v4268
    %4317 = vst [vmem:[#allocation3 + $0x18] sm:$0xff] %v4270
    %4318 = vst [vmem:[#allocation3 + $0x20] sm:$0xff] %v4161
    %4319 = vst [vmem:[#allocation3 + $0x28] sm:$0xff] %v4163
    %4320 = vst [vmem:[#allocation3 + $0x30] sm:$0xff] %v4274
    %4321 = vst [vmem:[#allocation3 + $0x38] sm:$0xff] %v4276
    %4322 = vst [vmem:[#allocation3 + $0x40] sm:$0xff] %v4167
    %4323 = vst [vmem:[#allocation3 + $0x48] sm:$0xff] %v4169
    %4324 = vst [vmem:[#allocation3 + $0x50] sm:$0xff] %v4280
    %4325 = vst [vmem:[#allocation3 + $0x58] sm:$0xff] %v4282
    %4326 = vst [vmem:[#allocation3 + $0x60] sm:$0xff] %v4173
    %4327 = vst [vmem:[#allocation3 + $0x68] sm:$0xff] %v4175
    %4328 = vst [vmem:[#allocation3 + $0x70] sm:$0xff] %v4286
    %4329 = vst [vmem:[#allocation3 + $0x78] sm:$0xff] %v4288
    %4330 = vst [vmem:[#allocation3 + $0x80] sm:$0xff] %v4179
    %4331 = vst [vmem:[#allocation3 + $0x88] sm:$0xff] %v4181
    %4332 = vst [vmem:[#allocation3 + $0x90] sm:$0xff] %v4292
    %4333 = vst [vmem:[#allocation3 + $0x98] sm:$0xff] %v4294
    %4334 = vst [vmem:[#allocation3 + $0xa0] sm:$0xff] %v4185
    %4335 = vst [vmem:[#allocation3 + $0xa8] sm:$0xff] %v4187
    %4336 = vst [vmem:[#allocation3 + $0xb0] sm:$0xff] %v4298
    %4337 = vst [vmem:[#allocation3 + $0xb8] sm:$0xff] %v4300
    %4338 = vst [vmem:[#allocation3 + $0xc0] sm:$0xff] %v4191
    %4339 = vst [vmem:[#allocation3 + $0xc8] sm:$0xff] %v4193
    %4340 = vst [vmem:[#allocation3 + $0xd0] sm:$0xff] %v4304
    %4341 = vst [vmem:[#allocation3 + $0xd8] sm:$0xff] %v4306
    %4342 = vst [vmem:[#allocation3 + $0xe0] sm:$0xff] %v4197
    %4343 = vst [vmem:[#allocation3 + $0xe8] sm:$0xff] %v4199
    %4344 = vst [vmem:[#allocation3 + $0xf0] sm:$0xff] %v4310
    %4345 = vst [vmem:[#allocation3 + $0xf8] sm:$0xff] %v4312
    %v4346 = vld [vmem:[#allocation13] sm:$0xff]
    %v4347 = vld [vmem:[#allocation13 + $0x8] sm:$0xff]
    %v4348 = vld [vmem:[#allocation13 + $0x10] sm:$0xff]
    %v4349 = vld [vmem:[#allocation13 + $0x18] sm:$0xff]
    %v4350 = vld [vmem:[#allocation13 + $0x20] sm:$0xff]
    %v4351 = vld [vmem:[#allocation13 + $0x28] sm:$0xff]
    %v4352 = vld [vmem:[#allocation13 + $0x30] sm:$0xff]
    %v4353 = vld [vmem:[#allocation13 + $0x38] sm:$0xff]
    %v4354 = vld [vmem:[#allocation13 + $0x40] sm:$0xff]
    %v4355 = vld [vmem:[#allocation13 + $0x48] sm:$0xff]
    %v4356 = vld [vmem:[#allocation13 + $0x50] sm:$0xff]
    %v4357 = vld [vmem:[#allocation13 + $0x58] sm:$0xff]
    %v4358 = vld [vmem:[#allocation13 + $0x60] sm:$0xff]
    %v4359 = vld [vmem:[#allocation13 + $0x68] sm:$0xff]
    %v4360 = vld [vmem:[#allocation13 + $0x70] sm:$0xff]
    %v4361 = vld [vmem:[#allocation13 + $0x78] sm:$0xff]
    %v4362 = vld [vmem:[#allocation13 + $0x80] sm:$0xff]
    %v4363 = vld [vmem:[#allocation13 + $0x88] sm:$0xff]
    %v4364 = vld [vmem:[#allocation13 + $0x90] sm:$0xff]
    %v4365 = vld [vmem:[#allocation13 + $0x98] sm:$0xff]
    %v4366 = vld [vmem:[#allocation13 + $0xa0] sm:$0xff]
    %v4367 = vld [vmem:[#allocation13 + $0xa8] sm:$0xff]
    %v4368 = vld [vmem:[#allocation13 + $0xb0] sm:$0xff]
    %v4369 = vld [vmem:[#allocation13 + $0xb8] sm:$0xff]
    %v4370 = vld [vmem:[#allocation13 + $0xc0] sm:$0xff]
    %v4371 = vld [vmem:[#allocation13 + $0xc8] sm:$0xff]
    %v4372 = vld [vmem:[#allocation13 + $0xd0] sm:$0xff]
    %v4373 = vld [vmem:[#allocation13 + $0xd8] sm:$0xff]
    %v4374 = vld [vmem:[#allocation13 + $0xe0] sm:$0xff]
    %v4375 = vld [vmem:[#allocation13 + $0xe8] sm:$0xff]
    %v4376 = vld [vmem:[#allocation13 + $0xf0] sm:$0xff]
    %v4377 = vld [vmem:[#allocation13 + $0xf8] sm:$0xff]
    %v4378 = vld [vmem:[#allocation13 + $0x100] sm:$0xff]
    %v4379 = vld [vmem:[#allocation13 + $0x108] sm:$0xff]
    %v4380 = vld [vmem:[#allocation13 + $0x110] sm:$0xff]
    %v4381 = vld [vmem:[#allocation13 + $0x118] sm:$0xff]
    %v4382 = vld [vmem:[#allocation13 + $0x120] sm:$0xff]
    %v4383 = vld [vmem:[#allocation13 + $0x128] sm:$0xff]
    %v4384 = vld [vmem:[#allocation13 + $0x130] sm:$0xff]
    %v4385 = vld [vmem:[#allocation13 + $0x138] sm:$0xff]
    %v4386 = vld [vmem:[#allocation13 + $0x140] sm:$0xff]
    %v4387 = vld [vmem:[#allocation13 + $0x148] sm:$0xff]
    %v4388 = vld [vmem:[#allocation13 + $0x150] sm:$0xff]
    %v4389 = vld [vmem:[#allocation13 + $0x158] sm:$0xff]
    %v4390 = vld [vmem:[#allocation13 + $0x160] sm:$0xff]
    %v4391 = vld [vmem:[#allocation13 + $0x168] sm:$0xff]
    %v4392 = vld [vmem:[#allocation13 + $0x170] sm:$0xff]
    %v4393 = vld [vmem:[#allocation13 + $0x178] sm:$0xff]
    %v4394 = vld [vmem:[#allocation13 + $0x180] sm:$0xff]
    %v4395 = vld [vmem:[#allocation13 + $0x188] sm:$0xff]
    %v4396 = vld [vmem:[#allocation13 + $0x190] sm:$0xff]
    %v4397 = vld [vmem:[#allocation13 + $0x198] sm:$0xff]
    %v4398 = vld [vmem:[#allocation13 + $0x1a0] sm:$0xff]
    %v4399 = vld [vmem:[#allocation13 + $0x1a8] sm:$0xff]
    %v4400 = vld [vmem:[#allocation13 + $0x1b0] sm:$0xff]
    %v4401 = vld [vmem:[#allocation13 + $0x1b8] sm:$0xff]
    %v4402 = vld [vmem:[#allocation13 + $0x1c0] sm:$0xff]
    %v4403 = vld [vmem:[#allocation13 + $0x1c8] sm:$0xff]
    %v4404 = vld [vmem:[#allocation13 + $0x1d0] sm:$0xff]
    %v4405 = vld [vmem:[#allocation13 + $0x1d8] sm:$0xff]
    %v4406 = vld [vmem:[#allocation13 + $0x1e0] sm:$0xff]
    %v4407 = vld [vmem:[#allocation13 + $0x1e8] sm:$0xff]
    %v4408 = vld [vmem:[#allocation13 + $0x1f0] sm:$0xff]
    %v4409 = vld [vmem:[#allocation13 + $0x1f8] sm:$0xff]
    %v4410 = vld [vmem:[#allocation13 + $0x200] sm:$0xff]
    %v4411 = vld [vmem:[#allocation13 + $0x208] sm:$0xff]
    %v4412 = vld [vmem:[#allocation13 + $0x210] sm:$0xff]
    %v4413 = vld [vmem:[#allocation13 + $0x218] sm:$0xff]
    %v4414 = vld [vmem:[#allocation13 + $0x220] sm:$0xff]
    %v4415 = vld [vmem:[#allocation13 + $0x228] sm:$0xff]
    %v4416 = vld [vmem:[#allocation13 + $0x230] sm:$0xff]
    %v4417 = vld [vmem:[#allocation13 + $0x238] sm:$0xff]
    %v4418 = vld [vmem:[#allocation13 + $0x240] sm:$0xff]
    %v4419 = vld [vmem:[#allocation13 + $0x248] sm:$0xff]
    %v4420 = vld [vmem:[#allocation13 + $0x250] sm:$0xff]
    %v4421 = vld [vmem:[#allocation13 + $0x258] sm:$0xff]
    %v4422 = vld [vmem:[#allocation13 + $0x260] sm:$0xff]
    %v4423 = vld [vmem:[#allocation13 + $0x268] sm:$0xff]
    %v4424 = vld [vmem:[#allocation13 + $0x270] sm:$0xff]
    %v4425 = vld [vmem:[#allocation13 + $0x278] sm:$0xff]
    %v4426 = vld [vmem:[#allocation13 + $0x280] sm:$0xff]
    %v4427 = vld [vmem:[#allocation13 + $0x288] sm:$0xff]
    %v4428 = vld [vmem:[#allocation13 + $0x290] sm:$0xff]
    %v4429 = vld [vmem:[#allocation13 + $0x298] sm:$0xff]
    %v4430 = vld [vmem:[#allocation13 + $0x2a0] sm:$0xff]
    %v4431 = vld [vmem:[#allocation13 + $0x2a8] sm:$0xff]
    %v4432 = vld [vmem:[#allocation13 + $0x2b0] sm:$0xff]
    %v4433 = vld [vmem:[#allocation13 + $0x2b8] sm:$0xff]
    %v4434 = vld [vmem:[#allocation13 + $0x2c0] sm:$0xff]
    %v4435 = vld [vmem:[#allocation13 + $0x2c8] sm:$0xff]
    %v4436 = vld [vmem:[#allocation13 + $0x2d0] sm:$0xff]
    %v4437 = vld [vmem:[#allocation13 + $0x2d8] sm:$0xff]
    %v4438 = vld [vmem:[#allocation13 + $0x2e0] sm:$0xff]
    %v4439 = vld [vmem:[#allocation13 + $0x2e8] sm:$0xff]
    %v4440 = vld [vmem:[#allocation13 + $0x2f0] sm:$0xff]
    %v4441 = vld [vmem:[#allocation13 + $0x2f8] sm:$0xff]
    %v4442 = vld [vmem:[#allocation13 + $0x300] sm:$0xff]
    %v4443 = vld [vmem:[#allocation13 + $0x308] sm:$0xff]
    %v4444 = vld [vmem:[#allocation13 + $0x310] sm:$0xff]
    %v4445 = vld [vmem:[#allocation13 + $0x318] sm:$0xff]
    %v4446 = vld [vmem:[#allocation13 + $0x320] sm:$0xff]
    %v4447 = vld [vmem:[#allocation13 + $0x328] sm:$0xff]
    %v4448 = vld [vmem:[#allocation13 + $0x330] sm:$0xff]
    %v4449 = vld [vmem:[#allocation13 + $0x338] sm:$0xff]
    %v4450 = vld [vmem:[#allocation13 + $0x340] sm:$0xff]
    %v4451 = vld [vmem:[#allocation13 + $0x348] sm:$0xff]
    %v4452 = vld [vmem:[#allocation13 + $0x350] sm:$0xff]
    %v4453 = vld [vmem:[#allocation13 + $0x358] sm:$0xff]
    %v4454 = vld [vmem:[#allocation13 + $0x360] sm:$0xff]
    %v4455 = vld [vmem:[#allocation13 + $0x368] sm:$0xff]
    %v4456 = vld [vmem:[#allocation13 + $0x370] sm:$0xff]
    %v4457 = vld [vmem:[#allocation13 + $0x378] sm:$0xff]
    %v4458 = vld [vmem:[#allocation13 + $0x380] sm:$0xff]
    %v4459 = vld [vmem:[#allocation13 + $0x388] sm:$0xff]
    %v4460 = vld [vmem:[#allocation13 + $0x390] sm:$0xff]
    %v4461 = vld [vmem:[#allocation13 + $0x398] sm:$0xff]
    %v4462 = vld [vmem:[#allocation13 + $0x3a0] sm:$0xff]
    %v4463 = vld [vmem:[#allocation13 + $0x3a8] sm:$0xff]
    %v4464 = vld [vmem:[#allocation13 + $0x3b0] sm:$0xff]
    %v4465 = vld [vmem:[#allocation13 + $0x3b8] sm:$0xff]
    %v4466 = vld [vmem:[#allocation13 + $0x3c0] sm:$0xff]
    %v4467 = vld [vmem:[#allocation13 + $0x3c8] sm:$0xff]
    %v4468 = vld [vmem:[#allocation13 + $0x3d0] sm:$0xff]
    %v4469 = vld [vmem:[#allocation13 + $0x3d8] sm:$0xff]
    %v4470 = vld [vmem:[#allocation13 + $0x3e0] sm:$0xff]
    %v4471 = vld [vmem:[#allocation13 + $0x3e8] sm:$0xff]
    %v4472 = vld [vmem:[#allocation13 + $0x3f0] sm:$0xff]
    %v4473 = vld [vmem:[#allocation13 + $0x3f8] sm:$0xff]
    %v4474 = vld [vmem:[%s14] sm:$0xf]
    %v4476 = vlaneseq
    %v4477 = vshrl.u32 %v4476, 7
    %v4478 = vsub.s32 0, %v4477
    %v4479 = vrot.slane %v4474, %v4478
    %v4480 = vlaneseq
    %v4481 = vshrl.u32 %v4480, 7
    %v4482 = vsub.s32 1, %v4481
    %v4483 = vrot.slane %v4474, %v4482
    %v4484 = vlaneseq
    %v4485 = vshrl.u32 %v4484, 7
    %v4486 = vsub.s32 2, %v4485
    %v4487 = vrot.slane %v4474, %v4486
    %v4488 = vlaneseq
    %v4489 = vshrl.u32 %v4488, 7
    %v4490 = vsub.s32 3, %v4489
    %v4491 = vrot.slane %v4474, %v4490
    %4496 = vmatprep.subr.mxu0 %v4347
    %4497 = vmatpush1.msra.mxu0 %v4346
    %4498 = vmatprep.subr.mxu0 %v4351
    %4499 = vmatpush1.msra.mxu0 %v4350
    %4500 = vmatprep.subr.mxu0 %v4355
    %4501 = vmatpush1.msra.mxu0 %v4354
    %4502 = vmatprep.subr.mxu0 %v4359
    %4503 = vmatpush1.msra.mxu0 %v4358
    %4504 = vmatprep.subr.mxu0 %v4363
    %4505 = vmatpush1.msra.mxu0 %v4362
    %4506 = vmatprep.subr.mxu0 %v4367
    %4507 = vmatpush1.msra.mxu0 %v4366
    %4508 = vmatprep.subr.mxu0 %v4371
    %4509 = vmatpush1.msra.mxu0 %v4370
    %4510 = vmatprep.subr.mxu0 %v4375
    %4511 = vmatpush1.msra.mxu0 %v4374
    %4512 = vmatprep.subr.mxu0 %v4379
    %4513 = vmatpush1.msra.mxu0 %v4378
    %4514 = vmatprep.subr.mxu0 %v4383
    %4515 = vmatpush1.msra.mxu0 %v4382
    %4516 = vmatprep.subr.mxu0 %v4387
    %4517 = vmatpush1.msra.mxu0 %v4386
    %4518 = vmatprep.subr.mxu0 %v4391
    %4519 = vmatpush1.msra.mxu0 %v4390
    %4520 = vmatprep.subr.mxu0 %v4395
    %4521 = vmatpush1.msra.mxu0 %v4394
    %4522 = vmatprep.subr.mxu0 %v4399
    %4523 = vmatpush1.msra.mxu0 %v4398
    %4524 = vmatprep.subr.mxu0 %v4403
    %4525 = vmatpush1.msra.mxu0 %v4402
    %4526 = vmatprep.subr.mxu0 %v4407
    %4527 = vmatpush1.msra.mxu0 %v4406
    %4528 = vmatprep.subr.mxu0 %v4411
    %4529 = vmatpush1.msra.mxu0 %v4410
    %4530 = vmatprep.subr.mxu0 %v4415
    %4531 = vmatpush1.msra.mxu0 %v4414
    %4532 = vmatprep.subr.mxu0 %v4419
    %4533 = vmatpush1.msra.mxu0 %v4418
    %4534 = vmatprep.subr.mxu0 %v4423
    %4535 = vmatpush1.msra.mxu0 %v4422
    %4536 = vmatprep.subr.mxu0 %v4427
    %4537 = vmatpush1.msra.mxu0 %v4426
    %4538 = vmatprep.subr.mxu0 %v4431
    %4539 = vmatpush1.msra.mxu0 %v4430
    %4540 = vmatprep.subr.mxu0 %v4435
    %4541 = vmatpush1.msra.mxu0 %v4434
    %4542 = vmatprep.subr.mxu0 %v4439
    %4543 = vmatpush1.msra.mxu0 %v4438
    %4544 = vmatprep.subr.mxu0 %v4443
    %4545 = vmatpush1.msra.mxu0 %v4442
    %4546 = vmatprep.subr.mxu0 %v4447
    %4547 = vmatpush1.msra.mxu0 %v4446
    %4548 = vmatprep.subr.mxu0 %v4451
    %4549 = vmatpush1.msra.mxu0 %v4450
    %4550 = vmatprep.subr.mxu0 %v4455
    %4551 = vmatpush1.msra.mxu0 %v4454
    %4552 = vmatprep.subr.mxu0 %v4459
    %4553 = vmatpush1.msra.mxu0 %v4458
    %4554 = vmatprep.subr.mxu0 %v4463
    %4555 = vmatpush1.msra.mxu0 %v4462
    %4556 = vmatprep.subr.mxu0 %v4467
    %4557 = vmatpush1.msra.mxu0 %v4466
    %4558 = vmatprep.subr.mxu0 %v4471
    %4559 = vmatpush1.msra.mxu0 %v4470
    %4560 = vmatprep.mubr.f32.mxu0 %v3923
    %4561 = vmatmul.mubr.f32.gmra.mrb[0].mxu0 %v3922
    %v4562 = vpop.f32.mrb[0].mxu0
    %v4563 = vadd.f32 %v4479, %v4562
    %v4564 = vpop.f32.mrb[0].mxu0
    %v4565 = vadd.f32 %v4483, %v4564
    %4566 = vmatprep.mubr.f32.mxu0 %v3925
    %4567 = vmatmul.mubr.f32.gmra.mrb[0].mxu0 %v3924
    %v4568 = vpop.f32.mrb[0].mxu0
    %v4569 = vadd.f32 %v4479, %v4568
    %v4570 = vpop.f32.mrb[0].mxu0
    %v4571 = vadd.f32 %v4483, %v4570
    %4572 = vmatprep.mubr.f32.mxu0 %v3927
    %4573 = vmatmul.mubr.f32.gmra.mrb[0].mxu0 %v3926
    %v4574 = vpop.f32.mrb[0].mxu0
    %v4575 = vadd.f32 %v4479, %v4574
    %v4576 = vpop.f32.mrb[0].mxu0
    %v4577 = vadd.f32 %v4483, %v4576
    %4578 = vmatprep.mubr.f32.mxu0 %v3929
    %4579 = vmatmul.mubr.f32.gmra.mrb[0].mxu0 %v3928
    %v4580 = vpop.f32.mrb[0].mxu0
    %v4581 = vadd.f32 %v4479, %v4580
    %v4582 = vpop.f32.mrb[0].mxu0
    %v4583 = vadd.f32 %v4483, %v4582
    %4584 = vmatprep.mubr.f32.mxu0 %v3931
    %4585 = vmatmul.mubr.f32.gmra.mrb[0].mxu0 %v3930
    %v4586 = vpop.f32.mrb[0].mxu0
    %v4587 = vadd.f32 %v4479, %v4586
    %v4588 = vpop.f32.mrb[0].mxu0
    %v4589 = vadd.f32 %v4483, %v4588
    %4590 = vmatprep.mubr.f32.mxu0 %v3933
    %4591 = vmatmul.mubr.f32.gmra.mrb[0].mxu0 %v3932
    %v4592 = vpop.f32.mrb[0].mxu0
    %v4593 = vadd.f32 %v4479, %v4592
    %v4594 = vpop.f32.mrb[0].mxu0
    %v4595 = vadd.f32 %v4483, %v4594
    %4596 = vmatprep.mubr.f32.mxu0 %v3935
    %4597 = vmatmul.mubr.f32.gmra.mrb[0].mxu0 %v3934
    %v4598 = vpop.f32.mrb[0].mxu0
    %v4599 = vadd.f32 %v4479, %v4598
    %v4600 = vpop.f32.mrb[0].mxu0
    %v4601 = vadd.f32 %v4483, %v4600
    %4602 = vmatprep.mubr.f32.mxu0 %v3937
    %4603 = vmatmul.mubr.f32.gmra.mrb[0].mxu0 %v3936
    %v4604 = vpop.f32.mrb[0].mxu0
    %v4605 = vadd.f32 %v4479, %v4604
    %v4606 = vpop.f32.mrb[0].mxu0
    %v4607 = vadd.f32 %v4483, %v4606
    %4608 = vdwg.mxu0
    %4609 = vmatprep.subr.mxu0 %v4349
    %4610 = vmatpush1.msra.mxu0 %v4348
    %4611 = vmatprep.subr.mxu0 %v4353
    %4612 = vmatpush1.msra.mxu0 %v4352
    %4613 = vmatprep.subr.mxu0 %v4357
    %4614 = vmatpush1.msra.mxu0 %v4356
    %4615 = vmatprep.subr.mxu0 %v4361
    %4616 = vmatpush1.msra.mxu0 %v4360
    %4617 = vmatprep.subr.mxu0 %v4365
    %4618 = vmatpush1.msra.mxu0 %v4364
    %4619 = vmatprep.subr.mxu0 %v4369
    %4620 = vmatpush1.msra.mxu0 %v4368
    %4621 = vmatprep.subr.mxu0 %v4373
    %4622 = vmatpush1.msra.mxu0 %v4372
    %4623 = vmatprep.subr.mxu0 %v4377
    %4624 = vmatpush1.msra.mxu0 %v4376
    %4625 = vmatprep.subr.mxu0 %v4381
    %4626 = vmatpush1.msra.mxu0 %v4380
    %4627 = vmatprep.subr.mxu0 %v4385
    %4628 = vmatpush1.msra.mxu0 %v4384
    %4629 = vmatprep.subr.mxu0 %v4389
    %4630 = vmatpush1.msra.mxu0 %v4388
    %4631 = vmatprep.subr.mxu0 %v4393
    %4632 = vmatpush1.msra.mxu0 %v4392
    %4633 = vmatprep.subr.mxu0 %v4397
    %4634 = vmatpush1.msra.mxu0 %v4396
    %4635 = vmatprep.subr.mxu0 %v4401
    %4636 = vmatpush1.msra.mxu0 %v4400
    %4637 = vmatprep.subr.mxu0 %v4405
    %4638 = vmatpush1.msra.mxu0 %v4404
    %4639 = vmatprep.subr.mxu0 %v4409
    %4640 = vmatpush1.msra.mxu0 %v4408
    %4641 = vmatprep.subr.mxu0 %v4413
    %4642 = vmatpush1.msra.mxu0 %v4412
    %4643 = vmatprep.subr.mxu0 %v4417
    %4644 = vmatpush1.msra.mxu0 %v4416
    %4645 = vmatprep.subr.mxu0 %v4421
    %4646 = vmatpush1.msra.mxu0 %v4420
    %4647 = vmatprep.subr.mxu0 %v4425
    %4648 = vmatpush1.msra.mxu0 %v4424
    %4649 = vmatprep.subr.mxu0 %v4429
    %4650 = vmatpush1.msra.mxu0 %v4428
    %4651 = vmatprep.subr.mxu0 %v4433
    %4652 = vmatpush1.msra.mxu0 %v4432
    %4653 = vmatprep.subr.mxu0 %v4437
    %4654 = vmatpush1.msra.mxu0 %v4436
    %4655 = vmatprep.subr.mxu0 %v4441
    %4656 = vmatpush1.msra.mxu0 %v4440
    %4657 = vmatprep.subr.mxu0 %v4445
    %4658 = vmatpush1.msra.mxu0 %v4444
    %4659 = vmatprep.subr.mxu0 %v4449
    %4660 = vmatpush1.msra.mxu0 %v4448
    %4661 = vmatprep.subr.mxu0 %v4453
    %4662 = vmatpush1.msra.mxu0 %v4452
    %4663 = vmatprep.subr.mxu0 %v4457
    %4664 = vmatpush1.msra.mxu0 %v4456
    %4665 = vmatprep.subr.mxu0 %v4461
    %4666 = vmatpush1.msra.mxu0 %v4460
    %4667 = vmatprep.subr.mxu0 %v4465
    %4668 = vmatpush1.msra.mxu0 %v4464
    %4669 = vmatprep.subr.mxu0 %v4469
    %4670 = vmatpush1.msra.mxu0 %v4468
    %4671 = vmatprep.subr.mxu0 %v4473
    %4672 = vmatpush1.msra.mxu0 %v4472
    %4673 = vmatprep.mubr.f32.mxu0 %v3923
    %4674 = vmatmul.mubr.f32.gmra.mrb[0].mxu0 %v3922
    %v4675 = vpop.f32.mrb[0].mxu0
    %v4676 = vadd.f32 %v4487, %v4675
    %v4677 = vpop.f32.mrb[0].mxu0
    %v4678 = vadd.f32 %v4491, %v4677
    %4679 = vmatprep.mubr.f32.mxu0 %v3925
    %4680 = vmatmul.mubr.f32.gmra.mrb[0].mxu0 %v3924
    %v4681 = vpop.f32.mrb[0].mxu0
    %v4682 = vadd.f32 %v4487, %v4681
    %v4683 = vpop.f32.mrb[0].mxu0
    %v4684 = vadd.f32 %v4491, %v4683
    %4685 = vmatprep.mubr.f32.mxu0 %v3927
    %4686 = vmatmul.mubr.f32.gmra.mrb[0].mxu0 %v3926
    %v4687 = vpop.f32.mrb[0].mxu0
    %v4688 = vadd.f32 %v4487, %v4687
    %v4689 = vpop.f32.mrb[0].mxu0
    %v4690 = vadd.f32 %v4491, %v4689
    %4691 = vmatprep.mubr.f32.mxu0 %v3929
    %4692 = vmatmul.mubr.f32.gmra.mrb[0].mxu0 %v3928
    %v4693 = vpop.f32.mrb[0].mxu0
    %v4694 = vadd.f32 %v4487, %v4693
    %v4695 = vpop.f32.mrb[0].mxu0
    %v4696 = vadd.f32 %v4491, %v4695
    %4697 = vmatprep.mubr.f32.mxu0 %v3931
    %4698 = vmatmul.mubr.f32.gmra.mrb[0].mxu0 %v3930
    %v4699 = vpop.f32.mrb[0].mxu0
    %v4700 = vadd.f32 %v4487, %v4699
    %v4701 = vpop.f32.mrb[0].mxu0
    %v4702 = vadd.f32 %v4491, %v4701
    %4703 = vmatprep.mubr.f32.mxu0 %v3933
    %4704 = vmatmul.mubr.f32.gmra.mrb[0].mxu0 %v3932
    %v4705 = vpop.f32.mrb[0].mxu0
    %v4706 = vadd.f32 %v4487, %v4705
    %v4707 = vpop.f32.mrb[0].mxu0
    %v4708 = vadd.f32 %v4491, %v4707
    %4709 = vmatprep.mubr.f32.mxu0 %v3935
    %4710 = vmatmul.mubr.f32.gmra.mrb[0].mxu0 %v3934
    %v4711 = vpop.f32.mrb[0].mxu0
    %v4712 = vadd.f32 %v4487, %v4711
    %v4713 = vpop.f32.mrb[0].mxu0
    %v4714 = vadd.f32 %v4491, %v4713
    %4715 = vmatprep.mubr.f32.mxu0 %v3937
    %4716 = vmatmul.mubr.f32.gmra.mrb[0].mxu0 %v3936
    %v4717 = vpop.f32.mrb[0].mxu0
    %v4718 = vadd.f32 %v4487, %v4717
    %v4719 = vpop.f32.mrb[0].mxu0
    %v4720 = vadd.f32 %v4491, %v4719
    %4721 = vdwg.mxu0
    %4722 = vst [vmem:[#allocation4] sm:$0xff] %v4563
    %4723 = vst [vmem:[#allocation4 + $0x8] sm:$0xff] %v4565
    %4724 = vst [vmem:[#allocation4 + $0x10] sm:$0xff] %v4676
    %4725 = vst [vmem:[#allocation4 + $0x18] sm:$0xff] %v4678
    %4726 = vst [vmem:[#allocation4 + $0x20] sm:$0xff] %v4569
    %4727 = vst [vmem:[#allocation4 + $0x28] sm:$0xff] %v4571
    %4728 = vst [vmem:[#allocation4 + $0x30] sm:$0xff] %v4682
    %4729 = vst [vmem:[#allocation4 + $0x38] sm:$0xff] %v4684
    %4730 = vst [vmem:[#allocation4 + $0x40] sm:$0xff] %v4575
    %4731 = vst [vmem:[#allocation4 + $0x48] sm:$0xff] %v4577
    %4732 = vst [vmem:[#allocation4 + $0x50] sm:$0xff] %v4688
    %4733 = vst [vmem:[#allocation4 + $0x58] sm:$0xff] %v4690
    %4734 = vst [vmem:[#allocation4 + $0x60] sm:$0xff] %v4581
    %4735 = vst [vmem:[#allocation4 + $0x68] sm:$0xff] %v4583
    %4736 = vst [vmem:[#allocation4 + $0x70] sm:$0xff] %v4694
    %4737 = vst [vmem:[#allocation4 + $0x78] sm:$0xff] %v4696
    %4738 = vst [vmem:[#allocation4 + $0x80] sm:$0xff] %v4587
    %4739 = vst [vmem:[#allocation4 + $0x88] sm:$0xff] %v4589
    %4740 = vst [vmem:[#allocation4 + $0x90] sm:$0xff] %v4700
    %4741 = vst [vmem:[#allocation4 + $0x98] sm:$0xff] %v4702
    %4742 = vst [vmem:[#allocation4 + $0xa0] sm:$0xff] %v4593
    %4743 = vst [vmem:[#allocation4 + $0xa8] sm:$0xff] %v4595
    %4744 = vst [vmem:[#allocation4 + $0xb0] sm:$0xff] %v4706
    %4745 = vst [vmem:[#allocation4 + $0xb8] sm:$0xff] %v4708
    %4746 = vst [vmem:[#allocation4 + $0xc0] sm:$0xff] %v4599
    %4747 = vst [vmem:[#allocation4 + $0xc8] sm:$0xff] %v4601
    %4748 = vst [vmem:[#allocation4 + $0xd0] sm:$0xff] %v4712
    %4749 = vst [vmem:[#allocation4 + $0xd8] sm:$0xff] %v4714
    %4750 = vst [vmem:[#allocation4 + $0xe0] sm:$0xff] %v4605
    %4751 = vst [vmem:[#allocation4 + $0xe8] sm:$0xff] %v4607
    %4752 = vst [vmem:[#allocation4 + $0xf0] sm:$0xff] %v4718
    %4753 = vst [vmem:[#allocation4 + $0xf8] sm:$0xff] %v4720
    %v4754 = vld [vmem:[#allocation12] sm:$0xff]
    %v4755 = vld [vmem:[#allocation12 + $0x8] sm:$0xff]
    %v4756 = vld [vmem:[#allocation12 + $0x10] sm:$0xff]
    %v4757 = vld [vmem:[#allocation12 + $0x18] sm:$0xff]
    %v4758 = vld [vmem:[#allocation12 + $0x20] sm:$0xff]
    %v4759 = vld [vmem:[#allocation12 + $0x28] sm:$0xff]
    %v4760 = vld [vmem:[#allocation12 + $0x30] sm:$0xff]
    %v4761 = vld [vmem:[#allocation12 + $0x38] sm:$0xff]
    %v4762 = vld [vmem:[#allocation12 + $0x40] sm:$0xff]
    %v4763 = vld [vmem:[#allocation12 + $0x48] sm:$0xff]
    %v4764 = vld [vmem:[#allocation12 + $0x50] sm:$0xff]
    %v4765 = vld [vmem:[#allocation12 + $0x58] sm:$0xff]
    %v4766 = vld [vmem:[#allocation12 + $0x60] sm:$0xff]
    %v4767 = vld [vmem:[#allocation12 + $0x68] sm:$0xff]
    %v4768 = vld [vmem:[#allocation12 + $0x70] sm:$0xff]
    %v4769 = vld [vmem:[#allocation12 + $0x78] sm:$0xff]
    %v4770 = vld [vmem:[#allocation12 + $0x80] sm:$0xff]
    %v4771 = vld [vmem:[#allocation12 + $0x88] sm:$0xff]
    %v4772 = vld [vmem:[#allocation12 + $0x90] sm:$0xff]
    %v4773 = vld [vmem:[#allocation12 + $0x98] sm:$0xff]
    %v4774 = vld [vmem:[#allocation12 + $0xa0] sm:$0xff]
    %v4775 = vld [vmem:[#allocation12 + $0xa8] sm:$0xff]
    %v4776 = vld [vmem:[#allocation12 + $0xb0] sm:$0xff]
    %v4777 = vld [vmem:[#allocation12 + $0xb8] sm:$0xff]
    %v4778 = vld [vmem:[#allocation12 + $0xc0] sm:$0xff]
    %v4779 = vld [vmem:[#allocation12 + $0xc8] sm:$0xff]
    %v4780 = vld [vmem:[#allocation12 + $0xd0] sm:$0xff]
    %v4781 = vld [vmem:[#allocation12 + $0xd8] sm:$0xff]
    %v4782 = vld [vmem:[#allocation12 + $0xe0] sm:$0xff]
    %v4783 = vld [vmem:[#allocation12 + $0xe8] sm:$0xff]
    %v4784 = vld [vmem:[#allocation12 + $0xf0] sm:$0xff]
    %v4785 = vld [vmem:[#allocation12 + $0xf8] sm:$0xff]
    %v4786 = vld [vmem:[#allocation12 + $0x100] sm:$0xff]
    %v4787 = vld [vmem:[#allocation12 + $0x108] sm:$0xff]
    %v4788 = vld [vmem:[#allocation12 + $0x110] sm:$0xff]
    %v4789 = vld [vmem:[#allocation12 + $0x118] sm:$0xff]
    %v4790 = vld [vmem:[#allocation12 + $0x120] sm:$0xff]
    %v4791 = vld [vmem:[#allocation12 + $0x128] sm:$0xff]
    %v4792 = vld [vmem:[#allocation12 + $0x130] sm:$0xff]
    %v4793 = vld [vmem:[#allocation12 + $0x138] sm:$0xff]
    %v4794 = vld [vmem:[#allocation12 + $0x140] sm:$0xff]
    %v4795 = vld [vmem:[#allocation12 + $0x148] sm:$0xff]
    %v4796 = vld [vmem:[#allocation12 + $0x150] sm:$0xff]
    %v4797 = vld [vmem:[#allocation12 + $0x158] sm:$0xff]
    %v4798 = vld [vmem:[#allocation12 + $0x160] sm:$0xff]
    %v4799 = vld [vmem:[#allocation12 + $0x168] sm:$0xff]
    %v4800 = vld [vmem:[#allocation12 + $0x170] sm:$0xff]
    %v4801 = vld [vmem:[#allocation12 + $0x178] sm:$0xff]
    %v4802 = vld [vmem:[#allocation12 + $0x180] sm:$0xff]
    %v4803 = vld [vmem:[#allocation12 + $0x188] sm:$0xff]
    %v4804 = vld [vmem:[#allocation12 + $0x190] sm:$0xff]
    %v4805 = vld [vmem:[#allocation12 + $0x198] sm:$0xff]
    %v4806 = vld [vmem:[#allocation12 + $0x1a0] sm:$0xff]
    %v4807 = vld [vmem:[#allocation12 + $0x1a8] sm:$0xff]
    %v4808 = vld [vmem:[#allocation12 + $0x1b0] sm:$0xff]
    %v4809 = vld [vmem:[#allocation12 + $0x1b8] sm:$0xff]
    %v4810 = vld [vmem:[#allocation12 + $0x1c0] sm:$0xff]
    %v4811 = vld [vmem:[#allocation12 + $0x1c8] sm:$0xff]
    %v4812 = vld [vmem:[#allocation12 + $0x1d0] sm:$0xff]
    %v4813 = vld [vmem:[#allocation12 + $0x1d8] sm:$0xff]
    %v4814 = vld [vmem:[#allocation12 + $0x1e0] sm:$0xff]
    %v4815 = vld [vmem:[#allocation12 + $0x1e8] sm:$0xff]
    %v4816 = vld [vmem:[#allocation12 + $0x1f0] sm:$0xff]
    %v4817 = vld [vmem:[#allocation12 + $0x1f8] sm:$0xff]
    %v4818 = vld [vmem:[#allocation15] sm:$0xff]
    %v4819 = vld [vmem:[#allocation15 + $0x8] sm:$0xff]
    %v4820 = vld [vmem:[#allocation15 + $0x10] sm:$0xff]
    %v4821 = vld [vmem:[#allocation15 + $0x18] sm:$0xff]
    %v4822 = vld [vmem:[#allocation15 + $0x20] sm:$0xff]
    %v4823 = vld [vmem:[#allocation15 + $0x28] sm:$0xff]
    %v4824 = vld [vmem:[#allocation15 + $0x30] sm:$0xff]
    %v4825 = vld [vmem:[#allocation15 + $0x38] sm:$0xff]
    %v4826 = vld [vmem:[#allocation15 + $0x40] sm:$0xff]
    %v4827 = vld [vmem:[#allocation15 + $0x48] sm:$0xff]
    %v4828 = vld [vmem:[#allocation15 + $0x50] sm:$0xff]
    %v4829 = vld [vmem:[#allocation15 + $0x58] sm:$0xff]
    %v4830 = vld [vmem:[#allocation15 + $0x60] sm:$0xff]
    %v4831 = vld [vmem:[#allocation15 + $0x68] sm:$0xff]
    %v4832 = vld [vmem:[#allocation15 + $0x70] sm:$0xff]
    %v4833 = vld [vmem:[#allocation15 + $0x78] sm:$0xff]
    %v4834 = vld [vmem:[#allocation15 + $0x80] sm:$0xff]
    %v4835 = vld [vmem:[#allocation15 + $0x88] sm:$0xff]
    %v4836 = vld [vmem:[#allocation15 + $0x90] sm:$0xff]
    %v4837 = vld [vmem:[#allocation15 + $0x98] sm:$0xff]
    %v4838 = vld [vmem:[#allocation15 + $0xa0] sm:$0xff]
    %v4839 = vld [vmem:[#allocation15 + $0xa8] sm:$0xff]
    %v4840 = vld [vmem:[#allocation15 + $0xb0] sm:$0xff]
    %v4841 = vld [vmem:[#allocation15 + $0xb8] sm:$0xff]
    %v4842 = vld [vmem:[#allocation15 + $0xc0] sm:$0xff]
    %v4843 = vld [vmem:[#allocation15 + $0xc8] sm:$0xff]
    %v4844 = vld [vmem:[#allocation15 + $0xd0] sm:$0xff]
    %v4845 = vld [vmem:[#allocation15 + $0xd8] sm:$0xff]
    %v4846 = vld [vmem:[#allocation15 + $0xe0] sm:$0xff]
    %v4847 = vld [vmem:[#allocation15 + $0xe8] sm:$0xff]
    %v4848 = vld [vmem:[#allocation15 + $0xf0] sm:$0xff]
    %v4849 = vld [vmem:[#allocation15 + $0xf8] sm:$0xff]
    %v4850 = vld [vmem:[#allocation15 + $0x100] sm:$0xff]
    %v4851 = vld [vmem:[#allocation15 + $0x108] sm:$0xff]
    %v4852 = vld [vmem:[#allocation15 + $0x110] sm:$0xff]
    %v4853 = vld [vmem:[#allocation15 + $0x118] sm:$0xff]
    %v4854 = vld [vmem:[#allocation15 + $0x120] sm:$0xff]
    %v4855 = vld [vmem:[#allocation15 + $0x128] sm:$0xff]
    %v4856 = vld [vmem:[#allocation15 + $0x130] sm:$0xff]
    %v4857 = vld [vmem:[#allocation15 + $0x138] sm:$0xff]
    %v4858 = vld [vmem:[#allocation15 + $0x140] sm:$0xff]
    %v4859 = vld [vmem:[#allocation15 + $0x148] sm:$0xff]
    %v4860 = vld [vmem:[#allocation15 + $0x150] sm:$0xff]
    %v4861 = vld [vmem:[#allocation15 + $0x158] sm:$0xff]
    %v4862 = vld [vmem:[#allocation15 + $0x160] sm:$0xff]
    %v4863 = vld [vmem:[#allocation15 + $0x168] sm:$0xff]
    %v4864 = vld [vmem:[#allocation15 + $0x170] sm:$0xff]
    %v4865 = vld [vmem:[#allocation15 + $0x178] sm:$0xff]
    %v4866 = vld [vmem:[#allocation15 + $0x180] sm:$0xff]
    %v4867 = vld [vmem:[#allocation15 + $0x188] sm:$0xff]
    %v4868 = vld [vmem:[#allocation15 + $0x190] sm:$0xff]
    %v4869 = vld [vmem:[#allocation15 + $0x198] sm:$0xff]
    %v4870 = vld [vmem:[#allocation15 + $0x1a0] sm:$0xff]
    %v4871 = vld [vmem:[#allocation15 + $0x1a8] sm:$0xff]
    %v4872 = vld [vmem:[#allocation15 + $0x1b0] sm:$0xff]
    %v4873 = vld [vmem:[#allocation15 + $0x1b8] sm:$0xff]
    %v4874 = vld [vmem:[#allocation15 + $0x1c0] sm:$0xff]
    %v4875 = vld [vmem:[#allocation15 + $0x1c8] sm:$0xff]
    %v4876 = vld [vmem:[#allocation15 + $0x1d0] sm:$0xff]
    %v4877 = vld [vmem:[#allocation15 + $0x1d8] sm:$0xff]
    %v4878 = vld [vmem:[#allocation15 + $0x1e0] sm:$0xff]
    %v4879 = vld [vmem:[#allocation15 + $0x1e8] sm:$0xff]
    %v4880 = vld [vmem:[#allocation15 + $0x1f0] sm:$0xff]
    %v4881 = vld [vmem:[#allocation15 + $0x1f8] sm:$0xff]
    %v4882 = vld [vmem:[#allocation3] sm:$0xff]
    %v4883 = vld [vmem:[#allocation3 + $0x8] sm:$0xff]
    %v4884 = vld [vmem:[#allocation3 + $0x10] sm:$0xff]
    %v4885 = vld [vmem:[#allocation3 + $0x18] sm:$0xff]
    %4886 = vmatprep.subr.mxu0 %v4755
    %4887 = vmatpush1.msra.mxu0 %v4754
    %4888 = vmatprep.subr.mxu0 %v4759
    %4889 = vmatpush1.msra.mxu0 %v4758
    %4890 = vmatprep.subr.mxu0 %v4763
    %4891 = vmatpush1.msra.mxu0 %v4762
    %4892 = vmatprep.subr.mxu0 %v4767
    %4893 = vmatpush1.msra.mxu0 %v4766
    %4894 = vmatprep.subr.mxu0 %v4771
    %4895 = vmatpush1.msra.mxu0 %v4770
    %4896 = vmatprep.subr.mxu0 %v4775
    %4897 = vmatpush1.msra.mxu0 %v4774
    %4898 = vmatprep.subr.mxu0 %v4779
    %4899 = vmatpush1.msra.mxu0 %v4778
    %4900 = vmatprep.subr.mxu0 %v4783
    %4901 = vmatpush1.msra.mxu0 %v4782
    %4902 = vmatprep.subr.mxu0 %v4787
    %4903 = vmatpush1.msra.mxu0 %v4786
    %4904 = vmatprep.subr.mxu0 %v4791
    %4905 = vmatpush1.msra.mxu0 %v4790
    %4906 = vmatprep.subr.mxu0 %v4795
    %4907 = vmatpush1.msra.mxu0 %v4794
    %4908 = vmatprep.subr.mxu0 %v4799
    %4909 = vmatpush1.msra.mxu0 %v4798
    %4910 = vmatprep.subr.mxu0 %v4803
    %4911 = vmatpush1.msra.mxu0 %v4802
    %4912 = vmatprep.subr.mxu0 %v4807
    %4913 = vmatpush1.msra.mxu0 %v4806
    %4914 = vmatprep.subr.mxu0 %v4811
    %4915 = vmatpush1.msra.mxu0 %v4810
    %4916 = vmatprep.subr.mxu0 %v4815
    %4917 = vmatpush1.msra.mxu0 %v4814
    %4918 = vmatprep.subr.mxu0 0.0
    %4919 = vmatpush1.msra.mxu0 0.0
    %4920 = vmatprep.subr.mxu0 0.0
    %4921 = vmatpush1.msra.mxu0 0.0
    %4922 = vmatprep.subr.mxu0 0.0
    %4923 = vmatpush1.msra.mxu0 0.0
    %4924 = vmatprep.subr.mxu0 0.0
    %4925 = vmatpush1.msra.mxu0 0.0
    %4926 = vmatprep.subr.mxu0 0.0
    %4927 = vmatpush1.msra.mxu0 0.0
    %4928 = vmatprep.subr.mxu0 0.0
    %4929 = vmatpush1.msra.mxu0 0.0
    %4930 = vmatprep.subr.mxu0 0.0
    %4931 = vmatpush1.msra.mxu0 0.0
    %4932 = vmatprep.subr.mxu0 0.0
    %4933 = vmatpush1.msra.mxu0 0.0
    %4934 = vmatprep.subr.mxu0 0.0
    %4935 = vmatpush1.msra.mxu0 0.0
    %4936 = vmatprep.subr.mxu0 0.0
    %4937 = vmatpush1.msra.mxu0 0.0
    %4938 = vmatprep.subr.mxu0 0.0
    %4939 = vmatpush1.msra.mxu0 0.0
    %4940 = vmatprep.subr.mxu0 0.0
    %4941 = vmatpush1.msra.mxu0 0.0
    %4942 = vmatprep.subr.mxu0 0.0
    %4943 = vmatpush1.msra.mxu0 0.0
    %4944 = vmatprep.subr.mxu0 0.0
    %4945 = vmatpush1.msra.mxu0 0.0
    %4946 = vmatprep.subr.mxu0 0.0
    %4947 = vmatpush1.msra.mxu0 0.0
    %4948 = vmatprep.subr.mxu0 0.0
    %4949 = vmatpush1.msra.mxu0 0.0
    %4950 = vmatprep.mubr.f32.mxu0 0.0
    %4951 = vmatmul.mubr.f32.gmra.mrb[0].mxu0 0.0
    %v4952 = vpop.f32.mrb[0].mxu0
    %v4953 = vadd.f32 0.0, %v4952
    %v4954 = vpop.f32.mrb[0].mxu0
    %v4955 = vadd.f32 0.0, %v4954
    %4956 = vdwg.mxu0
    %4957 = vmatprep.subr.mxu0 %v4757
    %4958 = vmatpush1.msra.mxu0 %v4756
    %4959 = vmatprep.subr.mxu0 %v4761
    %4960 = vmatpush1.msra.mxu0 %v4760
    %4961 = vmatprep.subr.mxu0 %v4765
    %4962 = vmatpush1.msra.mxu0 %v4764
    %4963 = vmatprep.subr.mxu0 %v4769
    %4964 = vmatpush1.msra.mxu0 %v4768
    %4965 = vmatprep.subr.mxu0 %v4773
    %4966 = vmatpush1.msra.mxu0 %v4772
    %4967 = vmatprep.subr.mxu0 %v4777
    %4968 = vmatpush1.msra.mxu0 %v4776
    %4969 = vmatprep.subr.mxu0 %v4781
    %4970 = vmatpush1.msra.mxu0 %v4780
    %4971 = vmatprep.subr.mxu0 %v4785
    %4972 = vmatpush1.msra.mxu0 %v4784
    %4973 = vmatprep.subr.mxu0 %v4789
    %4974 = vmatpush1.msra.mxu0 %v4788
    %4975 = vmatprep.subr.mxu0 %v4793
    %4976 = vmatpush1.msra.mxu0 %v4792
    %4977 = vmatprep.subr.mxu0 %v4797
    %4978 = vmatpush1.msra.mxu0 %v4796
    %4979 = vmatprep.subr.mxu0 %v4801
    %4980 = vmatpush1.msra.mxu0 %v4800
    %4981 = vmatprep.subr.mxu0 %v4805
    %4982 = vmatpush1.msra.mxu0 %v4804
    %4983 = vmatprep.subr.mxu0 %v4809
    %4984 = vmatpush1.msra.mxu0 %v4808
    %4985 = vmatprep.subr.mxu0 %v4813
    %4986 = vmatpush1.msra.mxu0 %v4812
    %4987 = vmatprep.subr.mxu0 %v4817
    %4988 = vmatpush1.msra.mxu0 %v4816
    %4989 = vmatprep.subr.mxu0 0.0
    %4990 = vmatpush1.msra.mxu0 0.0
    %4991 = vmatprep.subr.mxu0 0.0
    %4992 = vmatpush1.msra.mxu0 0.0
    %4993 = vmatprep.subr.mxu0 0.0
    %4994 = vmatpush1.msra.mxu0 0.0
    %4995 = vmatprep.subr.mxu0 0.0
    %4996 = vmatpush1.msra.mxu0 0.0
    %4997 = vmatprep.subr.mxu0 0.0
    %4998 = vmatpush1.msra.mxu0 0.0
    %4999 = vmatprep.subr.mxu0 0.0
    %5000 = vmatpush1.msra.mxu0 0.0
    %5001 = vmatprep.subr.mxu0 0.0
    %5002 = vmatpush1.msra.mxu0 0.0
    %5003 = vmatprep.subr.mxu0 0.0
    %5004 = vmatpush1.msra.mxu0 0.0
    %5005 = vmatprep.subr.mxu0 0.0
    %5006 = vmatpush1.msra.mxu0 0.0
    %5007 = vmatprep.subr.mxu0 0.0
    %5008 = vmatpush1.msra.mxu0 0.0
    %5009 = vmatprep.subr.mxu0 0.0
    %5010 = vmatpush1.msra.mxu0 0.0
    %5011 = vmatprep.subr.mxu0 0.0
    %5012 = vmatpush1.msra.mxu0 0.0
    %5013 = vmatprep.subr.mxu0 0.0
    %5014 = vmatpush1.msra.mxu0 0.0
    %5015 = vmatprep.subr.mxu0 0.0
    %5016 = vmatpush1.msra.mxu0 0.0
    %5017 = vmatprep.subr.mxu0 0.0
    %5018 = vmatpush1.msra.mxu0 0.0
    %5019 = vmatprep.subr.mxu0 0.0
    %5020 = vmatpush1.msra.mxu0 0.0
    %5021 = vmatprep.mubr.f32.mxu0 0.0
    %5022 = vmatmul.mubr.f32.gmra.mrb[0].mxu0 0.0
    %v5023 = vpop.f32.mrb[0].mxu0
    %v5024 = vadd.f32 0.0, %v5023
    %v5025 = vpop.f32.mrb[0].mxu0
    %v5026 = vadd.f32 0.0, %v5025
    %5027 = vdwg.mxu0
    %v5028 = vadd.f32 %v4882, %v4953
    %v5029 = vadd.f32 %v4883, %v4955
    %v5030 = vadd.f32 %v4884, %v5024
    %v5031 = vadd.f32 %v4885, %v5026
    %v5032 = vxor.u32 %v5028, 2147483648
    %v5033 = vmul.f32 %v5032, 1.442695
    %v5034 = vpow.pop %v5033
    %v5035 = vadd.f32 %v5034, 1.0
    %v5036 = vrcp.pop %v5035
    %v5037 = vmul.f32 1.0, %v5036
    %v5038 = vxor.u32 %v5029, 2147483648
    %v5039 = vmul.f32 %v5038, 1.442695
    %v5040 = vpow.pop %v5039
    %v5041 = vadd.f32 %v5040, 1.0
    %v5042 = vrcp.pop %v5041
    %v5043 = vmul.f32 1.0, %v5042
    %v5044 = vtanh.pop %v5030
    %v5045 = vxor.u32 %v5031, 2147483648
    %v5046 = vmul.f32 %v5045, 1.442695
    %v5047 = vpow.pop %v5046
    %v5048 = vadd.f32 %v5047, 1.0
    %v5049 = vrcp.pop %v5048
    %v5050 = vmul.f32 1.0, %v5049
    %v5051 = vmul.f32 %v5043, 0.0
    %v5052 = vmul.f32 %v5037, %v5044
    %v5053 = vadd.f32 %v5051, %v5052
    %v5054 = vtanh.pop %v5053
    %v5055 = vmul.f32 %v5050, %v5054
    %v5056 = vsel %vm1202, %v5055, 0.0
    %v5057 = vsel %vm1202, %v5053, 0.0
    %v5058 = vld [vmem:[%s1205] sm:$0xff]
    %v5059 = vld [vmem:[%s1205 + $0x8] sm:$0xff]
    %v5060 = vld [vmem:[%s1205 + $0x10] sm:$0xff]
    %v5061 = vld [vmem:[%s1205 + $0x18] sm:$0xff]
    %5062 = vmatprep.subr.mxu0 %v4819
    %5063 = vmatpush1.msra.mxu0 %v4818
    %5064 = vmatprep.subr.mxu0 %v4823
    %5065 = vmatpush1.msra.mxu0 %v4822
    %5066 = vmatprep.subr.mxu0 %v4827
    %5067 = vmatpush1.msra.mxu0 %v4826
    %5068 = vmatprep.subr.mxu0 %v4831
    %5069 = vmatpush1.msra.mxu0 %v4830
    %5070 = vmatprep.subr.mxu0 %v4835
    %5071 = vmatpush1.msra.mxu0 %v4834
    %5072 = vmatprep.subr.mxu0 %v4839
    %5073 = vmatpush1.msra.mxu0 %v4838
    %5074 = vmatprep.subr.mxu0 %v4843
    %5075 = vmatpush1.msra.mxu0 %v4842
    %5076 = vmatprep.subr.mxu0 %v4847
    %5077 = vmatpush1.msra.mxu0 %v4846
    %5078 = vmatprep.subr.mxu0 %v4851
    %5079 = vmatpush1.msra.mxu0 %v4850
    %5080 = vmatprep.subr.mxu0 %v4855
    %5081 = vmatpush1.msra.mxu0 %v4854
    %5082 = vmatprep.subr.mxu0 %v4859
    %5083 = vmatpush1.msra.mxu0 %v4858
    %5084 = vmatprep.subr.mxu0 %v4863
    %5085 = vmatpush1.msra.mxu0 %v4862
    %5086 = vmatprep.subr.mxu0 %v4867
    %5087 = vmatpush1.msra.mxu0 %v4866
    %5088 = vmatprep.subr.mxu0 %v4871
    %5089 = vmatpush1.msra.mxu0 %v4870
    %5090 = vmatprep.subr.mxu0 %v4875
    %5091 = vmatpush1.msra.mxu0 %v4874
    %5092 = vmatprep.subr.mxu0 %v4879
    %5093 = vmatpush1.msra.mxu0 %v4878
    %5094 = vmatprep.subr.mxu0 0.0
    %5095 = vmatpush1.msra.mxu0 0.0
    %5096 = vmatprep.subr.mxu0 0.0
    %5097 = vmatpush1.msra.mxu0 0.0
    %5098 = vmatprep.subr.mxu0 0.0
    %5099 = vmatpush1.msra.mxu0 0.0
    %5100 = vmatprep.subr.mxu0 0.0
    %5101 = vmatpush1.msra.mxu0 0.0
    %5102 = vmatprep.subr.mxu0 0.0
    %5103 = vmatpush1.msra.mxu0 0.0
    %5104 = vmatprep.subr.mxu0 0.0
    %5105 = vmatpush1.msra.mxu0 0.0
    %5106 = vmatprep.subr.mxu0 0.0
    %5107 = vmatpush1.msra.mxu0 0.0
    %5108 = vmatprep.subr.mxu0 0.0
    %5109 = vmatpush1.msra.mxu0 0.0
    %5110 = vmatprep.subr.mxu0 0.0
    %5111 = vmatpush1.msra.mxu0 0.0
    %5112 = vmatprep.subr.mxu0 0.0
    %5113 = vmatpush1.msra.mxu0 0.0
    %5114 = vmatprep.subr.mxu0 0.0
    %5115 = vmatpush1.msra.mxu0 0.0
    %5116 = vmatprep.subr.mxu0 0.0
    %5117 = vmatpush1.msra.mxu0 0.0
    %5118 = vmatprep.subr.mxu0 0.0
    %5119 = vmatpush1.msra.mxu0 0.0
    %5120 = vmatprep.subr.mxu0 0.0
    %5121 = vmatpush1.msra.mxu0 0.0
    %5122 = vmatprep.subr.mxu0 0.0
    %5123 = vmatpush1.msra.mxu0 0.0
    %5124 = vmatprep.subr.mxu0 0.0
    %5125 = vmatpush1.msra.mxu0 0.0
    %5126 = vmatprep.mubr.f32.mxu0 0.0
    %5127 = vmatmul.mubr.f32.gmra.mrb[0].mxu0 0.0
    %v5128 = vpop.f32.mrb[0].mxu0
    %v5129 = vadd.f32 0.0, %v5128
    %v5130 = vpop.f32.mrb[0].mxu0
    %v5131 = vadd.f32 0.0, %v5130
    %5132 = vdwg.mxu0
    %5133 = vmatprep.subr.mxu0 %v4821
    %5134 = vmatpush1.msra.mxu0 %v4820
    %5135 = vmatprep.subr.mxu0 %v4825
    %5136 = vmatpush1.msra.mxu0 %v4824
    %5137 = vmatprep.subr.mxu0 %v4829
    %5138 = vmatpush1.msra.mxu0 %v4828
    %5139 = vmatprep.subr.mxu0 %v4833
    %5140 = vmatpush1.msra.mxu0 %v4832
    %5141 = vmatprep.subr.mxu0 %v4837
    %5142 = vmatpush1.msra.mxu0 %v4836
    %5143 = vmatprep.subr.mxu0 %v4841
    %5144 = vmatpush1.msra.mxu0 %v4840
    %5145 = vmatprep.subr.mxu0 %v4845
    %5146 = vmatpush1.msra.mxu0 %v4844
    %5147 = vmatprep.subr.mxu0 %v4849
    %5148 = vmatpush1.msra.mxu0 %v4848
    %5149 = vmatprep.subr.mxu0 %v4853
    %5150 = vmatpush1.msra.mxu0 %v4852
    %5151 = vmatprep.subr.mxu0 %v4857
    %5152 = vmatpush1.msra.mxu0 %v4856
    %5153 = vmatprep.subr.mxu0 %v4861
    %5154 = vmatpush1.msra.mxu0 %v4860
    %5155 = vmatprep.subr.mxu0 %v4865
    %5156 = vmatpush1.msra.mxu0 %v4864
    %5157 = vmatprep.subr.mxu0 %v4869
    %5158 = vmatpush1.msra.mxu0 %v4868
    %5159 = vmatprep.subr.mxu0 %v4873
    %5160 = vmatpush1.msra.mxu0 %v4872
    %5161 = vmatprep.subr.mxu0 %v4877
    %5162 = vmatpush1.msra.mxu0 %v4876
    %5163 = vmatprep.subr.mxu0 %v4881
    %5164 = vmatpush1.msra.mxu0 %v4880
    %5165 = vmatprep.subr.mxu0 0.0
    %5166 = vmatpush1.msra.mxu0 0.0
    %5167 = vmatprep.subr.mxu0 0.0
    %5168 = vmatpush1.msra.mxu0 0.0
    %5169 = vmatprep.subr.mxu0 0.0
    %5170 = vmatpush1.msra.mxu0 0.0
    %5171 = vmatprep.subr.mxu0 0.0
    %5172 = vmatpush1.msra.mxu0 0.0
    %5173 = vmatprep.subr.mxu0 0.0
    %5174 = vmatpush1.msra.mxu0 0.0
    %5175 = vmatprep.subr.mxu0 0.0
    %5176 = vmatpush1.msra.mxu0 0.0
    %5177 = vmatprep.subr.mxu0 0.0
    %5178 = vmatpush1.msra.mxu0 0.0
    %5179 = vmatprep.subr.mxu0 0.0
    %5180 = vmatpush1.msra.mxu0 0.0
    %5181 = vmatprep.subr.mxu0 0.0
    %5182 = vmatpush1.msra.mxu0 0.0
    %5183 = vmatprep.subr.mxu0 0.0
    %5184 = vmatpush1.msra.mxu0 0.0
    %5185 = vmatprep.subr.mxu0 0.0
    %5186 = vmatpush1.msra.mxu0 0.0
    %5187 = vmatprep.subr.mxu0 0.0
    %5188 = vmatpush1.msra.mxu0 0.0
    %5189 = vmatprep.subr.mxu0 0.0
    %5190 = vmatpush1.msra.mxu0 0.0
    %5191 = vmatprep.subr.mxu0 0.0
    %5192 = vmatpush1.msra.mxu0 0.0
    %5193 = vmatprep.subr.mxu0 0.0
    %5194 = vmatpush1.msra.mxu0 0.0
    %5195 = vmatprep.subr.mxu0 0.0
    %5196 = vmatpush1.msra.mxu0 0.0
    %5197 = vmatprep.mubr.f32.mxu0 0.0
    %5198 = vmatmul.mubr.f32.gmra.mrb[0].mxu0 0.0
    %v5199 = vpop.f32.mrb[0].mxu0
    %v5200 = vadd.f32 0.0, %v5199
    %v5201 = vpop.f32.mrb[0].mxu0
    %v5202 = vadd.f32 0.0, %v5201
    %5203 = vdwg.mxu0
    %v5204 = vadd.f32 %v5058, %v5129
    %v5205 = vadd.f32 %v5059, %v5131
    %v5206 = vadd.f32 %v5060, %v5200
    %v5207 = vadd.f32 %v5061, %v5202
    %v5208 = vxor.u32 %v5204, 2147483648
    %v5209 = vmul.f32 %v5208, 1.442695
    %v5210 = vpow.pop %v5209
    %v5211 = vadd.f32 %v5210, 1.0
    %v5212 = vrcp.pop %v5211
    %v5213 = vmul.f32 1.0, %v5212
    %v5214 = vxor.u32 %v5205, 2147483648
    %v5215 = vmul.f32 %v5214, 1.442695
    %v5216 = vpow.pop %v5215
    %v5217 = vadd.f32 %v5216, 1.0
    %v5218 = vrcp.pop %v5217
    %v5219 = vmul.f32 1.0, %v5218
    %v5220 = vtanh.pop %v5206
    %v5221 = vxor.u32 %v5207, 2147483648
    %v5222 = vmul.f32 %v5221, 1.442695
    %v5223 = vpow.pop %v5222
    %v5224 = vadd.f32 %v5223, 1.0
    %v5225 = vrcp.pop %v5224
    %v5226 = vmul.f32 1.0, %v5225
    %v5227 = vmul.f32 %v5219, 0.0
    %v5228 = vmul.f32 %v5213, %v5220
    %v5229 = vadd.f32 %v5227, %v5228
    %v5230 = vtanh.pop %v5229
    %v5231 = vmul.f32 %v5226, %v5230
    %v5232 = vsel %vm1385, %v5231, 0.0
    %v5233 = vsel %vm1385, %v5229, 0.0
    %v5234 = vld [vmem:[%s1391] sm:$0xff]
    %v5235 = vld [vmem:[%s1391 + $0x8] sm:$0xff]
    %v5236 = vld [vmem:[%s1391 + $0x10] sm:$0xff]
    %v5237 = vld [vmem:[%s1391 + $0x18] sm:$0xff]
    %5238 = vmatprep.subr.mxu0 %v4755
    %5239 = vmatpush1.msra.mxu0 %v4754
    %5240 = vmatprep.subr.mxu0 %v4759
    %5241 = vmatpush1.msra.mxu0 %v4758
    %5242 = vmatprep.subr.mxu0 %v4763
    %5243 = vmatpush1.msra.mxu0 %v4762
    %5244 = vmatprep.subr.mxu0 %v4767
    %5245 = vmatpush1.msra.mxu0 %v4766
    %5246 = vmatprep.subr.mxu0 %v4771
    %5247 = vmatpush1.msra.mxu0 %v4770
    %5248 = vmatprep.subr.mxu0 %v4775
    %5249 = vmatpush1.msra.mxu0 %v4774
    %5250 = vmatprep.subr.mxu0 %v4779
    %5251 = vmatpush1.msra.mxu0 %v4778
    %5252 = vmatprep.subr.mxu0 %v4783
    %5253 = vmatpush1.msra.mxu0 %v4782
    %5254 = vmatprep.subr.mxu0 %v4787
    %5255 = vmatpush1.msra.mxu0 %v4786
    %5256 = vmatprep.subr.mxu0 %v4791
    %5257 = vmatpush1.msra.mxu0 %v4790
    %5258 = vmatprep.subr.mxu0 %v4795
    %5259 = vmatpush1.msra.mxu0 %v4794
    %5260 = vmatprep.subr.mxu0 %v4799
    %5261 = vmatpush1.msra.mxu0 %v4798
    %5262 = vmatprep.subr.mxu0 %v4803
    %5263 = vmatpush1.msra.mxu0 %v4802
    %5264 = vmatprep.subr.mxu0 %v4807
    %5265 = vmatpush1.msra.mxu0 %v4806
    %5266 = vmatprep.subr.mxu0 %v4811
    %5267 = vmatpush1.msra.mxu0 %v4810
    %5268 = vmatprep.subr.mxu0 %v4815
    %5269 = vmatpush1.msra.mxu0 %v4814
    %5270 = vmatprep.subr.mxu0 0.0
    %5271 = vmatpush1.msra.mxu0 0.0
    %5272 = vmatprep.subr.mxu0 0.0
    %5273 = vmatpush1.msra.mxu0 0.0
    %5274 = vmatprep.subr.mxu0 0.0
    %5275 = vmatpush1.msra.mxu0 0.0
    %5276 = vmatprep.subr.mxu0 0.0
    %5277 = vmatpush1.msra.mxu0 0.0
    %5278 = vmatprep.subr.mxu0 0.0
    %5279 = vmatpush1.msra.mxu0 0.0
    %5280 = vmatprep.subr.mxu0 0.0
    %5281 = vmatpush1.msra.mxu0 0.0
    %5282 = vmatprep.subr.mxu0 0.0
    %5283 = vmatpush1.msra.mxu0 0.0
    %5284 = vmatprep.subr.mxu0 0.0
    %5285 = vmatpush1.msra.mxu0 0.0
    %5286 = vmatprep.subr.mxu0 0.0
    %5287 = vmatpush1.msra.mxu0 0.0
    %5288 = vmatprep.subr.mxu0 0.0
    %5289 = vmatpush1.msra.mxu0 0.0
    %5290 = vmatprep.subr.mxu0 0.0
    %5291 = vmatpush1.msra.mxu0 0.0
    %5292 = vmatprep.subr.mxu0 0.0
    %5293 = vmatpush1.msra.mxu0 0.0
    %5294 = vmatprep.subr.mxu0 0.0
    %5295 = vmatpush1.msra.mxu0 0.0
    %5296 = vmatprep.subr.mxu0 0.0
    %5297 = vmatpush1.msra.mxu0 0.0
    %5298 = vmatprep.subr.mxu0 0.0
    %5299 = vmatpush1.msra.mxu0 0.0
    %5300 = vmatprep.subr.mxu0 0.0
    %5301 = vmatpush1.msra.mxu0 0.0
    %5302 = vmatprep.mubr.f32.mxu0 0.0
    %5303 = vmatmul.mubr.f32.gmra.mrb[0].mxu0 %v5056
    %v5304 = vpop.f32.mrb[0].mxu0
    %v5305 = vadd.f32 0.0, %v5304
    %v5306 = vpop.f32.mrb[0].mxu0
    %v5307 = vadd.f32 0.0, %v5306
    %5308 = vdwg.mxu0
    %5309 = vmatprep.subr.mxu0 %v4757
    %5310 = vmatpush1.msra.mxu0 %v4756
    %5311 = vmatprep.subr.mxu0 %v4761
    %5312 = vmatpush1.msra.mxu0 %v4760
    %5313 = vmatprep.subr.mxu0 %v4765
    %5314 = vmatpush1.msra.mxu0 %v4764
    %5315 = vmatprep.subr.mxu0 %v4769
    %5316 = vmatpush1.msra.mxu0 %v4768
    %5317 = vmatprep.subr.mxu0 %v4773
    %5318 = vmatpush1.msra.mxu0 %v4772
    %5319 = vmatprep.subr.mxu0 %v4777
    %5320 = vmatpush1.msra.mxu0 %v4776
    %5321 = vmatprep.subr.mxu0 %v4781
    %5322 = vmatpush1.msra.mxu0 %v4780
    %5323 = vmatprep.subr.mxu0 %v4785
    %5324 = vmatpush1.msra.mxu0 %v4784
    %5325 = vmatprep.subr.mxu0 %v4789
    %5326 = vmatpush1.msra.mxu0 %v4788
    %5327 = vmatprep.subr.mxu0 %v4793
    %5328 = vmatpush1.msra.mxu0 %v4792
    %5329 = vmatprep.subr.mxu0 %v4797
    %5330 = vmatpush1.msra.mxu0 %v4796
    %5331 = vmatprep.subr.mxu0 %v4801
    %5332 = vmatpush1.msra.mxu0 %v4800
    %5333 = vmatprep.subr.mxu0 %v4805
    %5334 = vmatpush1.msra.mxu0 %v4804
    %5335 = vmatprep.subr.mxu0 %v4809
    %5336 = vmatpush1.msra.mxu0 %v4808
    %5337 = vmatprep.subr.mxu0 %v4813
    %5338 = vmatpush1.msra.mxu0 %v4812
    %5339 = vmatprep.subr.mxu0 %v4817
    %5340 = vmatpush1.msra.mxu0 %v4816
    %5341 = vmatprep.subr.mxu0 0.0
    %5342 = vmatpush1.msra.mxu0 0.0
    %5343 = vmatprep.subr.mxu0 0.0
    %5344 = vmatpush1.msra.mxu0 0.0
    %5345 = vmatprep.subr.mxu0 0.0
    %5346 = vmatpush1.msra.mxu0 0.0
    %5347 = vmatprep.subr.mxu0 0.0
    %5348 = vmatpush1.msra.mxu0 0.0
    %5349 = vmatprep.subr.mxu0 0.0
    %5350 = vmatpush1.msra.mxu0 0.0
    %5351 = vmatprep.subr.mxu0 0.0
    %5352 = vmatpush1.msra.mxu0 0.0
    %5353 = vmatprep.subr.mxu0 0.0
    %5354 = vmatpush1.msra.mxu0 0.0
    %5355 = vmatprep.subr.mxu0 0.0
    %5356 = vmatpush1.msra.mxu0 0.0
    %5357 = vmatprep.subr.mxu0 0.0
    %5358 = vmatpush1.msra.mxu0 0.0
    %5359 = vmatprep.subr.mxu0 0.0
    %5360 = vmatpush1.msra.mxu0 0.0
    %5361 = vmatprep.subr.mxu0 0.0
    %5362 = vmatpush1.msra.mxu0 0.0
    %5363 = vmatprep.subr.mxu0 0.0
    %5364 = vmatpush1.msra.mxu0 0.0
    %5365 = vmatprep.subr.mxu0 0.0
    %5366 = vmatpush1.msra.mxu0 0.0
    %5367 = vmatprep.subr.mxu0 0.0
    %5368 = vmatpush1.msra.mxu0 0.0
    %5369 = vmatprep.subr.mxu0 0.0
    %5370 = vmatpush1.msra.mxu0 0.0
    %5371 = vmatprep.subr.mxu0 0.0
    %5372 = vmatpush1.msra.mxu0 0.0
    %5373 = vmatprep.mubr.f32.mxu0 0.0
    %5374 = vmatmul.mubr.f32.gmra.mrb[0].mxu0 %v5056
    %v5375 = vpop.f32.mrb[0].mxu0
    %v5376 = vadd.f32 0.0, %v5375
    %v5377 = vpop.f32.mrb[0].mxu0
    %v5378 = vadd.f32 0.0, %v5377
    %5379 = vdwg.mxu0
    %v5380 = vadd.f32 %v5234, %v5305
    %v5381 = vadd.f32 %v5235, %v5307
    %v5382 = vadd.f32 %v5236, %v5376
    %v5383 = vadd.f32 %v5237, %v5378
    %v5384 = vxor.u32 %v5380, 2147483648
    %v5385 = vmul.f32 %v5384, 1.442695
    %v5386 = vpow.pop %v5385
    %v5387 = vadd.f32 %v5386, 1.0
    %v5388 = vrcp.pop %v5387
    %v5389 = vmul.f32 1.0, %v5388
    %v5390 = vxor.u32 %v5381, 2147483648
    %v5391 = vmul.f32 %v5390, 1.442695
    %v5392 = vpow.pop %v5391
    %v5393 = vadd.f32 %v5392, 1.0
    %v5394 = vrcp.pop %v5393
    %v5395 = vmul.f32 1.0, %v5394
    %v5396 = vtanh.pop %v5382
    %v5397 = vxor.u32 %v5383, 2147483648
    %v5398 = vmul.f32 %v5397, 1.442695
    %v5399 = vpow.pop %v5398
    %v5400 = vadd.f32 %v5399, 1.0
    %v5401 = vrcp.pop %v5400
    %v5402 = vmul.f32 1.0, %v5401
    %v5403 = vmul.f32 %v5395, %v5057
    %v5404 = vmul.f32 %v5389, %v5396
    %v5405 = vadd.f32 %v5403, %v5404
    %v5406 = vtanh.pop %v5405
    %v5407 = vmul.f32 %v5402, %v5406
    %v5408 = vsel %vm1571, %v5407, %v5056
    %v5409 = vsel %vm1571, %v5405, %v5057
    %v5410 = vld [vmem:[%s1574] sm:$0xff]
    %v5411 = vld [vmem:[%s1574 + $0x8] sm:$0xff]
    %v5412 = vld [vmem:[%s1574 + $0x10] sm:$0xff]
    %v5413 = vld [vmem:[%s1574 + $0x18] sm:$0xff]
    %5414 = vmatprep.subr.mxu0 %v4819
    %5415 = vmatpush1.msra.mxu0 %v4818
    %5416 = vmatprep.subr.mxu0 %v4823
    %5417 = vmatpush1.msra.mxu0 %v4822
    %5418 = vmatprep.subr.mxu0 %v4827
    %5419 = vmatpush1.msra.mxu0 %v4826
    %5420 = vmatprep.subr.mxu0 %v4831
    %5421 = vmatpush1.msra.mxu0 %v4830
    %5422 = vmatprep.subr.mxu0 %v4835
    %5423 = vmatpush1.msra.mxu0 %v4834
    %5424 = vmatprep.subr.mxu0 %v4839
    %5425 = vmatpush1.msra.mxu0 %v4838
    %5426 = vmatprep.subr.mxu0 %v4843
    %5427 = vmatpush1.msra.mxu0 %v4842
    %5428 = vmatprep.subr.mxu0 %v4847
    %5429 = vmatpush1.msra.mxu0 %v4846
    %5430 = vmatprep.subr.mxu0 %v4851
    %5431 = vmatpush1.msra.mxu0 %v4850
    %5432 = vmatprep.subr.mxu0 %v4855
    %5433 = vmatpush1.msra.mxu0 %v4854
    %5434 = vmatprep.subr.mxu0 %v4859
    %5435 = vmatpush1.msra.mxu0 %v4858
    %5436 = vmatprep.subr.mxu0 %v4863
    %5437 = vmatpush1.msra.mxu0 %v4862
    %5438 = vmatprep.subr.mxu0 %v4867
    %5439 = vmatpush1.msra.mxu0 %v4866
    %5440 = vmatprep.subr.mxu0 %v4871
    %5441 = vmatpush1.msra.mxu0 %v4870
    %5442 = vmatprep.subr.mxu0 %v4875
    %5443 = vmatpush1.msra.mxu0 %v4874
    %5444 = vmatprep.subr.mxu0 %v4879
    %5445 = vmatpush1.msra.mxu0 %v4878
    %5446 = vmatprep.subr.mxu0 0.0
    %5447 = vmatpush1.msra.mxu0 0.0
    %5448 = vmatprep.subr.mxu0 0.0
    %5449 = vmatpush1.msra.mxu0 0.0
    %5450 = vmatprep.subr.mxu0 0.0
    %5451 = vmatpush1.msra.mxu0 0.0
    %5452 = vmatprep.subr.mxu0 0.0
    %5453 = vmatpush1.msra.mxu0 0.0
    %5454 = vmatprep.subr.mxu0 0.0
    %5455 = vmatpush1.msra.mxu0 0.0
    %5456 = vmatprep.subr.mxu0 0.0
    %5457 = vmatpush1.msra.mxu0 0.0
    %5458 = vmatprep.subr.mxu0 0.0
    %5459 = vmatpush1.msra.mxu0 0.0
    %5460 = vmatprep.subr.mxu0 0.0
    %5461 = vmatpush1.msra.mxu0 0.0
    %5462 = vmatprep.subr.mxu0 0.0
    %5463 = vmatpush1.msra.mxu0 0.0
    %5464 = vmatprep.subr.mxu0 0.0
    %5465 = vmatpush1.msra.mxu0 0.0
    %5466 = vmatprep.subr.mxu0 0.0
    %5467 = vmatpush1.msra.mxu0 0.0
    %5468 = vmatprep.subr.mxu0 0.0
    %5469 = vmatpush1.msra.mxu0 0.0
    %5470 = vmatprep.subr.mxu0 0.0
    %5471 = vmatpush1.msra.mxu0 0.0
    %5472 = vmatprep.subr.mxu0 0.0
    %5473 = vmatpush1.msra.mxu0 0.0
    %5474 = vmatprep.subr.mxu0 0.0
    %5475 = vmatpush1.msra.mxu0 0.0
    %5476 = vmatprep.subr.mxu0 0.0
    %5477 = vmatpush1.msra.mxu0 0.0
    %5478 = vmatprep.mubr.f32.mxu0 0.0
    %5479 = vmatmul.mubr.f32.gmra.mrb[0].mxu0 %v5232
    %v5480 = vpop.f32.mrb[0].mxu0
    %v5481 = vadd.f32 0.0, %v5480
    %v5482 = vpop.f32.mrb[0].mxu0
    %v5483 = vadd.f32 0.0, %v5482
    %5484 = vdwg.mxu0
    %5485 = vmatprep.subr.mxu0 %v4821
    %5486 = vmatpush1.msra.mxu0 %v4820
    %5487 = vmatprep.subr.mxu0 %v4825
    %5488 = vmatpush1.msra.mxu0 %v4824
    %5489 = vmatprep.subr.mxu0 %v4829
    %5490 = vmatpush1.msra.mxu0 %v4828
    %5491 = vmatprep.subr.mxu0 %v4833
    %5492 = vmatpush1.msra.mxu0 %v4832
    %5493 = vmatprep.subr.mxu0 %v4837
    %5494 = vmatpush1.msra.mxu0 %v4836
    %5495 = vmatprep.subr.mxu0 %v4841
    %5496 = vmatpush1.msra.mxu0 %v4840
    %5497 = vmatprep.subr.mxu0 %v4845
    %5498 = vmatpush1.msra.mxu0 %v4844
    %5499 = vmatprep.subr.mxu0 %v4849
    %5500 = vmatpush1.msra.mxu0 %v4848
    %5501 = vmatprep.subr.mxu0 %v4853
    %5502 = vmatpush1.msra.mxu0 %v4852
    %5503 = vmatprep.subr.mxu0 %v4857
    %5504 = vmatpush1.msra.mxu0 %v4856
    %5505 = vmatprep.subr.mxu0 %v4861
    %5506 = vmatpush1.msra.mxu0 %v4860
    %5507 = vmatprep.subr.mxu0 %v4865
    %5508 = vmatpush1.msra.mxu0 %v4864
    %5509 = vmatprep.subr.mxu0 %v4869
    %5510 = vmatpush1.msra.mxu0 %v4868
    %5511 = vmatprep.subr.mxu0 %v4873
    %5512 = vmatpush1.msra.mxu0 %v4872
    %5513 = vmatprep.subr.mxu0 %v4877
    %5514 = vmatpush1.msra.mxu0 %v4876
    %5515 = vmatprep.subr.mxu0 %v4881
    %5516 = vmatpush1.msra.mxu0 %v4880
    %5517 = vmatprep.subr.mxu0 0.0
    %5518 = vmatpush1.msra.mxu0 0.0
    %5519 = vmatprep.subr.mxu0 0.0
    %5520 = vmatpush1.msra.mxu0 0.0
    %5521 = vmatprep.subr.mxu0 0.0
    %5522 = vmatpush1.msra.mxu0 0.0
    %5523 = vmatprep.subr.mxu0 0.0
    %5524 = vmatpush1.msra.mxu0 0.0
    %5525 = vmatprep.subr.mxu0 0.0
    %5526 = vmatpush1.msra.mxu0 0.0
    %5527 = vmatprep.subr.mxu0 0.0
    %5528 = vmatpush1.msra.mxu0 0.0
    %5529 = vmatprep.subr.mxu0 0.0
    %5530 = vmatpush1.msra.mxu0 0.0
    %5531 = vmatprep.subr.mxu0 0.0
    %5532 = vmatpush1.msra.mxu0 0.0
    %5533 = vmatprep.subr.mxu0 0.0
    %5534 = vmatpush1.msra.mxu0 0.0
    %5535 = vmatprep.subr.mxu0 0.0
    %5536 = vmatpush1.msra.mxu0 0.0
    %5537 = vmatprep.subr.mxu0 0.0
    %5538 = vmatpush1.msra.mxu0 0.0
    %5539 = vmatprep.subr.mxu0 0.0
    %5540 = vmatpush1.msra.mxu0 0.0
    %5541 = vmatprep.subr.mxu0 0.0
    %5542 = vmatpush1.msra.mxu0 0.0
    %5543 = vmatprep.subr.mxu0 0.0
    %5544 = vmatpush1.msra.mxu0 0.0
    %5545 = vmatprep.subr.mxu0 0.0
    %5546 = vmatpush1.msra.mxu0 0.0
    %5547 = vmatprep.subr.mxu0 0.0
    %5548 = vmatpush1.msra.mxu0 0.0
    %5549 = vmatprep.mubr.f32.mxu0 0.0
    %5550 = vmatmul.mubr.f32.gmra.mrb[0].mxu0 %v5232
    %v5551 = vpop.f32.mrb[0].mxu0
    %v5552 = vadd.f32 0.0, %v5551
    %v5553 = vpop.f32.mrb[0].mxu0
    %v5554 = vadd.f32 0.0, %v5553
    %5555 = vdwg.mxu0
    %v5556 = vadd.f32 %v5410, %v5481
    %v5557 = vadd.f32 %v5411, %v5483
    %v5558 = vadd.f32 %v5412, %v5552
    %v5559 = vadd.f32 %v5413, %v5554
    %v5560 = vxor.u32 %v5556, 2147483648
    %v5561 = vmul.f32 %v5560, 1.442695
    %v5562 = vpow.pop %v5561
    %v5563 = vadd.f32 %v5562, 1.0
    %v5564 = vrcp.pop %v5563
    %v5565 = vmul.f32 1.0, %v5564
    %v5566 = vxor.u32 %v5557, 2147483648
    %v5567 = vmul.f32 %v5566, 1.442695
    %v5568 = vpow.pop %v5567
    %v5569 = vadd.f32 %v5568, 1.0
    %v5570 = vrcp.pop %v5569
    %v5571 = vmul.f32 1.0, %v5570
    %v5572 = vtanh.pop %v5558
    %v5573 = vxor.u32 %v5559, 2147483648
    %v5574 = vmul.f32 %v5573, 1.442695
    %v5575 = vpow.pop %v5574
    %v5576 = vadd.f32 %v5575, 1.0
    %v5577 = vrcp.pop %v5576
    %v5578 = vmul.f32 1.0, %v5577
    %v5579 = vmul.f32 %v5571, %v5233
    %v5580 = vmul.f32 %v5565, %v5572
    %v5581 = vadd.f32 %v5579, %v5580
    %v5582 = vtanh.pop %v5581
    %v5583 = vmul.f32 %v5578, %v5582
    %v5584 = vsel %vm1754, %v5583, %v5232
    %v5585 = vsel %vm1754, %v5581, %v5233
    %v5586 = vld [vmem:[%s1761] sm:$0xff]
    %v5587 = vld [vmem:[%s1761 + $0x8] sm:$0xff]
    %v5588 = vld [vmem:[%s1761 + $0x10] sm:$0xff]
    %v5589 = vld [vmem:[%s1761 + $0x18] sm:$0xff]
    %5590 = vmatprep.subr.mxu0 %v4755
    %5591 = vmatpush1.msra.mxu0 %v4754
    %5592 = vmatprep.subr.mxu0 %v4759
    %5593 = vmatpush1.msra.mxu0 %v4758
    %5594 = vmatprep.subr.mxu0 %v4763
    %5595 = vmatpush1.msra.mxu0 %v4762
    %5596 = vmatprep.subr.mxu0 %v4767
    %5597 = vmatpush1.msra.mxu0 %v4766
    %5598 = vmatprep.subr.mxu0 %v4771
    %5599 = vmatpush1.msra.mxu0 %v4770
    %5600 = vmatprep.subr.mxu0 %v4775
    %5601 = vmatpush1.msra.mxu0 %v4774
    %5602 = vmatprep.subr.mxu0 %v4779
    %5603 = vmatpush1.msra.mxu0 %v4778
    %5604 = vmatprep.subr.mxu0 %v4783
    %5605 = vmatpush1.msra.mxu0 %v4782
    %5606 = vmatprep.subr.mxu0 %v4787
    %5607 = vmatpush1.msra.mxu0 %v4786
    %5608 = vmatprep.subr.mxu0 %v4791
    %5609 = vmatpush1.msra.mxu0 %v4790
    %5610 = vmatprep.subr.mxu0 %v4795
    %5611 = vmatpush1.msra.mxu0 %v4794
    %5612 = vmatprep.subr.mxu0 %v4799
    %5613 = vmatpush1.msra.mxu0 %v4798
    %5614 = vmatprep.subr.mxu0 %v4803
    %5615 = vmatpush1.msra.mxu0 %v4802
    %5616 = vmatprep.subr.mxu0 %v4807
    %5617 = vmatpush1.msra.mxu0 %v4806
    %5618 = vmatprep.subr.mxu0 %v4811
    %5619 = vmatpush1.msra.mxu0 %v4810
    %5620 = vmatprep.subr.mxu0 %v4815
    %5621 = vmatpush1.msra.mxu0 %v4814
    %5622 = vmatprep.subr.mxu0 0.0
    %5623 = vmatpush1.msra.mxu0 0.0
    %5624 = vmatprep.subr.mxu0 0.0
    %5625 = vmatpush1.msra.mxu0 0.0
    %5626 = vmatprep.subr.mxu0 0.0
    %5627 = vmatpush1.msra.mxu0 0.0
    %5628 = vmatprep.subr.mxu0 0.0
    %5629 = vmatpush1.msra.mxu0 0.0
    %5630 = vmatprep.subr.mxu0 0.0
    %5631 = vmatpush1.msra.mxu0 0.0
    %5632 = vmatprep.subr.mxu0 0.0
    %5633 = vmatpush1.msra.mxu0 0.0
    %5634 = vmatprep.subr.mxu0 0.0
    %5635 = vmatpush1.msra.mxu0 0.0
    %5636 = vmatprep.subr.mxu0 0.0
    %5637 = vmatpush1.msra.mxu0 0.0
    %5638 = vmatprep.subr.mxu0 0.0
    %5639 = vmatpush1.msra.mxu0 0.0
    %5640 = vmatprep.subr.mxu0 0.0
    %5641 = vmatpush1.msra.mxu0 0.0
    %5642 = vmatprep.subr.mxu0 0.0
    %5643 = vmatpush1.msra.mxu0 0.0
    %5644 = vmatprep.subr.mxu0 0.0
    %5645 = vmatpush1.msra.mxu0 0.0
    %5646 = vmatprep.subr.mxu0 0.0
    %5647 = vmatpush1.msra.mxu0 0.0
    %5648 = vmatprep.subr.mxu0 0.0
    %5649 = vmatpush1.msra.mxu0 0.0
    %5650 = vmatprep.subr.mxu0 0.0
    %5651 = vmatpush1.msra.mxu0 0.0
    %5652 = vmatprep.subr.mxu0 0.0
    %5653 = vmatpush1.msra.mxu0 0.0
    %5654 = vmatprep.mubr.f32.mxu0 0.0
    %5655 = vmatmul.mubr.f32.gmra.mrb[0].mxu0 %v5408
    %v5656 = vpop.f32.mrb[0].mxu0
    %v5657 = vadd.f32 0.0, %v5656
    %v5658 = vpop.f32.mrb[0].mxu0
    %v5659 = vadd.f32 0.0, %v5658
    %5660 = vdwg.mxu0
    %5661 = vmatprep.subr.mxu0 %v4757
    %5662 = vmatpush1.msra.mxu0 %v4756
    %5663 = vmatprep.subr.mxu0 %v4761
    %5664 = vmatpush1.msra.mxu0 %v4760
    %5665 = vmatprep.subr.mxu0 %v4765
    %5666 = vmatpush1.msra.mxu0 %v4764
    %5667 = vmatprep.subr.mxu0 %v4769
    %5668 = vmatpush1.msra.mxu0 %v4768
    %5669 = vmatprep.subr.mxu0 %v4773
    %5670 = vmatpush1.msra.mxu0 %v4772
    %5671 = vmatprep.subr.mxu0 %v4777
    %5672 = vmatpush1.msra.mxu0 %v4776
    %5673 = vmatprep.subr.mxu0 %v4781
    %5674 = vmatpush1.msra.mxu0 %v4780
    %5675 = vmatprep.subr.mxu0 %v4785
    %5676 = vmatpush1.msra.mxu0 %v4784
    %5677 = vmatprep.subr.mxu0 %v4789
    %5678 = vmatpush1.msra.mxu0 %v4788
    %5679 = vmatprep.subr.mxu0 %v4793
    %5680 = vmatpush1.msra.mxu0 %v4792
    %5681 = vmatprep.subr.mxu0 %v4797
    %5682 = vmatpush1.msra.mxu0 %v4796
    %5683 = vmatprep.subr.mxu0 %v4801
    %5684 = vmatpush1.msra.mxu0 %v4800
    %5685 = vmatprep.subr.mxu0 %v4805
    %5686 = vmatpush1.msra.mxu0 %v4804
    %5687 = vmatprep.subr.mxu0 %v4809
    %5688 = vmatpush1.msra.mxu0 %v4808
    %5689 = vmatprep.subr.mxu0 %v4813
    %5690 = vmatpush1.msra.mxu0 %v4812
    %5691 = vmatprep.subr.mxu0 %v4817
    %5692 = vmatpush1.msra.mxu0 %v4816
    %5693 = vmatprep.subr.mxu0 0.0
    %5694 = vmatpush1.msra.mxu0 0.0
    %5695 = vmatprep.subr.mxu0 0.0
    %5696 = vmatpush1.msra.mxu0 0.0
    %5697 = vmatprep.subr.mxu0 0.0
    %5698 = vmatpush1.msra.mxu0 0.0
    %5699 = vmatprep.subr.mxu0 0.0
    %5700 = vmatpush1.msra.mxu0 0.0
    %5701 = vmatprep.subr.mxu0 0.0
    %5702 = vmatpush1.msra.mxu0 0.0
    %5703 = vmatprep.subr.mxu0 0.0
    %5704 = vmatpush1.msra.mxu0 0.0
    %5705 = vmatprep.subr.mxu0 0.0
    %5706 = vmatpush1.msra.mxu0 0.0
    %5707 = vmatprep.subr.mxu0 0.0
    %5708 = vmatpush1.msra.mxu0 0.0
    %5709 = vmatprep.subr.mxu0 0.0
    %5710 = vmatpush1.msra.mxu0 0.0
    %5711 = vmatprep.subr.mxu0 0.0
    %5712 = vmatpush1.msra.mxu0 0.0
    %5713 = vmatprep.subr.mxu0 0.0
    %5714 = vmatpush1.msra.mxu0 0.0
    %5715 = vmatprep.subr.mxu0 0.0
    %5716 = vmatpush1.msra.mxu0 0.0
    %5717 = vmatprep.subr.mxu0 0.0
    %5718 = vmatpush1.msra.mxu0 0.0
    %5719 = vmatprep.subr.mxu0 0.0
    %5720 = vmatpush1.msra.mxu0 0.0
    %5721 = vmatprep.subr.mxu0 0.0
    %5722 = vmatpush1.msra.mxu0 0.0
    %5723 = vmatprep.subr.mxu0 0.0
    %5724 = vmatpush1.msra.mxu0 0.0
    %5725 = vmatprep.mubr.f32.mxu0 0.0
    %5726 = vmatmul.mubr.f32.gmra.mrb[0].mxu0 %v5408
    %v5727 = vpop.f32.mrb[0].mxu0
    %v5728 = vadd.f32 0.0, %v5727
    %v5729 = vpop.f32.mrb[0].mxu0
    %v5730 = vadd.f32 0.0, %v5729
    %5731 = vdwg.mxu0
    %v5732 = vadd.f32 %v5586, %v5657
    %v5733 = vadd.f32 %v5587, %v5659
    %v5734 = vadd.f32 %v5588, %v5728
    %v5735 = vadd.f32 %v5589, %v5730
    %v5736 = vxor.u32 %v5732, 2147483648
    %v5737 = vmul.f32 %v5736, 1.442695
    %v5738 = vpow.pop %v5737
    %v5739 = vadd.f32 %v5738, 1.0
    %v5740 = vrcp.pop %v5739
    %v5741 = vmul.f32 1.0, %v5740
    %v5742 = vxor.u32 %v5733, 2147483648
    %v5743 = vmul.f32 %v5742, 1.442695
    %v5744 = vpow.pop %v5743
    %v5745 = vadd.f32 %v5744, 1.0
    %v5746 = vrcp.pop %v5745
    %v5747 = vmul.f32 1.0, %v5746
    %v5748 = vtanh.pop %v5734
    %v5749 = vxor.u32 %v5735, 2147483648
    %v5750 = vmul.f32 %v5749, 1.442695
    %v5751 = vpow.pop %v5750
    %v5752 = vadd.f32 %v5751, 1.0
    %v5753 = vrcp.pop %v5752
    %v5754 = vmul.f32 1.0, %v5753
    %v5755 = vmul.f32 %v5747, %v5409
    %v5756 = vmul.f32 %v5741, %v5748
    %v5757 = vadd.f32 %v5755, %v5756
    %v5758 = vtanh.pop %v5757
    %v5759 = vmul.f32 %v5754, %v5758
    %v5760 = vsel %vm1941, %v5759, %v5408
    %v5761 = vsel %vm1941, %v5757, %v5409
    %v5762 = vld [vmem:[%s1944] sm:$0xff]
    %v5763 = vld [vmem:[%s1944 + $0x8] sm:$0xff]
    %v5764 = vld [vmem:[%s1944 + $0x10] sm:$0xff]
    %v5765 = vld [vmem:[%s1944 + $0x18] sm:$0xff]
    %5766 = vmatprep.subr.mxu0 %v4819
    %5767 = vmatpush1.msra.mxu0 %v4818
    %5768 = vmatprep.subr.mxu0 %v4823
    %5769 = vmatpush1.msra.mxu0 %v4822
    %5770 = vmatprep.subr.mxu0 %v4827
    %5771 = vmatpush1.msra.mxu0 %v4826
    %5772 = vmatprep.subr.mxu0 %v4831
    %5773 = vmatpush1.msra.mxu0 %v4830
    %5774 = vmatprep.subr.mxu0 %v4835
    %5775 = vmatpush1.msra.mxu0 %v4834
    %5776 = vmatprep.subr.mxu0 %v4839
    %5777 = vmatpush1.msra.mxu0 %v4838
    %5778 = vmatprep.subr.mxu0 %v4843
    %5779 = vmatpush1.msra.mxu0 %v4842
    %5780 = vmatprep.subr.mxu0 %v4847
    %5781 = vmatpush1.msra.mxu0 %v4846
    %5782 = vmatprep.subr.mxu0 %v4851
    %5783 = vmatpush1.msra.mxu0 %v4850
    %5784 = vmatprep.subr.mxu0 %v4855
    %5785 = vmatpush1.msra.mxu0 %v4854
    %5786 = vmatprep.subr.mxu0 %v4859
    %5787 = vmatpush1.msra.mxu0 %v4858
    %5788 = vmatprep.subr.mxu0 %v4863
    %5789 = vmatpush1.msra.mxu0 %v4862
    %5790 = vmatprep.subr.mxu0 %v4867
    %5791 = vmatpush1.msra.mxu0 %v4866
    %5792 = vmatprep.subr.mxu0 %v4871
    %5793 = vmatpush1.msra.mxu0 %v4870
    %5794 = vmatprep.subr.mxu0 %v4875
    %5795 = vmatpush1.msra.mxu0 %v4874
    %5796 = vmatprep.subr.mxu0 %v4879
    %5797 = vmatpush1.msra.mxu0 %v4878
    %5798 = vmatprep.subr.mxu0 0.0
    %5799 = vmatpush1.msra.mxu0 0.0
    %5800 = vmatprep.subr.mxu0 0.0
    %5801 = vmatpush1.msra.mxu0 0.0
    %5802 = vmatprep.subr.mxu0 0.0
    %5803 = vmatpush1.msra.mxu0 0.0
    %5804 = vmatprep.subr.mxu0 0.0
    %5805 = vmatpush1.msra.mxu0 0.0
    %5806 = vmatprep.subr.mxu0 0.0
    %5807 = vmatpush1.msra.mxu0 0.0
    %5808 = vmatprep.subr.mxu0 0.0
    %5809 = vmatpush1.msra.mxu0 0.0
    %5810 = vmatprep.subr.mxu0 0.0
    %5811 = vmatpush1.msra.mxu0 0.0
    %5812 = vmatprep.subr.mxu0 0.0
    %5813 = vmatpush1.msra.mxu0 0.0
    %5814 = vmatprep.subr.mxu0 0.0
    %5815 = vmatpush1.msra.mxu0 0.0
    %5816 = vmatprep.subr.mxu0 0.0
    %5817 = vmatpush1.msra.mxu0 0.0
    %5818 = vmatprep.subr.mxu0 0.0
    %5819 = vmatpush1.msra.mxu0 0.0
    %5820 = vmatprep.subr.mxu0 0.0
    %5821 = vmatpush1.msra.mxu0 0.0
    %5822 = vmatprep.subr.mxu0 0.0
    %5823 = vmatpush1.msra.mxu0 0.0
    %5824 = vmatprep.subr.mxu0 0.0
    %5825 = vmatpush1.msra.mxu0 0.0
    %5826 = vmatprep.subr.mxu0 0.0
    %5827 = vmatpush1.msra.mxu0 0.0
    %5828 = vmatprep.subr.mxu0 0.0
    %5829 = vmatpush1.msra.mxu0 0.0
    %5830 = vmatprep.mubr.f32.mxu0 0.0
    %5831 = vmatmul.mubr.f32.gmra.mrb[0].mxu0 %v5584
    %v5832 = vpop.f32.mrb[0].mxu0
    %v5833 = vadd.f32 0.0, %v5832
    %v5834 = vpop.f32.mrb[0].mxu0
    %v5835 = vadd.f32 0.0, %v5834
    %5836 = vdwg.mxu0
    %5837 = vmatprep.subr.mxu0 %v4821
    %5838 = vmatpush1.msra.mxu0 %v4820
    %5839 = vmatprep.subr.mxu0 %v4825
    %5840 = vmatpush1.msra.mxu0 %v4824
    %5841 = vmatprep.subr.mxu0 %v4829
    %5842 = vmatpush1.msra.mxu0 %v4828
    %5843 = vmatprep.subr.mxu0 %v4833
    %5844 = vmatpush1.msra.mxu0 %v4832
    %5845 = vmatprep.subr.mxu0 %v4837
    %5846 = vmatpush1.msra.mxu0 %v4836
    %5847 = vmatprep.subr.mxu0 %v4841
    %5848 = vmatpush1.msra.mxu0 %v4840
    %5849 = vmatprep.subr.mxu0 %v4845
    %5850 = vmatpush1.msra.mxu0 %v4844
    %5851 = vmatprep.subr.mxu0 %v4849
    %5852 = vmatpush1.msra.mxu0 %v4848
    %5853 = vmatprep.subr.mxu0 %v4853
    %5854 = vmatpush1.msra.mxu0 %v4852
    %5855 = vmatprep.subr.mxu0 %v4857
    %5856 = vmatpush1.msra.mxu0 %v4856
    %5857 = vmatprep.subr.mxu0 %v4861
    %5858 = vmatpush1.msra.mxu0 %v4860
    %5859 = vmatprep.subr.mxu0 %v4865
    %5860 = vmatpush1.msra.mxu0 %v4864
    %5861 = vmatprep.subr.mxu0 %v4869
    %5862 = vmatpush1.msra.mxu0 %v4868
    %5863 = vmatprep.subr.mxu0 %v4873
    %5864 = vmatpush1.msra.mxu0 %v4872
    %5865 = vmatprep.subr.mxu0 %v4877
    %5866 = vmatpush1.msra.mxu0 %v4876
    %5867 = vmatprep.subr.mxu0 %v4881
    %5868 = vmatpush1.msra.mxu0 %v4880
    %5869 = vmatprep.subr.mxu0 0.0
    %5870 = vmatpush1.msra.mxu0 0.0
    %5871 = vmatprep.subr.mxu0 0.0
    %5872 = vmatpush1.msra.mxu0 0.0
    %5873 = vmatprep.subr.mxu0 0.0
    %5874 = vmatpush1.msra.mxu0 0.0
    %5875 = vmatprep.subr.mxu0 0.0
    %5876 = vmatpush1.msra.mxu0 0.0
    %5877 = vmatprep.subr.mxu0 0.0
    %5878 = vmatpush1.msra.mxu0 0.0
    %5879 = vmatprep.subr.mxu0 0.0
    %5880 = vmatpush1.msra.mxu0 0.0
    %5881 = vmatprep.subr.mxu0 0.0
    %5882 = vmatpush1.msra.mxu0 0.0
    %5883 = vmatprep.subr.mxu0 0.0
    %5884 = vmatpush1.msra.mxu0 0.0
    %5885 = vmatprep.subr.mxu0 0.0
    %5886 = vmatpush1.msra.mxu0 0.0
    %5887 = vmatprep.subr.mxu0 0.0
    %5888 = vmatpush1.msra.mxu0 0.0
    %5889 = vmatprep.subr.mxu0 0.0
    %5890 = vmatpush1.msra.mxu0 0.0
    %5891 = vmatprep.subr.mxu0 0.0
    %5892 = vmatpush1.msra.mxu0 0.0
    %5893 = vmatprep.subr.mxu0 0.0
    %5894 = vmatpush1.msra.mxu0 0.0
    %5895 = vmatprep.subr.mxu0 0.0
    %5896 = vmatpush1.msra.mxu0 0.0
    %5897 = vmatprep.subr.mxu0 0.0
    %5898 = vmatpush1.msra.mxu0 0.0
    %5899 = vmatprep.subr.mxu0 0.0
    %5900 = vmatpush1.msra.mxu0 0.0
    %5901 = vmatprep.mubr.f32.mxu0 0.0
    %5902 = vmatmul.mubr.f32.gmra.mrb[0].mxu0 %v5584
    %v5903 = vpop.f32.mrb[0].mxu0
    %v5904 = vadd.f32 0.0, %v5903
    %v5905 = vpop.f32.mrb[0].mxu0
    %v5906 = vadd.f32 0.0, %v5905
    %5907 = vdwg.mxu0
    %v5908 = vadd.f32 %v5762, %v5833
    %v5909 = vadd.f32 %v5763, %v5835
    %v5910 = vadd.f32 %v5764, %v5904
    %v5911 = vadd.f32 %v5765, %v5906
    %v5912 = vxor.u32 %v5908, 2147483648
    %v5913 = vmul.f32 %v5912, 1.442695
    %v5914 = vpow.pop %v5913
    %v5915 = vadd.f32 %v5914, 1.0
    %v5916 = vrcp.pop %v5915
    %v5917 = vmul.f32 1.0, %v5916
    %v5918 = vxor.u32 %v5909, 2147483648
    %v5919 = vmul.f32 %v5918, 1.442695
    %v5920 = vpow.pop %v5919
    %v5921 = vadd.f32 %v5920, 1.0
    %v5922 = vrcp.pop %v5921
    %v5923 = vmul.f32 1.0, %v5922
    %v5924 = vtanh.pop %v5910
    %v5925 = vxor.u32 %v5911, 2147483648
    %v5926 = vmul.f32 %v5925, 1.442695
    %v5927 = vpow.pop %v5926
    %v5928 = vadd.f32 %v5927, 1.0
    %v5929 = vrcp.pop %v5928
    %v5930 = vmul.f32 1.0, %v5929
    %v5931 = vmul.f32 %v5923, %v5585
    %v5932 = vmul.f32 %v5917, %v5924
    %v5933 = vadd.f32 %v5931, %v5932
    %v5934 = vtanh.pop %v5933
    %v5935 = vmul.f32 %v5930, %v5934
    %v5936 = vsel %vm2124, %v5935, %v5584
    %v5937 = vsel %vm2124, %v5933, %v5585
    %v5938 = vld [vmem:[%s2131] sm:$0xff]
    %v5939 = vld [vmem:[%s2131 + $0x8] sm:$0xff]
    %v5940 = vld [vmem:[%s2131 + $0x10] sm:$0xff]
    %v5941 = vld [vmem:[%s2131 + $0x18] sm:$0xff]
    %5942 = vmatprep.subr.mxu0 %v4755
    %5943 = vmatpush1.msra.mxu0 %v4754
    %5944 = vmatprep.subr.mxu0 %v4759
    %5945 = vmatpush1.msra.mxu0 %v4758
    %5946 = vmatprep.subr.mxu0 %v4763
    %5947 = vmatpush1.msra.mxu0 %v4762
    %5948 = vmatprep.subr.mxu0 %v4767
    %5949 = vmatpush1.msra.mxu0 %v4766
    %5950 = vmatprep.subr.mxu0 %v4771
    %5951 = vmatpush1.msra.mxu0 %v4770
    %5952 = vmatprep.subr.mxu0 %v4775
    %5953 = vmatpush1.msra.mxu0 %v4774
    %5954 = vmatprep.subr.mxu0 %v4779
    %5955 = vmatpush1.msra.mxu0 %v4778
    %5956 = vmatprep.subr.mxu0 %v4783
    %5957 = vmatpush1.msra.mxu0 %v4782
    %5958 = vmatprep.subr.mxu0 %v4787
    %5959 = vmatpush1.msra.mxu0 %v4786
    %5960 = vmatprep.subr.mxu0 %v4791
    %5961 = vmatpush1.msra.mxu0 %v4790
    %5962 = vmatprep.subr.mxu0 %v4795
    %5963 = vmatpush1.msra.mxu0 %v4794
    %5964 = vmatprep.subr.mxu0 %v4799
    %5965 = vmatpush1.msra.mxu0 %v4798
    %5966 = vmatprep.subr.mxu0 %v4803
    %5967 = vmatpush1.msra.mxu0 %v4802
    %5968 = vmatprep.subr.mxu0 %v4807
    %5969 = vmatpush1.msra.mxu0 %v4806
    %5970 = vmatprep.subr.mxu0 %v4811
    %5971 = vmatpush1.msra.mxu0 %v4810
    %5972 = vmatprep.subr.mxu0 %v4815
    %5973 = vmatpush1.msra.mxu0 %v4814
    %5974 = vmatprep.subr.mxu0 0.0
    %5975 = vmatpush1.msra.mxu0 0.0
    %5976 = vmatprep.subr.mxu0 0.0
    %5977 = vmatpush1.msra.mxu0 0.0
    %5978 = vmatprep.subr.mxu0 0.0
    %5979 = vmatpush1.msra.mxu0 0.0
    %5980 = vmatprep.subr.mxu0 0.0
    %5981 = vmatpush1.msra.mxu0 0.0
    %5982 = vmatprep.subr.mxu0 0.0
    %5983 = vmatpush1.msra.mxu0 0.0
    %5984 = vmatprep.subr.mxu0 0.0
    %5985 = vmatpush1.msra.mxu0 0.0
    %5986 = vmatprep.subr.mxu0 0.0
    %5987 = vmatpush1.msra.mxu0 0.0
    %5988 = vmatprep.subr.mxu0 0.0
    %5989 = vmatpush1.msra.mxu0 0.0
    %5990 = vmatprep.subr.mxu0 0.0
    %5991 = vmatpush1.msra.mxu0 0.0
    %5992 = vmatprep.subr.mxu0 0.0
    %5993 = vmatpush1.msra.mxu0 0.0
    %5994 = vmatprep.subr.mxu0 0.0
    %5995 = vmatpush1.msra.mxu0 0.0
    %5996 = vmatprep.subr.mxu0 0.0
    %5997 = vmatpush1.msra.mxu0 0.0
    %5998 = vmatprep.subr.mxu0 0.0
    %5999 = vmatpush1.msra.mxu0 0.0
    %6000 = vmatprep.subr.mxu0 0.0
    %6001 = vmatpush1.msra.mxu0 0.0
    %6002 = vmatprep.subr.mxu0 0.0
    %6003 = vmatpush1.msra.mxu0 0.0
    %6004 = vmatprep.subr.mxu0 0.0
    %6005 = vmatpush1.msra.mxu0 0.0
    %6006 = vmatprep.mubr.f32.mxu0 0.0
    %6007 = vmatmul.mubr.f32.gmra.mrb[0].mxu0 %v5760
    %v6008 = vpop.f32.mrb[0].mxu0
    %v6009 = vadd.f32 0.0, %v6008
    %v6010 = vpop.f32.mrb[0].mxu0
    %v6011 = vadd.f32 0.0, %v6010
    %6012 = vdwg.mxu0
    %6013 = vmatprep.subr.mxu0 %v4757
    %6014 = vmatpush1.msra.mxu0 %v4756
    %6015 = vmatprep.subr.mxu0 %v4761
    %6016 = vmatpush1.msra.mxu0 %v4760
    %6017 = vmatprep.subr.mxu0 %v4765
    %6018 = vmatpush1.msra.mxu0 %v4764
    %6019 = vmatprep.subr.mxu0 %v4769
    %6020 = vmatpush1.msra.mxu0 %v4768
    %6021 = vmatprep.subr.mxu0 %v4773
    %6022 = vmatpush1.msra.mxu0 %v4772
    %6023 = vmatprep.subr.mxu0 %v4777
    %6024 = vmatpush1.msra.mxu0 %v4776
    %6025 = vmatprep.subr.mxu0 %v4781
    %6026 = vmatpush1.msra.mxu0 %v4780
    %6027 = vmatprep.subr.mxu0 %v4785
    %6028 = vmatpush1.msra.mxu0 %v4784
    %6029 = vmatprep.subr.mxu0 %v4789
    %6030 = vmatpush1.msra.mxu0 %v4788
    %6031 = vmatprep.subr.mxu0 %v4793
    %6032 = vmatpush1.msra.mxu0 %v4792
    %6033 = vmatprep.subr.mxu0 %v4797
    %6034 = vmatpush1.msra.mxu0 %v4796
    %6035 = vmatprep.subr.mxu0 %v4801
    %6036 = vmatpush1.msra.mxu0 %v4800
    %6037 = vmatprep.subr.mxu0 %v4805
    %6038 = vmatpush1.msra.mxu0 %v4804
    %6039 = vmatprep.subr.mxu0 %v4809
    %6040 = vmatpush1.msra.mxu0 %v4808
    %6041 = vmatprep.subr.mxu0 %v4813
    %6042 = vmatpush1.msra.mxu0 %v4812
    %6043 = vmatprep.subr.mxu0 %v4817
    %6044 = vmatpush1.msra.mxu0 %v4816
    %6045 = vmatprep.subr.mxu0 0.0
    %6046 = vmatpush1.msra.mxu0 0.0
    %6047 = vmatprep.subr.mxu0 0.0
    %6048 = vmatpush1.msra.mxu0 0.0
    %6049 = vmatprep.subr.mxu0 0.0
    %6050 = vmatpush1.msra.mxu0 0.0
    %6051 = vmatprep.subr.mxu0 0.0
    %6052 = vmatpush1.msra.mxu0 0.0
    %6053 = vmatprep.subr.mxu0 0.0
    %6054 = vmatpush1.msra.mxu0 0.0
    %6055 = vmatprep.subr.mxu0 0.0
    %6056 = vmatpush1.msra.mxu0 0.0
    %6057 = vmatprep.subr.mxu0 0.0
    %6058 = vmatpush1.msra.mxu0 0.0
    %6059 = vmatprep.subr.mxu0 0.0
    %6060 = vmatpush1.msra.mxu0 0.0
    %6061 = vmatprep.subr.mxu0 0.0
    %6062 = vmatpush1.msra.mxu0 0.0
    %6063 = vmatprep.subr.mxu0 0.0
    %6064 = vmatpush1.msra.mxu0 0.0
    %6065 = vmatprep.subr.mxu0 0.0
    %6066 = vmatpush1.msra.mxu0 0.0
    %6067 = vmatprep.subr.mxu0 0.0
    %6068 = vmatpush1.msra.mxu0 0.0
    %6069 = vmatprep.subr.mxu0 0.0
    %6070 = vmatpush1.msra.mxu0 0.0
    %6071 = vmatprep.subr.mxu0 0.0
    %6072 = vmatpush1.msra.mxu0 0.0
    %6073 = vmatprep.subr.mxu0 0.0
    %6074 = vmatpush1.msra.mxu0 0.0
    %6075 = vmatprep.subr.mxu0 0.0
    %6076 = vmatpush1.msra.mxu0 0.0
    %6077 = vmatprep.mubr.f32.mxu0 0.0
    %6078 = vmatmul.mubr.f32.gmra.mrb[0].mxu0 %v5760
    %v6079 = vpop.f32.mrb[0].mxu0
    %v6080 = vadd.f32 0.0, %v6079
    %v6081 = vpop.f32.mrb[0].mxu0
    %v6082 = vadd.f32 0.0, %v6081
    %6083 = vdwg.mxu0
    %v6084 = vadd.f32 %v5938, %v6009
    %v6085 = vadd.f32 %v5939, %v6011
    %v6086 = vadd.f32 %v5940, %v6080
    %v6087 = vadd.f32 %v5941, %v6082
    %v6088 = vxor.u32 %v6084, 2147483648
    %v6089 = vmul.f32 %v6088, 1.442695
    %v6090 = vpow.pop %v6089
    %v6091 = vadd.f32 %v6090, 1.0
    %v6092 = vrcp.pop %v6091
    %v6093 = vmul.f32 1.0, %v6092
    %v6094 = vxor.u32 %v6085, 2147483648
    %v6095 = vmul.f32 %v6094, 1.442695
    %v6096 = vpow.pop %v6095
    %v6097 = vadd.f32 %v6096, 1.0
    %v6098 = vrcp.pop %v6097
    %v6099 = vmul.f32 1.0, %v6098
    %v6100 = vtanh.pop %v6086
    %v6101 = vxor.u32 %v6087, 2147483648
    %v6102 = vmul.f32 %v6101, 1.442695
    %v6103 = vpow.pop %v6102
    %v6104 = vadd.f32 %v6103, 1.0
    %v6105 = vrcp.pop %v6104
    %v6106 = vmul.f32 1.0, %v6105
    %v6107 = vmul.f32 %v6099, %v5761
    %v6108 = vmul.f32 %v6093, %v6100
    %v6109 = vadd.f32 %v6107, %v6108
    %v6110 = vtanh.pop %v6109
    %v6111 = vmul.f32 %v6106, %v6110
    %v6112 = vsel %vm2311, %v6111, %v5760
    %v6113 = vsel %vm2311, %v6109, %v5761
    %v6114 = vld [vmem:[%s2314] sm:$0xff]
    %v6115 = vld [vmem:[%s2314 + $0x8] sm:$0xff]
    %v6116 = vld [vmem:[%s2314 + $0x10] sm:$0xff]
    %v6117 = vld [vmem:[%s2314 + $0x18] sm:$0xff]
    %6118 = vmatprep.subr.mxu0 %v4819
    %6119 = vmatpush1.msra.mxu0 %v4818
    %6120 = vmatprep.subr.mxu0 %v4823
    %6121 = vmatpush1.msra.mxu0 %v4822
    %6122 = vmatprep.subr.mxu0 %v4827
    %6123 = vmatpush1.msra.mxu0 %v4826
    %6124 = vmatprep.subr.mxu0 %v4831
    %6125 = vmatpush1.msra.mxu0 %v4830
    %6126 = vmatprep.subr.mxu0 %v4835
    %6127 = vmatpush1.msra.mxu0 %v4834
    %6128 = vmatprep.subr.mxu0 %v4839
    %6129 = vmatpush1.msra.mxu0 %v4838
    %6130 = vmatprep.subr.mxu0 %v4843
    %6131 = vmatpush1.msra.mxu0 %v4842
    %6132 = vmatprep.subr.mxu0 %v4847
    %6133 = vmatpush1.msra.mxu0 %v4846
    %6134 = vmatprep.subr.mxu0 %v4851
    %6135 = vmatpush1.msra.mxu0 %v4850
    %6136 = vmatprep.subr.mxu0 %v4855
    %6137 = vmatpush1.msra.mxu0 %v4854
    %6138 = vmatprep.subr.mxu0 %v4859
    %6139 = vmatpush1.msra.mxu0 %v4858
    %6140 = vmatprep.subr.mxu0 %v4863
    %6141 = vmatpush1.msra.mxu0 %v4862
    %6142 = vmatprep.subr.mxu0 %v4867
    %6143 = vmatpush1.msra.mxu0 %v4866
    %6144 = vmatprep.subr.mxu0 %v4871
    %6145 = vmatpush1.msra.mxu0 %v4870
    %6146 = vmatprep.subr.mxu0 %v4875
    %6147 = vmatpush1.msra.mxu0 %v4874
    %6148 = vmatprep.subr.mxu0 %v4879
    %6149 = vmatpush1.msra.mxu0 %v4878
    %6150 = vmatprep.subr.mxu0 0.0
    %6151 = vmatpush1.msra.mxu0 0.0
    %6152 = vmatprep.subr.mxu0 0.0
    %6153 = vmatpush1.msra.mxu0 0.0
    %6154 = vmatprep.subr.mxu0 0.0
    %6155 = vmatpush1.msra.mxu0 0.0
    %6156 = vmatprep.subr.mxu0 0.0
    %6157 = vmatpush1.msra.mxu0 0.0
    %6158 = vmatprep.subr.mxu0 0.0
    %6159 = vmatpush1.msra.mxu0 0.0
    %6160 = vmatprep.subr.mxu0 0.0
    %6161 = vmatpush1.msra.mxu0 0.0
    %6162 = vmatprep.subr.mxu0 0.0
    %6163 = vmatpush1.msra.mxu0 0.0
    %6164 = vmatprep.subr.mxu0 0.0
    %6165 = vmatpush1.msra.mxu0 0.0
    %6166 = vmatprep.subr.mxu0 0.0
    %6167 = vmatpush1.msra.mxu0 0.0
    %6168 = vmatprep.subr.mxu0 0.0
    %6169 = vmatpush1.msra.mxu0 0.0
    %6170 = vmatprep.subr.mxu0 0.0
    %6171 = vmatpush1.msra.mxu0 0.0
    %6172 = vmatprep.subr.mxu0 0.0
    %6173 = vmatpush1.msra.mxu0 0.0
    %6174 = vmatprep.subr.mxu0 0.0
    %6175 = vmatpush1.msra.mxu0 0.0
    %6176 = vmatprep.subr.mxu0 0.0
    %6177 = vmatpush1.msra.mxu0 0.0
    %6178 = vmatprep.subr.mxu0 0.0
    %6179 = vmatpush1.msra.mxu0 0.0
    %6180 = vmatprep.subr.mxu0 0.0
    %6181 = vmatpush1.msra.mxu0 0.0
    %6182 = vmatprep.mubr.f32.mxu0 0.0
    %6183 = vmatmul.mubr.f32.gmra.mrb[0].mxu0 %v5936
    %v6184 = vpop.f32.mrb[0].mxu0
    %v6185 = vadd.f32 0.0, %v6184
    %v6186 = vpop.f32.mrb[0].mxu0
    %v6187 = vadd.f32 0.0, %v6186
    %6188 = vdwg.mxu0
    %6189 = vmatprep.subr.mxu0 %v4821
    %6190 = vmatpush1.msra.mxu0 %v4820
    %6191 = vmatprep.subr.mxu0 %v4825
    %6192 = vmatpush1.msra.mxu0 %v4824
    %6193 = vmatprep.subr.mxu0 %v4829
    %6194 = vmatpush1.msra.mxu0 %v4828
    %6195 = vmatprep.subr.mxu0 %v4833
    %6196 = vmatpush1.msra.mxu0 %v4832
    %6197 = vmatprep.subr.mxu0 %v4837
    %6198 = vmatpush1.msra.mxu0 %v4836
    %6199 = vmatprep.subr.mxu0 %v4841
    %6200 = vmatpush1.msra.mxu0 %v4840
    %6201 = vmatprep.subr.mxu0 %v4845
    %6202 = vmatpush1.msra.mxu0 %v4844
    %6203 = vmatprep.subr.mxu0 %v4849
    %6204 = vmatpush1.msra.mxu0 %v4848
    %6205 = vmatprep.subr.mxu0 %v4853
    %6206 = vmatpush1.msra.mxu0 %v4852
    %6207 = vmatprep.subr.mxu0 %v4857
    %6208 = vmatpush1.msra.mxu0 %v4856
    %6209 = vmatprep.subr.mxu0 %v4861
    %6210 = vmatpush1.msra.mxu0 %v4860
    %6211 = vmatprep.subr.mxu0 %v4865
    %6212 = vmatpush1.msra.mxu0 %v4864
    %6213 = vmatprep.subr.mxu0 %v4869
    %6214 = vmatpush1.msra.mxu0 %v4868
    %6215 = vmatprep.subr.mxu0 %v4873
    %6216 = vmatpush1.msra.mxu0 %v4872
    %6217 = vmatprep.subr.mxu0 %v4877
    %6218 = vmatpush1.msra.mxu0 %v4876
    %6219 = vmatprep.subr.mxu0 %v4881
    %6220 = vmatpush1.msra.mxu0 %v4880
    %6221 = vmatprep.subr.mxu0 0.0
    %6222 = vmatpush1.msra.mxu0 0.0
    %6223 = vmatprep.subr.mxu0 0.0
    %6224 = vmatpush1.msra.mxu0 0.0
    %6225 = vmatprep.subr.mxu0 0.0
    %6226 = vmatpush1.msra.mxu0 0.0
    %6227 = vmatprep.subr.mxu0 0.0
    %6228 = vmatpush1.msra.mxu0 0.0
    %6229 = vmatprep.subr.mxu0 0.0
    %6230 = vmatpush1.msra.mxu0 0.0
    %6231 = vmatprep.subr.mxu0 0.0
    %6232 = vmatpush1.msra.mxu0 0.0
    %6233 = vmatprep.subr.mxu0 0.0
    %6234 = vmatpush1.msra.mxu0 0.0
    %6235 = vmatprep.subr.mxu0 0.0
    %6236 = vmatpush1.msra.mxu0 0.0
    %6237 = vmatprep.subr.mxu0 0.0
    %6238 = vmatpush1.msra.mxu0 0.0
    %6239 = vmatprep.subr.mxu0 0.0
    %6240 = vmatpush1.msra.mxu0 0.0
    %6241 = vmatprep.subr.mxu0 0.0
    %6242 = vmatpush1.msra.mxu0 0.0
    %6243 = vmatprep.subr.mxu0 0.0
    %6244 = vmatpush1.msra.mxu0 0.0
    %6245 = vmatprep.subr.mxu0 0.0
    %6246 = vmatpush1.msra.mxu0 0.0
    %6247 = vmatprep.subr.mxu0 0.0
    %6248 = vmatpush1.msra.mxu0 0.0
    %6249 = vmatprep.subr.mxu0 0.0
    %6250 = vmatpush1.msra.mxu0 0.0
    %6251 = vmatprep.subr.mxu0 0.0
    %6252 = vmatpush1.msra.mxu0 0.0
    %6253 = vmatprep.mubr.f32.mxu0 0.0
    %6254 = vmatmul.mubr.f32.gmra.mrb[0].mxu0 %v5936
    %v6255 = vpop.f32.mrb[0].mxu0
    %v6256 = vadd.f32 0.0, %v6255
    %v6257 = vpop.f32.mrb[0].mxu0
    %v6258 = vadd.f32 0.0, %v6257
    %6259 = vdwg.mxu0
    %v6260 = vadd.f32 %v6114, %v6185
    %v6261 = vadd.f32 %v6115, %v6187
    %v6262 = vadd.f32 %v6116, %v6256
    %v6263 = vadd.f32 %v6117, %v6258
    %v6264 = vxor.u32 %v6260, 2147483648
    %v6265 = vmul.f32 %v6264, 1.442695
    %v6266 = vpow.pop %v6265
    %v6267 = vadd.f32 %v6266, 1.0
    %v6268 = vrcp.pop %v6267
    %v6269 = vmul.f32 1.0, %v6268
    %v6270 = vxor.u32 %v6261, 2147483648
    %v6271 = vmul.f32 %v6270, 1.442695
    %v6272 = vpow.pop %v6271
    %v6273 = vadd.f32 %v6272, 1.0
    %v6274 = vrcp.pop %v6273
    %v6275 = vmul.f32 1.0, %v6274
    %v6276 = vtanh.pop %v6262
    %v6277 = vxor.u32 %v6263, 2147483648
    %v6278 = vmul.f32 %v6277, 1.442695
    %v6279 = vpow.pop %v6278
    %v6280 = vadd.f32 %v6279, 1.0
    %v6281 = vrcp.pop %v6280
    %v6282 = vmul.f32 1.0, %v6281
    %v6283 = vmul.f32 %v6275, %v5937
    %v6284 = vmul.f32 %v6269, %v6276
    %v6285 = vadd.f32 %v6283, %v6284
    %v6286 = vtanh.pop %v6285
    %v6287 = vmul.f32 %v6282, %v6286
    %v6288 = vsel %vm2494, %v6287, %v5936
    %v6289 = vsel %vm2494, %v6285, %v5937
    %v6290 = vld [vmem:[%s2501] sm:$0xff]
    %v6291 = vld [vmem:[%s2501 + $0x8] sm:$0xff]
    %v6292 = vld [vmem:[%s2501 + $0x10] sm:$0xff]
    %v6293 = vld [vmem:[%s2501 + $0x18] sm:$0xff]
    %6294 = vmatprep.subr.mxu0 %v4755
    %6295 = vmatpush1.msra.mxu0 %v4754
    %6296 = vmatprep.subr.mxu0 %v4759
    %6297 = vmatpush1.msra.mxu0 %v4758
    %6298 = vmatprep.subr.mxu0 %v4763
    %6299 = vmatpush1.msra.mxu0 %v4762
    %6300 = vmatprep.subr.mxu0 %v4767
    %6301 = vmatpush1.msra.mxu0 %v4766
    %6302 = vmatprep.subr.mxu0 %v4771
    %6303 = vmatpush1.msra.mxu0 %v4770
    %6304 = vmatprep.subr.mxu0 %v4775
    %6305 = vmatpush1.msra.mxu0 %v4774
    %6306 = vmatprep.subr.mxu0 %v4779
    %6307 = vmatpush1.msra.mxu0 %v4778
    %6308 = vmatprep.subr.mxu0 %v4783
    %6309 = vmatpush1.msra.mxu0 %v4782
    %6310 = vmatprep.subr.mxu0 %v4787
    %6311 = vmatpush1.msra.mxu0 %v4786
    %6312 = vmatprep.subr.mxu0 %v4791
    %6313 = vmatpush1.msra.mxu0 %v4790
    %6314 = vmatprep.subr.mxu0 %v4795
    %6315 = vmatpush1.msra.mxu0 %v4794
    %6316 = vmatprep.subr.mxu0 %v4799
    %6317 = vmatpush1.msra.mxu0 %v4798
    %6318 = vmatprep.subr.mxu0 %v4803
    %6319 = vmatpush1.msra.mxu0 %v4802
    %6320 = vmatprep.subr.mxu0 %v4807
    %6321 = vmatpush1.msra.mxu0 %v4806
    %6322 = vmatprep.subr.mxu0 %v4811
    %6323 = vmatpush1.msra.mxu0 %v4810
    %6324 = vmatprep.subr.mxu0 %v4815
    %6325 = vmatpush1.msra.mxu0 %v4814
    %6326 = vmatprep.subr.mxu0 0.0
    %6327 = vmatpush1.msra.mxu0 0.0
    %6328 = vmatprep.subr.mxu0 0.0
    %6329 = vmatpush1.msra.mxu0 0.0
    %6330 = vmatprep.subr.mxu0 0.0
    %6331 = vmatpush1.msra.mxu0 0.0
    %6332 = vmatprep.subr.mxu0 0.0
    %6333 = vmatpush1.msra.mxu0 0.0
    %6334 = vmatprep.subr.mxu0 0.0
    %6335 = vmatpush1.msra.mxu0 0.0
    %6336 = vmatprep.subr.mxu0 0.0
    %6337 = vmatpush1.msra.mxu0 0.0
    %6338 = vmatprep.subr.mxu0 0.0
    %6339 = vmatpush1.msra.mxu0 0.0
    %6340 = vmatprep.subr.mxu0 0.0
    %6341 = vmatpush1.msra.mxu0 0.0
    %6342 = vmatprep.subr.mxu0 0.0
    %6343 = vmatpush1.msra.mxu0 0.0
    %6344 = vmatprep.subr.mxu0 0.0
    %6345 = vmatpush1.msra.mxu0 0.0
    %6346 = vmatprep.subr.mxu0 0.0
    %6347 = vmatpush1.msra.mxu0 0.0
    %6348 = vmatprep.subr.mxu0 0.0
    %6349 = vmatpush1.msra.mxu0 0.0
    %6350 = vmatprep.subr.mxu0 0.0
    %6351 = vmatpush1.msra.mxu0 0.0
    %6352 = vmatprep.subr.mxu0 0.0
    %6353 = vmatpush1.msra.mxu0 0.0
    %6354 = vmatprep.subr.mxu0 0.0
    %6355 = vmatpush1.msra.mxu0 0.0
    %6356 = vmatprep.subr.mxu0 0.0
    %6357 = vmatpush1.msra.mxu0 0.0
    %6358 = vmatprep.mubr.f32.mxu0 0.0
    %6359 = vmatmul.mubr.f32.gmra.mrb[0].mxu0 %v6112
    %v6360 = vpop.f32.mrb[0].mxu0
    %v6361 = vadd.f32 0.0, %v6360
    %v6362 = vpop.f32.mrb[0].mxu0
    %v6363 = vadd.f32 0.0, %v6362
    %6364 = vdwg.mxu0
    %6365 = vmatprep.subr.mxu0 %v4757
    %6366 = vmatpush1.msra.mxu0 %v4756
    %6367 = vmatprep.subr.mxu0 %v4761
    %6368 = vmatpush1.msra.mxu0 %v4760
    %6369 = vmatprep.subr.mxu0 %v4765
    %6370 = vmatpush1.msra.mxu0 %v4764
    %6371 = vmatprep.subr.mxu0 %v4769
    %6372 = vmatpush1.msra.mxu0 %v4768
    %6373 = vmatprep.subr.mxu0 %v4773
    %6374 = vmatpush1.msra.mxu0 %v4772
    %6375 = vmatprep.subr.mxu0 %v4777
    %6376 = vmatpush1.msra.mxu0 %v4776
    %6377 = vmatprep.subr.mxu0 %v4781
    %6378 = vmatpush1.msra.mxu0 %v4780
    %6379 = vmatprep.subr.mxu0 %v4785
    %6380 = vmatpush1.msra.mxu0 %v4784
    %6381 = vmatprep.subr.mxu0 %v4789
    %6382 = vmatpush1.msra.mxu0 %v4788
    %6383 = vmatprep.subr.mxu0 %v4793
    %6384 = vmatpush1.msra.mxu0 %v4792
    %6385 = vmatprep.subr.mxu0 %v4797
    %6386 = vmatpush1.msra.mxu0 %v4796
    %6387 = vmatprep.subr.mxu0 %v4801
    %6388 = vmatpush1.msra.mxu0 %v4800
    %6389 = vmatprep.subr.mxu0 %v4805
    %6390 = vmatpush1.msra.mxu0 %v4804
    %6391 = vmatprep.subr.mxu0 %v4809
    %6392 = vmatpush1.msra.mxu0 %v4808
    %6393 = vmatprep.subr.mxu0 %v4813
    %6394 = vmatpush1.msra.mxu0 %v4812
    %6395 = vmatprep.subr.mxu0 %v4817
    %6396 = vmatpush1.msra.mxu0 %v4816
    %6397 = vmatprep.subr.mxu0 0.0
    %6398 = vmatpush1.msra.mxu0 0.0
    %6399 = vmatprep.subr.mxu0 0.0
    %6400 = vmatpush1.msra.mxu0 0.0
    %6401 = vmatprep.subr.mxu0 0.0
    %6402 = vmatpush1.msra.mxu0 0.0
    %6403 = vmatprep.subr.mxu0 0.0
    %6404 = vmatpush1.msra.mxu0 0.0
    %6405 = vmatprep.subr.mxu0 0.0
    %6406 = vmatpush1.msra.mxu0 0.0
    %6407 = vmatprep.subr.mxu0 0.0
    %6408 = vmatpush1.msra.mxu0 0.0
    %6409 = vmatprep.subr.mxu0 0.0
    %6410 = vmatpush1.msra.mxu0 0.0
    %6411 = vmatprep.subr.mxu0 0.0
    %6412 = vmatpush1.msra.mxu0 0.0
    %6413 = vmatprep.subr.mxu0 0.0
    %6414 = vmatpush1.msra.mxu0 0.0
    %6415 = vmatprep.subr.mxu0 0.0
    %6416 = vmatpush1.msra.mxu0 0.0
    %6417 = vmatprep.subr.mxu0 0.0
    %6418 = vmatpush1.msra.mxu0 0.0
    %6419 = vmatprep.subr.mxu0 0.0
    %6420 = vmatpush1.msra.mxu0 0.0
    %6421 = vmatprep.subr.mxu0 0.0
    %6422 = vmatpush1.msra.mxu0 0.0
    %6423 = vmatprep.subr.mxu0 0.0
    %6424 = vmatpush1.msra.mxu0 0.0
    %6425 = vmatprep.subr.mxu0 0.0
    %6426 = vmatpush1.msra.mxu0 0.0
    %6427 = vmatprep.subr.mxu0 0.0
    %6428 = vmatpush1.msra.mxu0 0.0
    %6429 = vmatprep.mubr.f32.mxu0 0.0
    %6430 = vmatmul.mubr.f32.gmra.mrb[0].mxu0 %v6112
    %v6431 = vpop.f32.mrb[0].mxu0
    %v6432 = vadd.f32 0.0, %v6431
    %v6433 = vpop.f32.mrb[0].mxu0
    %v6434 = vadd.f32 0.0, %v6433
    %6435 = vdwg.mxu0
    %v6436 = vadd.f32 %v6290, %v6361
    %v6437 = vadd.f32 %v6291, %v6363
    %v6438 = vadd.f32 %v6292, %v6432
    %v6439 = vadd.f32 %v6293, %v6434
    %v6440 = vxor.u32 %v6436, 2147483648
    %v6441 = vmul.f32 %v6440, 1.442695
    %v6442 = vpow.pop %v6441
    %v6443 = vadd.f32 %v6442, 1.0
    %v6444 = vrcp.pop %v6443
    %v6445 = vmul.f32 1.0, %v6444
    %v6446 = vxor.u32 %v6437, 2147483648
    %v6447 = vmul.f32 %v6446, 1.442695
    %v6448 = vpow.pop %v6447
    %v6449 = vadd.f32 %v6448, 1.0
    %v6450 = vrcp.pop %v6449
    %v6451 = vmul.f32 1.0, %v6450
    %v6452 = vtanh.pop %v6438
    %v6453 = vxor.u32 %v6439, 2147483648
    %v6454 = vmul.f32 %v6453, 1.442695
    %v6455 = vpow.pop %v6454
    %v6456 = vadd.f32 %v6455, 1.0
    %v6457 = vrcp.pop %v6456
    %v6458 = vmul.f32 1.0, %v6457
    %v6459 = vmul.f32 %v6451, %v6113
    %v6460 = vmul.f32 %v6445, %v6452
    %v6461 = vadd.f32 %v6459, %v6460
    %v6462 = vtanh.pop %v6461
    %v6463 = vmul.f32 %v6458, %v6462
    %v6464 = vsel %vm2494, %v6463, %v6112
    %v6465 = vsel %vm2494, %v6461, %v6113
    %v6466 = vld [vmem:[%s2678] sm:$0xff]
    %v6467 = vld [vmem:[%s2678 + $0x8] sm:$0xff]
    %v6468 = vld [vmem:[%s2678 + $0x10] sm:$0xff]
    %v6469 = vld [vmem:[%s2678 + $0x18] sm:$0xff]
    %6470 = vmatprep.subr.mxu0 %v4819
    %6471 = vmatpush1.msra.mxu0 %v4818
    %6472 = vmatprep.subr.mxu0 %v4823
    %6473 = vmatpush1.msra.mxu0 %v4822
    %6474 = vmatprep.subr.mxu0 %v4827
    %6475 = vmatpush1.msra.mxu0 %v4826
    %6476 = vmatprep.subr.mxu0 %v4831
    %6477 = vmatpush1.msra.mxu0 %v4830
    %6478 = vmatprep.subr.mxu0 %v4835
    %6479 = vmatpush1.msra.mxu0 %v4834
    %6480 = vmatprep.subr.mxu0 %v4839
    %6481 = vmatpush1.msra.mxu0 %v4838
    %6482 = vmatprep.subr.mxu0 %v4843
    %6483 = vmatpush1.msra.mxu0 %v4842
    %6484 = vmatprep.subr.mxu0 %v4847
    %6485 = vmatpush1.msra.mxu0 %v4846
    %6486 = vmatprep.subr.mxu0 %v4851
    %6487 = vmatpush1.msra.mxu0 %v4850
    %6488 = vmatprep.subr.mxu0 %v4855
    %6489 = vmatpush1.msra.mxu0 %v4854
    %6490 = vmatprep.subr.mxu0 %v4859
    %6491 = vmatpush1.msra.mxu0 %v4858
    %6492 = vmatprep.subr.mxu0 %v4863
    %6493 = vmatpush1.msra.mxu0 %v4862
    %6494 = vmatprep.subr.mxu0 %v4867
    %6495 = vmatpush1.msra.mxu0 %v4866
    %6496 = vmatprep.subr.mxu0 %v4871
    %6497 = vmatpush1.msra.mxu0 %v4870
    %6498 = vmatprep.subr.mxu0 %v4875
    %6499 = vmatpush1.msra.mxu0 %v4874
    %6500 = vmatprep.subr.mxu0 %v4879
    %6501 = vmatpush1.msra.mxu0 %v4878
    %6502 = vmatprep.subr.mxu0 0.0
    %6503 = vmatpush1.msra.mxu0 0.0
    %6504 = vmatprep.subr.mxu0 0.0
    %6505 = vmatpush1.msra.mxu0 0.0
    %6506 = vmatprep.subr.mxu0 0.0
    %6507 = vmatpush1.msra.mxu0 0.0
    %6508 = vmatprep.subr.mxu0 0.0
    %6509 = vmatpush1.msra.mxu0 0.0
    %6510 = vmatprep.subr.mxu0 0.0
    %6511 = vmatpush1.msra.mxu0 0.0
    %6512 = vmatprep.subr.mxu0 0.0
    %6513 = vmatpush1.msra.mxu0 0.0
    %6514 = vmatprep.subr.mxu0 0.0
    %6515 = vmatpush1.msra.mxu0 0.0
    %6516 = vmatprep.subr.mxu0 0.0
    %6517 = vmatpush1.msra.mxu0 0.0
    %6518 = vmatprep.subr.mxu0 0.0
    %6519 = vmatpush1.msra.mxu0 0.0
    %6520 = vmatprep.subr.mxu0 0.0
    %6521 = vmatpush1.msra.mxu0 0.0
    %6522 = vmatprep.subr.mxu0 0.0
    %6523 = vmatpush1.msra.mxu0 0.0
    %6524 = vmatprep.subr.mxu0 0.0
    %6525 = vmatpush1.msra.mxu0 0.0
    %6526 = vmatprep.subr.mxu0 0.0
    %6527 = vmatpush1.msra.mxu0 0.0
    %6528 = vmatprep.subr.mxu0 0.0
    %6529 = vmatpush1.msra.mxu0 0.0
    %6530 = vmatprep.subr.mxu0 0.0
    %6531 = vmatpush1.msra.mxu0 0.0
    %6532 = vmatprep.subr.mxu0 0.0
    %6533 = vmatpush1.msra.mxu0 0.0
    %6534 = vmatprep.mubr.f32.mxu0 0.0
    %6535 = vmatmul.mubr.f32.gmra.mrb[0].mxu0 %v6288
    %v6536 = vpop.f32.mrb[0].mxu0
    %v6537 = vadd.f32 0.0, %v6536
    %v6538 = vpop.f32.mrb[0].mxu0
    %v6539 = vadd.f32 0.0, %v6538
    %6540 = vdwg.mxu0
    %6541 = vmatprep.subr.mxu0 %v4821
    %6542 = vmatpush1.msra.mxu0 %v4820
    %6543 = vmatprep.subr.mxu0 %v4825
    %6544 = vmatpush1.msra.mxu0 %v4824
    %6545 = vmatprep.subr.mxu0 %v4829
    %6546 = vmatpush1.msra.mxu0 %v4828
    %6547 = vmatprep.subr.mxu0 %v4833
    %6548 = vmatpush1.msra.mxu0 %v4832
    %6549 = vmatprep.subr.mxu0 %v4837
    %6550 = vmatpush1.msra.mxu0 %v4836
    %6551 = vmatprep.subr.mxu0 %v4841
    %6552 = vmatpush1.msra.mxu0 %v4840
    %6553 = vmatprep.subr.mxu0 %v4845
    %6554 = vmatpush1.msra.mxu0 %v4844
    %6555 = vmatprep.subr.mxu0 %v4849
    %6556 = vmatpush1.msra.mxu0 %v4848
    %6557 = vmatprep.subr.mxu0 %v4853
    %6558 = vmatpush1.msra.mxu0 %v4852
    %6559 = vmatprep.subr.mxu0 %v4857
    %6560 = vmatpush1.msra.mxu0 %v4856
    %6561 = vmatprep.subr.mxu0 %v4861
    %6562 = vmatpush1.msra.mxu0 %v4860
    %6563 = vmatprep.subr.mxu0 %v4865
    %6564 = vmatpush1.msra.mxu0 %v4864
    %6565 = vmatprep.subr.mxu0 %v4869
    %6566 = vmatpush1.msra.mxu0 %v4868
    %6567 = vmatprep.subr.mxu0 %v4873
    %6568 = vmatpush1.msra.mxu0 %v4872
    %6569 = vmatprep.subr.mxu0 %v4877
    %6570 = vmatpush1.msra.mxu0 %v4876
    %6571 = vmatprep.subr.mxu0 %v4881
    %6572 = vmatpush1.msra.mxu0 %v4880
    %6573 = vmatprep.subr.mxu0 0.0
    %6574 = vmatpush1.msra.mxu0 0.0
    %6575 = vmatprep.subr.mxu0 0.0
    %6576 = vmatpush1.msra.mxu0 0.0
    %6577 = vmatprep.subr.mxu0 0.0
    %6578 = vmatpush1.msra.mxu0 0.0
    %6579 = vmatprep.subr.mxu0 0.0
    %6580 = vmatpush1.msra.mxu0 0.0
    %6581 = vmatprep.subr.mxu0 0.0
    %6582 = vmatpush1.msra.mxu0 0.0
    %6583 = vmatprep.subr.mxu0 0.0
    %6584 = vmatpush1.msra.mxu0 0.0
    %6585 = vmatprep.subr.mxu0 0.0
    %6586 = vmatpush1.msra.mxu0 0.0
    %6587 = vmatprep.subr.mxu0 0.0
    %6588 = vmatpush1.msra.mxu0 0.0
    %6589 = vmatprep.subr.mxu0 0.0
    %6590 = vmatpush1.msra.mxu0 0.0
    %6591 = vmatprep.subr.mxu0 0.0
    %6592 = vmatpush1.msra.mxu0 0.0
    %6593 = vmatprep.subr.mxu0 0.0
    %6594 = vmatpush1.msra.mxu0 0.0
    %6595 = vmatprep.subr.mxu0 0.0
    %6596 = vmatpush1.msra.mxu0 0.0
    %6597 = vmatprep.subr.mxu0 0.0
    %6598 = vmatpush1.msra.mxu0 0.0
    %6599 = vmatprep.subr.mxu0 0.0
    %6600 = vmatpush1.msra.mxu0 0.0
    %6601 = vmatprep.subr.mxu0 0.0
    %6602 = vmatpush1.msra.mxu0 0.0
    %6603 = vmatprep.subr.mxu0 0.0
    %6604 = vmatpush1.msra.mxu0 0.0
    %6605 = vmatprep.mubr.f32.mxu0 0.0
    %6606 = vmatmul.mubr.f32.gmra.mrb[0].mxu0 %v6288
    %v6607 = vpop.f32.mrb[0].mxu0
    %v6608 = vadd.f32 0.0, %v6607
    %v6609 = vpop.f32.mrb[0].mxu0
    %v6610 = vadd.f32 0.0, %v6609
    %6611 = vdwg.mxu0
    %v6612 = vadd.f32 %v6466, %v6537
    %v6613 = vadd.f32 %v6467, %v6539
    %v6614 = vadd.f32 %v6468, %v6608
    %v6615 = vadd.f32 %v6469, %v6610
    %v6616 = vxor.u32 %v6612, 2147483648
    %v6617 = vmul.f32 %v6616, 1.442695
    %v6618 = vpow.pop %v6617
    %v6619 = vadd.f32 %v6618, 1.0
    %v6620 = vrcp.pop %v6619
    %v6621 = vmul.f32 1.0, %v6620
    %v6622 = vxor.u32 %v6613, 2147483648
    %v6623 = vmul.f32 %v6622, 1.442695
    %v6624 = vpow.pop %v6623
    %v6625 = vadd.f32 %v6624, 1.0
    %v6626 = vrcp.pop %v6625
    %v6627 = vmul.f32 1.0, %v6626
    %v6628 = vtanh.pop %v6614
    %v6629 = vxor.u32 %v6615, 2147483648
    %v6630 = vmul.f32 %v6629, 1.442695
    %v6631 = vpow.pop %v6630
    %v6632 = vadd.f32 %v6631, 1.0
    %v6633 = vrcp.pop %v6632
    %v6634 = vmul.f32 1.0, %v6633
    %v6635 = vmul.f32 %v6627, %v6289
    %v6636 = vmul.f32 %v6621, %v6628
    %v6637 = vadd.f32 %v6635, %v6636
    %v6638 = vtanh.pop %v6637
    %v6639 = vmul.f32 %v6634, %v6638
    %v6640 = vsel %vm2311, %v6639, %v6288
    %v6641 = vsel %vm2311, %v6637, %v6289
    %v6642 = vld [vmem:[%s2857] sm:$0xff]
    %v6643 = vld [vmem:[%s2857 + $0x8] sm:$0xff]
    %v6644 = vld [vmem:[%s2857 + $0x10] sm:$0xff]
    %v6645 = vld [vmem:[%s2857 + $0x18] sm:$0xff]
    %6646 = vmatprep.subr.mxu0 %v4755
    %6647 = vmatpush1.msra.mxu0 %v4754
    %6648 = vmatprep.subr.mxu0 %v4759
    %6649 = vmatpush1.msra.mxu0 %v4758
    %6650 = vmatprep.subr.mxu0 %v4763
    %6651 = vmatpush1.msra.mxu0 %v4762
    %6652 = vmatprep.subr.mxu0 %v4767
    %6653 = vmatpush1.msra.mxu0 %v4766
    %6654 = vmatprep.subr.mxu0 %v4771
    %6655 = vmatpush1.msra.mxu0 %v4770
    %6656 = vmatprep.subr.mxu0 %v4775
    %6657 = vmatpush1.msra.mxu0 %v4774
    %6658 = vmatprep.subr.mxu0 %v4779
    %6659 = vmatpush1.msra.mxu0 %v4778
    %6660 = vmatprep.subr.mxu0 %v4783
    %6661 = vmatpush1.msra.mxu0 %v4782
    %6662 = vmatprep.subr.mxu0 %v4787
    %6663 = vmatpush1.msra.mxu0 %v4786
    %6664 = vmatprep.subr.mxu0 %v4791
    %6665 = vmatpush1.msra.mxu0 %v4790
    %6666 = vmatprep.subr.mxu0 %v4795
    %6667 = vmatpush1.msra.mxu0 %v4794
    %6668 = vmatprep.subr.mxu0 %v4799
    %6669 = vmatpush1.msra.mxu0 %v4798
    %6670 = vmatprep.subr.mxu0 %v4803
    %6671 = vmatpush1.msra.mxu0 %v4802
    %6672 = vmatprep.subr.mxu0 %v4807
    %6673 = vmatpush1.msra.mxu0 %v4806
    %6674 = vmatprep.subr.mxu0 %v4811
    %6675 = vmatpush1.msra.mxu0 %v4810
    %6676 = vmatprep.subr.mxu0 %v4815
    %6677 = vmatpush1.msra.mxu0 %v4814
    %6678 = vmatprep.subr.mxu0 0.0
    %6679 = vmatpush1.msra.mxu0 0.0
    %6680 = vmatprep.subr.mxu0 0.0
    %6681 = vmatpush1.msra.mxu0 0.0
    %6682 = vmatprep.subr.mxu0 0.0
    %6683 = vmatpush1.msra.mxu0 0.0
    %6684 = vmatprep.subr.mxu0 0.0
    %6685 = vmatpush1.msra.mxu0 0.0
    %6686 = vmatprep.subr.mxu0 0.0
    %6687 = vmatpush1.msra.mxu0 0.0
    %6688 = vmatprep.subr.mxu0 0.0
    %6689 = vmatpush1.msra.mxu0 0.0
    %6690 = vmatprep.subr.mxu0 0.0
    %6691 = vmatpush1.msra.mxu0 0.0
    %6692 = vmatprep.subr.mxu0 0.0
    %6693 = vmatpush1.msra.mxu0 0.0
    %6694 = vmatprep.subr.mxu0 0.0
    %6695 = vmatpush1.msra.mxu0 0.0
    %6696 = vmatprep.subr.mxu0 0.0
    %6697 = vmatpush1.msra.mxu0 0.0
    %6698 = vmatprep.subr.mxu0 0.0
    %6699 = vmatpush1.msra.mxu0 0.0
    %6700 = vmatprep.subr.mxu0 0.0
    %6701 = vmatpush1.msra.mxu0 0.0
    %6702 = vmatprep.subr.mxu0 0.0
    %6703 = vmatpush1.msra.mxu0 0.0
    %6704 = vmatprep.subr.mxu0 0.0
    %6705 = vmatpush1.msra.mxu0 0.0
    %6706 = vmatprep.subr.mxu0 0.0
    %6707 = vmatpush1.msra.mxu0 0.0
    %6708 = vmatprep.subr.mxu0 0.0
    %6709 = vmatpush1.msra.mxu0 0.0
    %6710 = vmatprep.mubr.f32.mxu0 0.0
    %6711 = vmatmul.mubr.f32.gmra.mrb[0].mxu0 %v6464
    %v6712 = vpop.f32.mrb[0].mxu0
    %v6713 = vadd.f32 0.0, %v6712
    %v6714 = vpop.f32.mrb[0].mxu0
    %v6715 = vadd.f32 0.0, %v6714
    %6716 = vdwg.mxu0
    %6717 = vmatprep.subr.mxu0 %v4757
    %6718 = vmatpush1.msra.mxu0 %v4756
    %6719 = vmatprep.subr.mxu0 %v4761
    %6720 = vmatpush1.msra.mxu0 %v4760
    %6721 = vmatprep.subr.mxu0 %v4765
    %6722 = vmatpush1.msra.mxu0 %v4764
    %6723 = vmatprep.subr.mxu0 %v4769
    %6724 = vmatpush1.msra.mxu0 %v4768
    %6725 = vmatprep.subr.mxu0 %v4773
    %6726 = vmatpush1.msra.mxu0 %v4772
    %6727 = vmatprep.subr.mxu0 %v4777
    %6728 = vmatpush1.msra.mxu0 %v4776
    %6729 = vmatprep.subr.mxu0 %v4781
    %6730 = vmatpush1.msra.mxu0 %v4780
    %6731 = vmatprep.subr.mxu0 %v4785
    %6732 = vmatpush1.msra.mxu0 %v4784
    %6733 = vmatprep.subr.mxu0 %v4789
    %6734 = vmatpush1.msra.mxu0 %v4788
    %6735 = vmatprep.subr.mxu0 %v4793
    %6736 = vmatpush1.msra.mxu0 %v4792
    %6737 = vmatprep.subr.mxu0 %v4797
    %6738 = vmatpush1.msra.mxu0 %v4796
    %6739 = vmatprep.subr.mxu0 %v4801
    %6740 = vmatpush1.msra.mxu0 %v4800
    %6741 = vmatprep.subr.mxu0 %v4805
    %6742 = vmatpush1.msra.mxu0 %v4804
    %6743 = vmatprep.subr.mxu0 %v4809
    %6744 = vmatpush1.msra.mxu0 %v4808
    %6745 = vmatprep.subr.mxu0 %v4813
    %6746 = vmatpush1.msra.mxu0 %v4812
    %6747 = vmatprep.subr.mxu0 %v4817
    %6748 = vmatpush1.msra.mxu0 %v4816
    %6749 = vmatprep.subr.mxu0 0.0
    %6750 = vmatpush1.msra.mxu0 0.0
    %6751 = vmatprep.subr.mxu0 0.0
    %6752 = vmatpush1.msra.mxu0 0.0
    %6753 = vmatprep.subr.mxu0 0.0
    %6754 = vmatpush1.msra.mxu0 0.0
    %6755 = vmatprep.subr.mxu0 0.0
    %6756 = vmatpush1.msra.mxu0 0.0
    %6757 = vmatprep.subr.mxu0 0.0
    %6758 = vmatpush1.msra.mxu0 0.0
    %6759 = vmatprep.subr.mxu0 0.0
    %6760 = vmatpush1.msra.mxu0 0.0
    %6761 = vmatprep.subr.mxu0 0.0
    %6762 = vmatpush1.msra.mxu0 0.0
    %6763 = vmatprep.subr.mxu0 0.0
    %6764 = vmatpush1.msra.mxu0 0.0
    %6765 = vmatprep.subr.mxu0 0.0
    %6766 = vmatpush1.msra.mxu0 0.0
    %6767 = vmatprep.subr.mxu0 0.0
    %6768 = vmatpush1.msra.mxu0 0.0
    %6769 = vmatprep.subr.mxu0 0.0
    %6770 = vmatpush1.msra.mxu0 0.0
    %6771 = vmatprep.subr.mxu0 0.0
    %6772 = vmatpush1.msra.mxu0 0.0
    %6773 = vmatprep.subr.mxu0 0.0
    %6774 = vmatpush1.msra.mxu0 0.0
    %6775 = vmatprep.subr.mxu0 0.0
    %6776 = vmatpush1.msra.mxu0 0.0
    %6777 = vmatprep.subr.mxu0 0.0
    %6778 = vmatpush1.msra.mxu0 0.0
    %6779 = vmatprep.subr.mxu0 0.0
    %6780 = vmatpush1.msra.mxu0 0.0
    %6781 = vmatprep.mubr.f32.mxu0 0.0
    %6782 = vmatmul.mubr.f32.gmra.mrb[0].mxu0 %v6464
    %v6783 = vpop.f32.mrb[0].mxu0
    %v6784 = vadd.f32 0.0, %v6783
    %v6785 = vpop.f32.mrb[0].mxu0
    %v6786 = vadd.f32 0.0, %v6785
    %6787 = vdwg.mxu0
    %v6788 = vadd.f32 %v6642, %v6713
    %v6789 = vadd.f32 %v6643, %v6715
    %v6790 = vadd.f32 %v6644, %v6784
    %v6791 = vadd.f32 %v6645, %v6786
    %v6792 = vxor.u32 %v6788, 2147483648
    %v6793 = vmul.f32 %v6792, 1.442695
    %v6794 = vpow.pop %v6793
    %v6795 = vadd.f32 %v6794, 1.0
    %v6796 = vrcp.pop %v6795
    %v6797 = vmul.f32 1.0, %v6796
    %v6798 = vxor.u32 %v6789, 2147483648
    %v6799 = vmul.f32 %v6798, 1.442695
    %v6800 = vpow.pop %v6799
    %v6801 = vadd.f32 %v6800, 1.0
    %v6802 = vrcp.pop %v6801
    %v6803 = vmul.f32 1.0, %v6802
    %v6804 = vtanh.pop %v6790
    %v6805 = vxor.u32 %v6791, 2147483648
    %v6806 = vmul.f32 %v6805, 1.442695
    %v6807 = vpow.pop %v6806
    %v6808 = vadd.f32 %v6807, 1.0
    %v6809 = vrcp.pop %v6808
    %v6810 = vmul.f32 1.0, %v6809
    %v6811 = vmul.f32 %v6803, %v6465
    %v6812 = vmul.f32 %v6797, %v6804
    %v6813 = vadd.f32 %v6811, %v6812
    %v6814 = vtanh.pop %v6813
    %v6815 = vmul.f32 %v6810, %v6814
    %v6816 = vsel %vm2124, %v6815, %v6464
    %v6817 = vsel %vm2124, %v6813, %v6465
    %v6818 = vld [vmem:[%s3034] sm:$0xff]
    %v6819 = vld [vmem:[%s3034 + $0x8] sm:$0xff]
    %v6820 = vld [vmem:[%s3034 + $0x10] sm:$0xff]
    %v6821 = vld [vmem:[%s3034 + $0x18] sm:$0xff]
    %6822 = vmatprep.subr.mxu0 %v4819
    %6823 = vmatpush1.msra.mxu0 %v4818
    %6824 = vmatprep.subr.mxu0 %v4823
    %6825 = vmatpush1.msra.mxu0 %v4822
    %6826 = vmatprep.subr.mxu0 %v4827
    %6827 = vmatpush1.msra.mxu0 %v4826
    %6828 = vmatprep.subr.mxu0 %v4831
    %6829 = vmatpush1.msra.mxu0 %v4830
    %6830 = vmatprep.subr.mxu0 %v4835
    %6831 = vmatpush1.msra.mxu0 %v4834
    %6832 = vmatprep.subr.mxu0 %v4839
    %6833 = vmatpush1.msra.mxu0 %v4838
    %6834 = vmatprep.subr.mxu0 %v4843
    %6835 = vmatpush1.msra.mxu0 %v4842
    %6836 = vmatprep.subr.mxu0 %v4847
    %6837 = vmatpush1.msra.mxu0 %v4846
    %6838 = vmatprep.subr.mxu0 %v4851
    %6839 = vmatpush1.msra.mxu0 %v4850
    %6840 = vmatprep.subr.mxu0 %v4855
    %6841 = vmatpush1.msra.mxu0 %v4854
    %6842 = vmatprep.subr.mxu0 %v4859
    %6843 = vmatpush1.msra.mxu0 %v4858
    %6844 = vmatprep.subr.mxu0 %v4863
    %6845 = vmatpush1.msra.mxu0 %v4862
    %6846 = vmatprep.subr.mxu0 %v4867
    %6847 = vmatpush1.msra.mxu0 %v4866
    %6848 = vmatprep.subr.mxu0 %v4871
    %6849 = vmatpush1.msra.mxu0 %v4870
    %6850 = vmatprep.subr.mxu0 %v4875
    %6851 = vmatpush1.msra.mxu0 %v4874
    %6852 = vmatprep.subr.mxu0 %v4879
    %6853 = vmatpush1.msra.mxu0 %v4878
    %6854 = vmatprep.subr.mxu0 0.0
    %6855 = vmatpush1.msra.mxu0 0.0
    %6856 = vmatprep.subr.mxu0 0.0
    %6857 = vmatpush1.msra.mxu0 0.0
    %6858 = vmatprep.subr.mxu0 0.0
    %6859 = vmatpush1.msra.mxu0 0.0
    %6860 = vmatprep.subr.mxu0 0.0
    %6861 = vmatpush1.msra.mxu0 0.0
    %6862 = vmatprep.subr.mxu0 0.0
    %6863 = vmatpush1.msra.mxu0 0.0
    %6864 = vmatprep.subr.mxu0 0.0
    %6865 = vmatpush1.msra.mxu0 0.0
    %6866 = vmatprep.subr.mxu0 0.0
    %6867 = vmatpush1.msra.mxu0 0.0
    %6868 = vmatprep.subr.mxu0 0.0
    %6869 = vmatpush1.msra.mxu0 0.0
    %6870 = vmatprep.subr.mxu0 0.0
    %6871 = vmatpush1.msra.mxu0 0.0
    %6872 = vmatprep.subr.mxu0 0.0
    %6873 = vmatpush1.msra.mxu0 0.0
    %6874 = vmatprep.subr.mxu0 0.0
    %6875 = vmatpush1.msra.mxu0 0.0
    %6876 = vmatprep.subr.mxu0 0.0
    %6877 = vmatpush1.msra.mxu0 0.0
    %6878 = vmatprep.subr.mxu0 0.0
    %6879 = vmatpush1.msra.mxu0 0.0
    %6880 = vmatprep.subr.mxu0 0.0
    %6881 = vmatpush1.msra.mxu0 0.0
    %6882 = vmatprep.subr.mxu0 0.0
    %6883 = vmatpush1.msra.mxu0 0.0
    %6884 = vmatprep.subr.mxu0 0.0
    %6885 = vmatpush1.msra.mxu0 0.0
    %6886 = vmatprep.mubr.f32.mxu0 0.0
    %6887 = vmatmul.mubr.f32.gmra.mrb[0].mxu0 %v6640
    %v6888 = vpop.f32.mrb[0].mxu0
    %v6889 = vadd.f32 0.0, %v6888
    %v6890 = vpop.f32.mrb[0].mxu0
    %v6891 = vadd.f32 0.0, %v6890
    %6892 = vdwg.mxu0
    %6893 = vmatprep.subr.mxu0 %v4821
    %6894 = vmatpush1.msra.mxu0 %v4820
    %6895 = vmatprep.subr.mxu0 %v4825
    %6896 = vmatpush1.msra.mxu0 %v4824
    %6897 = vmatprep.subr.mxu0 %v4829
    %6898 = vmatpush1.msra.mxu0 %v4828
    %6899 = vmatprep.subr.mxu0 %v4833
    %6900 = vmatpush1.msra.mxu0 %v4832
    %6901 = vmatprep.subr.mxu0 %v4837
    %6902 = vmatpush1.msra.mxu0 %v4836
    %6903 = vmatprep.subr.mxu0 %v4841
    %6904 = vmatpush1.msra.mxu0 %v4840
    %6905 = vmatprep.subr.mxu0 %v4845
    %6906 = vmatpush1.msra.mxu0 %v4844
    %6907 = vmatprep.subr.mxu0 %v4849
    %6908 = vmatpush1.msra.mxu0 %v4848
    %6909 = vmatprep.subr.mxu0 %v4853
    %6910 = vmatpush1.msra.mxu0 %v4852
    %6911 = vmatprep.subr.mxu0 %v4857
    %6912 = vmatpush1.msra.mxu0 %v4856
    %6913 = vmatprep.subr.mxu0 %v4861
    %6914 = vmatpush1.msra.mxu0 %v4860
    %6915 = vmatprep.subr.mxu0 %v4865
    %6916 = vmatpush1.msra.mxu0 %v4864
    %6917 = vmatprep.subr.mxu0 %v4869
    %6918 = vmatpush1.msra.mxu0 %v4868
    %6919 = vmatprep.subr.mxu0 %v4873
    %6920 = vmatpush1.msra.mxu0 %v4872
    %6921 = vmatprep.subr.mxu0 %v4877
    %6922 = vmatpush1.msra.mxu0 %v4876
    %6923 = vmatprep.subr.mxu0 %v4881
    %6924 = vmatpush1.msra.mxu0 %v4880
    %6925 = vmatprep.subr.mxu0 0.0
    %6926 = vmatpush1.msra.mxu0 0.0
    %6927 = vmatprep.subr.mxu0 0.0
    %6928 = vmatpush1.msra.mxu0 0.0
    %6929 = vmatprep.subr.mxu0 0.0
    %6930 = vmatpush1.msra.mxu0 0.0
    %6931 = vmatprep.subr.mxu0 0.0
    %6932 = vmatpush1.msra.mxu0 0.0
    %6933 = vmatprep.subr.mxu0 0.0
    %6934 = vmatpush1.msra.mxu0 0.0
    %6935 = vmatprep.subr.mxu0 0.0
    %6936 = vmatpush1.msra.mxu0 0.0
    %6937 = vmatprep.subr.mxu0 0.0
    %6938 = vmatpush1.msra.mxu0 0.0
    %6939 = vmatprep.subr.mxu0 0.0
    %6940 = vmatpush1.msra.mxu0 0.0
    %6941 = vmatprep.subr.mxu0 0.0
    %6942 = vmatpush1.msra.mxu0 0.0
    %6943 = vmatprep.subr.mxu0 0.0
    %6944 = vmatpush1.msra.mxu0 0.0
    %6945 = vmatprep.subr.mxu0 0.0
    %6946 = vmatpush1.msra.mxu0 0.0
    %6947 = vmatprep.subr.mxu0 0.0
    %6948 = vmatpush1.msra.mxu0 0.0
    %6949 = vmatprep.subr.mxu0 0.0
    %6950 = vmatpush1.msra.mxu0 0.0
    %6951 = vmatprep.subr.mxu0 0.0
    %6952 = vmatpush1.msra.mxu0 0.0
    %6953 = vmatprep.subr.mxu0 0.0
    %6954 = vmatpush1.msra.mxu0 0.0
    %6955 = vmatprep.subr.mxu0 0.0
    %6956 = vmatpush1.msra.mxu0 0.0
    %6957 = vmatprep.mubr.f32.mxu0 0.0
    %6958 = vmatmul.mubr.f32.gmra.mrb[0].mxu0 %v6640
    %v6959 = vpop.f32.mrb[0].mxu0
    %v6960 = vadd.f32 0.0, %v6959
    %v6961 = vpop.f32.mrb[0].mxu0
    %v6962 = vadd.f32 0.0, %v6961
    %6963 = vdwg.mxu0
    %v6964 = vadd.f32 %v6818, %v6889
    %v6965 = vadd.f32 %v6819, %v6891
    %v6966 = vadd.f32 %v6820, %v6960
    %v6967 = vadd.f32 %v6821, %v6962
    %v6968 = vxor.u32 %v6964, 2147483648
    %v6969 = vmul.f32 %v6968, 1.442695
    %v6970 = vpow.pop %v6969
    %v6971 = vadd.f32 %v6970, 1.0
    %v6972 = vrcp.pop %v6971
    %v6973 = vmul.f32 1.0, %v6972
    %v6974 = vxor.u32 %v6965, 2147483648
    %v6975 = vmul.f32 %v6974, 1.442695
    %v6976 = vpow.pop %v6975
    %v6977 = vadd.f32 %v6976, 1.0
    %v6978 = vrcp.pop %v6977
    %v6979 = vmul.f32 1.0, %v6978
    %v6980 = vtanh.pop %v6966
    %v6981 = vxor.u32 %v6967, 2147483648
    %v6982 = vmul.f32 %v6981, 1.442695
    %v6983 = vpow.pop %v6982
    %v6984 = vadd.f32 %v6983, 1.0
    %v6985 = vrcp.pop %v6984
    %v6986 = vmul.f32 1.0, %v6985
    %v6987 = vmul.f32 %v6979, %v6641
    %v6988 = vmul.f32 %v6973, %v6980
    %v6989 = vadd.f32 %v6987, %v6988
    %v6990 = vtanh.pop %v6989
    %v6991 = vmul.f32 %v6986, %v6990
    %v6992 = vsel %vm1941, %v6991, %v6640
    %v6993 = vsel %vm1941, %v6989, %v6641
    %v6994 = vld [vmem:[%s3213] sm:$0xff]
    %v6995 = vld [vmem:[%s3213 + $0x8] sm:$0xff]
    %v6996 = vld [vmem:[%s3213 + $0x10] sm:$0xff]
    %v6997 = vld [vmem:[%s3213 + $0x18] sm:$0xff]
    %6998 = vmatprep.subr.mxu0 %v4755
    %6999 = vmatpush1.msra.mxu0 %v4754
    %7000 = vmatprep.subr.mxu0 %v4759
    %7001 = vmatpush1.msra.mxu0 %v4758
    %7002 = vmatprep.subr.mxu0 %v4763
    %7003 = vmatpush1.msra.mxu0 %v4762
    %7004 = vmatprep.subr.mxu0 %v4767
    %7005 = vmatpush1.msra.mxu0 %v4766
    %7006 = vmatprep.subr.mxu0 %v4771
    %7007 = vmatpush1.msra.mxu0 %v4770
    %7008 = vmatprep.subr.mxu0 %v4775
    %7009 = vmatpush1.msra.mxu0 %v4774
    %7010 = vmatprep.subr.mxu0 %v4779
    %7011 = vmatpush1.msra.mxu0 %v4778
    %7012 = vmatprep.subr.mxu0 %v4783
    %7013 = vmatpush1.msra.mxu0 %v4782
    %7014 = vmatprep.subr.mxu0 %v4787
    %7015 = vmatpush1.msra.mxu0 %v4786
    %7016 = vmatprep.subr.mxu0 %v4791
    %7017 = vmatpush1.msra.mxu0 %v4790
    %7018 = vmatprep.subr.mxu0 %v4795
    %7019 = vmatpush1.msra.mxu0 %v4794
    %7020 = vmatprep.subr.mxu0 %v4799
    %7021 = vmatpush1.msra.mxu0 %v4798
    %7022 = vmatprep.subr.mxu0 %v4803
    %7023 = vmatpush1.msra.mxu0 %v4802
    %7024 = vmatprep.subr.mxu0 %v4807
    %7025 = vmatpush1.msra.mxu0 %v4806
    %7026 = vmatprep.subr.mxu0 %v4811
    %7027 = vmatpush1.msra.mxu0 %v4810
    %7028 = vmatprep.subr.mxu0 %v4815
    %7029 = vmatpush1.msra.mxu0 %v4814
    %7030 = vmatprep.subr.mxu0 0.0
    %7031 = vmatpush1.msra.mxu0 0.0
    %7032 = vmatprep.subr.mxu0 0.0
    %7033 = vmatpush1.msra.mxu0 0.0
    %7034 = vmatprep.subr.mxu0 0.0
    %7035 = vmatpush1.msra.mxu0 0.0
    %7036 = vmatprep.subr.mxu0 0.0
    %7037 = vmatpush1.msra.mxu0 0.0
    %7038 = vmatprep.subr.mxu0 0.0
    %7039 = vmatpush1.msra.mxu0 0.0
    %7040 = vmatprep.subr.mxu0 0.0
    %7041 = vmatpush1.msra.mxu0 0.0
    %7042 = vmatprep.subr.mxu0 0.0
    %7043 = vmatpush1.msra.mxu0 0.0
    %7044 = vmatprep.subr.mxu0 0.0
    %7045 = vmatpush1.msra.mxu0 0.0
    %7046 = vmatprep.subr.mxu0 0.0
    %7047 = vmatpush1.msra.mxu0 0.0
    %7048 = vmatprep.subr.mxu0 0.0
    %7049 = vmatpush1.msra.mxu0 0.0
    %7050 = vmatprep.subr.mxu0 0.0
    %7051 = vmatpush1.msra.mxu0 0.0
    %7052 = vmatprep.subr.mxu0 0.0
    %7053 = vmatpush1.msra.mxu0 0.0
    %7054 = vmatprep.subr.mxu0 0.0
    %7055 = vmatpush1.msra.mxu0 0.0
    %7056 = vmatprep.subr.mxu0 0.0
    %7057 = vmatpush1.msra.mxu0 0.0
    %7058 = vmatprep.subr.mxu0 0.0
    %7059 = vmatpush1.msra.mxu0 0.0
    %7060 = vmatprep.subr.mxu0 0.0
    %7061 = vmatpush1.msra.mxu0 0.0
    %7062 = vmatprep.mubr.f32.mxu0 0.0
    %7063 = vmatmul.mubr.f32.gmra.mrb[0].mxu0 %v6816
    %v7064 = vpop.f32.mrb[0].mxu0
    %v7065 = vadd.f32 0.0, %v7064
    %v7066 = vpop.f32.mrb[0].mxu0
    %v7067 = vadd.f32 0.0, %v7066
    %7068 = vdwg.mxu0
    %7069 = vmatprep.subr.mxu0 %v4757
    %7070 = vmatpush1.msra.mxu0 %v4756
    %7071 = vmatprep.subr.mxu0 %v4761
    %7072 = vmatpush1.msra.mxu0 %v4760
    %7073 = vmatprep.subr.mxu0 %v4765
    %7074 = vmatpush1.msra.mxu0 %v4764
    %7075 = vmatprep.subr.mxu0 %v4769
    %7076 = vmatpush1.msra.mxu0 %v4768
    %7077 = vmatprep.subr.mxu0 %v4773
    %7078 = vmatpush1.msra.mxu0 %v4772
    %7079 = vmatprep.subr.mxu0 %v4777
    %7080 = vmatpush1.msra.mxu0 %v4776
    %7081 = vmatprep.subr.mxu0 %v4781
    %7082 = vmatpush1.msra.mxu0 %v4780
    %7083 = vmatprep.subr.mxu0 %v4785
    %7084 = vmatpush1.msra.mxu0 %v4784
    %7085 = vmatprep.subr.mxu0 %v4789
    %7086 = vmatpush1.msra.mxu0 %v4788
    %7087 = vmatprep.subr.mxu0 %v4793
    %7088 = vmatpush1.msra.mxu0 %v4792
    %7089 = vmatprep.subr.mxu0 %v4797
    %7090 = vmatpush1.msra.mxu0 %v4796
    %7091 = vmatprep.subr.mxu0 %v4801
    %7092 = vmatpush1.msra.mxu0 %v4800
    %7093 = vmatprep.subr.mxu0 %v4805
    %7094 = vmatpush1.msra.mxu0 %v4804
    %7095 = vmatprep.subr.mxu0 %v4809
    %7096 = vmatpush1.msra.mxu0 %v4808
    %7097 = vmatprep.subr.mxu0 %v4813
    %7098 = vmatpush1.msra.mxu0 %v4812
    %7099 = vmatprep.subr.mxu0 %v4817
    %7100 = vmatpush1.msra.mxu0 %v4816
    %7101 = vmatprep.subr.mxu0 0.0
    %7102 = vmatpush1.msra.mxu0 0.0
    %7103 = vmatprep.subr.mxu0 0.0
    %7104 = vmatpush1.msra.mxu0 0.0
    %7105 = vmatprep.subr.mxu0 0.0
    %7106 = vmatpush1.msra.mxu0 0.0
    %7107 = vmatprep.subr.mxu0 0.0
    %7108 = vmatpush1.msra.mxu0 0.0
    %7109 = vmatprep.subr.mxu0 0.0
    %7110 = vmatpush1.msra.mxu0 0.0
    %7111 = vmatprep.subr.mxu0 0.0
    %7112 = vmatpush1.msra.mxu0 0.0
    %7113 = vmatprep.subr.mxu0 0.0
    %7114 = vmatpush1.msra.mxu0 0.0
    %7115 = vmatprep.subr.mxu0 0.0
    %7116 = vmatpush1.msra.mxu0 0.0
    %7117 = vmatprep.subr.mxu0 0.0
    %7118 = vmatpush1.msra.mxu0 0.0
    %7119 = vmatprep.subr.mxu0 0.0
    %7120 = vmatpush1.msra.mxu0 0.0
    %7121 = vmatprep.subr.mxu0 0.0
    %7122 = vmatpush1.msra.mxu0 0.0
    %7123 = vmatprep.subr.mxu0 0.0
    %7124 = vmatpush1.msra.mxu0 0.0
    %7125 = vmatprep.subr.mxu0 0.0
    %7126 = vmatpush1.msra.mxu0 0.0
    %7127 = vmatprep.subr.mxu0 0.0
    %7128 = vmatpush1.msra.mxu0 0.0
    %7129 = vmatprep.subr.mxu0 0.0
    %7130 = vmatpush1.msra.mxu0 0.0
    %7131 = vmatprep.subr.mxu0 0.0
    %7132 = vmatpush1.msra.mxu0 0.0
    %7133 = vmatprep.mubr.f32.mxu0 0.0
    %7134 = vmatmul.mubr.f32.gmra.mrb[0].mxu0 %v6816
    %v7135 = vpop.f32.mrb[0].mxu0
    %v7136 = vadd.f32 0.0, %v7135
    %v7137 = vpop.f32.mrb[0].mxu0
    %v7138 = vadd.f32 0.0, %v7137
    %7139 = vdwg.mxu0
    %v7140 = vadd.f32 %v6994, %v7065
    %v7141 = vadd.f32 %v6995, %v7067
    %v7142 = vadd.f32 %v6996, %v7136
    %v7143 = vadd.f32 %v6997, %v7138
    %v7144 = vxor.u32 %v7140, 2147483648
    %v7145 = vmul.f32 %v7144, 1.442695
    %v7146 = vpow.pop %v7145
    %v7147 = vadd.f32 %v7146, 1.0
    %v7148 = vrcp.pop %v7147
    %v7149 = vmul.f32 1.0, %v7148
    %v7150 = vxor.u32 %v7141, 2147483648
    %v7151 = vmul.f32 %v7150, 1.442695
    %v7152 = vpow.pop %v7151
    %v7153 = vadd.f32 %v7152, 1.0
    %v7154 = vrcp.pop %v7153
    %v7155 = vmul.f32 1.0, %v7154
    %v7156 = vtanh.pop %v7142
    %v7157 = vxor.u32 %v7143, 2147483648
    %v7158 = vmul.f32 %v7157, 1.442695
    %v7159 = vpow.pop %v7158
    %v7160 = vadd.f32 %v7159, 1.0
    %v7161 = vrcp.pop %v7160
    %v7162 = vmul.f32 1.0, %v7161
    %v7163 = vmul.f32 %v7155, %v6817
    %v7164 = vmul.f32 %v7149, %v7156
    %v7165 = vadd.f32 %v7163, %v7164
    %v7166 = vtanh.pop %v7165
    %v7167 = vmul.f32 %v7162, %v7166
    %v7168 = vsel %vm1754, %v7167, %v6816
    %v7169 = vsel %vm1754, %v7165, %v6817
    %v7170 = vld [vmem:[%s3390] sm:$0xff]
    %v7171 = vld [vmem:[%s3390 + $0x8] sm:$0xff]
    %v7172 = vld [vmem:[%s3390 + $0x10] sm:$0xff]
    %v7173 = vld [vmem:[%s3390 + $0x18] sm:$0xff]
    %7174 = vmatprep.subr.mxu0 %v4819
    %7175 = vmatpush1.msra.mxu0 %v4818
    %7176 = vmatprep.subr.mxu0 %v4823
    %7177 = vmatpush1.msra.mxu0 %v4822
    %7178 = vmatprep.subr.mxu0 %v4827
    %7179 = vmatpush1.msra.mxu0 %v4826
    %7180 = vmatprep.subr.mxu0 %v4831
    %7181 = vmatpush1.msra.mxu0 %v4830
    %7182 = vmatprep.subr.mxu0 %v4835
    %7183 = vmatpush1.msra.mxu0 %v4834
    %7184 = vmatprep.subr.mxu0 %v4839
    %7185 = vmatpush1.msra.mxu0 %v4838
    %7186 = vmatprep.subr.mxu0 %v4843
    %7187 = vmatpush1.msra.mxu0 %v4842
    %7188 = vmatprep.subr.mxu0 %v4847
    %7189 = vmatpush1.msra.mxu0 %v4846
    %7190 = vmatprep.subr.mxu0 %v4851
    %7191 = vmatpush1.msra.mxu0 %v4850
    %7192 = vmatprep.subr.mxu0 %v4855
    %7193 = vmatpush1.msra.mxu0 %v4854
    %7194 = vmatprep.subr.mxu0 %v4859
    %7195 = vmatpush1.msra.mxu0 %v4858
    %7196 = vmatprep.subr.mxu0 %v4863
    %7197 = vmatpush1.msra.mxu0 %v4862
    %7198 = vmatprep.subr.mxu0 %v4867
    %7199 = vmatpush1.msra.mxu0 %v4866
    %7200 = vmatprep.subr.mxu0 %v4871
    %7201 = vmatpush1.msra.mxu0 %v4870
    %7202 = vmatprep.subr.mxu0 %v4875
    %7203 = vmatpush1.msra.mxu0 %v4874
    %7204 = vmatprep.subr.mxu0 %v4879
    %7205 = vmatpush1.msra.mxu0 %v4878
    %7206 = vmatprep.subr.mxu0 0.0
    %7207 = vmatpush1.msra.mxu0 0.0
    %7208 = vmatprep.subr.mxu0 0.0
    %7209 = vmatpush1.msra.mxu0 0.0
    %7210 = vmatprep.subr.mxu0 0.0
    %7211 = vmatpush1.msra.mxu0 0.0
    %7212 = vmatprep.subr.mxu0 0.0
    %7213 = vmatpush1.msra.mxu0 0.0
    %7214 = vmatprep.subr.mxu0 0.0
    %7215 = vmatpush1.msra.mxu0 0.0
    %7216 = vmatprep.subr.mxu0 0.0
    %7217 = vmatpush1.msra.mxu0 0.0
    %7218 = vmatprep.subr.mxu0 0.0
    %7219 = vmatpush1.msra.mxu0 0.0
    %7220 = vmatprep.subr.mxu0 0.0
    %7221 = vmatpush1.msra.mxu0 0.0
    %7222 = vmatprep.subr.mxu0 0.0
    %7223 = vmatpush1.msra.mxu0 0.0
    %7224 = vmatprep.subr.mxu0 0.0
    %7225 = vmatpush1.msra.mxu0 0.0
    %7226 = vmatprep.subr.mxu0 0.0
    %7227 = vmatpush1.msra.mxu0 0.0
    %7228 = vmatprep.subr.mxu0 0.0
    %7229 = vmatpush1.msra.mxu0 0.0
    %7230 = vmatprep.subr.mxu0 0.0
    %7231 = vmatpush1.msra.mxu0 0.0
    %7232 = vmatprep.subr.mxu0 0.0
    %7233 = vmatpush1.msra.mxu0 0.0
    %7234 = vmatprep.subr.mxu0 0.0
    %7235 = vmatpush1.msra.mxu0 0.0
    %7236 = vmatprep.subr.mxu0 0.0
    %7237 = vmatpush1.msra.mxu0 0.0
    %7238 = vmatprep.mubr.f32.mxu0 0.0
    %7239 = vmatmul.mubr.f32.gmra.mrb[0].mxu0 %v6992
    %v7240 = vpop.f32.mrb[0].mxu0
    %v7241 = vadd.f32 0.0, %v7240
    %v7242 = vpop.f32.mrb[0].mxu0
    %v7243 = vadd.f32 0.0, %v7242
    %7244 = vdwg.mxu0
    %7245 = vmatprep.subr.mxu0 %v4821
    %7246 = vmatpush1.msra.mxu0 %v4820
    %7247 = vmatprep.subr.mxu0 %v4825
    %7248 = vmatpush1.msra.mxu0 %v4824
    %7249 = vmatprep.subr.mxu0 %v4829
    %7250 = vmatpush1.msra.mxu0 %v4828
    %7251 = vmatprep.subr.mxu0 %v4833
    %7252 = vmatpush1.msra.mxu0 %v4832
    %7253 = vmatprep.subr.mxu0 %v4837
    %7254 = vmatpush1.msra.mxu0 %v4836
    %7255 = vmatprep.subr.mxu0 %v4841
    %7256 = vmatpush1.msra.mxu0 %v4840
    %7257 = vmatprep.subr.mxu0 %v4845
    %7258 = vmatpush1.msra.mxu0 %v4844
    %7259 = vmatprep.subr.mxu0 %v4849
    %7260 = vmatpush1.msra.mxu0 %v4848
    %7261 = vmatprep.subr.mxu0 %v4853
    %7262 = vmatpush1.msra.mxu0 %v4852
    %7263 = vmatprep.subr.mxu0 %v4857
    %7264 = vmatpush1.msra.mxu0 %v4856
    %7265 = vmatprep.subr.mxu0 %v4861
    %7266 = vmatpush1.msra.mxu0 %v4860
    %7267 = vmatprep.subr.mxu0 %v4865
    %7268 = vmatpush1.msra.mxu0 %v4864
    %7269 = vmatprep.subr.mxu0 %v4869
    %7270 = vmatpush1.msra.mxu0 %v4868
    %7271 = vmatprep.subr.mxu0 %v4873
    %7272 = vmatpush1.msra.mxu0 %v4872
    %7273 = vmatprep.subr.mxu0 %v4877
    %7274 = vmatpush1.msra.mxu0 %v4876
    %7275 = vmatprep.subr.mxu0 %v4881
    %7276 = vmatpush1.msra.mxu0 %v4880
    %7277 = vmatprep.subr.mxu0 0.0
    %7278 = vmatpush1.msra.mxu0 0.0
    %7279 = vmatprep.subr.mxu0 0.0
    %7280 = vmatpush1.msra.mxu0 0.0
    %7281 = vmatprep.subr.mxu0 0.0
    %7282 = vmatpush1.msra.mxu0 0.0
    %7283 = vmatprep.subr.mxu0 0.0
    %7284 = vmatpush1.msra.mxu0 0.0
    %7285 = vmatprep.subr.mxu0 0.0
    %7286 = vmatpush1.msra.mxu0 0.0
    %7287 = vmatprep.subr.mxu0 0.0
    %7288 = vmatpush1.msra.mxu0 0.0
    %7289 = vmatprep.subr.mxu0 0.0
    %7290 = vmatpush1.msra.mxu0 0.0
    %7291 = vmatprep.subr.mxu0 0.0
    %7292 = vmatpush1.msra.mxu0 0.0
    %7293 = vmatprep.subr.mxu0 0.0
    %7294 = vmatpush1.msra.mxu0 0.0
    %7295 = vmatprep.subr.mxu0 0.0
    %7296 = vmatpush1.msra.mxu0 0.0
    %7297 = vmatprep.subr.mxu0 0.0
    %7298 = vmatpush1.msra.mxu0 0.0
    %7299 = vmatprep.subr.mxu0 0.0
    %7300 = vmatpush1.msra.mxu0 0.0
    %7301 = vmatprep.subr.mxu0 0.0
    %7302 = vmatpush1.msra.mxu0 0.0
    %7303 = vmatprep.subr.mxu0 0.0
    %7304 = vmatpush1.msra.mxu0 0.0
    %7305 = vmatprep.subr.mxu0 0.0
    %7306 = vmatpush1.msra.mxu0 0.0
    %7307 = vmatprep.subr.mxu0 0.0
    %7308 = vmatpush1.msra.mxu0 0.0
    %7309 = vmatprep.mubr.f32.mxu0 0.0
    %7310 = vmatmul.mubr.f32.gmra.mrb[0].mxu0 %v6992
    %v7311 = vpop.f32.mrb[0].mxu0
    %v7312 = vadd.f32 0.0, %v7311
    %v7313 = vpop.f32.mrb[0].mxu0
    %v7314 = vadd.f32 0.0, %v7313
    %7315 = vdwg.mxu0
    %v7316 = vadd.f32 %v7170, %v7241
    %v7317 = vadd.f32 %v7171, %v7243
    %v7318 = vadd.f32 %v7172, %v7312
    %v7319 = vadd.f32 %v7173, %v7314
    %v7320 = vxor.u32 %v7316, 2147483648
    %v7321 = vmul.f32 %v7320, 1.442695
    %v7322 = vpow.pop %v7321
    %v7323 = vadd.f32 %v7322, 1.0
    %v7324 = vrcp.pop %v7323
    %v7325 = vmul.f32 1.0, %v7324
    %v7326 = vxor.u32 %v7317, 2147483648
    %v7327 = vmul.f32 %v7326, 1.442695
    %v7328 = vpow.pop %v7327
    %v7329 = vadd.f32 %v7328, 1.0
    %v7330 = vrcp.pop %v7329
    %v7331 = vmul.f32 1.0, %v7330
    %v7332 = vtanh.pop %v7318
    %v7333 = vxor.u32 %v7319, 2147483648
    %v7334 = vmul.f32 %v7333, 1.442695
    %v7335 = vpow.pop %v7334
    %v7336 = vadd.f32 %v7335, 1.0
    %v7337 = vrcp.pop %v7336
    %v7338 = vmul.f32 1.0, %v7337
    %v7339 = vmul.f32 %v7331, %v6993
    %v7340 = vmul.f32 %v7325, %v7332
    %v7341 = vadd.f32 %v7339, %v7340
    %v7342 = vtanh.pop %v7341
    %v7343 = vmul.f32 %v7338, %v7342
    %v7344 = vsel %vm1571, %v7343, %v6992
    %v7345 = vsel %vm1571, %v7341, %v6993
    %v7346 = vld [vmem:[%s3569] sm:$0xff]
    %v7347 = vld [vmem:[%s3569 + $0x8] sm:$0xff]
    %v7348 = vld [vmem:[%s3569 + $0x10] sm:$0xff]
    %v7349 = vld [vmem:[%s3569 + $0x18] sm:$0xff]
    %7350 = vmatprep.subr.mxu0 %v4755
    %7351 = vmatpush1.msra.mxu0 %v4754
    %7352 = vmatprep.subr.mxu0 %v4759
    %7353 = vmatpush1.msra.mxu0 %v4758
    %7354 = vmatprep.subr.mxu0 %v4763
    %7355 = vmatpush1.msra.mxu0 %v4762
    %7356 = vmatprep.subr.mxu0 %v4767
    %7357 = vmatpush1.msra.mxu0 %v4766
    %7358 = vmatprep.subr.mxu0 %v4771
    %7359 = vmatpush1.msra.mxu0 %v4770
    %7360 = vmatprep.subr.mxu0 %v4775
    %7361 = vmatpush1.msra.mxu0 %v4774
    %7362 = vmatprep.subr.mxu0 %v4779
    %7363 = vmatpush1.msra.mxu0 %v4778
    %7364 = vmatprep.subr.mxu0 %v4783
    %7365 = vmatpush1.msra.mxu0 %v4782
    %7366 = vmatprep.subr.mxu0 %v4787
    %7367 = vmatpush1.msra.mxu0 %v4786
    %7368 = vmatprep.subr.mxu0 %v4791
    %7369 = vmatpush1.msra.mxu0 %v4790
    %7370 = vmatprep.subr.mxu0 %v4795
    %7371 = vmatpush1.msra.mxu0 %v4794
    %7372 = vmatprep.subr.mxu0 %v4799
    %7373 = vmatpush1.msra.mxu0 %v4798
    %7374 = vmatprep.subr.mxu0 %v4803
    %7375 = vmatpush1.msra.mxu0 %v4802
    %7376 = vmatprep.subr.mxu0 %v4807
    %7377 = vmatpush1.msra.mxu0 %v4806
    %7378 = vmatprep.subr.mxu0 %v4811
    %7379 = vmatpush1.msra.mxu0 %v4810
    %7380 = vmatprep.subr.mxu0 %v4815
    %7381 = vmatpush1.msra.mxu0 %v4814
    %7382 = vmatprep.subr.mxu0 0.0
    %7383 = vmatpush1.msra.mxu0 0.0
    %7384 = vmatprep.subr.mxu0 0.0
    %7385 = vmatpush1.msra.mxu0 0.0
    %7386 = vmatprep.subr.mxu0 0.0
    %7387 = vmatpush1.msra.mxu0 0.0
    %7388 = vmatprep.subr.mxu0 0.0
    %7389 = vmatpush1.msra.mxu0 0.0
    %7390 = vmatprep.subr.mxu0 0.0
    %7391 = vmatpush1.msra.mxu0 0.0
    %7392 = vmatprep.subr.mxu0 0.0
    %7393 = vmatpush1.msra.mxu0 0.0
    %7394 = vmatprep.subr.mxu0 0.0
    %7395 = vmatpush1.msra.mxu0 0.0
    %7396 = vmatprep.subr.mxu0 0.0
    %7397 = vmatpush1.msra.mxu0 0.0
    %7398 = vmatprep.subr.mxu0 0.0
    %7399 = vmatpush1.msra.mxu0 0.0
    %7400 = vmatprep.subr.mxu0 0.0
    %7401 = vmatpush1.msra.mxu0 0.0
    %7402 = vmatprep.subr.mxu0 0.0
    %7403 = vmatpush1.msra.mxu0 0.0
    %7404 = vmatprep.subr.mxu0 0.0
    %7405 = vmatpush1.msra.mxu0 0.0
    %7406 = vmatprep.subr.mxu0 0.0
    %7407 = vmatpush1.msra.mxu0 0.0
    %7408 = vmatprep.subr.mxu0 0.0
    %7409 = vmatpush1.msra.mxu0 0.0
    %7410 = vmatprep.subr.mxu0 0.0
    %7411 = vmatpush1.msra.mxu0 0.0
    %7412 = vmatprep.subr.mxu0 0.0
    %7413 = vmatpush1.msra.mxu0 0.0
    %7414 = vmatprep.mubr.f32.mxu0 0.0
    %7415 = vmatmul.mubr.f32.gmra.mrb[0].mxu0 %v7168
    %v7416 = vpop.f32.mrb[0].mxu0
    %v7417 = vadd.f32 0.0, %v7416
    %v7418 = vpop.f32.mrb[0].mxu0
    %v7419 = vadd.f32 0.0, %v7418
    %7420 = vdwg.mxu0
    %7421 = vmatprep.subr.mxu0 %v4757
    %7422 = vmatpush1.msra.mxu0 %v4756
    %7423 = vmatprep.subr.mxu0 %v4761
    %7424 = vmatpush1.msra.mxu0 %v4760
    %7425 = vmatprep.subr.mxu0 %v4765
    %7426 = vmatpush1.msra.mxu0 %v4764
    %7427 = vmatprep.subr.mxu0 %v4769
    %7428 = vmatpush1.msra.mxu0 %v4768
    %7429 = vmatprep.subr.mxu0 %v4773
    %7430 = vmatpush1.msra.mxu0 %v4772
    %7431 = vmatprep.subr.mxu0 %v4777
    %7432 = vmatpush1.msra.mxu0 %v4776
    %7433 = vmatprep.subr.mxu0 %v4781
    %7434 = vmatpush1.msra.mxu0 %v4780
    %7435 = vmatprep.subr.mxu0 %v4785
    %7436 = vmatpush1.msra.mxu0 %v4784
    %7437 = vmatprep.subr.mxu0 %v4789
    %7438 = vmatpush1.msra.mxu0 %v4788
    %7439 = vmatprep.subr.mxu0 %v4793
    %7440 = vmatpush1.msra.mxu0 %v4792
    %7441 = vmatprep.subr.mxu0 %v4797
    %7442 = vmatpush1.msra.mxu0 %v4796
    %7443 = vmatprep.subr.mxu0 %v4801
    %7444 = vmatpush1.msra.mxu0 %v4800
    %7445 = vmatprep.subr.mxu0 %v4805
    %7446 = vmatpush1.msra.mxu0 %v4804
    %7447 = vmatprep.subr.mxu0 %v4809
    %7448 = vmatpush1.msra.mxu0 %v4808
    %7449 = vmatprep.subr.mxu0 %v4813
    %7450 = vmatpush1.msra.mxu0 %v4812
    %7451 = vmatprep.subr.mxu0 %v4817
    %7452 = vmatpush1.msra.mxu0 %v4816
    %7453 = vmatprep.subr.mxu0 0.0
    %7454 = vmatpush1.msra.mxu0 0.0
    %7455 = vmatprep.subr.mxu0 0.0
    %7456 = vmatpush1.msra.mxu0 0.0
    %7457 = vmatprep.subr.mxu0 0.0
    %7458 = vmatpush1.msra.mxu0 0.0
    %7459 = vmatprep.subr.mxu0 0.0
    %7460 = vmatpush1.msra.mxu0 0.0
    %7461 = vmatprep.subr.mxu0 0.0
    %7462 = vmatpush1.msra.mxu0 0.0
    %7463 = vmatprep.subr.mxu0 0.0
    %7464 = vmatpush1.msra.mxu0 0.0
    %7465 = vmatprep.subr.mxu0 0.0
    %7466 = vmatpush1.msra.mxu0 0.0
    %7467 = vmatprep.subr.mxu0 0.0
    %7468 = vmatpush1.msra.mxu0 0.0
    %7469 = vmatprep.subr.mxu0 0.0
    %7470 = vmatpush1.msra.mxu0 0.0
    %7471 = vmatprep.subr.mxu0 0.0
    %7472 = vmatpush1.msra.mxu0 0.0
    %7473 = vmatprep.subr.mxu0 0.0
    %7474 = vmatpush1.msra.mxu0 0.0
    %7475 = vmatprep.subr.mxu0 0.0
    %7476 = vmatpush1.msra.mxu0 0.0
    %7477 = vmatprep.subr.mxu0 0.0
    %7478 = vmatpush1.msra.mxu0 0.0
    %7479 = vmatprep.subr.mxu0 0.0
    %7480 = vmatpush1.msra.mxu0 0.0
    %7481 = vmatprep.subr.mxu0 0.0
    %7482 = vmatpush1.msra.mxu0 0.0
    %7483 = vmatprep.subr.mxu0 0.0
    %7484 = vmatpush1.msra.mxu0 0.0
    %7485 = vmatprep.mubr.f32.mxu0 0.0
    %7486 = vmatmul.mubr.f32.gmra.mrb[0].mxu0 %v7168
    %v7487 = vpop.f32.mrb[0].mxu0
    %v7488 = vadd.f32 0.0, %v7487
    %v7489 = vpop.f32.mrb[0].mxu0
    %v7490 = vadd.f32 0.0, %v7489
    %7491 = vdwg.mxu0
    %v7492 = vadd.f32 %v7346, %v7417
    %v7493 = vadd.f32 %v7347, %v7419
    %v7494 = vadd.f32 %v7348, %v7488
    %v7495 = vadd.f32 %v7349, %v7490
    %v7496 = vxor.u32 %v7492, 2147483648
    %v7497 = vmul.f32 %v7496, 1.442695
    %v7498 = vpow.pop %v7497
    %v7499 = vadd.f32 %v7498, 1.0
    %v7500 = vrcp.pop %v7499
    %v7501 = vmul.f32 1.0, %v7500
    %v7502 = vxor.u32 %v7493, 2147483648
    %v7503 = vmul.f32 %v7502, 1.442695
    %v7504 = vpow.pop %v7503
    %v7505 = vadd.f32 %v7504, 1.0
    %v7506 = vrcp.pop %v7505
    %v7507 = vmul.f32 1.0, %v7506
    %v7508 = vtanh.pop %v7494
    %v7509 = vxor.u32 %v7495, 2147483648
    %v7510 = vmul.f32 %v7509, 1.442695
    %v7511 = vpow.pop %v7510
    %v7512 = vadd.f32 %v7511, 1.0
    %v7513 = vrcp.pop %v7512
    %v7514 = vmul.f32 1.0, %v7513
    %v7515 = vmul.f32 %v7507, %v7169
    %v7516 = vmul.f32 %v7501, %v7508
    %v7517 = vadd.f32 %v7515, %v7516
    %v7518 = vtanh.pop %v7517
    %v7519 = vmul.f32 %v7514, %v7518
    %v7520 = vsel %vm1385, %v7519, %v7168
    %v7521 = vld [vmem:[#allocation4] sm:$0xff]
    %v7522 = vld [vmem:[#allocation4 + $0x8] sm:$0xff]
    %v7523 = vld [vmem:[#allocation4 + $0x10] sm:$0xff]
    %v7524 = vld [vmem:[#allocation4 + $0x18] sm:$0xff]
    %7525 = vmatprep.subr.mxu0 %v4819
    %7526 = vmatpush1.msra.mxu0 %v4818
    %7527 = vmatprep.subr.mxu0 %v4823
    %7528 = vmatpush1.msra.mxu0 %v4822
    %7529 = vmatprep.subr.mxu0 %v4827
    %7530 = vmatpush1.msra.mxu0 %v4826
    %7531 = vmatprep.subr.mxu0 %v4831
    %7532 = vmatpush1.msra.mxu0 %v4830
    %7533 = vmatprep.subr.mxu0 %v4835
    %7534 = vmatpush1.msra.mxu0 %v4834
    %7535 = vmatprep.subr.mxu0 %v4839
    %7536 = vmatpush1.msra.mxu0 %v4838
    %7537 = vmatprep.subr.mxu0 %v4843
    %7538 = vmatpush1.msra.mxu0 %v4842
    %7539 = vmatprep.subr.mxu0 %v4847
    %7540 = vmatpush1.msra.mxu0 %v4846
    %7541 = vmatprep.subr.mxu0 %v4851
    %7542 = vmatpush1.msra.mxu0 %v4850
    %7543 = vmatprep.subr.mxu0 %v4855
    %7544 = vmatpush1.msra.mxu0 %v4854
    %7545 = vmatprep.subr.mxu0 %v4859
    %7546 = vmatpush1.msra.mxu0 %v4858
    %7547 = vmatprep.subr.mxu0 %v4863
    %7548 = vmatpush1.msra.mxu0 %v4862
    %7549 = vmatprep.subr.mxu0 %v4867
    %7550 = vmatpush1.msra.mxu0 %v4866
    %7551 = vmatprep.subr.mxu0 %v4871
    %7552 = vmatpush1.msra.mxu0 %v4870
    %7553 = vmatprep.subr.mxu0 %v4875
    %7554 = vmatpush1.msra.mxu0 %v4874
    %7555 = vmatprep.subr.mxu0 %v4879
    %7556 = vmatpush1.msra.mxu0 %v4878
    %7557 = vmatprep.subr.mxu0 0.0
    %7558 = vmatpush1.msra.mxu0 0.0
    %7559 = vmatprep.subr.mxu0 0.0
    %7560 = vmatpush1.msra.mxu0 0.0
    %7561 = vmatprep.subr.mxu0 0.0
    %7562 = vmatpush1.msra.mxu0 0.0
    %7563 = vmatprep.subr.mxu0 0.0
    %7564 = vmatpush1.msra.mxu0 0.0
    %7565 = vmatprep.subr.mxu0 0.0
    %7566 = vmatpush1.msra.mxu0 0.0
    %7567 = vmatprep.subr.mxu0 0.0
    %7568 = vmatpush1.msra.mxu0 0.0
    %7569 = vmatprep.subr.mxu0 0.0
    %7570 = vmatpush1.msra.mxu0 0.0
    %7571 = vmatprep.subr.mxu0 0.0
    %7572 = vmatpush1.msra.mxu0 0.0
    %7573 = vmatprep.subr.mxu0 0.0
    %7574 = vmatpush1.msra.mxu0 0.0
    %7575 = vmatprep.subr.mxu0 0.0
    %7576 = vmatpush1.msra.mxu0 0.0
    %7577 = vmatprep.subr.mxu0 0.0
    %7578 = vmatpush1.msra.mxu0 0.0
    %7579 = vmatprep.subr.mxu0 0.0
    %7580 = vmatpush1.msra.mxu0 0.0
    %7581 = vmatprep.subr.mxu0 0.0
    %7582 = vmatpush1.msra.mxu0 0.0
    %7583 = vmatprep.subr.mxu0 0.0
    %7584 = vmatpush1.msra.mxu0 0.0
    %7585 = vmatprep.subr.mxu0 0.0
    %7586 = vmatpush1.msra.mxu0 0.0
    %7587 = vmatprep.subr.mxu0 0.0
    %7588 = vmatpush1.msra.mxu0 0.0
    %7589 = vmatprep.mubr.f32.mxu0 0.0
    %7590 = vmatmul.mubr.f32.gmra.mrb[0].mxu0 %v7344
    %v7591 = vpop.f32.mrb[0].mxu0
    %v7592 = vadd.f32 0.0, %v7591
    %v7593 = vpop.f32.mrb[0].mxu0
    %v7594 = vadd.f32 0.0, %v7593
    %7595 = vdwg.mxu0
    %7596 = vmatprep.subr.mxu0 %v4821
    %7597 = vmatpush1.msra.mxu0 %v4820
    %7598 = vmatprep.subr.mxu0 %v4825
    %7599 = vmatpush1.msra.mxu0 %v4824
    %7600 = vmatprep.subr.mxu0 %v4829
    %7601 = vmatpush1.msra.mxu0 %v4828
    %7602 = vmatprep.subr.mxu0 %v4833
    %7603 = vmatpush1.msra.mxu0 %v4832
    %7604 = vmatprep.subr.mxu0 %v4837
    %7605 = vmatpush1.msra.mxu0 %v4836
    %7606 = vmatprep.subr.mxu0 %v4841
    %7607 = vmatpush1.msra.mxu0 %v4840
    %7608 = vmatprep.subr.mxu0 %v4845
    %7609 = vmatpush1.msra.mxu0 %v4844
    %7610 = vmatprep.subr.mxu0 %v4849
    %7611 = vmatpush1.msra.mxu0 %v4848
    %7612 = vmatprep.subr.mxu0 %v4853
    %7613 = vmatpush1.msra.mxu0 %v4852
    %7614 = vmatprep.subr.mxu0 %v4857
    %7615 = vmatpush1.msra.mxu0 %v4856
    %7616 = vmatprep.subr.mxu0 %v4861
    %7617 = vmatpush1.msra.mxu0 %v4860
    %7618 = vmatprep.subr.mxu0 %v4865
    %7619 = vmatpush1.msra.mxu0 %v4864
    %7620 = vmatprep.subr.mxu0 %v4869
    %7621 = vmatpush1.msra.mxu0 %v4868
    %7622 = vmatprep.subr.mxu0 %v4873
    %7623 = vmatpush1.msra.mxu0 %v4872
    %7624 = vmatprep.subr.mxu0 %v4877
    %7625 = vmatpush1.msra.mxu0 %v4876
    %7626 = vmatprep.subr.mxu0 %v4881
    %7627 = vmatpush1.msra.mxu0 %v4880
    %7628 = vmatprep.subr.mxu0 0.0
    %7629 = vmatpush1.msra.mxu0 0.0
    %7630 = vmatprep.subr.mxu0 0.0
    %7631 = vmatpush1.msra.mxu0 0.0
    %7632 = vmatprep.subr.mxu0 0.0
    %7633 = vmatpush1.msra.mxu0 0.0
    %7634 = vmatprep.subr.mxu0 0.0
    %7635 = vmatpush1.msra.mxu0 0.0
    %7636 = vmatprep.subr.mxu0 0.0
    %7637 = vmatpush1.msra.mxu0 0.0
    %7638 = vmatprep.subr.mxu0 0.0
    %7639 = vmatpush1.msra.mxu0 0.0
    %7640 = vmatprep.subr.mxu0 0.0
    %7641 = vmatpush1.msra.mxu0 0.0
    %7642 = vmatprep.subr.mxu0 0.0
    %7643 = vmatpush1.msra.mxu0 0.0
    %7644 = vmatprep.subr.mxu0 0.0
    %7645 = vmatpush1.msra.mxu0 0.0
    %7646 = vmatprep.subr.mxu0 0.0
    %7647 = vmatpush1.msra.mxu0 0.0
    %7648 = vmatprep.subr.mxu0 0.0
    %7649 = vmatpush1.msra.mxu0 0.0
    %7650 = vmatprep.subr.mxu0 0.0
    %7651 = vmatpush1.msra.mxu0 0.0
    %7652 = vmatprep.subr.mxu0 0.0
    %7653 = vmatpush1.msra.mxu0 0.0
    %7654 = vmatprep.subr.mxu0 0.0
    %7655 = vmatpush1.msra.mxu0 0.0
    %7656 = vmatprep.subr.mxu0 0.0
    %7657 = vmatpush1.msra.mxu0 0.0
    %7658 = vmatprep.subr.mxu0 0.0
    %7659 = vmatpush1.msra.mxu0 0.0
    %7660 = vmatprep.mubr.f32.mxu0 0.0
    %7661 = vmatmul.mubr.f32.gmra.mrb[0].mxu0 %v7344
    %v7662 = vpop.f32.mrb[0].mxu0
    %v7663 = vadd.f32 0.0, %v7662
    %v7664 = vpop.f32.mrb[0].mxu0
    %v7665 = vadd.f32 0.0, %v7664
    %7666 = vdwg.mxu0
    %v7667 = vadd.f32 %v7521, %v7592
    %v7668 = vadd.f32 %v7522, %v7594
    %v7669 = vadd.f32 %v7523, %v7663
    %v7670 = vadd.f32 %v7524, %v7665
    %v7671 = vxor.u32 %v7667, 2147483648
    %v7672 = vmul.f32 %v7671, 1.442695
    %v7673 = vpow.pop %v7672
    %v7674 = vadd.f32 %v7673, 1.0
    %v7675 = vrcp.pop %v7674
    %v7676 = vmul.f32 1.0, %v7675
    %v7677 = vxor.u32 %v7668, 2147483648
    %v7678 = vmul.f32 %v7677, 1.442695
    %v7679 = vpow.pop %v7678
    %v7680 = vadd.f32 %v7679, 1.0
    %v7681 = vrcp.pop %v7680
    %v7682 = vmul.f32 1.0, %v7681
    %v7683 = vtanh.pop %v7669
    %v7684 = vxor.u32 %v7670, 2147483648
    %v7685 = vmul.f32 %v7684, 1.442695
    %v7686 = vpow.pop %v7685
    %v7687 = vadd.f32 %v7686, 1.0
    %v7688 = vrcp.pop %v7687
    %v7689 = vmul.f32 1.0, %v7688
    %v7690 = vmul.f32 %v7682, %v7345
    %v7691 = vmul.f32 %v7676, %v7683
    %v7692 = vadd.f32 %v7690, %v7691
    %v7693 = vtanh.pop %v7692
    %v7694 = vmul.f32 %v7689, %v7693
    %v7695 = vsel %vm1202, %v7694, %v7344
    %v7696 = vld [vmem:[%s2] sm:$0xff]
    %v7697 = vld [vmem:[#allocation16] sm:$0xff]
    %v7698 = vld [vmem:[#allocation16 + $0x8] sm:$0xff]
    %v7699 = vld [vmem:[#allocation16 + $0x10] sm:$0xff]
    %v7700 = vld [vmem:[#allocation16 + $0x18] sm:$0xff]
    %v7701 = vld [vmem:[#allocation16 + $0x20] sm:$0xff]
    %v7702 = vld [vmem:[#allocation16 + $0x28] sm:$0xff]
    %v7703 = vld [vmem:[#allocation16 + $0x30] sm:$0xff]
    %v7704 = vld [vmem:[#allocation16 + $0x38] sm:$0xff]
    %v7705 = vld [vmem:[#allocation16 + $0x40] sm:$0xff]
    %v7706 = vld [vmem:[#allocation16 + $0x48] sm:$0xff]
    %v7707 = vld [vmem:[#allocation16 + $0x50] sm:$0xff]
    %v7708 = vld [vmem:[#allocation16 + $0x58] sm:$0xff]
    %v7709 = vld [vmem:[#allocation16 + $0x60] sm:$0xff]
    %v7710 = vld [vmem:[#allocation16 + $0x68] sm:$0xff]
    %v7711 = vld [vmem:[#allocation16 + $0x70] sm:$0xff]
    %v7712 = vld [vmem:[#allocation16 + $0x78] sm:$0xff]
    %v7713 = vld [vmem:[#allocation18] sm:$0xff]
    %v7714 = vld [vmem:[#allocation18 + $0x8] sm:$0xff]
    %v7715 = vld [vmem:[#allocation18 + $0x10] sm:$0xff]
    %v7716 = vld [vmem:[#allocation18 + $0x18] sm:$0xff]
    %v7717 = vld [vmem:[#allocation18 + $0x20] sm:$0xff]
    %v7718 = vld [vmem:[#allocation18 + $0x28] sm:$0xff]
    %v7719 = vld [vmem:[#allocation18 + $0x30] sm:$0xff]
    %v7720 = vld [vmem:[#allocation18 + $0x38] sm:$0xff]
    %v7721 = vld [vmem:[#allocation18 + $0x40] sm:$0xff]
    %v7722 = vld [vmem:[#allocation18 + $0x48] sm:$0xff]
    %v7723 = vld [vmem:[#allocation18 + $0x50] sm:$0xff]
    %v7724 = vld [vmem:[#allocation18 + $0x58] sm:$0xff]
    %v7725 = vld [vmem:[#allocation18 + $0x60] sm:$0xff]
    %v7726 = vld [vmem:[#allocation18 + $0x68] sm:$0xff]
    %v7727 = vld [vmem:[#allocation18 + $0x70] sm:$0xff]
    %v7728 = vld [vmem:[#allocation18 + $0x78] sm:$0xff]
    %7729 = vmatprep.subr.mxu0 0.0
    %7730 = vmatpush1.msra.mxu0 %v7713
    %7731 = vmatprep.subr.mxu0 0.0
    %7732 = vmatpush1.msra.mxu0 %v7714
    %7733 = vmatprep.subr.mxu0 0.0
    %7734 = vmatpush1.msra.mxu0 %v7715
    %7735 = vmatprep.subr.mxu0 0.0
    %7736 = vmatpush1.msra.mxu0 %v7716
    %7737 = vmatprep.subr.mxu0 0.0
    %7738 = vmatpush1.msra.mxu0 %v7717
    %7739 = vmatprep.subr.mxu0 0.0
    %7740 = vmatpush1.msra.mxu0 %v7718
    %7741 = vmatprep.subr.mxu0 0.0
    %7742 = vmatpush1.msra.mxu0 %v7719
    %7743 = vmatprep.subr.mxu0 0.0
    %7744 = vmatpush1.msra.mxu0 %v7720
    %7745 = vmatprep.subr.mxu0 0.0
    %7746 = vmatpush1.msra.mxu0 %v7721
    %7747 = vmatprep.subr.mxu0 0.0
    %7748 = vmatpush1.msra.mxu0 %v7722
    %7749 = vmatprep.subr.mxu0 0.0
    %7750 = vmatpush1.msra.mxu0 %v7723
    %7751 = vmatprep.subr.mxu0 0.0
    %7752 = vmatpush1.msra.mxu0 %v7724
    %7753 = vmatprep.subr.mxu0 0.0
    %7754 = vmatpush1.msra.mxu0 %v7725
    %7755 = vmatprep.subr.mxu0 0.0
    %7756 = vmatpush1.msra.mxu0 %v7726
    %7757 = vmatprep.subr.mxu0 0.0
    %7758 = vmatpush1.msra.mxu0 %v7727
    %7759 = vmatprep.subr.mxu0 0.0
    %7760 = vmatpush1.msra.mxu0 %v7728
    %7761 = vmatprep.subr.mxu0 0.0
    %7762 = vmatpush1.msra.mxu0 0.0
    %7763 = vmatprep.subr.mxu0 0.0
    %7764 = vmatpush1.msra.mxu0 0.0
    %7765 = vmatprep.subr.mxu0 0.0
    %7766 = vmatpush1.msra.mxu0 0.0
    %7767 = vmatprep.subr.mxu0 0.0
    %7768 = vmatpush1.msra.mxu0 0.0
    %7769 = vmatprep.subr.mxu0 0.0
    %7770 = vmatpush1.msra.mxu0 0.0
    %7771 = vmatprep.subr.mxu0 0.0
    %7772 = vmatpush1.msra.mxu0 0.0
    %7773 = vmatprep.subr.mxu0 0.0
    %7774 = vmatpush1.msra.mxu0 0.0
    %7775 = vmatprep.subr.mxu0 0.0
    %7776 = vmatpush1.msra.mxu0 0.0
    %7777 = vmatprep.subr.mxu0 0.0
    %7778 = vmatpush1.msra.mxu0 0.0
    %7779 = vmatprep.subr.mxu0 0.0
    %7780 = vmatpush1.msra.mxu0 0.0
    %7781 = vmatprep.subr.mxu0 0.0
    %7782 = vmatpush1.msra.mxu0 0.0
    %7783 = vmatprep.subr.mxu0 0.0
    %7784 = vmatpush1.msra.mxu0 0.0
    %7785 = vmatprep.subr.mxu0 0.0
    %7786 = vmatpush1.msra.mxu0 0.0
    %7787 = vmatprep.subr.mxu0 0.0
    %7788 = vmatpush1.msra.mxu0 0.0
    %7789 = vmatprep.subr.mxu0 0.0
    %7790 = vmatpush1.msra.mxu0 0.0
    %7791 = vmatprep.subr.mxu0 0.0
    %7792 = vmatpush1.msra.mxu0 0.0
    %7793 = vmatprep.mubr.f32.mxu0 0.0
    %7794 = vmatmul.mubr.f32.gmra.mrb[0].mxu0 %v7520
    %v7795 = vpop.f32.mrb[0].mxu0
    %v7796 = vadd.f32 0.0, %v7795
    %v7797 = vpop.f32.mrb[0].mxu0
    %7798 = vdwg.mxu0
    %7799 = vmatprep.subr.mxu0 0.0
    %7800 = vmatpush1.msra.mxu0 %v7697
    %7801 = vmatprep.subr.mxu0 0.0
    %7802 = vmatpush1.msra.mxu0 %v7698
    %7803 = vmatprep.subr.mxu0 0.0
    %7804 = vmatpush1.msra.mxu0 %v7699
    %7805 = vmatprep.subr.mxu0 0.0
    %7806 = vmatpush1.msra.mxu0 %v7700
    %7807 = vmatprep.subr.mxu0 0.0
    %7808 = vmatpush1.msra.mxu0 %v7701
    %7809 = vmatprep.subr.mxu0 0.0
    %7810 = vmatpush1.msra.mxu0 %v7702
    %7811 = vmatprep.subr.mxu0 0.0
    %7812 = vmatpush1.msra.mxu0 %v7703
    %7813 = vmatprep.subr.mxu0 0.0
    %7814 = vmatpush1.msra.mxu0 %v7704
    %7815 = vmatprep.subr.mxu0 0.0
    %7816 = vmatpush1.msra.mxu0 %v7705
    %7817 = vmatprep.subr.mxu0 0.0
    %7818 = vmatpush1.msra.mxu0 %v7706
    %7819 = vmatprep.subr.mxu0 0.0
    %7820 = vmatpush1.msra.mxu0 %v7707
    %7821 = vmatprep.subr.mxu0 0.0
    %7822 = vmatpush1.msra.mxu0 %v7708
    %7823 = vmatprep.subr.mxu0 0.0
    %7824 = vmatpush1.msra.mxu0 %v7709
    %7825 = vmatprep.subr.mxu0 0.0
    %7826 = vmatpush1.msra.mxu0 %v7710
    %7827 = vmatprep.subr.mxu0 0.0
    %7828 = vmatpush1.msra.mxu0 %v7711
    %7829 = vmatprep.subr.mxu0 0.0
    %7830 = vmatpush1.msra.mxu0 %v7712
    %7831 = vmatprep.subr.mxu0 0.0
    %7832 = vmatpush1.msra.mxu0 0.0
    %7833 = vmatprep.subr.mxu0 0.0
    %7834 = vmatpush1.msra.mxu0 0.0
    %7835 = vmatprep.subr.mxu0 0.0
    %7836 = vmatpush1.msra.mxu0 0.0
    %7837 = vmatprep.subr.mxu0 0.0
    %7838 = vmatpush1.msra.mxu0 0.0
    %7839 = vmatprep.subr.mxu0 0.0
    %7840 = vmatpush1.msra.mxu0 0.0
    %7841 = vmatprep.subr.mxu0 0.0
    %7842 = vmatpush1.msra.mxu0 0.0
    %7843 = vmatprep.subr.mxu0 0.0
    %7844 = vmatpush1.msra.mxu0 0.0
    %7845 = vmatprep.subr.mxu0 0.0
    %7846 = vmatpush1.msra.mxu0 0.0
    %7847 = vmatprep.subr.mxu0 0.0
    %7848 = vmatpush1.msra.mxu0 0.0
    %7849 = vmatprep.subr.mxu0 0.0
    %7850 = vmatpush1.msra.mxu0 0.0
    %7851 = vmatprep.subr.mxu0 0.0
    %7852 = vmatpush1.msra.mxu0 0.0
    %7853 = vmatprep.subr.mxu0 0.0
    %7854 = vmatpush1.msra.mxu0 0.0
    %7855 = vmatprep.subr.mxu0 0.0
    %7856 = vmatpush1.msra.mxu0 0.0
    %7857 = vmatprep.subr.mxu0 0.0
    %7858 = vmatpush1.msra.mxu0 0.0
    %7859 = vmatprep.subr.mxu0 0.0
    %7860 = vmatpush1.msra.mxu0 0.0
    %7861 = vmatprep.subr.mxu0 0.0
    %7862 = vmatpush1.msra.mxu0 0.0
    %7863 = vmatprep.mubr.f32.mxu0 0.0
    %7864 = vmatmul.mubr.f32.gmra.mrb[0].mxu0 %v7696
    %v7865 = vpop.f32.mrb[0].mxu0
    %v7866 = vadd.f32 %v7796, %v7865
    %v7867 = vpop.f32.mrb[0].mxu0
    %7868 = vdwg.mxu0
    %v7869 = vld [vmem:[#allocation19] sm:$0xff]
    %v7870 = vld [vmem:[#allocation19 + $0x8] sm:$0xff]
    %v7871 = vld [vmem:[#allocation19 + $0x10] sm:$0xff]
    %v7872 = vld [vmem:[#allocation19 + $0x18] sm:$0xff]
    %v7873 = vld [vmem:[#allocation19 + $0x20] sm:$0xff]
    %v7874 = vld [vmem:[#allocation19 + $0x28] sm:$0xff]
    %v7875 = vld [vmem:[#allocation19 + $0x30] sm:$0xff]
    %v7876 = vld [vmem:[#allocation19 + $0x38] sm:$0xff]
    %v7877 = vld [vmem:[#allocation19 + $0x40] sm:$0xff]
    %v7878 = vld [vmem:[#allocation19 + $0x48] sm:$0xff]
    %v7879 = vld [vmem:[#allocation19 + $0x50] sm:$0xff]
    %v7880 = vld [vmem:[#allocation19 + $0x58] sm:$0xff]
    %v7881 = vld [vmem:[#allocation19 + $0x60] sm:$0xff]
    %v7882 = vld [vmem:[#allocation19 + $0x68] sm:$0xff]
    %v7883 = vld [vmem:[#allocation19 + $0x70] sm:$0xff]
    %v7884 = vld [vmem:[#allocation19 + $0x78] sm:$0xff]
    %7885 = vmatprep.subr.mxu0 0.0
    %7886 = vmatpush1.msra.mxu0 %v7869
    %7887 = vmatprep.subr.mxu0 0.0
    %7888 = vmatpush1.msra.mxu0 %v7870
    %7889 = vmatprep.subr.mxu0 0.0
    %7890 = vmatpush1.msra.mxu0 %v7871
    %7891 = vmatprep.subr.mxu0 0.0
    %7892 = vmatpush1.msra.mxu0 %v7872
    %7893 = vmatprep.subr.mxu0 0.0
    %7894 = vmatpush1.msra.mxu0 %v7873
    %7895 = vmatprep.subr.mxu0 0.0
    %7896 = vmatpush1.msra.mxu0 %v7874
    %7897 = vmatprep.subr.mxu0 0.0
    %7898 = vmatpush1.msra.mxu0 %v7875
    %7899 = vmatprep.subr.mxu0 0.0
    %7900 = vmatpush1.msra.mxu0 %v7876
    %7901 = vmatprep.subr.mxu0 0.0
    %7902 = vmatpush1.msra.mxu0 %v7877
    %7903 = vmatprep.subr.mxu0 0.0
    %7904 = vmatpush1.msra.mxu0 %v7878
    %7905 = vmatprep.subr.mxu0 0.0
    %7906 = vmatpush1.msra.mxu0 %v7879
    %7907 = vmatprep.subr.mxu0 0.0
    %7908 = vmatpush1.msra.mxu0 %v7880
    %7909 = vmatprep.subr.mxu0 0.0
    %7910 = vmatpush1.msra.mxu0 %v7881
    %7911 = vmatprep.subr.mxu0 0.0
    %7912 = vmatpush1.msra.mxu0 %v7882
    %7913 = vmatprep.subr.mxu0 0.0
    %7914 = vmatpush1.msra.mxu0 %v7883
    %7915 = vmatprep.subr.mxu0 0.0
    %7916 = vmatpush1.msra.mxu0 %v7884
    %7917 = vmatprep.subr.mxu0 0.0
    %7918 = vmatpush1.msra.mxu0 0.0
    %7919 = vmatprep.subr.mxu0 0.0
    %7920 = vmatpush1.msra.mxu0 0.0
    %7921 = vmatprep.subr.mxu0 0.0
    %7922 = vmatpush1.msra.mxu0 0.0
    %7923 = vmatprep.subr.mxu0 0.0
    %7924 = vmatpush1.msra.mxu0 0.0
    %7925 = vmatprep.subr.mxu0 0.0
    %7926 = vmatpush1.msra.mxu0 0.0
    %7927 = vmatprep.subr.mxu0 0.0
    %7928 = vmatpush1.msra.mxu0 0.0
    %7929 = vmatprep.subr.mxu0 0.0
    %7930 = vmatpush1.msra.mxu0 0.0
    %7931 = vmatprep.subr.mxu0 0.0
    %7932 = vmatpush1.msra.mxu0 0.0
    %7933 = vmatprep.subr.mxu0 0.0
    %7934 = vmatpush1.msra.mxu0 0.0
    %7935 = vmatprep.subr.mxu0 0.0
    %7936 = vmatpush1.msra.mxu0 0.0
    %7937 = vmatprep.subr.mxu0 0.0
    %7938 = vmatpush1.msra.mxu0 0.0
    %7939 = vmatprep.subr.mxu0 0.0
    %7940 = vmatpush1.msra.mxu0 0.0
    %7941 = vmatprep.subr.mxu0 0.0
    %7942 = vmatpush1.msra.mxu0 0.0
    %7943 = vmatprep.subr.mxu0 0.0
    %7944 = vmatpush1.msra.mxu0 0.0
    %7945 = vmatprep.subr.mxu0 0.0
    %7946 = vmatpush1.msra.mxu0 0.0
    %7947 = vmatprep.subr.mxu0 0.0
    %7948 = vmatpush1.msra.mxu0 0.0
    %7949 = vmatprep.mubr.f32.mxu0 0.0
    %7950 = vmatmul.mubr.f32.gmra.mrb[0].mxu0 %v7695
    %v7951 = vpop.f32.mrb[0].mxu0
    %v7952 = vadd.f32 0.0, %v7951
    %v7953 = vpop.f32.mrb[0].mxu0
    %7954 = vdwg.mxu0
    %v7955 = vadd.f32 %v7866, %v7952
    %v7956 = vld [vmem:[%s18] sm:$0x1]
    %v7958 = vlaneseq
    %v7959 = vshrl.u32 %v7958, 7
    %v7960 = vsub.s32 0, %v7959
    %v7961 = vrot.slane %v7956, %v7960
    %v7963 = vadd.f32 %v7955, %v7961
    %7964 = vst [vmem:[%s19] sm:$0xff] %v7963
    // Predicated region
    $region118: #{_lambda_.1} parent=1 // pred_check
      _
    $region119: #{_lambda_.1} parent=1 // pred_check_branch
      %7966 = sbr.rel (0) target = $region121
    $region120: #{_lambda_.1} parent=1 // pred_region
      _
    $region121: #{_lambda_.1} parent=1 // pred_fallthru
      _
    // Predicated region
    $region122: #{_lambda_.1} parent=1 // pred_check
      _
    $region123: #{_lambda_.1} parent=1 // pred_check_branch
      %7968 = sbr.rel (0) target = $region125
    $region124: #{_lambda_.1} parent=1 // pred_region
      _
    $region125: #{_lambda_.1} parent=1 // pred_fallthru
      _
    %7969 = vsyncpa [#allocation6], 1
    %7970 = vsyncpa [#allocation8], 1
    %7971 = vsyncpa [#allocation11], 1
    %7972 = vsyncpa [#allocation14], 1
    %7973 = vsyncpa [#allocation17], 1
    %7974 = vsyncpa [#allocation20], 1

</llo_original>
